<compile_context>
chip_gen: v7x
topology: tpu7x:2x2x1
jax: 0.10.0
libtpu: 0.0.40
codegen_flags: <defaults>
</compile_context>

<pallas_src>
import math

import jax
import jax.numpy as jnp
from jax.experimental import pallas as pl
from jax.experimental.pallas import tpu as pltpu


def _round_up(x, m):
    return (x + m - 1) // m * m


# ---------------------------------------------------------------------------
# Kernels
# ---------------------------------------------------------------------------
def ffn_direct_kernel(x_ref, w1_ref, b1_ref, w2_ref, b2_ref, o_ref):
    """Weights fully resident (kt == 1). Grid = (row tiles, out-col tiles).

    No reduction axis -> no accumulator scratch: compute h = relu(x@W1 + b1)
    and write o = h@W2 + b2 directly. MXU inputs are bf16 (cast in wrapper),
    accumulation and epilogue are f32.
    """
    h = jnp.dot(x_ref[...], w1_ref[...], preferred_element_type=jnp.float32)
    h = jnp.maximum(h + b1_ref[...], 0.0)                      # f32 epilogue
    out = jnp.dot(h.astype(w2_ref.dtype), w2_ref[...],
                  preferred_element_type=jnp.float32)
    o_ref[...] = (out + b2_ref[...]).astype(o_ref.dtype)


def ffn_acc_kernel(x_ref, w1_ref, b1_ref, w2_ref, b2_ref, o_ref, acc_ref):
    """Streaming weights (kt > 1). Grid = (row tiles, d_ff chunks).

    d_ff is a reduction for the second matmul; partials accumulate in an f32
    VMEM scratch and are finalized (+b2, cast) on the last chunk.
    """
    k = pl.program_id(1)

    @pl.when(k == 0)
    def _init():
        acc_ref[...] = jnp.zeros_like(acc_ref)

    h = jnp.dot(x_ref[...], w1_ref[...], preferred_element_type=jnp.float32)
    h = jnp.maximum(h + b1_ref[...], 0.0)
    acc_ref[...] += jnp.dot(h.astype(w2_ref.dtype), w2_ref[...],
                            preferred_element_type=jnp.float32)

    @pl.when(k == pl.num_programs(1) - 1)
    def _finalize():
        o_ref[...] = (acc_ref[...] + b2_ref[...]).astype(o_ref.dtype)


# ---------------------------------------------------------------------------
# Wrapper
# ---------------------------------------------------------------------------
def _vmem_budget_bytes():
    """Per-generation VMEM budget: ~75% of physical capacity (leaves headroom
    for compiler internal scratch), never more than 100 MiB.
    => ~48 MiB on v7x (64 MiB physical), ~96 MiB on v5e/v6e (128 MiB)."""
    cap = 64 << 20  # conservative default if the query is unavailable
    try:
        info = pltpu.get_tpu_info()
        cap = int(getattr(info, "vmem_capacity_bytes", cap)) or cap
    except Exception:
        pass
    return min((cap * 3) // 4, 100 << 20)


def feed_forward_network(x, w1, b1, w2, b2, *, tm=None, tf=None,
                         compute_dtype=jnp.bfloat16):
    """y = relu(x @ w1 + b1) @ w2 + b2.

    x: (..., d_model); w1: (d_model, d_ff); b1: (d_ff,);
    w2: (d_ff, d_model); b2: (d_model,). Output dtype == x.dtype.
    """
    orig_shape = x.shape
    out_dtype = x.dtype
    d_model, d_ff = w1.shape
    assert w2.shape == (d_ff, d_model)

    # ---- Mixed precision: bf16 MXU inputs, f32 accumulation / epilogue. ----
    if compute_dtype is not None:
        x = x.astype(compute_dtype)
        w1 = w1.astype(compute_dtype)
        w2 = w2.astype(compute_dtype)
    b1 = b1.astype(jnp.float32)
    b2 = b2.astype(jnp.float32)

    x2d = x.reshape(-1, d_model)
    M = x2d.shape[0]

    x_item = x2d.dtype.itemsize
    w_item = w1.dtype.itemsize
    out_item = jnp.dtype(out_dtype).itemsize

    budget = _vmem_budget_bytes()

    # ---- M tile: multiple of 128 (full MXU rows), up to 512; pad M up. ----
    if tm is None:
        tm = min(512, _round_up(max(M, 1), 128))
    M_pad = _round_up(max(M, 1), tm)
    if M_pad != M:
        x2d = jnp.pad(x2d, ((0, M_pad - M), (0, 0)))
    m_tiles = M_pad // tm

    # ---- d_ff tile: pad d_ff to a lane multiple, then pick the largest
    #      128-multiple divisor of the padded d_ff whose working set fits the
    #      per-generation VMEM budget. tf == d_ff_pad => weights resident. ----
    d_ff_pad = _round_up(d_ff, 128)

    def vmem_need(tf_):
        kt_ = d_ff_pad // tf_
        n_wbuf = 1 if kt_ == 1 else 2                      # streamed => double-buffered
        need = n_wbuf * w_item * (d_model * tf_ + tf_ * d_model)   # W1 + W2 chunks
        need += n_wbuf * 4 * tf_ + 4 * d_model                     # b1 chunk + b2 (f32)
        need += 2 * x_item * tm * d_model                          # x tile, 2 buffers
        need += 2 * out_item * tm * d_model                        # out tile, 2 buffers
        need += 4 * tm * d_model                                   # f32 acc / f32 out
        need += 4 * tm * tf_                                       # f32 h intermediate
        return need

    if tf is not None and (tf % 128 != 0 or d_ff_pad % tf != 0):
        tf = None  # invalid user tile -> auto-select a lane-aligned one
    if tf is None:
        candidates = [t for t in range(128, d_ff_pad + 1, 128) if d_ff_pad % t == 0]
        tf = candidates[0]
        for t in reversed(candidates):
            if vmem_need(t) <= budget:
                tf = t
                break
    kt = d_ff_pad // tf

    # Zero-pad d_ff: padded h columns are relu(0 + 0) = 0 and padded W2 rows
    # are 0, so the result is unchanged.
    if d_ff_pad != d_ff:
        pad = d_ff_pad - d_ff
        w1 = jnp.pad(w1, ((0, 0), (0, pad)))
        b1 = jnp.pad(b1, ((0, pad),))
        w2 = jnp.pad(w2, ((0, pad), (0, 0)))

    b1_2d = b1.reshape(1, d_ff_pad)
    b2_2d = b2.reshape(1, d_model)

    vmem_limit = int(min(budget, max(1.5 * vmem_need(tf), 16 << 20)))

    def const_spec(shape):
        # Block index never changes -> fetched once; single-buffer it so only
        # one VMEM copy is allocated.
        return pl.BlockSpec(shape, lambda i, j: (0, 0),
                            pipeline_mode=pl.Buffered(1))

    if kt == 1:
        # ---- Direct path: weights resident, no accumulator. ----
        # Megacore (v7x): if there is only one row tile, split the output
        # d_model axis into two "parallel" tiles so both TensorCores get work.
        if m_tiles == 1 and d_model % 256 == 0:
            tn = d_model // 2
        else:
            tn = d_model
        n_tiles = d_model // tn

        in_specs = [
            pl.BlockSpec((tm, d_model), lambda i, n: (i, 0)),        # x row tile
            const_spec((d_model, d_ff_pad)),                          # W1 (resident)
            const_spec((1, d_ff_pad)),                                # b1
            (pl.BlockSpec((d_ff_pad, tn), lambda i, n: (0, n))
             if n_tiles > 1 else const_spec((d_ff_pad, tn))),         # W2
            (pl.BlockSpec((1, tn), lambda i, n: (0, n))
             if n_tiles > 1 else const_spec((1, tn))),                # b2
        ]
        out_spec = pl.BlockSpec((tm, tn), lambda i, n: (i, n))

        out = pl.pallas_call(
            ffn_direct_kernel,
            out_shape=jax.ShapeDtypeStruct((M_pad, d_model), out_dtype),
            grid=(m_tiles, n_tiles),
            in_specs=in_specs,
            out_specs=out_spec,
            compiler_params=pltpu.CompilerParams(
                dimension_semantics=("parallel", "parallel"),
                vmem_limit_bytes=vmem_limit,
            ),
        )(x2d, w1, b1_2d, w2, b2_2d)
    else:
        # ---- Streaming path: d_ff chunks, f32 accumulator (P3). ----
        # TODO(synk): if profiling shows exposed weight-DMA latency, bump the
        # streamed W1/W2 specs to pipeline_mode=pl.Buffered(3) within budget.
        in_specs = [
            pl.BlockSpec((tm, d_model), lambda i, k: (i, 0)),        # x row tile
            pl.BlockSpec((d_model, tf), lambda i, k: (0, k)),        # W1 chunk
            pl.BlockSpec((1, tf), lambda i, k: (0, k)),              # b1 chunk
            pl.BlockSpec((tf, d_model), lambda i, k: (k, 0)),        # W2 chunk
            const_spec((1, d_model)),                                 # b2
        ]
        out_spec = pl.BlockSpec((tm, d_model), lambda i, k: (i, 0))

        out = pl.pallas_call(
            ffn_acc_kernel,
            out_shape=jax.ShapeDtypeStruct((M_pad, d_model), out_dtype),
            grid=(m_tiles, kt),
            in_specs=in_specs,
            out_specs=out_spec,
            scratch_shapes=[pltpu.VMEM((tm, d_model), jnp.float32)],
            compiler_params=pltpu.CompilerParams(
                dimension_semantics=("parallel", "arbitrary"),
                vmem_limit_bytes=vmem_limit,
            ),
        )(x2d, w1, b1_2d, w2, b2_2d)

    if M_pad != M:
        out = out[:M]
    return out.reshape(orig_shape)


def init_linear_params(key, in_features, out_features, dtype=jnp.float32):
    """torch.nn.Linear default init (uniform +-1/sqrt(in)); weight as (in, out)."""
    kw, kb = jax.random.split(key)
    bound = 1.0 / math.sqrt(in_features)
    w = jax.random.uniform(kw, (in_features, out_features), dtype,
                           minval=-bound, maxval=bound)
    b = jax.random.uniform(kb, (out_features,), dtype,
                           minval=-bound, maxval=bound)
    return w, b


if __name__ == "__main__":
    # Shapes from the module spec: d_model=512, d_ff=2048; small batch/seq.
    batch, seq = 2, 8
    d_model, d_ff = 512, 2048

    key = jax.random.PRNGKey(0)
    kx, k1, k2 = jax.random.split(key, 3)

    x = jax.random.normal(kx, (batch, seq, d_model), dtype=jnp.float32)
    w1, b1 = init_linear_params(k1, d_model, d_ff)
    w2, b2 = init_linear_params(k2, d_ff, d_model)

    y = feed_forward_network(x, w1, b1, w2, b2)
    y = jax.block_until_ready(y)
    assert y.shape == (batch, seq, d_model)

    # (1) Mixed-precision-consistent reference (tight): bf16 MXU inputs with
    #     f32 accumulation -- exactly what the kernel computes.
    xb = x.astype(jnp.bfloat16)
    w1b = w1.astype(jnp.bfloat16)
    w2b = w2.astype(jnp.bfloat16)
    h_mp = jnp.maximum(
        jnp.dot(xb, w1b, preferred_element_type=jnp.float32) + b1, 0.0)
    ref_mp = jnp.dot(h_mp.astype(jnp.bfloat16), w2b,
                     preferred_element_type=jnp.float32) + b2
    assert jnp.allclose(y, ref_mp, atol=5e-3, rtol=5e-3), (
        float(jnp.max(jnp.abs(y - ref_mp))))

    # (2) Full-f32 module reference (loose tolerance covers bf16 rounding of
    #     the MXU inputs -- standard mixed precision).
    hp = jax.lax.Precision.HIGHEST
    ref = jnp.dot(jnp.maximum(jnp.dot(x, w1, precision=hp) + b1, 0.0),
                  w2, precision=hp) + b2
    assert jnp.allclose(y, ref, atol=3e-2, rtol=3e-2), (
        float(jnp.max(jnp.abs(y - ref))))

    print("KERNEL_OK")
</pallas_src>

<mosaic_0001>
module attributes {stable_mosaic.version = 11 : i64} {
  func.func @ffn_direct_kernel(%arg0: i32, %arg1: i32, %arg2: memref<128x512xbf16, #tpu.memory_space<vmem>>, %arg3: memref<512x2048xbf16, #tpu.memory_space<vmem>>, %arg4: memref<1x2048xf32, #tpu.memory_space<vmem>>, %arg5: memref<2048x256xbf16, #tpu.memory_space<vmem>>, %arg6: memref<1x256xf32, #tpu.memory_space<vmem>>, %arg7: memref<128x256xf32, #tpu.memory_space<vmem>>) attributes {dimension_semantics = [#tpu.dimension_semantics<parallel>, #tpu.dimension_semantics<parallel>], iteration_bounds = array<i64: 1, 2>, scalar_prefetch = 0 : i64, scratch_operands = 0 : i64, tpu.core_type = #tpu.core_type<tc>, window_params = [{transform_indices = @transform_0, window_bounds = array<i64: 128, 512>}, {pipeline_mode = #tpu.pipeline_mode<synchronous>, transform_indices = @transform_1, window_bounds = array<i64: 512, 2048>}, {pipeline_mode = #tpu.pipeline_mode<synchronous>, transform_indices = @transform_2, window_bounds = array<i64: 1, 2048>}, {transform_indices = @transform_3, window_bounds = array<i64: 2048, 256>}, {transform_indices = @transform_4, window_bounds = array<i64: 1, 256>}, {transform_indices = @transform_5, window_bounds = array<i64: 128, 256>}]} {
    %c0 = arith.constant 0 : index
    %c0_0 = arith.constant 0 : index
    %0 = vector.load %arg2[%c0, %c0_0] : memref<128x512xbf16, #tpu.memory_space<vmem>>, vector<128x512xbf16>
    %c0_1 = arith.constant 0 : index
    %c0_2 = arith.constant 0 : index
    %1 = vector.load %arg3[%c0_1, %c0_2] : memref<512x2048xbf16, #tpu.memory_space<vmem>>, vector<512x2048xbf16>
    %cst = arith.constant dense<0.000000e+00> : vector<128x2048xf32>
    %2 = tpu.matmul %0, %1, %cst {dimension_numbers = #tpu.dot_dimension_numbers<[1], [0], [0], [1], [0, 0, 1, 1], [], []>} : vector<128x512xbf16>, vector<512x2048xbf16>, vector<128x2048xf32> -> vector<128x2048xf32>
    %c0_3 = arith.constant 0 : index
    %c0_4 = arith.constant 0 : index
    %3 = vector.load %arg4[%c0_3, %c0_4] : memref<1x2048xf32, #tpu.memory_space<vmem>>, vector<1x2048xf32>
    %4 = vector.broadcast %3 : vector<1x2048xf32> to vector<128x2048xf32>
    %5 = arith.addf %2, %4 : vector<128x2048xf32>
    %cst_5 = arith.constant 0.000000e+00 : f32
    %6 = vector.broadcast %cst_5 : f32 to vector<128x2048xf32>
    %7 = arith.maximumf %5, %6 : vector<128x2048xf32>
    %8 = arith.truncf %7 : vector<128x2048xf32> to vector<128x2048xbf16>
    %c0_6 = arith.constant 0 : index
    %c0_7 = arith.constant 0 : index
    %9 = vector.load %arg5[%c0_6, %c0_7] : memref<2048x256xbf16, #tpu.memory_space<vmem>>, vector<2048x256xbf16>
    %cst_8 = arith.constant dense<0.000000e+00> : vector<128x256xf32>
    %10 = tpu.matmul %8, %9, %cst_8 {dimension_numbers = #tpu.dot_dimension_numbers<[1], [0], [0], [1], [0, 0, 1, 1], [], []>} : vector<128x2048xbf16>, vector<2048x256xbf16>, vector<128x256xf32> -> vector<128x256xf32>
    %c0_9 = arith.constant 0 : index
    %c0_10 = arith.constant 0 : index
    %11 = vector.load %arg6[%c0_9, %c0_10] : memref<1x256xf32, #tpu.memory_space<vmem>>, vector<1x256xf32>
    %12 = vector.broadcast %11 : vector<1x256xf32> to vector<128x256xf32>
    %13 = arith.addf %10, %12 : vector<128x256xf32>
    %c0_11 = arith.constant 0 : index
    %c0_12 = arith.constant 0 : index
    %14 = vector.load %arg7[%c0_11, %c0_12] : memref<128x256xf32, #tpu.memory_space<vmem>>, vector<128x256xf32>
    tpu.vector_store %arg7[%c0_11, %c0_12], %13 {strides = array<i32>} : memref<128x256xf32, #tpu.memory_space<vmem>>, vector<128x256xf32>,
    return
  }
  func.func @transform_0(%arg0: i32, %arg1: i32) -> (i32, i32) {
    %c0_i32 = arith.constant 0 : i32
    %c0_i32_0 = arith.constant 0 : i32
    return %arg0, %c0_i32 : i32, i32
  }
  func.func @transform_1(%arg0: i32, %arg1: i32) -> (i32, i32) {
    %c0_i32 = arith.constant 0 : i32
    %c0_i32_0 = arith.constant 0 : i32
    %c0_i32_1 = arith.constant 0 : i32
    return %c0_i32, %c0_i32_0 : i32, i32
  }
  func.func @transform_2(%arg0: i32, %arg1: i32) -> (i32, i32) {
    %c0_i32 = arith.constant 0 : i32
    %c0_i32_0 = arith.constant 0 : i32
    %c0_i32_1 = arith.constant 0 : i32
    return %c0_i32, %c0_i32_0 : i32, i32
  }
  func.func @transform_3(%arg0: i32, %arg1: i32) -> (i32, i32) {
    %c0_i32 = arith.constant 0 : i32
    %c0_i32_0 = arith.constant 0 : i32
    return %c0_i32, %arg1 : i32, i32
  }
  func.func @transform_4(%arg0: i32, %arg1: i32) -> (i32, i32) {
    %c0_i32 = arith.constant 0 : i32
    %c0_i32_0 = arith.constant 0 : i32
    return %c0_i32, %arg1 : i32, i32
  }
  func.func @transform_5(%arg0: i32, %arg1: i32) -> (i32, i32) {
    %c0_i32 = arith.constant 0 : i32
    return %arg0, %arg1 : i32, i32
  }
}

</mosaic_0001>

<llo_original>
// kernel: tpu_custom_call.1
$region0: #{tpu_custom_call.1}
  #allocation0 [shape = 'u32[]', space=smem, size = 0x4, offset = 0x4, fixed_abs, tag = 'smem constant byte address 0x4 - core index']
  #allocation1 [shape = 'u32[144,128]{1,0:T(1,128)}', space=vmem, size = 0x12000, scoped, tag = 'internal scratch']
  %s0 = inlined_call_operand.hbm [shape: bf16[128,512], index: 0, kind: input, shape index: {}]
  %s1 = inlined_call_operand.hbm [shape: bf16[512,2048], index: 1, kind: input, shape index: {}]
  %s2 = inlined_call_operand.hbm [shape: f32[1,2048], index: 2, kind: input, shape index: {}]
  %s3 = inlined_call_operand.hbm [shape: bf16[2048,512], index: 3, kind: input, shape index: {}]
  %s4 = inlined_call_operand.hbm [shape: f32[1,512], index: 4, kind: input, shape index: {}]
  %s5 = inlined_call_operand.hbm [shape: f32[128,512], index: 5, kind: output, shape index: {}]
  %s6 = sld [smem:[#allocation0]]
  $region73: #{tpu_custom_call.1} parent=0
    _
  %s8 = ssub.s32 1, %s6
  %s9 = scalar_select 0, %s8, %s6
  $region1: #{tpu_custom_call.1} parent=0
    #allocation2 [shape = 'u8[131072]{0}', space=vmem, size = 0x20000, scoped, tag = 'input window, operand 0, single buffered']
    #allocation3 [shape = 's32[2]{0}', space=sflag, size = 0x8, scoped, tag = 'scoped memory for tpu_custom_call.1']
    #allocation4 [shape = 's32[2]{0}', space=sflag, size = 0x8, scoped, tag = 'scoped memory for tpu_custom_call.1']
    #allocation5 [shape = 'u8[2097152]{0}', space=vmem, size = 0x200000, scoped, tag = 'input window, operand 1, single buffered']
    #allocation6 [shape = 's32[1]{0}', space=sflag, size = 0x4, scoped, tag = 'scoped memory for tpu_custom_call.1']
    #allocation7 [shape = 'u8[8192]{0}', space=vmem, size = 0x2000, scoped, tag = 'input window, operand 2, single buffered']
    #allocation8 [shape = 'u8[2097152]{0}', space=vmem, size = 0x200000, scoped, tag = 'input window, operand 3']
    #allocation9 [shape = 's32[2]{0}', space=sflag, size = 0x8, scoped, tag = 'scoped memory for tpu_custom_call.1']
    #allocation10 [shape = 'u8[2048]{0}', space=vmem, size = 0x800, scoped, tag = 'input window, operand 4']
    #allocation11 [shape = 'u8[262144]{0}', space=vmem, size = 0x40000, scoped, tag = 'output window, operand 0']
    %10 = vsyncpa [#allocation3], 0
    %11 = vsyncpa [#allocation6], 0
    %12 = vsyncpa [#allocation9], 0
    %s13 = scalar_lea.sflag [#allocation9], 1
    %14 = vsyncpa %s13, 0
    %15 = vsyncpa [#allocation4], 0
    %s16 = scalar_lea.sflag [#allocation4], 1
    %17 = vsyncpa %s16, 0
    loop: start=0, step=1, limit=4
    $region2: #{tpu_custom_call.1} parent=1 // loop_pre_header
      _
    $region3: #{tpu_custom_call.1} parent=1 // loop_header
      %s19 = sphi 0, %s23
      %p20 = scmp.ge.s32.totalorder %s19, 4
      %s26 = sphi 0, %s38
      %s27 = sphi 0, %s34
      %s28 = sphi 0, %s26
      %s29 = sphi 0, %s27
      %s30 = sphi 0, %s28
      %s31 = sphi 0, %s29
      %s41 = sphi 0, %s43
      %s44 = sphi 0, %s41
      %s45 = sphi 0, %s44
      %s61 = sphi 0, %s45
      %s65 = sphi 0, %s65
      %s67 = sphi 0, %s65
      %s68 = sphi 0, %s67
      %s82 = sphi 0, %s68
      %s86 = sphi 0, %s86
      %s88 = sphi 0, %s86
      %s89 = sphi 0, %s88
      %s103 = sphi 0, %s89
      %s109 = sphi 0, %s111
      %s112 = sphi 0, %s109
      %s113 = sphi 0, %s112
      %s129 = sphi 0, %s113
      %s135 = sphi 0, %s137
      %s138 = sphi 0, %s135
      %s139 = sphi 0, %s138
      %s155 = sphi 0, %s139
      %s163 = sphi 0, %s165
      %s166 = sphi 0, %s163
      %s167 = sphi 0, %s166
      %s183 = sphi 0, %s167
    $region4: #{tpu_custom_call.1} parent=1 // loop_header_branch
      %22 = sbr.rel (%p20) target = $region8
    $region5: #{tpu_custom_call.1} parent=1 // loop_body
      %s24 = ssub.s32 %s19, 1
      %s25 = ssub.s32 %s19, 2
      %s32 = sadd.s32 1, %s27
      %p33 = scmp.ge.s32.totalorder %s32, 2
      %s34 = scalar_select %p33, 0, %s32
      %s35 = sadd.s32 1, %s26
      %s36 = scalar_select %p33, %s35, %s26
      %p37 = scmp.ge.s32.totalorder %s36, 1
      %s38 = scalar_select %p37, 0, %s36
      %s39 = ssub.s32 %s26, %s38
      %p40 = scmp.eq.s32.totalorder %s39, 0
      %s42 = sadd.s32 %s41, 1
      %s43 = scalar_select %p40, %s41, %s42
      %p46 = pneg %p40
      %p47 = scmp.eq.s32.totalorder %s19, 1
      %p48 = por %p46, %p47
      %p49 = scmp.ne.s32.totalorder %s41, %s44
      %p50 = scmp.eq.s32.totalorder %s19, 0
      %p51 = por %p49, %p50
      %p52 = scmp.ne.s32.totalorder %s41, %s44
      %p53 = scmp.eq.s32.totalorder %s24, 1
      %p54 = por %p52, %p53
      %p55 = scmp.ne.s32.totalorder %s44, %s45
      %p56 = scmp.eq.s32.totalorder %s24, 0
      %p57 = por %p55, %p56
      %p58 = scmp.ne.s32.totalorder %s44, %s45
      %p59 = scmp.eq.s32.totalorder %s25, 1
      %p60 = por %p58, %p59
      %p62 = scmp.ne.s32.totalorder %s45, %s61
      %p63 = scmp.eq.s32.totalorder %s25, 0
      %p64 = por %p62, %p63
      %s66 = sadd.s32 %s65, 1
      %p69 = scmp.eq.s32.totalorder %s19, 1
      %p70 = scmp.ne.s32.totalorder %s65, %s67
      %p71 = scmp.eq.s32.totalorder %s19, 0
      %p72 = por %p70, %p71
      %p73 = scmp.ne.s32.totalorder %s65, %s67
      %p74 = scmp.eq.s32.totalorder %s24, 1
      %p75 = por %p73, %p74
      %p76 = scmp.ne.s32.totalorder %s67, %s68
      %p77 = scmp.eq.s32.totalorder %s24, 0
      %p78 = por %p76, %p77
      %p79 = scmp.ne.s32.totalorder %s67, %s68
      %p80 = scmp.eq.s32.totalorder %s25, 1
      %p81 = por %p79, %p80
      %p83 = scmp.ne.s32.totalorder %s68, %s82
      %p84 = scmp.eq.s32.totalorder %s25, 0
      %p85 = por %p83, %p84
      %s87 = sadd.s32 %s86, 1
      %p90 = scmp.eq.s32.totalorder %s19, 1
      %p91 = scmp.ne.s32.totalorder %s86, %s88
      %p92 = scmp.eq.s32.totalorder %s19, 0
      %p93 = por %p91, %p92
      %p94 = scmp.ne.s32.totalorder %s86, %s88
      %p95 = scmp.eq.s32.totalorder %s24, 1
      %p96 = por %p94, %p95
      %p97 = scmp.ne.s32.totalorder %s88, %s89
      %p98 = scmp.eq.s32.totalorder %s24, 0
      %p99 = por %p97, %p98
      %p100 = scmp.ne.s32.totalorder %s88, %s89
      %p101 = scmp.eq.s32.totalorder %s25, 1
      %p102 = por %p100, %p101
      %p104 = scmp.ne.s32.totalorder %s89, %s103
      %p105 = scmp.eq.s32.totalorder %s25, 0
      %p106 = por %p104, %p105
      %s107 = ssub.s32 %s27, %s34
      %p108 = scmp.eq.s32.totalorder %s107, 0
      %s110 = sadd.s32 %s109, 1
      %s111 = scalar_select %p108, %s109, %s110
      %p114 = pneg %p108
      %p115 = scmp.eq.s32.totalorder %s19, 1
      %p116 = por %p114, %p115
      %p117 = scmp.ne.s32.totalorder %s109, %s112
      %p118 = scmp.eq.s32.totalorder %s19, 0
      %p119 = por %p117, %p118
      %p120 = scmp.ne.s32.totalorder %s109, %s112
      %p121 = scmp.eq.s32.totalorder %s24, 1
      %p122 = por %p120, %p121
      %p123 = scmp.ne.s32.totalorder %s112, %s113
      %p124 = scmp.eq.s32.totalorder %s24, 0
      %p125 = por %p123, %p124
      %p126 = scmp.ne.s32.totalorder %s112, %s113
      %p127 = scmp.eq.s32.totalorder %s25, 1
      %p128 = por %p126, %p127
      %p130 = scmp.ne.s32.totalorder %s113, %s129
      %p131 = scmp.eq.s32.totalorder %s25, 0
      %p132 = por %p130, %p131
      %s133 = ssub.s32 %s27, %s34
      %p134 = scmp.eq.s32.totalorder %s133, 0
      %s136 = sadd.s32 %s135, 1
      %s137 = scalar_select %p134, %s135, %s136
      %p140 = pneg %p134
      %p141 = scmp.eq.s32.totalorder %s19, 1
      %p142 = por %p140, %p141
      %p143 = scmp.ne.s32.totalorder %s135, %s138
      %p144 = scmp.eq.s32.totalorder %s19, 0
      %p145 = por %p143, %p144
      %p146 = scmp.ne.s32.totalorder %s135, %s138
      %p147 = scmp.eq.s32.totalorder %s24, 1
      %p148 = por %p146, %p147
      %p149 = scmp.ne.s32.totalorder %s138, %s139
      %p150 = scmp.eq.s32.totalorder %s24, 0
      %p151 = por %p149, %p150
      %p152 = scmp.ne.s32.totalorder %s138, %s139
      %p153 = scmp.eq.s32.totalorder %s25, 1
      %p154 = por %p152, %p153
      %p156 = scmp.ne.s32.totalorder %s139, %s155
      %p157 = scmp.eq.s32.totalorder %s25, 0
      %p158 = por %p156, %p157
      %s159 = ssub.s32 %s26, %s38
      %s160 = ssub.s32 %s27, %s34
      %s161 = sor.u32 %s159, %s160
      %p162 = scmp.eq.s32.totalorder %s161, 0
      %s164 = sadd.s32 %s163, 1
      %s165 = scalar_select %p162, %s163, %s164
      %p168 = pneg %p162
      %p169 = scmp.eq.s32.totalorder %s19, 1
      %p170 = por %p168, %p169
      %p171 = scmp.ne.s32.totalorder %s163, %s166
      %p172 = scmp.eq.s32.totalorder %s19, 0
      %p173 = por %p171, %p172
      %p174 = scmp.ne.s32.totalorder %s163, %s166
      %p175 = scmp.eq.s32.totalorder %s24, 1
      %p176 = por %p174, %p175
      %p177 = scmp.ne.s32.totalorder %s166, %s167
      %p178 = scmp.eq.s32.totalorder %s24, 0
      %p179 = por %p177, %p178
      %p180 = scmp.ne.s32.totalorder %s166, %s167
      %p181 = scmp.eq.s32.totalorder %s25, 1
      %p182 = por %p180, %p181
      %p184 = scmp.ne.s32.totalorder %s167, %s183
      %p185 = scmp.eq.s32.totalorder %s25, 0
      %p186 = por %p184, %p185
      %p187 = scmp.le.s32.totalorder 1, %s19
      %p188 = scmp.lt.s32.totalorder %s19, 3
      %p189 = pnand %p187, %p188
      %p190 = pneg %p189
      // Predicated region
      $region9: #{tpu_custom_call.1} parent=5 // pred_check
        _
      $region10: #{tpu_custom_call.1} parent=5 // pred_check_branch
        %192 = sbr.rel (%p189) target = $region12
      $region11: #{tpu_custom_call.1} parent=5 // pred_region
        %s193 = ssub.s32 %s19, 1
        // Predicated region
        $region13: #{tpu_custom_call.1} parent=11 // pred_check
          %p194 = pneg %p57
        $region14: #{tpu_custom_call.1} parent=11 // pred_check_branch
          %196 = sbr.rel (%p194) target = $region16
        $region15: #{tpu_custom_call.1} parent=11 // pred_region
          %s197 = smul.u32 16, %s28
          %s199 = ssub.s32 4096, 4096
          %200 = vsyncadd [#allocation3], %s199
          %s201 = smul.addr %s197, 4
          %s202 = smul.addr %s201, 64
          %s203 = scalar_lea.hbm %s0, %s202
          %s204 = sshll.u32 [#allocation2], 4
          %s205 = int_to_ptr.vmem [resolvable:$true] %s204
          %210 = dma.hbm_to_vmem [thread:$0]  %s203, 4096, %s205, [#allocation3], 256, 256, 16
        $region16: #{tpu_custom_call.1} parent=11 // pred_fallthru
          _
        // Predicated region
        $region17: #{tpu_custom_call.1} parent=11 // pred_check
          %p211 = pneg %p78
        $region18: #{tpu_custom_call.1} parent=11 // pred_check_branch
          %213 = sbr.rel (%p211) target = $region20
        $region19: #{tpu_custom_call.1} parent=11 // pred_region
          %s215 = ssub.s32 65536, 65536
          %216 = vsyncadd [#allocation6], %s215
          %s217 = sshll.u32 [#allocation5], 4
          %s218 = int_to_ptr.vmem [resolvable:$true] %s217
          %223 = dma.hbm_to_vmem [thread:$0]  %s1, 65536, %s218, [#allocation6], 1024, 1024, 64
        $region20: #{tpu_custom_call.1} parent=11 // pred_fallthru
          _
        // Predicated region
        $region21: #{tpu_custom_call.1} parent=11 // pred_check
          %p224 = pneg %p99
        $region22: #{tpu_custom_call.1} parent=11 // pred_check_branch
          %226 = sbr.rel (%p224) target = $region24
        $region23: #{tpu_custom_call.1} parent=11 // pred_region
          %s228 = ssub.s32 256, 256
          %229 = vsyncadd [#allocation6], %s228
          %s231 = sshll.u32 [#allocation7], 4
          %s232 = int_to_ptr.vmem [resolvable:$true] %s231
          %234 = dma.hbm_to_vmem [thread:$0]  %s2, 256, %s232, [#allocation6]
        $region24: #{tpu_custom_call.1} parent=11 // pred_fallthru
          _
      $region12: #{tpu_custom_call.1} parent=5 // pred_fallthru
        _
      %p235 = scmp.lt.s32.totalorder %s19, 2
      // Predicated region
      $region25: #{tpu_custom_call.1} parent=5 // pred_check
        %p236 = pneg %p235
      $region26: #{tpu_custom_call.1} parent=5 // pred_check_branch
        %238 = sbr.rel (%p236) target = $region28
      $region27: #{tpu_custom_call.1} parent=5 // pred_region
        // Predicated region
        $region29: #{tpu_custom_call.1} parent=27 // pred_check
          %p239 = pneg %p119
        $region30: #{tpu_custom_call.1} parent=27 // pred_check_branch
          %241 = sbr.rel (%p239) target = $region32
        $region31: #{tpu_custom_call.1} parent=27 // pred_region
          %s242 = sand.u32 %s19, 1
          %s243 = scalar_lea.sflag [#allocation9], %s242
          %s244 = sand.u32 %s109, 1
          %s245 = smul.addr %s244, 2048
          %s246 = scalar_lea.vmem [#allocation8], %s245
          %s247 = smul.u32 2, %s27
          %s249 = ssub.s32 32768, 32768
          %250 = vsyncadd %s243, %s249
          %s251 = smul.addr %s247, 64
          %s252 = scalar_lea.hbm %s3, %s251
          %s253 = sshll.u32 %s246, 4
          %s254 = int_to_ptr.vmem [resolvable:$true] %s253
          %259 = dma.hbm_to_vmem [thread:$0]  %s252, 32768, %s254, %s243, 256, 128, 8
        $region32: #{tpu_custom_call.1} parent=27 // pred_fallthru
          _
        // Predicated region
        $region33: #{tpu_custom_call.1} parent=27 // pred_check
          %p260 = pneg %p145
        $region34: #{tpu_custom_call.1} parent=27 // pred_check_branch
          %262 = sbr.rel (%p260) target = $region36
        $region35: #{tpu_custom_call.1} parent=27 // pred_region
          %s263 = sand.u32 %s19, 1
          %s264 = scalar_lea.sflag [#allocation9], %s263
          %s265 = sand.u32 %s135, 1
          %s266 = smul.addr %s265, 2
          %s267 = scalar_lea.vmem [#allocation10], %s266
          %s268 = smul.u32 2, %s27
          %s270 = ssub.s32 32, 32
          %271 = vsyncadd %s264, %s270
          %s272 = smul.addr %s268, 16
          %s273 = scalar_lea.hbm %s4, %s272
          %s275 = sshll.u32 %s267, 4
          %s276 = int_to_ptr.vmem [resolvable:$true] %s275
          %278 = dma.hbm_to_vmem [thread:$0]  %s273, 32, %s276, %s264
        $region36: #{tpu_custom_call.1} parent=27 // pred_fallthru
          _
      $region28: #{tpu_custom_call.1} parent=5 // pred_fallthru
        _
      %p279 = scmp.le.s32.totalorder 1, %s19
      %p280 = scmp.lt.s32.totalorder %s19, 3
      %p281 = pnand %p279, %p280
      %p282 = pneg %p281
      // Predicated region
      $region37: #{tpu_custom_call.1} parent=5 // pred_check
        _
      $region38: #{tpu_custom_call.1} parent=5 // pred_check_branch
        %284 = sbr.rel (%p281) target = $region40
      $region39: #{tpu_custom_call.1} parent=5 // pred_region
        %s285 = ssub.s32 %s19, 1
        // Predicated region
        $region41: #{tpu_custom_call.1} parent=39 // pred_check
          %p286 = pneg %p57
        $region42: #{tpu_custom_call.1} parent=39 // pred_check_branch
          %288 = sbr.rel (%p286) target = $region44
        $region43: #{tpu_custom_call.1} parent=39 // pred_region
          %289 = dma.done [#allocation3], 4096
        $region44: #{tpu_custom_call.1} parent=39 // pred_fallthru
          _
        // Predicated region
        $region45: #{tpu_custom_call.1} parent=39 // pred_check
          %p290 = pneg %p78
        $region46: #{tpu_custom_call.1} parent=39 // pred_check_branch
          %292 = sbr.rel (%p290) target = $region48
        $region47: #{tpu_custom_call.1} parent=39 // pred_region
          %293 = dma.done [#allocation6], 65536
        $region48: #{tpu_custom_call.1} parent=39 // pred_fallthru
          _
        // Predicated region
        $region49: #{tpu_custom_call.1} parent=39 // pred_check
          %p294 = pneg %p99
        $region50: #{tpu_custom_call.1} parent=39 // pred_check_branch
          %296 = sbr.rel (%p294) target = $region52
        $region51: #{tpu_custom_call.1} parent=39 // pred_region
          %297 = dma.done [#allocation6], 256
        $region52: #{tpu_custom_call.1} parent=39 // pred_fallthru
          _
        %s298 = sand.u32 %s24, 1
        %s299 = scalar_lea.sflag [#allocation9], %s298
        %s300 = sand.u32 %s112, 1
        %s301 = smul.addr %s300, 2048
        %s302 = scalar_lea.vmem [#allocation8], %s301
        // Predicated region
        $region53: #{tpu_custom_call.1} parent=39 // pred_check
          %p303 = pneg %p125
        $region54: #{tpu_custom_call.1} parent=39 // pred_check_branch
          %305 = sbr.rel (%p303) target = $region56
        $region55: #{tpu_custom_call.1} parent=39 // pred_region
          %306 = dma.done %s299, 32768
        $region56: #{tpu_custom_call.1} parent=39 // pred_fallthru
          _
        %s307 = sand.u32 %s24, 1
        %s308 = scalar_lea.sflag [#allocation9], %s307
        %s309 = sand.u32 %s138, 1
        %s310 = smul.addr %s309, 2
        %s311 = scalar_lea.vmem [#allocation10], %s310
        // Predicated region
        $region57: #{tpu_custom_call.1} parent=39 // pred_check
          %p312 = pneg %p151
        $region58: #{tpu_custom_call.1} parent=39 // pred_check_branch
          %314 = sbr.rel (%p312) target = $region60
        $region59: #{tpu_custom_call.1} parent=39 // pred_region
          %315 = dma.done %s308, 32
        $region60: #{tpu_custom_call.1} parent=39 // pred_fallthru
          _
        %p316 = pneg %p57
        %p317 = pneg %p54
        %p318 = pneg %p78
        %p319 = pneg %p75
        %p320 = pneg %p99
        %p321 = pneg %p96
        %s322 = sand.u32 %s24, 1
        %s323 = scalar_lea.sflag [#allocation9], %s322
        %s324 = sand.u32 %s112, 1
        %s325 = smul.addr %s324, 2048
        %s326 = scalar_lea.vmem [#allocation8], %s325
        %p327 = pneg %p125
        %p328 = pneg %p122
        %s329 = sand.u32 %s24, 1
        %s330 = scalar_lea.sflag [#allocation9], %s329
        %s331 = sand.u32 %s138, 1
        %s332 = smul.addr %s331, 2
        %s333 = scalar_lea.vmem [#allocation10], %s332
        %p334 = pneg %p151
        %p335 = pneg %p148
        %p336 = pneg %p179
        %p337 = pneg %p176
        %s338 = sand.u32 %s166, 1
        %s339 = scalar_lea.sflag [#allocation4], %s338
        %s340 = sand.u32 %s166, 1
        %s341 = smul.addr %s340, 256
        %s342 = scalar_lea.vmem [#allocation11], %s341
        %s343 = smul.u32 16, %s28
        %s344 = smul.u32 2, %s29
        %s345 = smul.u32 2, %s29
        %s346 = smul.u32 16, %s28
        %s347 = smul.u32 2, %s29
        %v348 = vld [vmem:[#allocation2] sm:$0xff]
        %v349 = vld [vmem:[#allocation2 + $0x8] sm:$0xff]
        %v350 = vld [vmem:[#allocation2 + $0x10] sm:$0xff]
        %v351 = vld [vmem:[#allocation2 + $0x18] sm:$0xff]
        %v352 = vld [vmem:[#allocation2 + $0x20] sm:$0xff]
        %v353 = vld [vmem:[#allocation2 + $0x28] sm:$0xff]
        %v354 = vld [vmem:[#allocation2 + $0x30] sm:$0xff]
        %v355 = vld [vmem:[#allocation2 + $0x38] sm:$0xff]
        %v356 = vld [vmem:[#allocation2 + $0x40] sm:$0xff]
        %v357 = vld [vmem:[#allocation2 + $0x48] sm:$0xff]
        %v358 = vld [vmem:[#allocation2 + $0x50] sm:$0xff]
        %v359 = vld [vmem:[#allocation2 + $0x58] sm:$0xff]
        %v360 = vld [vmem:[#allocation2 + $0x60] sm:$0xff]
        %v361 = vld [vmem:[#allocation2 + $0x68] sm:$0xff]
        %v362 = vld [vmem:[#allocation2 + $0x70] sm:$0xff]
        %v363 = vld [vmem:[#allocation2 + $0x78] sm:$0xff]
        %v364 = vld [vmem:[#allocation2 + $0x80] sm:$0xff]
        %v365 = vld [vmem:[#allocation2 + $0x88] sm:$0xff]
        %v366 = vld [vmem:[#allocation2 + $0x90] sm:$0xff]
        %v367 = vld [vmem:[#allocation2 + $0x98] sm:$0xff]
        %v368 = vld [vmem:[#allocation2 + $0xa0] sm:$0xff]
        %v369 = vld [vmem:[#allocation2 + $0xa8] sm:$0xff]
        %v370 = vld [vmem:[#allocation2 + $0xb0] sm:$0xff]
        %v371 = vld [vmem:[#allocation2 + $0xb8] sm:$0xff]
        %v372 = vld [vmem:[#allocation2 + $0xc0] sm:$0xff]
        %v373 = vld [vmem:[#allocation2 + $0xc8] sm:$0xff]
        %v374 = vld [vmem:[#allocation2 + $0xd0] sm:$0xff]
        %v375 = vld [vmem:[#allocation2 + $0xd8] sm:$0xff]
        %v376 = vld [vmem:[#allocation2 + $0xe0] sm:$0xff]
        %v377 = vld [vmem:[#allocation2 + $0xe8] sm:$0xff]
        %v378 = vld [vmem:[#allocation2 + $0xf0] sm:$0xff]
        %v379 = vld [vmem:[#allocation2 + $0xf8] sm:$0xff]
        %v380 = vld [vmem:[#allocation5] sm:$0xff]
        %v381 = vld [vmem:[#allocation5 + $0x8] sm:$0xff]
        %v382 = vld [vmem:[#allocation5 + $0x10] sm:$0xff]
        %v383 = vld [vmem:[#allocation5 + $0x18] sm:$0xff]
        %v384 = vld [vmem:[#allocation5 + $0x20] sm:$0xff]
        %v385 = vld [vmem:[#allocation5 + $0x28] sm:$0xff]
        %v386 = vld [vmem:[#allocation5 + $0x30] sm:$0xff]
        %v387 = vld [vmem:[#allocation5 + $0x38] sm:$0xff]
        %v388 = vld [vmem:[#allocation5 + $0x40] sm:$0xff]
        %v389 = vld [vmem:[#allocation5 + $0x48] sm:$0xff]
        %v390 = vld [vmem:[#allocation5 + $0x50] sm:$0xff]
        %v391 = vld [vmem:[#allocation5 + $0x58] sm:$0xff]
        %v392 = vld [vmem:[#allocation5 + $0x60] sm:$0xff]
        %v393 = vld [vmem:[#allocation5 + $0x68] sm:$0xff]
        %v394 = vld [vmem:[#allocation5 + $0x70] sm:$0xff]
        %v395 = vld [vmem:[#allocation5 + $0x78] sm:$0xff]
        %v396 = vld [vmem:[#allocation5 + $0x80] sm:$0xff]
        %v397 = vld [vmem:[#allocation5 + $0x88] sm:$0xff]
        %v398 = vld [vmem:[#allocation5 + $0x90] sm:$0xff]
        %v399 = vld [vmem:[#allocation5 + $0x98] sm:$0xff]
        %v400 = vld [vmem:[#allocation5 + $0xa0] sm:$0xff]
        %v401 = vld [vmem:[#allocation5 + $0xa8] sm:$0xff]
        %v402 = vld [vmem:[#allocation5 + $0xb0] sm:$0xff]
        %v403 = vld [vmem:[#allocation5 + $0xb8] sm:$0xff]
        %v404 = vld [vmem:[#allocation5 + $0xc0] sm:$0xff]
        %v405 = vld [vmem:[#allocation5 + $0xc8] sm:$0xff]
        %v406 = vld [vmem:[#allocation5 + $0xd0] sm:$0xff]
        %v407 = vld [vmem:[#allocation5 + $0xd8] sm:$0xff]
        %v408 = vld [vmem:[#allocation5 + $0xe0] sm:$0xff]
        %v409 = vld [vmem:[#allocation5 + $0xe8] sm:$0xff]
        %v410 = vld [vmem:[#allocation5 + $0xf0] sm:$0xff]
        %v411 = vld [vmem:[#allocation5 + $0xf8] sm:$0xff]
        %v412 = vld [vmem:[#allocation5 + $0x100] sm:$0xff]
        %v413 = vld [vmem:[#allocation5 + $0x108] sm:$0xff]
        %v414 = vld [vmem:[#allocation5 + $0x110] sm:$0xff]
        %v415 = vld [vmem:[#allocation5 + $0x118] sm:$0xff]
        %v416 = vld [vmem:[#allocation5 + $0x120] sm:$0xff]
        %v417 = vld [vmem:[#allocation5 + $0x128] sm:$0xff]
        %v418 = vld [vmem:[#allocation5 + $0x130] sm:$0xff]
        %v419 = vld [vmem:[#allocation5 + $0x138] sm:$0xff]
        %v420 = vld [vmem:[#allocation5 + $0x140] sm:$0xff]
        %v421 = vld [vmem:[#allocation5 + $0x148] sm:$0xff]
        %v422 = vld [vmem:[#allocation5 + $0x150] sm:$0xff]
        %v423 = vld [vmem:[#allocation5 + $0x158] sm:$0xff]
        %v424 = vld [vmem:[#allocation5 + $0x160] sm:$0xff]
        %v425 = vld [vmem:[#allocation5 + $0x168] sm:$0xff]
        %v426 = vld [vmem:[#allocation5 + $0x170] sm:$0xff]
        %v427 = vld [vmem:[#allocation5 + $0x178] sm:$0xff]
        %v428 = vld [vmem:[#allocation5 + $0x180] sm:$0xff]
        %v429 = vld [vmem:[#allocation5 + $0x188] sm:$0xff]
        %v430 = vld [vmem:[#allocation5 + $0x190] sm:$0xff]
        %v431 = vld [vmem:[#allocation5 + $0x198] sm:$0xff]
        %v432 = vld [vmem:[#allocation5 + $0x1a0] sm:$0xff]
        %v433 = vld [vmem:[#allocation5 + $0x1a8] sm:$0xff]
        %v434 = vld [vmem:[#allocation5 + $0x1b0] sm:$0xff]
        %v435 = vld [vmem:[#allocation5 + $0x1b8] sm:$0xff]
        %v436 = vld [vmem:[#allocation5 + $0x1c0] sm:$0xff]
        %v437 = vld [vmem:[#allocation5 + $0x1c8] sm:$0xff]
        %v438 = vld [vmem:[#allocation5 + $0x1d0] sm:$0xff]
        %v439 = vld [vmem:[#allocation5 + $0x1d8] sm:$0xff]
        %v440 = vld [vmem:[#allocation5 + $0x1e0] sm:$0xff]
        %v441 = vld [vmem:[#allocation5 + $0x1e8] sm:$0xff]
        %v442 = vld [vmem:[#allocation5 + $0x1f0] sm:$0xff]
        %v443 = vld [vmem:[#allocation5 + $0x1f8] sm:$0xff]
        %v444 = vld [vmem:[#allocation5 + $0x200] sm:$0xff]
        %v445 = vld [vmem:[#allocation5 + $0x208] sm:$0xff]
        %v446 = vld [vmem:[#allocation5 + $0x210] sm:$0xff]
        %v447 = vld [vmem:[#allocation5 + $0x218] sm:$0xff]
        %v448 = vld [vmem:[#allocation5 + $0x220] sm:$0xff]
        %v449 = vld [vmem:[#allocation5 + $0x228] sm:$0xff]
        %v450 = vld [vmem:[#allocation5 + $0x230] sm:$0xff]
        %v451 = vld [vmem:[#allocation5 + $0x238] sm:$0xff]
        %v452 = vld [vmem:[#allocation5 + $0x240] sm:$0xff]
        %v453 = vld [vmem:[#allocation5 + $0x248] sm:$0xff]
        %v454 = vld [vmem:[#allocation5 + $0x250] sm:$0xff]
        %v455 = vld [vmem:[#allocation5 + $0x258] sm:$0xff]
        %v456 = vld [vmem:[#allocation5 + $0x260] sm:$0xff]
        %v457 = vld [vmem:[#allocation5 + $0x268] sm:$0xff]
        %v458 = vld [vmem:[#allocation5 + $0x270] sm:$0xff]
        %v459 = vld [vmem:[#allocation5 + $0x278] sm:$0xff]
        %v460 = vld [vmem:[#allocation5 + $0x280] sm:$0xff]
        %v461 = vld [vmem:[#allocation5 + $0x288] sm:$0xff]
        %v462 = vld [vmem:[#allocation5 + $0x290] sm:$0xff]
        %v463 = vld [vmem:[#allocation5 + $0x298] sm:$0xff]
        %v464 = vld [vmem:[#allocation5 + $0x2a0] sm:$0xff]
        %v465 = vld [vmem:[#allocation5 + $0x2a8] sm:$0xff]
        %v466 = vld [vmem:[#allocation5 + $0x2b0] sm:$0xff]
        %v467 = vld [vmem:[#allocation5 + $0x2b8] sm:$0xff]
        %v468 = vld [vmem:[#allocation5 + $0x2c0] sm:$0xff]
        %v469 = vld [vmem:[#allocation5 + $0x2c8] sm:$0xff]
        %v470 = vld [vmem:[#allocation5 + $0x2d0] sm:$0xff]
        %v471 = vld [vmem:[#allocation5 + $0x2d8] sm:$0xff]
        %v472 = vld [vmem:[#allocation5 + $0x2e0] sm:$0xff]
        %v473 = vld [vmem:[#allocation5 + $0x2e8] sm:$0xff]
        %v474 = vld [vmem:[#allocation5 + $0x2f0] sm:$0xff]
        %v475 = vld [vmem:[#allocation5 + $0x2f8] sm:$0xff]
        %v476 = vld [vmem:[#allocation5 + $0x300] sm:$0xff]
        %v477 = vld [vmem:[#allocation5 + $0x308] sm:$0xff]
        %v478 = vld [vmem:[#allocation5 + $0x310] sm:$0xff]
        %v479 = vld [vmem:[#allocation5 + $0x318] sm:$0xff]
        %v480 = vld [vmem:[#allocation5 + $0x320] sm:$0xff]
        %v481 = vld [vmem:[#allocation5 + $0x328] sm:$0xff]
        %v482 = vld [vmem:[#allocation5 + $0x330] sm:$0xff]
        %v483 = vld [vmem:[#allocation5 + $0x338] sm:$0xff]
        %v484 = vld [vmem:[#allocation5 + $0x340] sm:$0xff]
        %v485 = vld [vmem:[#allocation5 + $0x348] sm:$0xff]
        %v486 = vld [vmem:[#allocation5 + $0x350] sm:$0xff]
        %v487 = vld [vmem:[#allocation5 + $0x358] sm:$0xff]
        %v488 = vld [vmem:[#allocation5 + $0x360] sm:$0xff]
        %v489 = vld [vmem:[#allocation5 + $0x368] sm:$0xff]
        %v490 = vld [vmem:[#allocation5 + $0x370] sm:$0xff]
        %v491 = vld [vmem:[#allocation5 + $0x378] sm:$0xff]
        %v492 = vld [vmem:[#allocation5 + $0x380] sm:$0xff]
        %v493 = vld [vmem:[#allocation5 + $0x388] sm:$0xff]
        %v494 = vld [vmem:[#allocation5 + $0x390] sm:$0xff]
        %v495 = vld [vmem:[#allocation5 + $0x398] sm:$0xff]
        %v496 = vld [vmem:[#allocation5 + $0x3a0] sm:$0xff]
        %v497 = vld [vmem:[#allocation5 + $0x3a8] sm:$0xff]
        %v498 = vld [vmem:[#allocation5 + $0x3b0] sm:$0xff]
        %v499 = vld [vmem:[#allocation5 + $0x3b8] sm:$0xff]
        %v500 = vld [vmem:[#allocation5 + $0x3c0] sm:$0xff]
        %v501 = vld [vmem:[#allocation5 + $0x3c8] sm:$0xff]
        %v502 = vld [vmem:[#allocation5 + $0x3d0] sm:$0xff]
        %v503 = vld [vmem:[#allocation5 + $0x3d8] sm:$0xff]
        %v504 = vld [vmem:[#allocation5 + $0x3e0] sm:$0xff]
        %v505 = vld [vmem:[#allocation5 + $0x3e8] sm:$0xff]
        %v506 = vld [vmem:[#allocation5 + $0x3f0] sm:$0xff]
        %v507 = vld [vmem:[#allocation5 + $0x3f8] sm:$0xff]
        %v508 = vld [vmem:[#allocation5 + $0x400] sm:$0xff]
        %v509 = vld [vmem:[#allocation5 + $0x408] sm:$0xff]
        %v510 = vld [vmem:[#allocation5 + $0x410] sm:$0xff]
        %v511 = vld [vmem:[#allocation5 + $0x418] sm:$0xff]
        %v512 = vld [vmem:[#allocation5 + $0x420] sm:$0xff]
        %v513 = vld [vmem:[#allocation5 + $0x428] sm:$0xff]
        %v514 = vld [vmem:[#allocation5 + $0x430] sm:$0xff]
        %v515 = vld [vmem:[#allocation5 + $0x438] sm:$0xff]
        %v516 = vld [vmem:[#allocation5 + $0x440] sm:$0xff]
        %v517 = vld [vmem:[#allocation5 + $0x448] sm:$0xff]
        %v518 = vld [vmem:[#allocation5 + $0x450] sm:$0xff]
        %v519 = vld [vmem:[#allocation5 + $0x458] sm:$0xff]
        %v520 = vld [vmem:[#allocation5 + $0x460] sm:$0xff]
        %v521 = vld [vmem:[#allocation5 + $0x468] sm:$0xff]
        %v522 = vld [vmem:[#allocation5 + $0x470] sm:$0xff]
        %v523 = vld [vmem:[#allocation5 + $0x478] sm:$0xff]
        %v524 = vld [vmem:[#allocation5 + $0x480] sm:$0xff]
        %v525 = vld [vmem:[#allocation5 + $0x488] sm:$0xff]
        %v526 = vld [vmem:[#allocation5 + $0x490] sm:$0xff]
        %v527 = vld [vmem:[#allocation5 + $0x498] sm:$0xff]
        %v528 = vld [vmem:[#allocation5 + $0x4a0] sm:$0xff]
        %v529 = vld [vmem:[#allocation5 + $0x4a8] sm:$0xff]
        %v530 = vld [vmem:[#allocation5 + $0x4b0] sm:$0xff]
        %v531 = vld [vmem:[#allocation5 + $0x4b8] sm:$0xff]
        %v532 = vld [vmem:[#allocation5 + $0x4c0] sm:$0xff]
        %v533 = vld [vmem:[#allocation5 + $0x4c8] sm:$0xff]
        %v534 = vld [vmem:[#allocation5 + $0x4d0] sm:$0xff]
        %v535 = vld [vmem:[#allocation5 + $0x4d8] sm:$0xff]
        %v536 = vld [vmem:[#allocation5 + $0x4e0] sm:$0xff]
        %v537 = vld [vmem:[#allocation5 + $0x4e8] sm:$0xff]
        %v538 = vld [vmem:[#allocation5 + $0x4f0] sm:$0xff]
        %v539 = vld [vmem:[#allocation5 + $0x4f8] sm:$0xff]
        %v540 = vld [vmem:[#allocation5 + $0x500] sm:$0xff]
        %v541 = vld [vmem:[#allocation5 + $0x508] sm:$0xff]
        %v542 = vld [vmem:[#allocation5 + $0x510] sm:$0xff]
        %v543 = vld [vmem:[#allocation5 + $0x518] sm:$0xff]
        %v544 = vld [vmem:[#allocation5 + $0x520] sm:$0xff]
        %v545 = vld [vmem:[#allocation5 + $0x528] sm:$0xff]
        %v546 = vld [vmem:[#allocation5 + $0x530] sm:$0xff]
        %v547 = vld [vmem:[#allocation5 + $0x538] sm:$0xff]
        %v548 = vld [vmem:[#allocation5 + $0x540] sm:$0xff]
        %v549 = vld [vmem:[#allocation5 + $0x548] sm:$0xff]
        %v550 = vld [vmem:[#allocation5 + $0x550] sm:$0xff]
        %v551 = vld [vmem:[#allocation5 + $0x558] sm:$0xff]
        %v552 = vld [vmem:[#allocation5 + $0x560] sm:$0xff]
        %v553 = vld [vmem:[#allocation5 + $0x568] sm:$0xff]
        %v554 = vld [vmem:[#allocation5 + $0x570] sm:$0xff]
        %v555 = vld [vmem:[#allocation5 + $0x578] sm:$0xff]
        %v556 = vld [vmem:[#allocation5 + $0x580] sm:$0xff]
        %v557 = vld [vmem:[#allocation5 + $0x588] sm:$0xff]
        %v558 = vld [vmem:[#allocation5 + $0x590] sm:$0xff]
        %v559 = vld [vmem:[#allocation5 + $0x598] sm:$0xff]
        %v560 = vld [vmem:[#allocation5 + $0x5a0] sm:$0xff]
        %v561 = vld [vmem:[#allocation5 + $0x5a8] sm:$0xff]
        %v562 = vld [vmem:[#allocation5 + $0x5b0] sm:$0xff]
        %v563 = vld [vmem:[#allocation5 + $0x5b8] sm:$0xff]
        %v564 = vld [vmem:[#allocation5 + $0x5c0] sm:$0xff]
        %v565 = vld [vmem:[#allocation5 + $0x5c8] sm:$0xff]
        %v566 = vld [vmem:[#allocation5 + $0x5d0] sm:$0xff]
        %v567 = vld [vmem:[#allocation5 + $0x5d8] sm:$0xff]
        %v568 = vld [vmem:[#allocation5 + $0x5e0] sm:$0xff]
        %v569 = vld [vmem:[#allocation5 + $0x5e8] sm:$0xff]
        %v570 = vld [vmem:[#allocation5 + $0x5f0] sm:$0xff]
        %v571 = vld [vmem:[#allocation5 + $0x5f8] sm:$0xff]
        %v572 = vld [vmem:[#allocation5 + $0x600] sm:$0xff]
        %v573 = vld [vmem:[#allocation5 + $0x608] sm:$0xff]
        %v574 = vld [vmem:[#allocation5 + $0x610] sm:$0xff]
        %v575 = vld [vmem:[#allocation5 + $0x618] sm:$0xff]
        %v576 = vld [vmem:[#allocation5 + $0x620] sm:$0xff]
        %v577 = vld [vmem:[#allocation5 + $0x628] sm:$0xff]
        %v578 = vld [vmem:[#allocation5 + $0x630] sm:$0xff]
        %v579 = vld [vmem:[#allocation5 + $0x638] sm:$0xff]
        %v580 = vld [vmem:[#allocation5 + $0x640] sm:$0xff]
        %v581 = vld [vmem:[#allocation5 + $0x648] sm:$0xff]
        %v582 = vld [vmem:[#allocation5 + $0x650] sm:$0xff]
        %v583 = vld [vmem:[#allocation5 + $0x658] sm:$0xff]
        %v584 = vld [vmem:[#allocation5 + $0x660] sm:$0xff]
        %v585 = vld [vmem:[#allocation5 + $0x668] sm:$0xff]
        %v586 = vld [vmem:[#allocation5 + $0x670] sm:$0xff]
        %v587 = vld [vmem:[#allocation5 + $0x678] sm:$0xff]
        %v588 = vld [vmem:[#allocation5 + $0x680] sm:$0xff]
        %v589 = vld [vmem:[#allocation5 + $0x688] sm:$0xff]
        %v590 = vld [vmem:[#allocation5 + $0x690] sm:$0xff]
        %v591 = vld [vmem:[#allocation5 + $0x698] sm:$0xff]
        %v592 = vld [vmem:[#allocation5 + $0x6a0] sm:$0xff]
        %v593 = vld [vmem:[#allocation5 + $0x6a8] sm:$0xff]
        %v594 = vld [vmem:[#allocation5 + $0x6b0] sm:$0xff]
        %v595 = vld [vmem:[#allocation5 + $0x6b8] sm:$0xff]
        %v596 = vld [vmem:[#allocation5 + $0x6c0] sm:$0xff]
        %v597 = vld [vmem:[#allocation5 + $0x6c8] sm:$0xff]
        %v598 = vld [vmem:[#allocation5 + $0x6d0] sm:$0xff]
        %v599 = vld [vmem:[#allocation5 + $0x6d8] sm:$0xff]
        %v600 = vld [vmem:[#allocation5 + $0x6e0] sm:$0xff]
        %v601 = vld [vmem:[#allocation5 + $0x6e8] sm:$0xff]
        %v602 = vld [vmem:[#allocation5 + $0x6f0] sm:$0xff]
        %v603 = vld [vmem:[#allocation5 + $0x6f8] sm:$0xff]
        %v604 = vld [vmem:[#allocation5 + $0x700] sm:$0xff]
        %v605 = vld [vmem:[#allocation5 + $0x708] sm:$0xff]
        %v606 = vld [vmem:[#allocation5 + $0x710] sm:$0xff]
        %v607 = vld [vmem:[#allocation5 + $0x718] sm:$0xff]
        %v608 = vld [vmem:[#allocation5 + $0x720] sm:$0xff]
        %v609 = vld [vmem:[#allocation5 + $0x728] sm:$0xff]
        %v610 = vld [vmem:[#allocation5 + $0x730] sm:$0xff]
        %v611 = vld [vmem:[#allocation5 + $0x738] sm:$0xff]
        %v612 = vld [vmem:[#allocation5 + $0x740] sm:$0xff]
        %v613 = vld [vmem:[#allocation5 + $0x748] sm:$0xff]
        %v614 = vld [vmem:[#allocation5 + $0x750] sm:$0xff]
        %v615 = vld [vmem:[#allocation5 + $0x758] sm:$0xff]
        %v616 = vld [vmem:[#allocation5 + $0x760] sm:$0xff]
        %v617 = vld [vmem:[#allocation5 + $0x768] sm:$0xff]
        %v618 = vld [vmem:[#allocation5 + $0x770] sm:$0xff]
        %v619 = vld [vmem:[#allocation5 + $0x778] sm:$0xff]
        %v620 = vld [vmem:[#allocation5 + $0x780] sm:$0xff]
        %v621 = vld [vmem:[#allocation5 + $0x788] sm:$0xff]
        %v622 = vld [vmem:[#allocation5 + $0x790] sm:$0xff]
        %v623 = vld [vmem:[#allocation5 + $0x798] sm:$0xff]
        %v624 = vld [vmem:[#allocation5 + $0x7a0] sm:$0xff]
        %v625 = vld [vmem:[#allocation5 + $0x7a8] sm:$0xff]
        %v626 = vld [vmem:[#allocation5 + $0x7b0] sm:$0xff]
        %v627 = vld [vmem:[#allocation5 + $0x7b8] sm:$0xff]
        %v628 = vld [vmem:[#allocation5 + $0x7c0] sm:$0xff]
        %v629 = vld [vmem:[#allocation5 + $0x7c8] sm:$0xff]
        %v630 = vld [vmem:[#allocation5 + $0x7d0] sm:$0xff]
        %v631 = vld [vmem:[#allocation5 + $0x7d8] sm:$0xff]
        %v632 = vld [vmem:[#allocation5 + $0x7e0] sm:$0xff]
        %v633 = vld [vmem:[#allocation5 + $0x7e8] sm:$0xff]
        %v634 = vld [vmem:[#allocation5 + $0x7f0] sm:$0xff]
        %v635 = vld [vmem:[#allocation5 + $0x7f8] sm:$0xff]
        %v636 = vld [vmem:[#allocation5 + $0x800] sm:$0xff]
        %v637 = vld [vmem:[#allocation5 + $0x808] sm:$0xff]
        %v638 = vld [vmem:[#allocation5 + $0x810] sm:$0xff]
        %v639 = vld [vmem:[#allocation5 + $0x818] sm:$0xff]
        %v640 = vld [vmem:[#allocation5 + $0x820] sm:$0xff]
        %v641 = vld [vmem:[#allocation5 + $0x828] sm:$0xff]
        %v642 = vld [vmem:[#allocation5 + $0x830] sm:$0xff]
        %v643 = vld [vmem:[#allocation5 + $0x838] sm:$0xff]
        %v644 = vld [vmem:[#allocation5 + $0x840] sm:$0xff]
        %v645 = vld [vmem:[#allocation5 + $0x848] sm:$0xff]
        %v646 = vld [vmem:[#allocation5 + $0x850] sm:$0xff]
        %v647 = vld [vmem:[#allocation5 + $0x858] sm:$0xff]
        %v648 = vld [vmem:[#allocation5 + $0x860] sm:$0xff]
        %v649 = vld [vmem:[#allocation5 + $0x868] sm:$0xff]
        %v650 = vld [vmem:[#allocation5 + $0x870] sm:$0xff]
        %v651 = vld [vmem:[#allocation5 + $0x878] sm:$0xff]
        %v652 = vld [vmem:[#allocation5 + $0x880] sm:$0xff]
        %v653 = vld [vmem:[#allocation5 + $0x888] sm:$0xff]
        %v654 = vld [vmem:[#allocation5 + $0x890] sm:$0xff]
        %v655 = vld [vmem:[#allocation5 + $0x898] sm:$0xff]
        %v656 = vld [vmem:[#allocation5 + $0x8a0] sm:$0xff]
        %v657 = vld [vmem:[#allocation5 + $0x8a8] sm:$0xff]
        %v658 = vld [vmem:[#allocation5 + $0x8b0] sm:$0xff]
        %v659 = vld [vmem:[#allocation5 + $0x8b8] sm:$0xff]
        %v660 = vld [vmem:[#allocation5 + $0x8c0] sm:$0xff]
        %v661 = vld [vmem:[#allocation5 + $0x8c8] sm:$0xff]
        %v662 = vld [vmem:[#allocation5 + $0x8d0] sm:$0xff]
        %v663 = vld [vmem:[#allocation5 + $0x8d8] sm:$0xff]
        %v664 = vld [vmem:[#allocation5 + $0x8e0] sm:$0xff]
        %v665 = vld [vmem:[#allocation5 + $0x8e8] sm:$0xff]
        %v666 = vld [vmem:[#allocation5 + $0x8f0] sm:$0xff]
        %v667 = vld [vmem:[#allocation5 + $0x8f8] sm:$0xff]
        %v668 = vld [vmem:[#allocation5 + $0x900] sm:$0xff]
        %v669 = vld [vmem:[#allocation5 + $0x908] sm:$0xff]
        %v670 = vld [vmem:[#allocation5 + $0x910] sm:$0xff]
        %v671 = vld [vmem:[#allocation5 + $0x918] sm:$0xff]
        %v672 = vld [vmem:[#allocation5 + $0x920] sm:$0xff]
        %v673 = vld [vmem:[#allocation5 + $0x928] sm:$0xff]
        %v674 = vld [vmem:[#allocation5 + $0x930] sm:$0xff]
        %v675 = vld [vmem:[#allocation5 + $0x938] sm:$0xff]
        %v676 = vld [vmem:[#allocation5 + $0x940] sm:$0xff]
        %v677 = vld [vmem:[#allocation5 + $0x948] sm:$0xff]
        %v678 = vld [vmem:[#allocation5 + $0x950] sm:$0xff]
        %v679 = vld [vmem:[#allocation5 + $0x958] sm:$0xff]
        %v680 = vld [vmem:[#allocation5 + $0x960] sm:$0xff]
        %v681 = vld [vmem:[#allocation5 + $0x968] sm:$0xff]
        %v682 = vld [vmem:[#allocation5 + $0x970] sm:$0xff]
        %v683 = vld [vmem:[#allocation5 + $0x978] sm:$0xff]
        %v684 = vld [vmem:[#allocation5 + $0x980] sm:$0xff]
        %v685 = vld [vmem:[#allocation5 + $0x988] sm:$0xff]
        %v686 = vld [vmem:[#allocation5 + $0x990] sm:$0xff]
        %v687 = vld [vmem:[#allocation5 + $0x998] sm:$0xff]
        %v688 = vld [vmem:[#allocation5 + $0x9a0] sm:$0xff]
        %v689 = vld [vmem:[#allocation5 + $0x9a8] sm:$0xff]
        %v690 = vld [vmem:[#allocation5 + $0x9b0] sm:$0xff]
        %v691 = vld [vmem:[#allocation5 + $0x9b8] sm:$0xff]
        %v692 = vld [vmem:[#allocation5 + $0x9c0] sm:$0xff]
        %v693 = vld [vmem:[#allocation5 + $0x9c8] sm:$0xff]
        %v694 = vld [vmem:[#allocation5 + $0x9d0] sm:$0xff]
        %v695 = vld [vmem:[#allocation5 + $0x9d8] sm:$0xff]
        %v696 = vld [vmem:[#allocation5 + $0x9e0] sm:$0xff]
        %v697 = vld [vmem:[#allocation5 + $0x9e8] sm:$0xff]
        %v698 = vld [vmem:[#allocation5 + $0x9f0] sm:$0xff]
        %v699 = vld [vmem:[#allocation5 + $0x9f8] sm:$0xff]
        %v700 = vld [vmem:[#allocation5 + $0xa00] sm:$0xff]
        %v701 = vld [vmem:[#allocation5 + $0xa08] sm:$0xff]
        %v702 = vld [vmem:[#allocation5 + $0xa10] sm:$0xff]
        %v703 = vld [vmem:[#allocation5 + $0xa18] sm:$0xff]
        %v704 = vld [vmem:[#allocation5 + $0xa20] sm:$0xff]
        %v705 = vld [vmem:[#allocation5 + $0xa28] sm:$0xff]
        %v706 = vld [vmem:[#allocation5 + $0xa30] sm:$0xff]
        %v707 = vld [vmem:[#allocation5 + $0xa38] sm:$0xff]
        %v708 = vld [vmem:[#allocation5 + $0xa40] sm:$0xff]
        %v709 = vld [vmem:[#allocation5 + $0xa48] sm:$0xff]
        %v710 = vld [vmem:[#allocation5 + $0xa50] sm:$0xff]
        %v711 = vld [vmem:[#allocation5 + $0xa58] sm:$0xff]
        %v712 = vld [vmem:[#allocation5 + $0xa60] sm:$0xff]
        %v713 = vld [vmem:[#allocation5 + $0xa68] sm:$0xff]
        %v714 = vld [vmem:[#allocation5 + $0xa70] sm:$0xff]
        %v715 = vld [vmem:[#allocation5 + $0xa78] sm:$0xff]
        %v716 = vld [vmem:[#allocation5 + $0xa80] sm:$0xff]
        %v717 = vld [vmem:[#allocation5 + $0xa88] sm:$0xff]
        %v718 = vld [vmem:[#allocation5 + $0xa90] sm:$0xff]
        %v719 = vld [vmem:[#allocation5 + $0xa98] sm:$0xff]
        %v720 = vld [vmem:[#allocation5 + $0xaa0] sm:$0xff]
        %v721 = vld [vmem:[#allocation5 + $0xaa8] sm:$0xff]
        %v722 = vld [vmem:[#allocation5 + $0xab0] sm:$0xff]
        %v723 = vld [vmem:[#allocation5 + $0xab8] sm:$0xff]
        %v724 = vld [vmem:[#allocation5 + $0xac0] sm:$0xff]
        %v725 = vld [vmem:[#allocation5 + $0xac8] sm:$0xff]
        %v726 = vld [vmem:[#allocation5 + $0xad0] sm:$0xff]
        %v727 = vld [vmem:[#allocation5 + $0xad8] sm:$0xff]
        %v728 = vld [vmem:[#allocation5 + $0xae0] sm:$0xff]
        %v729 = vld [vmem:[#allocation5 + $0xae8] sm:$0xff]
        %v730 = vld [vmem:[#allocation5 + $0xaf0] sm:$0xff]
        %v731 = vld [vmem:[#allocation5 + $0xaf8] sm:$0xff]
        %v732 = vld [vmem:[#allocation5 + $0xb00] sm:$0xff]
        %v733 = vld [vmem:[#allocation5 + $0xb08] sm:$0xff]
        %v734 = vld [vmem:[#allocation5 + $0xb10] sm:$0xff]
        %v735 = vld [vmem:[#allocation5 + $0xb18] sm:$0xff]
        %v736 = vld [vmem:[#allocation5 + $0xb20] sm:$0xff]
        %v737 = vld [vmem:[#allocation5 + $0xb28] sm:$0xff]
        %v738 = vld [vmem:[#allocation5 + $0xb30] sm:$0xff]
        %v739 = vld [vmem:[#allocation5 + $0xb38] sm:$0xff]
        %v740 = vld [vmem:[#allocation5 + $0xb40] sm:$0xff]
        %v741 = vld [vmem:[#allocation5 + $0xb48] sm:$0xff]
        %v742 = vld [vmem:[#allocation5 + $0xb50] sm:$0xff]
        %v743 = vld [vmem:[#allocation5 + $0xb58] sm:$0xff]
        %v744 = vld [vmem:[#allocation5 + $0xb60] sm:$0xff]
        %v745 = vld [vmem:[#allocation5 + $0xb68] sm:$0xff]
        %v746 = vld [vmem:[#allocation5 + $0xb70] sm:$0xff]
        %v747 = vld [vmem:[#allocation5 + $0xb78] sm:$0xff]
        %v748 = vld [vmem:[#allocation5 + $0xb80] sm:$0xff]
        %v749 = vld [vmem:[#allocation5 + $0xb88] sm:$0xff]
        %v750 = vld [vmem:[#allocation5 + $0xb90] sm:$0xff]
        %v751 = vld [vmem:[#allocation5 + $0xb98] sm:$0xff]
        %v752 = vld [vmem:[#allocation5 + $0xba0] sm:$0xff]
        %v753 = vld [vmem:[#allocation5 + $0xba8] sm:$0xff]
        %v754 = vld [vmem:[#allocation5 + $0xbb0] sm:$0xff]
        %v755 = vld [vmem:[#allocation5 + $0xbb8] sm:$0xff]
        %v756 = vld [vmem:[#allocation5 + $0xbc0] sm:$0xff]
        %v757 = vld [vmem:[#allocation5 + $0xbc8] sm:$0xff]
        %v758 = vld [vmem:[#allocation5 + $0xbd0] sm:$0xff]
        %v759 = vld [vmem:[#allocation5 + $0xbd8] sm:$0xff]
        %v760 = vld [vmem:[#allocation5 + $0xbe0] sm:$0xff]
        %v761 = vld [vmem:[#allocation5 + $0xbe8] sm:$0xff]
        %v762 = vld [vmem:[#allocation5 + $0xbf0] sm:$0xff]
        %v763 = vld [vmem:[#allocation5 + $0xbf8] sm:$0xff]
        %v764 = vld [vmem:[#allocation5 + $0xc00] sm:$0xff]
        %v765 = vld [vmem:[#allocation5 + $0xc08] sm:$0xff]
        %v766 = vld [vmem:[#allocation5 + $0xc10] sm:$0xff]
        %v767 = vld [vmem:[#allocation5 + $0xc18] sm:$0xff]
        %v768 = vld [vmem:[#allocation5 + $0xc20] sm:$0xff]
        %v769 = vld [vmem:[#allocation5 + $0xc28] sm:$0xff]
        %v770 = vld [vmem:[#allocation5 + $0xc30] sm:$0xff]
        %v771 = vld [vmem:[#allocation5 + $0xc38] sm:$0xff]
        %v772 = vld [vmem:[#allocation5 + $0xc40] sm:$0xff]
        %v773 = vld [vmem:[#allocation5 + $0xc48] sm:$0xff]
        %v774 = vld [vmem:[#allocation5 + $0xc50] sm:$0xff]
        %v775 = vld [vmem:[#allocation5 + $0xc58] sm:$0xff]
        %v776 = vld [vmem:[#allocation5 + $0xc60] sm:$0xff]
        %v777 = vld [vmem:[#allocation5 + $0xc68] sm:$0xff]
        %v778 = vld [vmem:[#allocation5 + $0xc70] sm:$0xff]
        %v779 = vld [vmem:[#allocation5 + $0xc78] sm:$0xff]
        %v780 = vld [vmem:[#allocation5 + $0xc80] sm:$0xff]
        %v781 = vld [vmem:[#allocation5 + $0xc88] sm:$0xff]
        %v782 = vld [vmem:[#allocation5 + $0xc90] sm:$0xff]
        %v783 = vld [vmem:[#allocation5 + $0xc98] sm:$0xff]
        %v784 = vld [vmem:[#allocation5 + $0xca0] sm:$0xff]
        %v785 = vld [vmem:[#allocation5 + $0xca8] sm:$0xff]
        %v786 = vld [vmem:[#allocation5 + $0xcb0] sm:$0xff]
        %v787 = vld [vmem:[#allocation5 + $0xcb8] sm:$0xff]
        %v788 = vld [vmem:[#allocation5 + $0xcc0] sm:$0xff]
        %v789 = vld [vmem:[#allocation5 + $0xcc8] sm:$0xff]
        %v790 = vld [vmem:[#allocation5 + $0xcd0] sm:$0xff]
        %v791 = vld [vmem:[#allocation5 + $0xcd8] sm:$0xff]
        %v792 = vld [vmem:[#allocation5 + $0xce0] sm:$0xff]
        %v793 = vld [vmem:[#allocation5 + $0xce8] sm:$0xff]
        %v794 = vld [vmem:[#allocation5 + $0xcf0] sm:$0xff]
        %v795 = vld [vmem:[#allocation5 + $0xcf8] sm:$0xff]
        %v796 = vld [vmem:[#allocation5 + $0xd00] sm:$0xff]
        %v797 = vld [vmem:[#allocation5 + $0xd08] sm:$0xff]
        %v798 = vld [vmem:[#allocation5 + $0xd10] sm:$0xff]
        %v799 = vld [vmem:[#allocation5 + $0xd18] sm:$0xff]
        %v800 = vld [vmem:[#allocation5 + $0xd20] sm:$0xff]
        %v801 = vld [vmem:[#allocation5 + $0xd28] sm:$0xff]
        %v802 = vld [vmem:[#allocation5 + $0xd30] sm:$0xff]
        %v803 = vld [vmem:[#allocation5 + $0xd38] sm:$0xff]
        %v804 = vld [vmem:[#allocation5 + $0xd40] sm:$0xff]
        %v805 = vld [vmem:[#allocation5 + $0xd48] sm:$0xff]
        %v806 = vld [vmem:[#allocation5 + $0xd50] sm:$0xff]
        %v807 = vld [vmem:[#allocation5 + $0xd58] sm:$0xff]
        %v808 = vld [vmem:[#allocation5 + $0xd60] sm:$0xff]
        %v809 = vld [vmem:[#allocation5 + $0xd68] sm:$0xff]
        %v810 = vld [vmem:[#allocation5 + $0xd70] sm:$0xff]
        %v811 = vld [vmem:[#allocation5 + $0xd78] sm:$0xff]
        %v812 = vld [vmem:[#allocation5 + $0xd80] sm:$0xff]
        %v813 = vld [vmem:[#allocation5 + $0xd88] sm:$0xff]
        %v814 = vld [vmem:[#allocation5 + $0xd90] sm:$0xff]
        %v815 = vld [vmem:[#allocation5 + $0xd98] sm:$0xff]
        %v816 = vld [vmem:[#allocation5 + $0xda0] sm:$0xff]
        %v817 = vld [vmem:[#allocation5 + $0xda8] sm:$0xff]
        %v818 = vld [vmem:[#allocation5 + $0xdb0] sm:$0xff]
        %v819 = vld [vmem:[#allocation5 + $0xdb8] sm:$0xff]
        %v820 = vld [vmem:[#allocation5 + $0xdc0] sm:$0xff]
        %v821 = vld [vmem:[#allocation5 + $0xdc8] sm:$0xff]
        %v822 = vld [vmem:[#allocation5 + $0xdd0] sm:$0xff]
        %v823 = vld [vmem:[#allocation5 + $0xdd8] sm:$0xff]
        %v824 = vld [vmem:[#allocation5 + $0xde0] sm:$0xff]
        %v825 = vld [vmem:[#allocation5 + $0xde8] sm:$0xff]
        %v826 = vld [vmem:[#allocation5 + $0xdf0] sm:$0xff]
        %v827 = vld [vmem:[#allocation5 + $0xdf8] sm:$0xff]
        %v828 = vld [vmem:[#allocation5 + $0xe00] sm:$0xff]
        %v829 = vld [vmem:[#allocation5 + $0xe08] sm:$0xff]
        %v830 = vld [vmem:[#allocation5 + $0xe10] sm:$0xff]
        %v831 = vld [vmem:[#allocation5 + $0xe18] sm:$0xff]
        %v832 = vld [vmem:[#allocation5 + $0xe20] sm:$0xff]
        %v833 = vld [vmem:[#allocation5 + $0xe28] sm:$0xff]
        %v834 = vld [vmem:[#allocation5 + $0xe30] sm:$0xff]
        %v835 = vld [vmem:[#allocation5 + $0xe38] sm:$0xff]
        %v836 = vld [vmem:[#allocation5 + $0xe40] sm:$0xff]
        %v837 = vld [vmem:[#allocation5 + $0xe48] sm:$0xff]
        %v838 = vld [vmem:[#allocation5 + $0xe50] sm:$0xff]
        %v839 = vld [vmem:[#allocation5 + $0xe58] sm:$0xff]
        %v840 = vld [vmem:[#allocation5 + $0xe60] sm:$0xff]
        %v841 = vld [vmem:[#allocation5 + $0xe68] sm:$0xff]
        %v842 = vld [vmem:[#allocation5 + $0xe70] sm:$0xff]
        %v843 = vld [vmem:[#allocation5 + $0xe78] sm:$0xff]
        %v844 = vld [vmem:[#allocation5 + $0xe80] sm:$0xff]
        %v845 = vld [vmem:[#allocation5 + $0xe88] sm:$0xff]
        %v846 = vld [vmem:[#allocation5 + $0xe90] sm:$0xff]
        %v847 = vld [vmem:[#allocation5 + $0xe98] sm:$0xff]
        %v848 = vld [vmem:[#allocation5 + $0xea0] sm:$0xff]
        %v849 = vld [vmem:[#allocation5 + $0xea8] sm:$0xff]
        %v850 = vld [vmem:[#allocation5 + $0xeb0] sm:$0xff]
        %v851 = vld [vmem:[#allocation5 + $0xeb8] sm:$0xff]
        %v852 = vld [vmem:[#allocation5 + $0xec0] sm:$0xff]
        %v853 = vld [vmem:[#allocation5 + $0xec8] sm:$0xff]
        %v854 = vld [vmem:[#allocation5 + $0xed0] sm:$0xff]
        %v855 = vld [vmem:[#allocation5 + $0xed8] sm:$0xff]
        %v856 = vld [vmem:[#allocation5 + $0xee0] sm:$0xff]
        %v857 = vld [vmem:[#allocation5 + $0xee8] sm:$0xff]
        %v858 = vld [vmem:[#allocation5 + $0xef0] sm:$0xff]
        %v859 = vld [vmem:[#allocation5 + $0xef8] sm:$0xff]
        %v860 = vld [vmem:[#allocation5 + $0xf00] sm:$0xff]
        %v861 = vld [vmem:[#allocation5 + $0xf08] sm:$0xff]
        %v862 = vld [vmem:[#allocation5 + $0xf10] sm:$0xff]
        %v863 = vld [vmem:[#allocation5 + $0xf18] sm:$0xff]
        %v864 = vld [vmem:[#allocation5 + $0xf20] sm:$0xff]
        %v865 = vld [vmem:[#allocation5 + $0xf28] sm:$0xff]
        %v866 = vld [vmem:[#allocation5 + $0xf30] sm:$0xff]
        %v867 = vld [vmem:[#allocation5 + $0xf38] sm:$0xff]
        %v868 = vld [vmem:[#allocation5 + $0xf40] sm:$0xff]
        %v869 = vld [vmem:[#allocation5 + $0xf48] sm:$0xff]
        %v870 = vld [vmem:[#allocation5 + $0xf50] sm:$0xff]
        %v871 = vld [vmem:[#allocation5 + $0xf58] sm:$0xff]
        %v872 = vld [vmem:[#allocation5 + $0xf60] sm:$0xff]
        %v873 = vld [vmem:[#allocation5 + $0xf68] sm:$0xff]
        %v874 = vld [vmem:[#allocation5 + $0xf70] sm:$0xff]
        %v875 = vld [vmem:[#allocation5 + $0xf78] sm:$0xff]
        %v876 = vld [vmem:[#allocation5 + $0xf80] sm:$0xff]
        %v877 = vld [vmem:[#allocation5 + $0xf88] sm:$0xff]
        %v878 = vld [vmem:[#allocation5 + $0xf90] sm:$0xff]
        %v879 = vld [vmem:[#allocation5 + $0xf98] sm:$0xff]
        %v880 = vld [vmem:[#allocation5 + $0xfa0] sm:$0xff]
        %v881 = vld [vmem:[#allocation5 + $0xfa8] sm:$0xff]
        %v882 = vld [vmem:[#allocation5 + $0xfb0] sm:$0xff]
        %v883 = vld [vmem:[#allocation5 + $0xfb8] sm:$0xff]
        %v884 = vld [vmem:[#allocation5 + $0xfc0] sm:$0xff]
        %v885 = vld [vmem:[#allocation5 + $0xfc8] sm:$0xff]
        %v886 = vld [vmem:[#allocation5 + $0xfd0] sm:$0xff]
        %v887 = vld [vmem:[#allocation5 + $0xfd8] sm:$0xff]
        %v888 = vld [vmem:[#allocation5 + $0xfe0] sm:$0xff]
        %v889 = vld [vmem:[#allocation5 + $0xfe8] sm:$0xff]
        %v890 = vld [vmem:[#allocation5 + $0xff0] sm:$0xff]
        %v891 = vld [vmem:[#allocation5 + $0xff8] sm:$0xff]
        %v892 = vld [vmem:[#allocation7] sm:$0xff]
        %v893 = vld [vmem:[#allocation7 + $0x8] sm:$0xff]
        %v896 = vlaneseq
        %v897 = vshrl.u32 %v896, 7
        %v898 = vsub.s32 0, %v897
        %v899 = vrot.slane %v892, %v898
        %v900 = vlaneseq
        %v901 = vshrl.u32 %v900, 7
        %v902 = vsub.s32 1, %v901
        %v903 = vrot.slane %v892, %v902
        %v904 = vlaneseq
        %v905 = vshrl.u32 %v904, 7
        %v906 = vsub.s32 2, %v905
        %v907 = vrot.slane %v892, %v906
        %v908 = vlaneseq
        %v909 = vshrl.u32 %v908, 7
        %v910 = vsub.s32 3, %v909
        %v911 = vrot.slane %v892, %v910
        %v912 = vlaneseq
        %v913 = vshrl.u32 %v912, 7
        %v914 = vsub.s32 4, %v913
        %v915 = vrot.slane %v892, %v914
        %v916 = vlaneseq
        %v917 = vshrl.u32 %v916, 7
        %v918 = vsub.s32 5, %v917
        %v919 = vrot.slane %v892, %v918
        %v920 = vlaneseq
        %v921 = vshrl.u32 %v920, 7
        %v922 = vsub.s32 6, %v921
        %v923 = vrot.slane %v892, %v922
        %v924 = vlaneseq
        %v925 = vshrl.u32 %v924, 7
        %v926 = vsub.s32 7, %v925
        %v927 = vrot.slane %v892, %v926
        %v928 = vlaneseq
        %v929 = vshrl.u32 %v928, 7
        %v930 = vsub.s32 0, %v929
        %v931 = vrot.slane %v893, %v930
        %v932 = vlaneseq
        %v933 = vshrl.u32 %v932, 7
        %v934 = vsub.s32 1, %v933
        %v935 = vrot.slane %v893, %v934
        %v936 = vlaneseq
        %v937 = vshrl.u32 %v936, 7
        %v938 = vsub.s32 2, %v937
        %v939 = vrot.slane %v893, %v938
        %v940 = vlaneseq
        %v941 = vshrl.u32 %v940, 7
        %v942 = vsub.s32 3, %v941
        %v943 = vrot.slane %v893, %v942
        %v944 = vlaneseq
        %v945 = vshrl.u32 %v944, 7
        %v946 = vsub.s32 4, %v945
        %v947 = vrot.slane %v893, %v946
        %v948 = vlaneseq
        %v949 = vshrl.u32 %v948, 7
        %v950 = vsub.s32 5, %v949
        %v951 = vrot.slane %v893, %v950
        %v952 = vlaneseq
        %v953 = vshrl.u32 %v952, 7
        %v954 = vsub.s32 6, %v953
        %v955 = vrot.slane %v893, %v954
        %v956 = vlaneseq
        %v957 = vshrl.u32 %v956, 7
        %v958 = vsub.s32 7, %v957
        %v959 = vrot.slane %v893, %v958
        %v1008 = vunpack.c.l.b16 %v348
        %v1009 = vunpack.c.h.b16 %v348
        %v1010 = vunpack.c.l.b16 %v349
        %v1011 = vunpack.c.h.b16 %v349
        %v1012 = vunpack.c.l.b16 %v350
        %v1013 = vunpack.c.h.b16 %v350
        %v1014 = vunpack.c.l.b16 %v351
        %v1015 = vunpack.c.h.b16 %v351
        %v1016 = vunpack.c.l.b16 %v352
        %v1017 = vunpack.c.h.b16 %v352
        %v1018 = vunpack.c.l.b16 %v353
        %v1019 = vunpack.c.h.b16 %v353
        %v1020 = vunpack.c.l.b16 %v354
        %v1021 = vunpack.c.h.b16 %v354
        %v1022 = vunpack.c.l.b16 %v355
        %v1023 = vunpack.c.h.b16 %v355
        %v1024 = vunpack.c.l.b16 %v356
        %v1025 = vunpack.c.h.b16 %v356
        %v1026 = vunpack.c.l.b16 %v357
        %v1027 = vunpack.c.h.b16 %v357
        %v1028 = vunpack.c.l.b16 %v358
        %v1029 = vunpack.c.h.b16 %v358
        %v1030 = vunpack.c.l.b16 %v359
        %v1031 = vunpack.c.h.b16 %v359
        %v1032 = vunpack.c.l.b16 %v360
        %v1033 = vunpack.c.h.b16 %v360
        %v1034 = vunpack.c.l.b16 %v361
        %v1035 = vunpack.c.h.b16 %v361
        %v1036 = vunpack.c.l.b16 %v362
        %v1037 = vunpack.c.h.b16 %v362
        %v1038 = vunpack.c.l.b16 %v363
        %v1039 = vunpack.c.h.b16 %v363
        %v1040 = vunpack.c.l.b16 %v364
        %v1041 = vunpack.c.h.b16 %v364
        %v1042 = vunpack.c.l.b16 %v365
        %v1043 = vunpack.c.h.b16 %v365
        %v1044 = vunpack.c.l.b16 %v366
        %v1045 = vunpack.c.h.b16 %v366
        %v1046 = vunpack.c.l.b16 %v367
        %v1047 = vunpack.c.h.b16 %v367
        %v1048 = vunpack.c.l.b16 %v368
        %v1049 = vunpack.c.h.b16 %v368
        %v1050 = vunpack.c.l.b16 %v369
        %v1051 = vunpack.c.h.b16 %v369
        %v1052 = vunpack.c.l.b16 %v370
        %v1053 = vunpack.c.h.b16 %v370
        %v1054 = vunpack.c.l.b16 %v371
        %v1055 = vunpack.c.h.b16 %v371
        %v1056 = vunpack.c.l.b16 %v372
        %v1057 = vunpack.c.h.b16 %v372
        %v1058 = vunpack.c.l.b16 %v373
        %v1059 = vunpack.c.h.b16 %v373
        %v1060 = vunpack.c.l.b16 %v374
        %v1061 = vunpack.c.h.b16 %v374
        %v1062 = vunpack.c.l.b16 %v375
        %v1063 = vunpack.c.h.b16 %v375
        %v1064 = vunpack.c.l.b16 %v376
        %v1065 = vunpack.c.h.b16 %v376
        %v1066 = vunpack.c.l.b16 %v377
        %v1067 = vunpack.c.h.b16 %v377
        %v1068 = vunpack.c.l.b16 %v378
        %v1069 = vunpack.c.h.b16 %v378
        %v1070 = vunpack.c.l.b16 %v379
        %v1071 = vunpack.c.h.b16 %v379
        %v1072 = vpack.c.b16 %v1012, %v1008
        %v1073 = vpack.c.b16 %v1013, %v1009
        %v1074 = vpack.c.b16 %v1014, %v1010
        %v1075 = vpack.c.b16 %v1015, %v1011
        %v1076 = vpack.c.b16 %v1020, %v1016
        %v1077 = vpack.c.b16 %v1021, %v1017
        %v1078 = vpack.c.b16 %v1022, %v1018
        %v1079 = vpack.c.b16 %v1023, %v1019
        %v1080 = vpack.c.b16 %v1028, %v1024
        %v1081 = vpack.c.b16 %v1029, %v1025
        %v1082 = vpack.c.b16 %v1030, %v1026
        %v1083 = vpack.c.b16 %v1031, %v1027
        %v1084 = vpack.c.b16 %v1036, %v1032
        %v1085 = vpack.c.b16 %v1037, %v1033
        %v1086 = vpack.c.b16 %v1038, %v1034
        %v1087 = vpack.c.b16 %v1039, %v1035
        %v1088 = vpack.c.b16 %v1044, %v1040
        %v1089 = vpack.c.b16 %v1045, %v1041
        %v1090 = vpack.c.b16 %v1046, %v1042
        %v1091 = vpack.c.b16 %v1047, %v1043
        %v1092 = vpack.c.b16 %v1052, %v1048
        %v1093 = vpack.c.b16 %v1053, %v1049
        %v1094 = vpack.c.b16 %v1054, %v1050
        %v1095 = vpack.c.b16 %v1055, %v1051
        %v1096 = vpack.c.b16 %v1060, %v1056
        %v1097 = vpack.c.b16 %v1061, %v1057
        %v1098 = vpack.c.b16 %v1062, %v1058
        %v1099 = vpack.c.b16 %v1063, %v1059
        %v1100 = vpack.c.b16 %v1068, %v1064
        %v1101 = vpack.c.b16 %v1069, %v1065
        %v1102 = vpack.c.b16 %v1070, %v1066
        %v1103 = vpack.c.b16 %v1071, %v1067
        %v1648 = vunpack.c.l.b16 %v380
        %v1649 = vunpack.c.h.b16 %v380
        %v1650 = vunpack.c.l.b16 %v381
        %v1651 = vunpack.c.h.b16 %v381
        %v1652 = vunpack.c.l.b16 %v382
        %v1653 = vunpack.c.h.b16 %v382
        %v1654 = vunpack.c.l.b16 %v383
        %v1655 = vunpack.c.h.b16 %v383
        %v1656 = vunpack.c.l.b16 %v384
        %v1657 = vunpack.c.h.b16 %v384
        %v1658 = vunpack.c.l.b16 %v385
        %v1659 = vunpack.c.h.b16 %v385
        %v1660 = vunpack.c.l.b16 %v386
        %v1661 = vunpack.c.h.b16 %v386
        %v1662 = vunpack.c.l.b16 %v387
        %v1663 = vunpack.c.h.b16 %v387
        %v1664 = vunpack.c.l.b16 %v388
        %v1665 = vunpack.c.h.b16 %v388
        %v1666 = vunpack.c.l.b16 %v389
        %v1667 = vunpack.c.h.b16 %v389
        %v1668 = vunpack.c.l.b16 %v390
        %v1669 = vunpack.c.h.b16 %v390
        %v1670 = vunpack.c.l.b16 %v391
        %v1671 = vunpack.c.h.b16 %v391
        %v1672 = vunpack.c.l.b16 %v392
        %v1673 = vunpack.c.h.b16 %v392
        %v1674 = vunpack.c.l.b16 %v393
        %v1675 = vunpack.c.h.b16 %v393
        %v1676 = vunpack.c.l.b16 %v394
        %v1677 = vunpack.c.h.b16 %v394
        %v1678 = vunpack.c.l.b16 %v395
        %v1679 = vunpack.c.h.b16 %v395
        %v1680 = vunpack.c.l.b16 %v396
        %v1681 = vunpack.c.h.b16 %v396
        %v1682 = vunpack.c.l.b16 %v397
        %v1683 = vunpack.c.h.b16 %v397
        %v1684 = vunpack.c.l.b16 %v398
        %v1685 = vunpack.c.h.b16 %v398
        %v1686 = vunpack.c.l.b16 %v399
        %v1687 = vunpack.c.h.b16 %v399
        %v1688 = vunpack.c.l.b16 %v400
        %v1689 = vunpack.c.h.b16 %v400
        %v1690 = vunpack.c.l.b16 %v401
        %v1691 = vunpack.c.h.b16 %v401
        %v1692 = vunpack.c.l.b16 %v402
        %v1693 = vunpack.c.h.b16 %v402
        %v1694 = vunpack.c.l.b16 %v403
        %v1695 = vunpack.c.h.b16 %v403
        %v1696 = vunpack.c.l.b16 %v404
        %v1697 = vunpack.c.h.b16 %v404
        %v1698 = vunpack.c.l.b16 %v405
        %v1699 = vunpack.c.h.b16 %v405
        %v1700 = vunpack.c.l.b16 %v406
        %v1701 = vunpack.c.h.b16 %v406
        %v1702 = vunpack.c.l.b16 %v407
        %v1703 = vunpack.c.h.b16 %v407
        %v1704 = vunpack.c.l.b16 %v408
        %v1705 = vunpack.c.h.b16 %v408
        %v1706 = vunpack.c.l.b16 %v409
        %v1707 = vunpack.c.h.b16 %v409
        %v1708 = vunpack.c.l.b16 %v410
        %v1709 = vunpack.c.h.b16 %v410
        %v1710 = vunpack.c.l.b16 %v411
        %v1711 = vunpack.c.h.b16 %v411
        %v1712 = vunpack.c.l.b16 %v412
        %v1713 = vunpack.c.h.b16 %v412
        %v1714 = vunpack.c.l.b16 %v413
        %v1715 = vunpack.c.h.b16 %v413
        %v1716 = vunpack.c.l.b16 %v414
        %v1717 = vunpack.c.h.b16 %v414
        %v1718 = vunpack.c.l.b16 %v415
        %v1719 = vunpack.c.h.b16 %v415
        %v1720 = vunpack.c.l.b16 %v416
        %v1721 = vunpack.c.h.b16 %v416
        %v1722 = vunpack.c.l.b16 %v417
        %v1723 = vunpack.c.h.b16 %v417
        %v1724 = vunpack.c.l.b16 %v418
        %v1725 = vunpack.c.h.b16 %v418
        %v1726 = vunpack.c.l.b16 %v419
        %v1727 = vunpack.c.h.b16 %v419
        %v1728 = vunpack.c.l.b16 %v420
        %v1729 = vunpack.c.h.b16 %v420
        %v1730 = vunpack.c.l.b16 %v421
        %v1731 = vunpack.c.h.b16 %v421
        %v1732 = vunpack.c.l.b16 %v422
        %v1733 = vunpack.c.h.b16 %v422
        %v1734 = vunpack.c.l.b16 %v423
        %v1735 = vunpack.c.h.b16 %v423
        %v1736 = vunpack.c.l.b16 %v424
        %v1737 = vunpack.c.h.b16 %v424
        %v1738 = vunpack.c.l.b16 %v425
        %v1739 = vunpack.c.h.b16 %v425
        %v1740 = vunpack.c.l.b16 %v426
        %v1741 = vunpack.c.h.b16 %v426
        %v1742 = vunpack.c.l.b16 %v427
        %v1743 = vunpack.c.h.b16 %v427
        %v1744 = vunpack.c.l.b16 %v428
        %v1745 = vunpack.c.h.b16 %v428
        %v1746 = vunpack.c.l.b16 %v429
        %v1747 = vunpack.c.h.b16 %v429
        %v1748 = vunpack.c.l.b16 %v430
        %v1749 = vunpack.c.h.b16 %v430
        %v1750 = vunpack.c.l.b16 %v431
        %v1751 = vunpack.c.h.b16 %v431
        %v1752 = vunpack.c.l.b16 %v432
        %v1753 = vunpack.c.h.b16 %v432
        %v1754 = vunpack.c.l.b16 %v433
        %v1755 = vunpack.c.h.b16 %v433
        %v1756 = vunpack.c.l.b16 %v434
        %v1757 = vunpack.c.h.b16 %v434
        %v1758 = vunpack.c.l.b16 %v435
        %v1759 = vunpack.c.h.b16 %v435
        %v1760 = vunpack.c.l.b16 %v436
        %v1761 = vunpack.c.h.b16 %v436
        %v1762 = vunpack.c.l.b16 %v437
        %v1763 = vunpack.c.h.b16 %v437
        %v1764 = vunpack.c.l.b16 %v438
        %v1765 = vunpack.c.h.b16 %v438
        %v1766 = vunpack.c.l.b16 %v439
        %v1767 = vunpack.c.h.b16 %v439
        %v1768 = vunpack.c.l.b16 %v440
        %v1769 = vunpack.c.h.b16 %v440
        %v1770 = vunpack.c.l.b16 %v441
        %v1771 = vunpack.c.h.b16 %v441
        %v1772 = vunpack.c.l.b16 %v442
        %v1773 = vunpack.c.h.b16 %v442
        %v1774 = vunpack.c.l.b16 %v443
        %v1775 = vunpack.c.h.b16 %v443
        %v1776 = vunpack.c.l.b16 %v444
        %v1777 = vunpack.c.h.b16 %v444
        %v1778 = vunpack.c.l.b16 %v445
        %v1779 = vunpack.c.h.b16 %v445
        %v1780 = vunpack.c.l.b16 %v446
        %v1781 = vunpack.c.h.b16 %v446
        %v1782 = vunpack.c.l.b16 %v447
        %v1783 = vunpack.c.h.b16 %v447
        %v1784 = vunpack.c.l.b16 %v448
        %v1785 = vunpack.c.h.b16 %v448
        %v1786 = vunpack.c.l.b16 %v449
        %v1787 = vunpack.c.h.b16 %v449
        %v1788 = vunpack.c.l.b16 %v450
        %v1789 = vunpack.c.h.b16 %v450
        %v1790 = vunpack.c.l.b16 %v451
        %v1791 = vunpack.c.h.b16 %v451
        %v1792 = vunpack.c.l.b16 %v452
        %v1793 = vunpack.c.h.b16 %v452
        %v1794 = vunpack.c.l.b16 %v453
        %v1795 = vunpack.c.h.b16 %v453
        %v1796 = vunpack.c.l.b16 %v454
        %v1797 = vunpack.c.h.b16 %v454
        %v1798 = vunpack.c.l.b16 %v455
        %v1799 = vunpack.c.h.b16 %v455
        %v1800 = vunpack.c.l.b16 %v456
        %v1801 = vunpack.c.h.b16 %v456
        %v1802 = vunpack.c.l.b16 %v457
        %v1803 = vunpack.c.h.b16 %v457
        %v1804 = vunpack.c.l.b16 %v458
        %v1805 = vunpack.c.h.b16 %v458
        %v1806 = vunpack.c.l.b16 %v459
        %v1807 = vunpack.c.h.b16 %v459
        %v1808 = vunpack.c.l.b16 %v460
        %v1809 = vunpack.c.h.b16 %v460
        %v1810 = vunpack.c.l.b16 %v461
        %v1811 = vunpack.c.h.b16 %v461
        %v1812 = vunpack.c.l.b16 %v462
        %v1813 = vunpack.c.h.b16 %v462
        %v1814 = vunpack.c.l.b16 %v463
        %v1815 = vunpack.c.h.b16 %v463
        %v1816 = vunpack.c.l.b16 %v464
        %v1817 = vunpack.c.h.b16 %v464
        %v1818 = vunpack.c.l.b16 %v465
        %v1819 = vunpack.c.h.b16 %v465
        %v1820 = vunpack.c.l.b16 %v466
        %v1821 = vunpack.c.h.b16 %v466
        %v1822 = vunpack.c.l.b16 %v467
        %v1823 = vunpack.c.h.b16 %v467
        %v1824 = vunpack.c.l.b16 %v468
        %v1825 = vunpack.c.h.b16 %v468
        %v1826 = vunpack.c.l.b16 %v469
        %v1827 = vunpack.c.h.b16 %v469
        %v1828 = vunpack.c.l.b16 %v470
        %v1829 = vunpack.c.h.b16 %v470
        %v1830 = vunpack.c.l.b16 %v471
        %v1831 = vunpack.c.h.b16 %v471
        %v1832 = vunpack.c.l.b16 %v472
        %v1833 = vunpack.c.h.b16 %v472
        %v1834 = vunpack.c.l.b16 %v473
        %v1835 = vunpack.c.h.b16 %v473
        %v1836 = vunpack.c.l.b16 %v474
        %v1837 = vunpack.c.h.b16 %v474
        %v1838 = vunpack.c.l.b16 %v475
        %v1839 = vunpack.c.h.b16 %v475
        %v1840 = vunpack.c.l.b16 %v476
        %v1841 = vunpack.c.h.b16 %v476
        %v1842 = vunpack.c.l.b16 %v477
        %v1843 = vunpack.c.h.b16 %v477
        %v1844 = vunpack.c.l.b16 %v478
        %v1845 = vunpack.c.h.b16 %v478
        %v1846 = vunpack.c.l.b16 %v479
        %v1847 = vunpack.c.h.b16 %v479
        %v1848 = vunpack.c.l.b16 %v480
        %v1849 = vunpack.c.h.b16 %v480
        %v1850 = vunpack.c.l.b16 %v481
        %v1851 = vunpack.c.h.b16 %v481
        %v1852 = vunpack.c.l.b16 %v482
        %v1853 = vunpack.c.h.b16 %v482
        %v1854 = vunpack.c.l.b16 %v483
        %v1855 = vunpack.c.h.b16 %v483
        %v1856 = vunpack.c.l.b16 %v484
        %v1857 = vunpack.c.h.b16 %v484
        %v1858 = vunpack.c.l.b16 %v485
        %v1859 = vunpack.c.h.b16 %v485
        %v1860 = vunpack.c.l.b16 %v486
        %v1861 = vunpack.c.h.b16 %v486
        %v1862 = vunpack.c.l.b16 %v487
        %v1863 = vunpack.c.h.b16 %v487
        %v1864 = vunpack.c.l.b16 %v488
        %v1865 = vunpack.c.h.b16 %v488
        %v1866 = vunpack.c.l.b16 %v489
        %v1867 = vunpack.c.h.b16 %v489
        %v1868 = vunpack.c.l.b16 %v490
        %v1869 = vunpack.c.h.b16 %v490
        %v1870 = vunpack.c.l.b16 %v491
        %v1871 = vunpack.c.h.b16 %v491
        %v1872 = vunpack.c.l.b16 %v492
        %v1873 = vunpack.c.h.b16 %v492
        %v1874 = vunpack.c.l.b16 %v493
        %v1875 = vunpack.c.h.b16 %v493
        %v1876 = vunpack.c.l.b16 %v494
        %v1877 = vunpack.c.h.b16 %v494
        %v1878 = vunpack.c.l.b16 %v495
        %v1879 = vunpack.c.h.b16 %v495
        %v1880 = vunpack.c.l.b16 %v496
        %v1881 = vunpack.c.h.b16 %v496
        %v1882 = vunpack.c.l.b16 %v497
        %v1883 = vunpack.c.h.b16 %v497
        %v1884 = vunpack.c.l.b16 %v498
        %v1885 = vunpack.c.h.b16 %v498
        %v1886 = vunpack.c.l.b16 %v499
        %v1887 = vunpack.c.h.b16 %v499
        %v1888 = vunpack.c.l.b16 %v500
        %v1889 = vunpack.c.h.b16 %v500
        %v1890 = vunpack.c.l.b16 %v501
        %v1891 = vunpack.c.h.b16 %v501
        %v1892 = vunpack.c.l.b16 %v502
        %v1893 = vunpack.c.h.b16 %v502
        %v1894 = vunpack.c.l.b16 %v503
        %v1895 = vunpack.c.h.b16 %v503
        %v1896 = vunpack.c.l.b16 %v504
        %v1897 = vunpack.c.h.b16 %v504
        %v1898 = vunpack.c.l.b16 %v505
        %v1899 = vunpack.c.h.b16 %v505
        %v1900 = vunpack.c.l.b16 %v506
        %v1901 = vunpack.c.h.b16 %v506
        %v1902 = vunpack.c.l.b16 %v507
        %v1903 = vunpack.c.h.b16 %v507
        %v1904 = vunpack.c.l.b16 %v508
        %v1905 = vunpack.c.h.b16 %v508
        %v1906 = vunpack.c.l.b16 %v509
        %v1907 = vunpack.c.h.b16 %v509
        %v1908 = vunpack.c.l.b16 %v510
        %v1909 = vunpack.c.h.b16 %v510
        %v1910 = vunpack.c.l.b16 %v511
        %v1911 = vunpack.c.h.b16 %v511
        %v1912 = vunpack.c.l.b16 %v512
        %v1913 = vunpack.c.h.b16 %v512
        %v1914 = vunpack.c.l.b16 %v513
        %v1915 = vunpack.c.h.b16 %v513
        %v1916 = vunpack.c.l.b16 %v514
        %v1917 = vunpack.c.h.b16 %v514
        %v1918 = vunpack.c.l.b16 %v515
        %v1919 = vunpack.c.h.b16 %v515
        %v1920 = vunpack.c.l.b16 %v516
        %v1921 = vunpack.c.h.b16 %v516
        %v1922 = vunpack.c.l.b16 %v517
        %v1923 = vunpack.c.h.b16 %v517
        %v1924 = vunpack.c.l.b16 %v518
        %v1925 = vunpack.c.h.b16 %v518
        %v1926 = vunpack.c.l.b16 %v519
        %v1927 = vunpack.c.h.b16 %v519
        %v1928 = vunpack.c.l.b16 %v520
        %v1929 = vunpack.c.h.b16 %v520
        %v1930 = vunpack.c.l.b16 %v521
        %v1931 = vunpack.c.h.b16 %v521
        %v1932 = vunpack.c.l.b16 %v522
        %v1933 = vunpack.c.h.b16 %v522
        %v1934 = vunpack.c.l.b16 %v523
        %v1935 = vunpack.c.h.b16 %v523
        %v1936 = vunpack.c.l.b16 %v524
        %v1937 = vunpack.c.h.b16 %v524
        %v1938 = vunpack.c.l.b16 %v525
        %v1939 = vunpack.c.h.b16 %v525
        %v1940 = vunpack.c.l.b16 %v526
        %v1941 = vunpack.c.h.b16 %v526
        %v1942 = vunpack.c.l.b16 %v527
        %v1943 = vunpack.c.h.b16 %v527
        %v1944 = vunpack.c.l.b16 %v528
        %v1945 = vunpack.c.h.b16 %v528
        %v1946 = vunpack.c.l.b16 %v529
        %v1947 = vunpack.c.h.b16 %v529
        %v1948 = vunpack.c.l.b16 %v530
        %v1949 = vunpack.c.h.b16 %v530
        %v1950 = vunpack.c.l.b16 %v531
        %v1951 = vunpack.c.h.b16 %v531
        %v1952 = vunpack.c.l.b16 %v532
        %v1953 = vunpack.c.h.b16 %v532
        %v1954 = vunpack.c.l.b16 %v533
        %v1955 = vunpack.c.h.b16 %v533
        %v1956 = vunpack.c.l.b16 %v534
        %v1957 = vunpack.c.h.b16 %v534
        %v1958 = vunpack.c.l.b16 %v535
        %v1959 = vunpack.c.h.b16 %v535
        %v1960 = vunpack.c.l.b16 %v536
        %v1961 = vunpack.c.h.b16 %v536
        %v1962 = vunpack.c.l.b16 %v537
        %v1963 = vunpack.c.h.b16 %v537
        %v1964 = vunpack.c.l.b16 %v538
        %v1965 = vunpack.c.h.b16 %v538
        %v1966 = vunpack.c.l.b16 %v539
        %v1967 = vunpack.c.h.b16 %v539
        %v1968 = vunpack.c.l.b16 %v540
        %v1969 = vunpack.c.h.b16 %v540
        %v1970 = vunpack.c.l.b16 %v541
        %v1971 = vunpack.c.h.b16 %v541
        %v1972 = vunpack.c.l.b16 %v542
        %v1973 = vunpack.c.h.b16 %v542
        %v1974 = vunpack.c.l.b16 %v543
        %v1975 = vunpack.c.h.b16 %v543
        %v1976 = vunpack.c.l.b16 %v544
        %v1977 = vunpack.c.h.b16 %v544
        %v1978 = vunpack.c.l.b16 %v545
        %v1979 = vunpack.c.h.b16 %v545
        %v1980 = vunpack.c.l.b16 %v546
        %v1981 = vunpack.c.h.b16 %v546
        %v1982 = vunpack.c.l.b16 %v547
        %v1983 = vunpack.c.h.b16 %v547
        %v1984 = vunpack.c.l.b16 %v548
        %v1985 = vunpack.c.h.b16 %v548
        %v1986 = vunpack.c.l.b16 %v549
        %v1987 = vunpack.c.h.b16 %v549
        %v1988 = vunpack.c.l.b16 %v550
        %v1989 = vunpack.c.h.b16 %v550
        %v1990 = vunpack.c.l.b16 %v551
        %v1991 = vunpack.c.h.b16 %v551
        %v1992 = vunpack.c.l.b16 %v552
        %v1993 = vunpack.c.h.b16 %v552
        %v1994 = vunpack.c.l.b16 %v553
        %v1995 = vunpack.c.h.b16 %v553
        %v1996 = vunpack.c.l.b16 %v554
        %v1997 = vunpack.c.h.b16 %v554
        %v1998 = vunpack.c.l.b16 %v555
        %v1999 = vunpack.c.h.b16 %v555
        %v2000 = vunpack.c.l.b16 %v556
        %v2001 = vunpack.c.h.b16 %v556
        %v2002 = vunpack.c.l.b16 %v557
        %v2003 = vunpack.c.h.b16 %v557
        %v2004 = vunpack.c.l.b16 %v558
        %v2005 = vunpack.c.h.b16 %v558
        %v2006 = vunpack.c.l.b16 %v559
        %v2007 = vunpack.c.h.b16 %v559
        %v2008 = vunpack.c.l.b16 %v560
        %v2009 = vunpack.c.h.b16 %v560
        %v2010 = vunpack.c.l.b16 %v561
        %v2011 = vunpack.c.h.b16 %v561
        %v2012 = vunpack.c.l.b16 %v562
        %v2013 = vunpack.c.h.b16 %v562
        %v2014 = vunpack.c.l.b16 %v563
        %v2015 = vunpack.c.h.b16 %v563
        %v2016 = vunpack.c.l.b16 %v564
        %v2017 = vunpack.c.h.b16 %v564
        %v2018 = vunpack.c.l.b16 %v565
        %v2019 = vunpack.c.h.b16 %v565
        %v2020 = vunpack.c.l.b16 %v566
        %v2021 = vunpack.c.h.b16 %v566
        %v2022 = vunpack.c.l.b16 %v567
        %v2023 = vunpack.c.h.b16 %v567
        %v2024 = vunpack.c.l.b16 %v568
        %v2025 = vunpack.c.h.b16 %v568
        %v2026 = vunpack.c.l.b16 %v569
        %v2027 = vunpack.c.h.b16 %v569
        %v2028 = vunpack.c.l.b16 %v570
        %v2029 = vunpack.c.h.b16 %v570
        %v2030 = vunpack.c.l.b16 %v571
        %v2031 = vunpack.c.h.b16 %v571
        %v2032 = vunpack.c.l.b16 %v572
        %v2033 = vunpack.c.h.b16 %v572
        %v2034 = vunpack.c.l.b16 %v573
        %v2035 = vunpack.c.h.b16 %v573
        %v2036 = vunpack.c.l.b16 %v574
        %v2037 = vunpack.c.h.b16 %v574
        %v2038 = vunpack.c.l.b16 %v575
        %v2039 = vunpack.c.h.b16 %v575
        %v2040 = vunpack.c.l.b16 %v576
        %v2041 = vunpack.c.h.b16 %v576
        %v2042 = vunpack.c.l.b16 %v577
        %v2043 = vunpack.c.h.b16 %v577
        %v2044 = vunpack.c.l.b16 %v578
        %v2045 = vunpack.c.h.b16 %v578
        %v2046 = vunpack.c.l.b16 %v579
        %v2047 = vunpack.c.h.b16 %v579
        %v2048 = vunpack.c.l.b16 %v580
        %v2049 = vunpack.c.h.b16 %v580
        %v2050 = vunpack.c.l.b16 %v581
        %v2051 = vunpack.c.h.b16 %v581
        %v2052 = vunpack.c.l.b16 %v582
        %v2053 = vunpack.c.h.b16 %v582
        %v2054 = vunpack.c.l.b16 %v583
        %v2055 = vunpack.c.h.b16 %v583
        %v2056 = vunpack.c.l.b16 %v584
        %v2057 = vunpack.c.h.b16 %v584
        %v2058 = vunpack.c.l.b16 %v585
        %v2059 = vunpack.c.h.b16 %v585
        %v2060 = vunpack.c.l.b16 %v586
        %v2061 = vunpack.c.h.b16 %v586
        %v2062 = vunpack.c.l.b16 %v587
        %v2063 = vunpack.c.h.b16 %v587
        %v2064 = vunpack.c.l.b16 %v588
        %v2065 = vunpack.c.h.b16 %v588
        %v2066 = vunpack.c.l.b16 %v589
        %v2067 = vunpack.c.h.b16 %v589
        %v2068 = vunpack.c.l.b16 %v590
        %v2069 = vunpack.c.h.b16 %v590
        %v2070 = vunpack.c.l.b16 %v591
        %v2071 = vunpack.c.h.b16 %v591
        %v2072 = vunpack.c.l.b16 %v592
        %v2073 = vunpack.c.h.b16 %v592
        %v2074 = vunpack.c.l.b16 %v593
        %v2075 = vunpack.c.h.b16 %v593
        %v2076 = vunpack.c.l.b16 %v594
        %v2077 = vunpack.c.h.b16 %v594
        %v2078 = vunpack.c.l.b16 %v595
        %v2079 = vunpack.c.h.b16 %v595
        %v2080 = vunpack.c.l.b16 %v596
        %v2081 = vunpack.c.h.b16 %v596
        %v2082 = vunpack.c.l.b16 %v597
        %v2083 = vunpack.c.h.b16 %v597
        %v2084 = vunpack.c.l.b16 %v598
        %v2085 = vunpack.c.h.b16 %v598
        %v2086 = vunpack.c.l.b16 %v599
        %v2087 = vunpack.c.h.b16 %v599
        %v2088 = vunpack.c.l.b16 %v600
        %v2089 = vunpack.c.h.b16 %v600
        %v2090 = vunpack.c.l.b16 %v601
        %v2091 = vunpack.c.h.b16 %v601
        %v2092 = vunpack.c.l.b16 %v602
        %v2093 = vunpack.c.h.b16 %v602
        %v2094 = vunpack.c.l.b16 %v603
        %v2095 = vunpack.c.h.b16 %v603
        %v2096 = vunpack.c.l.b16 %v604
        %v2097 = vunpack.c.h.b16 %v604
        %v2098 = vunpack.c.l.b16 %v605
        %v2099 = vunpack.c.h.b16 %v605
        %v2100 = vunpack.c.l.b16 %v606
        %v2101 = vunpack.c.h.b16 %v606
        %v2102 = vunpack.c.l.b16 %v607
        %v2103 = vunpack.c.h.b16 %v607
        %v2104 = vunpack.c.l.b16 %v608
        %v2105 = vunpack.c.h.b16 %v608
        %v2106 = vunpack.c.l.b16 %v609
        %v2107 = vunpack.c.h.b16 %v609
        %v2108 = vunpack.c.l.b16 %v610
        %v2109 = vunpack.c.h.b16 %v610
        %v2110 = vunpack.c.l.b16 %v611
        %v2111 = vunpack.c.h.b16 %v611
        %v2112 = vunpack.c.l.b16 %v612
        %v2113 = vunpack.c.h.b16 %v612
        %v2114 = vunpack.c.l.b16 %v613
        %v2115 = vunpack.c.h.b16 %v613
        %v2116 = vunpack.c.l.b16 %v614
        %v2117 = vunpack.c.h.b16 %v614
        %v2118 = vunpack.c.l.b16 %v615
        %v2119 = vunpack.c.h.b16 %v615
        %v2120 = vunpack.c.l.b16 %v616
        %v2121 = vunpack.c.h.b16 %v616
        %v2122 = vunpack.c.l.b16 %v617
        %v2123 = vunpack.c.h.b16 %v617
        %v2124 = vunpack.c.l.b16 %v618
        %v2125 = vunpack.c.h.b16 %v618
        %v2126 = vunpack.c.l.b16 %v619
        %v2127 = vunpack.c.h.b16 %v619
        %v2128 = vunpack.c.l.b16 %v620
        %v2129 = vunpack.c.h.b16 %v620
        %v2130 = vunpack.c.l.b16 %v621
        %v2131 = vunpack.c.h.b16 %v621
        %v2132 = vunpack.c.l.b16 %v622
        %v2133 = vunpack.c.h.b16 %v622
        %v2134 = vunpack.c.l.b16 %v623
        %v2135 = vunpack.c.h.b16 %v623
        %v2136 = vunpack.c.l.b16 %v624
        %v2137 = vunpack.c.h.b16 %v624
        %v2138 = vunpack.c.l.b16 %v625
        %v2139 = vunpack.c.h.b16 %v625
        %v2140 = vunpack.c.l.b16 %v626
        %v2141 = vunpack.c.h.b16 %v626
        %v2142 = vunpack.c.l.b16 %v627
        %v2143 = vunpack.c.h.b16 %v627
        %v2144 = vunpack.c.l.b16 %v628
        %v2145 = vunpack.c.h.b16 %v628
        %v2146 = vunpack.c.l.b16 %v629
        %v2147 = vunpack.c.h.b16 %v629
        %v2148 = vunpack.c.l.b16 %v630
        %v2149 = vunpack.c.h.b16 %v630
        %v2150 = vunpack.c.l.b16 %v631
        %v2151 = vunpack.c.h.b16 %v631
        %v2152 = vunpack.c.l.b16 %v632
        %v2153 = vunpack.c.h.b16 %v632
        %v2154 = vunpack.c.l.b16 %v633
        %v2155 = vunpack.c.h.b16 %v633
        %v2156 = vunpack.c.l.b16 %v634
        %v2157 = vunpack.c.h.b16 %v634
        %v2158 = vunpack.c.l.b16 %v635
        %v2159 = vunpack.c.h.b16 %v635
        %v2160 = vunpack.c.l.b16 %v636
        %v2161 = vunpack.c.h.b16 %v636
        %v2162 = vunpack.c.l.b16 %v637
        %v2163 = vunpack.c.h.b16 %v637
        %v2164 = vunpack.c.l.b16 %v638
        %v2165 = vunpack.c.h.b16 %v638
        %v2166 = vunpack.c.l.b16 %v639
        %v2167 = vunpack.c.h.b16 %v639
        %v2168 = vunpack.c.l.b16 %v640
        %v2169 = vunpack.c.h.b16 %v640
        %v2170 = vunpack.c.l.b16 %v641
        %v2171 = vunpack.c.h.b16 %v641
        %v2172 = vunpack.c.l.b16 %v642
        %v2173 = vunpack.c.h.b16 %v642
        %v2174 = vunpack.c.l.b16 %v643
        %v2175 = vunpack.c.h.b16 %v643
        %v2176 = vunpack.c.l.b16 %v644
        %v2177 = vunpack.c.h.b16 %v644
        %v2178 = vunpack.c.l.b16 %v645
        %v2179 = vunpack.c.h.b16 %v645
        %v2180 = vunpack.c.l.b16 %v646
        %v2181 = vunpack.c.h.b16 %v646
        %v2182 = vunpack.c.l.b16 %v647
        %v2183 = vunpack.c.h.b16 %v647
        %v2184 = vunpack.c.l.b16 %v648
        %v2185 = vunpack.c.h.b16 %v648
        %v2186 = vunpack.c.l.b16 %v649
        %v2187 = vunpack.c.h.b16 %v649
        %v2188 = vunpack.c.l.b16 %v650
        %v2189 = vunpack.c.h.b16 %v650
        %v2190 = vunpack.c.l.b16 %v651
        %v2191 = vunpack.c.h.b16 %v651
        %v2192 = vunpack.c.l.b16 %v652
        %v2193 = vunpack.c.h.b16 %v652
        %v2194 = vunpack.c.l.b16 %v653
        %v2195 = vunpack.c.h.b16 %v653
        %v2196 = vunpack.c.l.b16 %v654
        %v2197 = vunpack.c.h.b16 %v654
        %v2198 = vunpack.c.l.b16 %v655
        %v2199 = vunpack.c.h.b16 %v655
        %v2200 = vunpack.c.l.b16 %v656
        %v2201 = vunpack.c.h.b16 %v656
        %v2202 = vunpack.c.l.b16 %v657
        %v2203 = vunpack.c.h.b16 %v657
        %v2204 = vunpack.c.l.b16 %v658
        %v2205 = vunpack.c.h.b16 %v658
        %v2206 = vunpack.c.l.b16 %v659
        %v2207 = vunpack.c.h.b16 %v659
        %v2208 = vunpack.c.l.b16 %v660
        %v2209 = vunpack.c.h.b16 %v660
        %v2210 = vunpack.c.l.b16 %v661
        %v2211 = vunpack.c.h.b16 %v661
        %v2212 = vunpack.c.l.b16 %v662
        %v2213 = vunpack.c.h.b16 %v662
        %v2214 = vunpack.c.l.b16 %v663
        %v2215 = vunpack.c.h.b16 %v663
        %v2216 = vunpack.c.l.b16 %v664
        %v2217 = vunpack.c.h.b16 %v664
        %v2218 = vunpack.c.l.b16 %v665
        %v2219 = vunpack.c.h.b16 %v665
        %v2220 = vunpack.c.l.b16 %v666
        %v2221 = vunpack.c.h.b16 %v666
        %v2222 = vunpack.c.l.b16 %v667
        %v2223 = vunpack.c.h.b16 %v667
        %v2224 = vunpack.c.l.b16 %v668
        %v2225 = vunpack.c.h.b16 %v668
        %v2226 = vunpack.c.l.b16 %v669
        %v2227 = vunpack.c.h.b16 %v669
        %v2228 = vunpack.c.l.b16 %v670
        %v2229 = vunpack.c.h.b16 %v670
        %v2230 = vunpack.c.l.b16 %v671
        %v2231 = vunpack.c.h.b16 %v671
        %v2232 = vunpack.c.l.b16 %v672
        %v2233 = vunpack.c.h.b16 %v672
        %v2234 = vunpack.c.l.b16 %v673
        %v2235 = vunpack.c.h.b16 %v673
        %v2236 = vunpack.c.l.b16 %v674
        %v2237 = vunpack.c.h.b16 %v674
        %v2238 = vunpack.c.l.b16 %v675
        %v2239 = vunpack.c.h.b16 %v675
        %v2240 = vunpack.c.l.b16 %v676
        %v2241 = vunpack.c.h.b16 %v676
        %v2242 = vunpack.c.l.b16 %v677
        %v2243 = vunpack.c.h.b16 %v677
        %v2244 = vunpack.c.l.b16 %v678
        %v2245 = vunpack.c.h.b16 %v678
        %v2246 = vunpack.c.l.b16 %v679
        %v2247 = vunpack.c.h.b16 %v679
        %v2248 = vunpack.c.l.b16 %v680
        %v2249 = vunpack.c.h.b16 %v680
        %v2250 = vunpack.c.l.b16 %v681
        %v2251 = vunpack.c.h.b16 %v681
        %v2252 = vunpack.c.l.b16 %v682
        %v2253 = vunpack.c.h.b16 %v682
        %v2254 = vunpack.c.l.b16 %v683
        %v2255 = vunpack.c.h.b16 %v683
        %v2256 = vunpack.c.l.b16 %v684
        %v2257 = vunpack.c.h.b16 %v684
        %v2258 = vunpack.c.l.b16 %v685
        %v2259 = vunpack.c.h.b16 %v685
        %v2260 = vunpack.c.l.b16 %v686
        %v2261 = vunpack.c.h.b16 %v686
        %v2262 = vunpack.c.l.b16 %v687
        %v2263 = vunpack.c.h.b16 %v687
        %v2264 = vunpack.c.l.b16 %v688
        %v2265 = vunpack.c.h.b16 %v688
        %v2266 = vunpack.c.l.b16 %v689
        %v2267 = vunpack.c.h.b16 %v689
        %v2268 = vunpack.c.l.b16 %v690
        %v2269 = vunpack.c.h.b16 %v690
        %v2270 = vunpack.c.l.b16 %v691
        %v2271 = vunpack.c.h.b16 %v691
        %v2272 = vunpack.c.l.b16 %v692
        %v2273 = vunpack.c.h.b16 %v692
        %v2274 = vunpack.c.l.b16 %v693
        %v2275 = vunpack.c.h.b16 %v693
        %v2276 = vunpack.c.l.b16 %v694
        %v2277 = vunpack.c.h.b16 %v694
        %v2278 = vunpack.c.l.b16 %v695
        %v2279 = vunpack.c.h.b16 %v695
        %v2280 = vunpack.c.l.b16 %v696
        %v2281 = vunpack.c.h.b16 %v696
        %v2282 = vunpack.c.l.b16 %v697
        %v2283 = vunpack.c.h.b16 %v697
        %v2284 = vunpack.c.l.b16 %v698
        %v2285 = vunpack.c.h.b16 %v698
        %v2286 = vunpack.c.l.b16 %v699
        %v2287 = vunpack.c.h.b16 %v699
        %v2288 = vunpack.c.l.b16 %v700
        %v2289 = vunpack.c.h.b16 %v700
        %v2290 = vunpack.c.l.b16 %v701
        %v2291 = vunpack.c.h.b16 %v701
        %v2292 = vunpack.c.l.b16 %v702
        %v2293 = vunpack.c.h.b16 %v702
        %v2294 = vunpack.c.l.b16 %v703
        %v2295 = vunpack.c.h.b16 %v703
        %v2296 = vunpack.c.l.b16 %v704
        %v2297 = vunpack.c.h.b16 %v704
        %v2298 = vunpack.c.l.b16 %v705
        %v2299 = vunpack.c.h.b16 %v705
        %v2300 = vunpack.c.l.b16 %v706
        %v2301 = vunpack.c.h.b16 %v706
        %v2302 = vunpack.c.l.b16 %v707
        %v2303 = vunpack.c.h.b16 %v707
        %v2304 = vunpack.c.l.b16 %v708
        %v2305 = vunpack.c.h.b16 %v708
        %v2306 = vunpack.c.l.b16 %v709
        %v2307 = vunpack.c.h.b16 %v709
        %v2308 = vunpack.c.l.b16 %v710
        %v2309 = vunpack.c.h.b16 %v710
        %v2310 = vunpack.c.l.b16 %v711
        %v2311 = vunpack.c.h.b16 %v711
        %v2312 = vunpack.c.l.b16 %v712
        %v2313 = vunpack.c.h.b16 %v712
        %v2314 = vunpack.c.l.b16 %v713
        %v2315 = vunpack.c.h.b16 %v713
        %v2316 = vunpack.c.l.b16 %v714
        %v2317 = vunpack.c.h.b16 %v714
        %v2318 = vunpack.c.l.b16 %v715
        %v2319 = vunpack.c.h.b16 %v715
        %v2320 = vunpack.c.l.b16 %v716
        %v2321 = vunpack.c.h.b16 %v716
        %v2322 = vunpack.c.l.b16 %v717
        %v2323 = vunpack.c.h.b16 %v717
        %v2324 = vunpack.c.l.b16 %v718
        %v2325 = vunpack.c.h.b16 %v718
        %v2326 = vunpack.c.l.b16 %v719
        %v2327 = vunpack.c.h.b16 %v719
        %v2328 = vunpack.c.l.b16 %v720
        %v2329 = vunpack.c.h.b16 %v720
        %v2330 = vunpack.c.l.b16 %v721
        %v2331 = vunpack.c.h.b16 %v721
        %v2332 = vunpack.c.l.b16 %v722
        %v2333 = vunpack.c.h.b16 %v722
        %v2334 = vunpack.c.l.b16 %v723
        %v2335 = vunpack.c.h.b16 %v723
        %v2336 = vunpack.c.l.b16 %v724
        %v2337 = vunpack.c.h.b16 %v724
        %v2338 = vunpack.c.l.b16 %v725
        %v2339 = vunpack.c.h.b16 %v725
        %v2340 = vunpack.c.l.b16 %v726
        %v2341 = vunpack.c.h.b16 %v726
        %v2342 = vunpack.c.l.b16 %v727
        %v2343 = vunpack.c.h.b16 %v727
        %v2344 = vunpack.c.l.b16 %v728
        %v2345 = vunpack.c.h.b16 %v728
        %v2346 = vunpack.c.l.b16 %v729
        %v2347 = vunpack.c.h.b16 %v729
        %v2348 = vunpack.c.l.b16 %v730
        %v2349 = vunpack.c.h.b16 %v730
        %v2350 = vunpack.c.l.b16 %v731
        %v2351 = vunpack.c.h.b16 %v731
        %v2352 = vunpack.c.l.b16 %v732
        %v2353 = vunpack.c.h.b16 %v732
        %v2354 = vunpack.c.l.b16 %v733
        %v2355 = vunpack.c.h.b16 %v733
        %v2356 = vunpack.c.l.b16 %v734
        %v2357 = vunpack.c.h.b16 %v734
        %v2358 = vunpack.c.l.b16 %v735
        %v2359 = vunpack.c.h.b16 %v735
        %v2360 = vunpack.c.l.b16 %v736
        %v2361 = vunpack.c.h.b16 %v736
        %v2362 = vunpack.c.l.b16 %v737
        %v2363 = vunpack.c.h.b16 %v737
        %v2364 = vunpack.c.l.b16 %v738
        %v2365 = vunpack.c.h.b16 %v738
        %v2366 = vunpack.c.l.b16 %v739
        %v2367 = vunpack.c.h.b16 %v739
        %v2368 = vunpack.c.l.b16 %v740
        %v2369 = vunpack.c.h.b16 %v740
        %v2370 = vunpack.c.l.b16 %v741
        %v2371 = vunpack.c.h.b16 %v741
        %v2372 = vunpack.c.l.b16 %v742
        %v2373 = vunpack.c.h.b16 %v742
        %v2374 = vunpack.c.l.b16 %v743
        %v2375 = vunpack.c.h.b16 %v743
        %v2376 = vunpack.c.l.b16 %v744
        %v2377 = vunpack.c.h.b16 %v744
        %v2378 = vunpack.c.l.b16 %v745
        %v2379 = vunpack.c.h.b16 %v745
        %v2380 = vunpack.c.l.b16 %v746
        %v2381 = vunpack.c.h.b16 %v746
        %v2382 = vunpack.c.l.b16 %v747
        %v2383 = vunpack.c.h.b16 %v747
        %v2384 = vunpack.c.l.b16 %v748
        %v2385 = vunpack.c.h.b16 %v748
        %v2386 = vunpack.c.l.b16 %v749
        %v2387 = vunpack.c.h.b16 %v749
        %v2388 = vunpack.c.l.b16 %v750
        %v2389 = vunpack.c.h.b16 %v750
        %v2390 = vunpack.c.l.b16 %v751
        %v2391 = vunpack.c.h.b16 %v751
        %v2392 = vunpack.c.l.b16 %v752
        %v2393 = vunpack.c.h.b16 %v752
        %v2394 = vunpack.c.l.b16 %v753
        %v2395 = vunpack.c.h.b16 %v753
        %v2396 = vunpack.c.l.b16 %v754
        %v2397 = vunpack.c.h.b16 %v754
        %v2398 = vunpack.c.l.b16 %v755
        %v2399 = vunpack.c.h.b16 %v755
        %v2400 = vunpack.c.l.b16 %v756
        %v2401 = vunpack.c.h.b16 %v756
        %v2402 = vunpack.c.l.b16 %v757
        %v2403 = vunpack.c.h.b16 %v757
        %v2404 = vunpack.c.l.b16 %v758
        %v2405 = vunpack.c.h.b16 %v758
        %v2406 = vunpack.c.l.b16 %v759
        %v2407 = vunpack.c.h.b16 %v759
        %v2408 = vunpack.c.l.b16 %v760
        %v2409 = vunpack.c.h.b16 %v760
        %v2410 = vunpack.c.l.b16 %v761
        %v2411 = vunpack.c.h.b16 %v761
        %v2412 = vunpack.c.l.b16 %v762
        %v2413 = vunpack.c.h.b16 %v762
        %v2414 = vunpack.c.l.b16 %v763
        %v2415 = vunpack.c.h.b16 %v763
        %v2416 = vunpack.c.l.b16 %v764
        %v2417 = vunpack.c.h.b16 %v764
        %v2418 = vunpack.c.l.b16 %v765
        %v2419 = vunpack.c.h.b16 %v765
        %v2420 = vunpack.c.l.b16 %v766
        %v2421 = vunpack.c.h.b16 %v766
        %v2422 = vunpack.c.l.b16 %v767
        %v2423 = vunpack.c.h.b16 %v767
        %v2424 = vunpack.c.l.b16 %v768
        %v2425 = vunpack.c.h.b16 %v768
        %v2426 = vunpack.c.l.b16 %v769
        %v2427 = vunpack.c.h.b16 %v769
        %v2428 = vunpack.c.l.b16 %v770
        %v2429 = vunpack.c.h.b16 %v770
        %v2430 = vunpack.c.l.b16 %v771
        %v2431 = vunpack.c.h.b16 %v771
        %v2432 = vunpack.c.l.b16 %v772
        %v2433 = vunpack.c.h.b16 %v772
        %v2434 = vunpack.c.l.b16 %v773
        %v2435 = vunpack.c.h.b16 %v773
        %v2436 = vunpack.c.l.b16 %v774
        %v2437 = vunpack.c.h.b16 %v774
        %v2438 = vunpack.c.l.b16 %v775
        %v2439 = vunpack.c.h.b16 %v775
        %v2440 = vunpack.c.l.b16 %v776
        %v2441 = vunpack.c.h.b16 %v776
        %v2442 = vunpack.c.l.b16 %v777
        %v2443 = vunpack.c.h.b16 %v777
        %v2444 = vunpack.c.l.b16 %v778
        %v2445 = vunpack.c.h.b16 %v778
        %v2446 = vunpack.c.l.b16 %v779
        %v2447 = vunpack.c.h.b16 %v779
        %v2448 = vunpack.c.l.b16 %v780
        %v2449 = vunpack.c.h.b16 %v780
        %v2450 = vunpack.c.l.b16 %v781
        %v2451 = vunpack.c.h.b16 %v781
        %v2452 = vunpack.c.l.b16 %v782
        %v2453 = vunpack.c.h.b16 %v782
        %v2454 = vunpack.c.l.b16 %v783
        %v2455 = vunpack.c.h.b16 %v783
        %v2456 = vunpack.c.l.b16 %v784
        %v2457 = vunpack.c.h.b16 %v784
        %v2458 = vunpack.c.l.b16 %v785
        %v2459 = vunpack.c.h.b16 %v785
        %v2460 = vunpack.c.l.b16 %v786
        %v2461 = vunpack.c.h.b16 %v786
        %v2462 = vunpack.c.l.b16 %v787
        %v2463 = vunpack.c.h.b16 %v787
        %v2464 = vunpack.c.l.b16 %v788
        %v2465 = vunpack.c.h.b16 %v788
        %v2466 = vunpack.c.l.b16 %v789
        %v2467 = vunpack.c.h.b16 %v789
        %v2468 = vunpack.c.l.b16 %v790
        %v2469 = vunpack.c.h.b16 %v790
        %v2470 = vunpack.c.l.b16 %v791
        %v2471 = vunpack.c.h.b16 %v791
        %v2472 = vunpack.c.l.b16 %v792
        %v2473 = vunpack.c.h.b16 %v792
        %v2474 = vunpack.c.l.b16 %v793
        %v2475 = vunpack.c.h.b16 %v793
        %v2476 = vunpack.c.l.b16 %v794
        %v2477 = vunpack.c.h.b16 %v794
        %v2478 = vunpack.c.l.b16 %v795
        %v2479 = vunpack.c.h.b16 %v795
        %v2480 = vunpack.c.l.b16 %v796
        %v2481 = vunpack.c.h.b16 %v796
        %v2482 = vunpack.c.l.b16 %v797
        %v2483 = vunpack.c.h.b16 %v797
        %v2484 = vunpack.c.l.b16 %v798
        %v2485 = vunpack.c.h.b16 %v798
        %v2486 = vunpack.c.l.b16 %v799
        %v2487 = vunpack.c.h.b16 %v799
        %v2488 = vunpack.c.l.b16 %v800
        %v2489 = vunpack.c.h.b16 %v800
        %v2490 = vunpack.c.l.b16 %v801
        %v2491 = vunpack.c.h.b16 %v801
        %v2492 = vunpack.c.l.b16 %v802
        %v2493 = vunpack.c.h.b16 %v802
        %v2494 = vunpack.c.l.b16 %v803
        %v2495 = vunpack.c.h.b16 %v803
        %v2496 = vunpack.c.l.b16 %v804
        %v2497 = vunpack.c.h.b16 %v804
        %v2498 = vunpack.c.l.b16 %v805
        %v2499 = vunpack.c.h.b16 %v805
        %v2500 = vunpack.c.l.b16 %v806
        %v2501 = vunpack.c.h.b16 %v806
        %v2502 = vunpack.c.l.b16 %v807
        %v2503 = vunpack.c.h.b16 %v807
        %v2504 = vunpack.c.l.b16 %v808
        %v2505 = vunpack.c.h.b16 %v808
        %v2506 = vunpack.c.l.b16 %v809
        %v2507 = vunpack.c.h.b16 %v809
        %v2508 = vunpack.c.l.b16 %v810
        %v2509 = vunpack.c.h.b16 %v810
        %v2510 = vunpack.c.l.b16 %v811
        %v2511 = vunpack.c.h.b16 %v811
        %v2512 = vunpack.c.l.b16 %v812
        %v2513 = vunpack.c.h.b16 %v812
        %v2514 = vunpack.c.l.b16 %v813
        %v2515 = vunpack.c.h.b16 %v813
        %v2516 = vunpack.c.l.b16 %v814
        %v2517 = vunpack.c.h.b16 %v814
        %v2518 = vunpack.c.l.b16 %v815
        %v2519 = vunpack.c.h.b16 %v815
        %v2520 = vunpack.c.l.b16 %v816
        %v2521 = vunpack.c.h.b16 %v816
        %v2522 = vunpack.c.l.b16 %v817
        %v2523 = vunpack.c.h.b16 %v817
        %v2524 = vunpack.c.l.b16 %v818
        %v2525 = vunpack.c.h.b16 %v818
        %v2526 = vunpack.c.l.b16 %v819
        %v2527 = vunpack.c.h.b16 %v819
        %v2528 = vunpack.c.l.b16 %v820
        %v2529 = vunpack.c.h.b16 %v820
        %v2530 = vunpack.c.l.b16 %v821
        %v2531 = vunpack.c.h.b16 %v821
        %v2532 = vunpack.c.l.b16 %v822
        %v2533 = vunpack.c.h.b16 %v822
        %v2534 = vunpack.c.l.b16 %v823
        %v2535 = vunpack.c.h.b16 %v823
        %v2536 = vunpack.c.l.b16 %v824
        %v2537 = vunpack.c.h.b16 %v824
        %v2538 = vunpack.c.l.b16 %v825
        %v2539 = vunpack.c.h.b16 %v825
        %v2540 = vunpack.c.l.b16 %v826
        %v2541 = vunpack.c.h.b16 %v826
        %v2542 = vunpack.c.l.b16 %v827
        %v2543 = vunpack.c.h.b16 %v827
        %v2544 = vunpack.c.l.b16 %v828
        %v2545 = vunpack.c.h.b16 %v828
        %v2546 = vunpack.c.l.b16 %v829
        %v2547 = vunpack.c.h.b16 %v829
        %v2548 = vunpack.c.l.b16 %v830
        %v2549 = vunpack.c.h.b16 %v830
        %v2550 = vunpack.c.l.b16 %v831
        %v2551 = vunpack.c.h.b16 %v831
        %v2552 = vunpack.c.l.b16 %v832
        %v2553 = vunpack.c.h.b16 %v832
        %v2554 = vunpack.c.l.b16 %v833
        %v2555 = vunpack.c.h.b16 %v833
        %v2556 = vunpack.c.l.b16 %v834
        %v2557 = vunpack.c.h.b16 %v834
        %v2558 = vunpack.c.l.b16 %v835
        %v2559 = vunpack.c.h.b16 %v835
        %v2560 = vunpack.c.l.b16 %v836
        %v2561 = vunpack.c.h.b16 %v836
        %v2562 = vunpack.c.l.b16 %v837
        %v2563 = vunpack.c.h.b16 %v837
        %v2564 = vunpack.c.l.b16 %v838
        %v2565 = vunpack.c.h.b16 %v838
        %v2566 = vunpack.c.l.b16 %v839
        %v2567 = vunpack.c.h.b16 %v839
        %v2568 = vunpack.c.l.b16 %v840
        %v2569 = vunpack.c.h.b16 %v840
        %v2570 = vunpack.c.l.b16 %v841
        %v2571 = vunpack.c.h.b16 %v841
        %v2572 = vunpack.c.l.b16 %v842
        %v2573 = vunpack.c.h.b16 %v842
        %v2574 = vunpack.c.l.b16 %v843
        %v2575 = vunpack.c.h.b16 %v843
        %v2576 = vunpack.c.l.b16 %v844
        %v2577 = vunpack.c.h.b16 %v844
        %v2578 = vunpack.c.l.b16 %v845
        %v2579 = vunpack.c.h.b16 %v845
        %v2580 = vunpack.c.l.b16 %v846
        %v2581 = vunpack.c.h.b16 %v846
        %v2582 = vunpack.c.l.b16 %v847
        %v2583 = vunpack.c.h.b16 %v847
        %v2584 = vunpack.c.l.b16 %v848
        %v2585 = vunpack.c.h.b16 %v848
        %v2586 = vunpack.c.l.b16 %v849
        %v2587 = vunpack.c.h.b16 %v849
        %v2588 = vunpack.c.l.b16 %v850
        %v2589 = vunpack.c.h.b16 %v850
        %v2590 = vunpack.c.l.b16 %v851
        %v2591 = vunpack.c.h.b16 %v851
        %v2592 = vunpack.c.l.b16 %v852
        %v2593 = vunpack.c.h.b16 %v852
        %v2594 = vunpack.c.l.b16 %v853
        %v2595 = vunpack.c.h.b16 %v853
        %v2596 = vunpack.c.l.b16 %v854
        %v2597 = vunpack.c.h.b16 %v854
        %v2598 = vunpack.c.l.b16 %v855
        %v2599 = vunpack.c.h.b16 %v855
        %v2600 = vunpack.c.l.b16 %v856
        %v2601 = vunpack.c.h.b16 %v856
        %v2602 = vunpack.c.l.b16 %v857
        %v2603 = vunpack.c.h.b16 %v857
        %v2604 = vunpack.c.l.b16 %v858
        %v2605 = vunpack.c.h.b16 %v858
        %v2606 = vunpack.c.l.b16 %v859
        %v2607 = vunpack.c.h.b16 %v859
        %v2608 = vunpack.c.l.b16 %v860
        %v2609 = vunpack.c.h.b16 %v860
        %v2610 = vunpack.c.l.b16 %v861
        %v2611 = vunpack.c.h.b16 %v861
        %v2612 = vunpack.c.l.b16 %v862
        %v2613 = vunpack.c.h.b16 %v862
        %v2614 = vunpack.c.l.b16 %v863
        %v2615 = vunpack.c.h.b16 %v863
        %v2616 = vunpack.c.l.b16 %v864
        %v2617 = vunpack.c.h.b16 %v864
        %v2618 = vunpack.c.l.b16 %v865
        %v2619 = vunpack.c.h.b16 %v865
        %v2620 = vunpack.c.l.b16 %v866
        %v2621 = vunpack.c.h.b16 %v866
        %v2622 = vunpack.c.l.b16 %v867
        %v2623 = vunpack.c.h.b16 %v867
        %v2624 = vunpack.c.l.b16 %v868
        %v2625 = vunpack.c.h.b16 %v868
        %v2626 = vunpack.c.l.b16 %v869
        %v2627 = vunpack.c.h.b16 %v869
        %v2628 = vunpack.c.l.b16 %v870
        %v2629 = vunpack.c.h.b16 %v870
        %v2630 = vunpack.c.l.b16 %v871
        %v2631 = vunpack.c.h.b16 %v871
        %v2632 = vunpack.c.l.b16 %v872
        %v2633 = vunpack.c.h.b16 %v872
        %v2634 = vunpack.c.l.b16 %v873
        %v2635 = vunpack.c.h.b16 %v873
        %v2636 = vunpack.c.l.b16 %v874
        %v2637 = vunpack.c.h.b16 %v874
        %v2638 = vunpack.c.l.b16 %v875
        %v2639 = vunpack.c.h.b16 %v875
        %v2640 = vunpack.c.l.b16 %v876
        %v2641 = vunpack.c.h.b16 %v876
        %v2642 = vunpack.c.l.b16 %v877
        %v2643 = vunpack.c.h.b16 %v877
        %v2644 = vunpack.c.l.b16 %v878
        %v2645 = vunpack.c.h.b16 %v878
        %v2646 = vunpack.c.l.b16 %v879
        %v2647 = vunpack.c.h.b16 %v879
        %v2648 = vunpack.c.l.b16 %v880
        %v2649 = vunpack.c.h.b16 %v880
        %v2650 = vunpack.c.l.b16 %v881
        %v2651 = vunpack.c.h.b16 %v881
        %v2652 = vunpack.c.l.b16 %v882
        %v2653 = vunpack.c.h.b16 %v882
        %v2654 = vunpack.c.l.b16 %v883
        %v2655 = vunpack.c.h.b16 %v883
        %v2656 = vunpack.c.l.b16 %v884
        %v2657 = vunpack.c.h.b16 %v884
        %v2658 = vunpack.c.l.b16 %v885
        %v2659 = vunpack.c.h.b16 %v885
        %v2660 = vunpack.c.l.b16 %v886
        %v2661 = vunpack.c.h.b16 %v886
        %v2662 = vunpack.c.l.b16 %v887
        %v2663 = vunpack.c.h.b16 %v887
        %v2664 = vunpack.c.l.b16 %v888
        %v2665 = vunpack.c.h.b16 %v888
        %v2666 = vunpack.c.l.b16 %v889
        %v2667 = vunpack.c.h.b16 %v889
        %v2668 = vunpack.c.l.b16 %v890
        %v2669 = vunpack.c.h.b16 %v890
        %v2670 = vunpack.c.l.b16 %v891
        %v2671 = vunpack.c.h.b16 %v891
        %v2672 = vpack.c.b16 %v1664, %v1648
        %v2673 = vpack.c.b16 %v1665, %v1649
        %v2674 = vpack.c.b16 %v1666, %v1650
        %v2675 = vpack.c.b16 %v1667, %v1651
        %v2676 = vpack.c.b16 %v1668, %v1652
        %v2677 = vpack.c.b16 %v1669, %v1653
        %v2678 = vpack.c.b16 %v1670, %v1654
        %v2679 = vpack.c.b16 %v1671, %v1655
        %v2680 = vpack.c.b16 %v1672, %v1656
        %v2681 = vpack.c.b16 %v1673, %v1657
        %v2682 = vpack.c.b16 %v1674, %v1658
        %v2683 = vpack.c.b16 %v1675, %v1659
        %v2684 = vpack.c.b16 %v1676, %v1660
        %v2685 = vpack.c.b16 %v1677, %v1661
        %v2686 = vpack.c.b16 %v1678, %v1662
        %v2687 = vpack.c.b16 %v1679, %v1663
        %v2688 = vpack.c.b16 %v1696, %v1680
        %v2689 = vpack.c.b16 %v1697, %v1681
        %v2690 = vpack.c.b16 %v1698, %v1682
        %v2691 = vpack.c.b16 %v1699, %v1683
        %v2692 = vpack.c.b16 %v1700, %v1684
        %v2693 = vpack.c.b16 %v1701, %v1685
        %v2694 = vpack.c.b16 %v1702, %v1686
        %v2695 = vpack.c.b16 %v1703, %v1687
        %v2696 = vpack.c.b16 %v1704, %v1688
        %v2697 = vpack.c.b16 %v1705, %v1689
        %v2698 = vpack.c.b16 %v1706, %v1690
        %v2699 = vpack.c.b16 %v1707, %v1691
        %v2700 = vpack.c.b16 %v1708, %v1692
        %v2701 = vpack.c.b16 %v1709, %v1693
        %v2702 = vpack.c.b16 %v1710, %v1694
        %v2703 = vpack.c.b16 %v1711, %v1695
        %v2704 = vpack.c.b16 %v1728, %v1712
        %v2705 = vpack.c.b16 %v1729, %v1713
        %v2706 = vpack.c.b16 %v1730, %v1714
        %v2707 = vpack.c.b16 %v1731, %v1715
        %v2708 = vpack.c.b16 %v1732, %v1716
        %v2709 = vpack.c.b16 %v1733, %v1717
        %v2710 = vpack.c.b16 %v1734, %v1718
        %v2711 = vpack.c.b16 %v1735, %v1719
        %v2712 = vpack.c.b16 %v1736, %v1720
        %v2713 = vpack.c.b16 %v1737, %v1721
        %v2714 = vpack.c.b16 %v1738, %v1722
        %v2715 = vpack.c.b16 %v1739, %v1723
        %v2716 = vpack.c.b16 %v1740, %v1724
        %v2717 = vpack.c.b16 %v1741, %v1725
        %v2718 = vpack.c.b16 %v1742, %v1726
        %v2719 = vpack.c.b16 %v1743, %v1727
        %v2720 = vpack.c.b16 %v1760, %v1744
        %v2721 = vpack.c.b16 %v1761, %v1745
        %v2722 = vpack.c.b16 %v1762, %v1746
        %v2723 = vpack.c.b16 %v1763, %v1747
        %v2724 = vpack.c.b16 %v1764, %v1748
        %v2725 = vpack.c.b16 %v1765, %v1749
        %v2726 = vpack.c.b16 %v1766, %v1750
        %v2727 = vpack.c.b16 %v1767, %v1751
        %v2728 = vpack.c.b16 %v1768, %v1752
        %v2729 = vpack.c.b16 %v1769, %v1753
        %v2730 = vpack.c.b16 %v1770, %v1754
        %v2731 = vpack.c.b16 %v1771, %v1755
        %v2732 = vpack.c.b16 %v1772, %v1756
        %v2733 = vpack.c.b16 %v1773, %v1757
        %v2734 = vpack.c.b16 %v1774, %v1758
        %v2735 = vpack.c.b16 %v1775, %v1759
        %v2736 = vpack.c.b16 %v1792, %v1776
        %v2737 = vpack.c.b16 %v1793, %v1777
        %v2738 = vpack.c.b16 %v1794, %v1778
        %v2739 = vpack.c.b16 %v1795, %v1779
        %v2740 = vpack.c.b16 %v1796, %v1780
        %v2741 = vpack.c.b16 %v1797, %v1781
        %v2742 = vpack.c.b16 %v1798, %v1782
        %v2743 = vpack.c.b16 %v1799, %v1783
        %v2744 = vpack.c.b16 %v1800, %v1784
        %v2745 = vpack.c.b16 %v1801, %v1785
        %v2746 = vpack.c.b16 %v1802, %v1786
        %v2747 = vpack.c.b16 %v1803, %v1787
        %v2748 = vpack.c.b16 %v1804, %v1788
        %v2749 = vpack.c.b16 %v1805, %v1789
        %v2750 = vpack.c.b16 %v1806, %v1790
        %v2751 = vpack.c.b16 %v1807, %v1791
        %v2752 = vpack.c.b16 %v1824, %v1808
        %v2753 = vpack.c.b16 %v1825, %v1809
        %v2754 = vpack.c.b16 %v1826, %v1810
        %v2755 = vpack.c.b16 %v1827, %v1811
        %v2756 = vpack.c.b16 %v1828, %v1812
        %v2757 = vpack.c.b16 %v1829, %v1813
        %v2758 = vpack.c.b16 %v1830, %v1814
        %v2759 = vpack.c.b16 %v1831, %v1815
        %v2760 = vpack.c.b16 %v1832, %v1816
        %v2761 = vpack.c.b16 %v1833, %v1817
        %v2762 = vpack.c.b16 %v1834, %v1818
        %v2763 = vpack.c.b16 %v1835, %v1819
        %v2764 = vpack.c.b16 %v1836, %v1820
        %v2765 = vpack.c.b16 %v1837, %v1821
        %v2766 = vpack.c.b16 %v1838, %v1822
        %v2767 = vpack.c.b16 %v1839, %v1823
        %v2768 = vpack.c.b16 %v1856, %v1840
        %v2769 = vpack.c.b16 %v1857, %v1841
        %v2770 = vpack.c.b16 %v1858, %v1842
        %v2771 = vpack.c.b16 %v1859, %v1843
        %v2772 = vpack.c.b16 %v1860, %v1844
        %v2773 = vpack.c.b16 %v1861, %v1845
        %v2774 = vpack.c.b16 %v1862, %v1846
        %v2775 = vpack.c.b16 %v1863, %v1847
        %v2776 = vpack.c.b16 %v1864, %v1848
        %v2777 = vpack.c.b16 %v1865, %v1849
        %v2778 = vpack.c.b16 %v1866, %v1850
        %v2779 = vpack.c.b16 %v1867, %v1851
        %v2780 = vpack.c.b16 %v1868, %v1852
        %v2781 = vpack.c.b16 %v1869, %v1853
        %v2782 = vpack.c.b16 %v1870, %v1854
        %v2783 = vpack.c.b16 %v1871, %v1855
        %v2784 = vpack.c.b16 %v1888, %v1872
        %v2785 = vpack.c.b16 %v1889, %v1873
        %v2786 = vpack.c.b16 %v1890, %v1874
        %v2787 = vpack.c.b16 %v1891, %v1875
        %v2788 = vpack.c.b16 %v1892, %v1876
        %v2789 = vpack.c.b16 %v1893, %v1877
        %v2790 = vpack.c.b16 %v1894, %v1878
        %v2791 = vpack.c.b16 %v1895, %v1879
        %v2792 = vpack.c.b16 %v1896, %v1880
        %v2793 = vpack.c.b16 %v1897, %v1881
        %v2794 = vpack.c.b16 %v1898, %v1882
        %v2795 = vpack.c.b16 %v1899, %v1883
        %v2796 = vpack.c.b16 %v1900, %v1884
        %v2797 = vpack.c.b16 %v1901, %v1885
        %v2798 = vpack.c.b16 %v1902, %v1886
        %v2799 = vpack.c.b16 %v1903, %v1887
        %v2800 = vpack.c.b16 %v1920, %v1904
        %v2801 = vpack.c.b16 %v1921, %v1905
        %v2802 = vpack.c.b16 %v1922, %v1906
        %v2803 = vpack.c.b16 %v1923, %v1907
        %v2804 = vpack.c.b16 %v1924, %v1908
        %v2805 = vpack.c.b16 %v1925, %v1909
        %v2806 = vpack.c.b16 %v1926, %v1910
        %v2807 = vpack.c.b16 %v1927, %v1911
        %v2808 = vpack.c.b16 %v1928, %v1912
        %v2809 = vpack.c.b16 %v1929, %v1913
        %v2810 = vpack.c.b16 %v1930, %v1914
        %v2811 = vpack.c.b16 %v1931, %v1915
        %v2812 = vpack.c.b16 %v1932, %v1916
        %v2813 = vpack.c.b16 %v1933, %v1917
        %v2814 = vpack.c.b16 %v1934, %v1918
        %v2815 = vpack.c.b16 %v1935, %v1919
        %v2816 = vpack.c.b16 %v1952, %v1936
        %v2817 = vpack.c.b16 %v1953, %v1937
        %v2818 = vpack.c.b16 %v1954, %v1938
        %v2819 = vpack.c.b16 %v1955, %v1939
        %v2820 = vpack.c.b16 %v1956, %v1940
        %v2821 = vpack.c.b16 %v1957, %v1941
        %v2822 = vpack.c.b16 %v1958, %v1942
        %v2823 = vpack.c.b16 %v1959, %v1943
        %v2824 = vpack.c.b16 %v1960, %v1944
        %v2825 = vpack.c.b16 %v1961, %v1945
        %v2826 = vpack.c.b16 %v1962, %v1946
        %v2827 = vpack.c.b16 %v1963, %v1947
        %v2828 = vpack.c.b16 %v1964, %v1948
        %v2829 = vpack.c.b16 %v1965, %v1949
        %v2830 = vpack.c.b16 %v1966, %v1950
        %v2831 = vpack.c.b16 %v1967, %v1951
        %v2832 = vpack.c.b16 %v1984, %v1968
        %v2833 = vpack.c.b16 %v1985, %v1969
        %v2834 = vpack.c.b16 %v1986, %v1970
        %v2835 = vpack.c.b16 %v1987, %v1971
        %v2836 = vpack.c.b16 %v1988, %v1972
        %v2837 = vpack.c.b16 %v1989, %v1973
        %v2838 = vpack.c.b16 %v1990, %v1974
        %v2839 = vpack.c.b16 %v1991, %v1975
        %v2840 = vpack.c.b16 %v1992, %v1976
        %v2841 = vpack.c.b16 %v1993, %v1977
        %v2842 = vpack.c.b16 %v1994, %v1978
        %v2843 = vpack.c.b16 %v1995, %v1979
        %v2844 = vpack.c.b16 %v1996, %v1980
        %v2845 = vpack.c.b16 %v1997, %v1981
        %v2846 = vpack.c.b16 %v1998, %v1982
        %v2847 = vpack.c.b16 %v1999, %v1983
        %v2848 = vpack.c.b16 %v2016, %v2000
        %v2849 = vpack.c.b16 %v2017, %v2001
        %v2850 = vpack.c.b16 %v2018, %v2002
        %v2851 = vpack.c.b16 %v2019, %v2003
        %v2852 = vpack.c.b16 %v2020, %v2004
        %v2853 = vpack.c.b16 %v2021, %v2005
        %v2854 = vpack.c.b16 %v2022, %v2006
        %v2855 = vpack.c.b16 %v2023, %v2007
        %v2856 = vpack.c.b16 %v2024, %v2008
        %v2857 = vpack.c.b16 %v2025, %v2009
        %v2858 = vpack.c.b16 %v2026, %v2010
        %v2859 = vpack.c.b16 %v2027, %v2011
        %v2860 = vpack.c.b16 %v2028, %v2012
        %v2861 = vpack.c.b16 %v2029, %v2013
        %v2862 = vpack.c.b16 %v2030, %v2014
        %v2863 = vpack.c.b16 %v2031, %v2015
        %v2864 = vpack.c.b16 %v2048, %v2032
        %v2865 = vpack.c.b16 %v2049, %v2033
        %v2866 = vpack.c.b16 %v2050, %v2034
        %v2867 = vpack.c.b16 %v2051, %v2035
        %v2868 = vpack.c.b16 %v2052, %v2036
        %v2869 = vpack.c.b16 %v2053, %v2037
        %v2870 = vpack.c.b16 %v2054, %v2038
        %v2871 = vpack.c.b16 %v2055, %v2039
        %v2872 = vpack.c.b16 %v2056, %v2040
        %v2873 = vpack.c.b16 %v2057, %v2041
        %v2874 = vpack.c.b16 %v2058, %v2042
        %v2875 = vpack.c.b16 %v2059, %v2043
        %v2876 = vpack.c.b16 %v2060, %v2044
        %v2877 = vpack.c.b16 %v2061, %v2045
        %v2878 = vpack.c.b16 %v2062, %v2046
        %v2879 = vpack.c.b16 %v2063, %v2047
        %v2880 = vpack.c.b16 %v2080, %v2064
        %v2881 = vpack.c.b16 %v2081, %v2065
        %v2882 = vpack.c.b16 %v2082, %v2066
        %v2883 = vpack.c.b16 %v2083, %v2067
        %v2884 = vpack.c.b16 %v2084, %v2068
        %v2885 = vpack.c.b16 %v2085, %v2069
        %v2886 = vpack.c.b16 %v2086, %v2070
        %v2887 = vpack.c.b16 %v2087, %v2071
        %v2888 = vpack.c.b16 %v2088, %v2072
        %v2889 = vpack.c.b16 %v2089, %v2073
        %v2890 = vpack.c.b16 %v2090, %v2074
        %v2891 = vpack.c.b16 %v2091, %v2075
        %v2892 = vpack.c.b16 %v2092, %v2076
        %v2893 = vpack.c.b16 %v2093, %v2077
        %v2894 = vpack.c.b16 %v2094, %v2078
        %v2895 = vpack.c.b16 %v2095, %v2079
        %v2896 = vpack.c.b16 %v2112, %v2096
        %v2897 = vpack.c.b16 %v2113, %v2097
        %v2898 = vpack.c.b16 %v2114, %v2098
        %v2899 = vpack.c.b16 %v2115, %v2099
        %v2900 = vpack.c.b16 %v2116, %v2100
        %v2901 = vpack.c.b16 %v2117, %v2101
        %v2902 = vpack.c.b16 %v2118, %v2102
        %v2903 = vpack.c.b16 %v2119, %v2103
        %v2904 = vpack.c.b16 %v2120, %v2104
        %v2905 = vpack.c.b16 %v2121, %v2105
        %v2906 = vpack.c.b16 %v2122, %v2106
        %v2907 = vpack.c.b16 %v2123, %v2107
        %v2908 = vpack.c.b16 %v2124, %v2108
        %v2909 = vpack.c.b16 %v2125, %v2109
        %v2910 = vpack.c.b16 %v2126, %v2110
        %v2911 = vpack.c.b16 %v2127, %v2111
        %v2912 = vpack.c.b16 %v2144, %v2128
        %v2913 = vpack.c.b16 %v2145, %v2129
        %v2914 = vpack.c.b16 %v2146, %v2130
        %v2915 = vpack.c.b16 %v2147, %v2131
        %v2916 = vpack.c.b16 %v2148, %v2132
        %v2917 = vpack.c.b16 %v2149, %v2133
        %v2918 = vpack.c.b16 %v2150, %v2134
        %v2919 = vpack.c.b16 %v2151, %v2135
        %v2920 = vpack.c.b16 %v2152, %v2136
        %v2921 = vpack.c.b16 %v2153, %v2137
        %v2922 = vpack.c.b16 %v2154, %v2138
        %v2923 = vpack.c.b16 %v2155, %v2139
        %v2924 = vpack.c.b16 %v2156, %v2140
        %v2925 = vpack.c.b16 %v2157, %v2141
        %v2926 = vpack.c.b16 %v2158, %v2142
        %v2927 = vpack.c.b16 %v2159, %v2143
        %v2928 = vpack.c.b16 %v2176, %v2160
        %v2929 = vpack.c.b16 %v2177, %v2161
        %v2930 = vpack.c.b16 %v2178, %v2162
        %v2931 = vpack.c.b16 %v2179, %v2163
        %v2932 = vpack.c.b16 %v2180, %v2164
        %v2933 = vpack.c.b16 %v2181, %v2165
        %v2934 = vpack.c.b16 %v2182, %v2166
        %v2935 = vpack.c.b16 %v2183, %v2167
        %v2936 = vpack.c.b16 %v2184, %v2168
        %v2937 = vpack.c.b16 %v2185, %v2169
        %v2938 = vpack.c.b16 %v2186, %v2170
        %v2939 = vpack.c.b16 %v2187, %v2171
        %v2940 = vpack.c.b16 %v2188, %v2172
        %v2941 = vpack.c.b16 %v2189, %v2173
        %v2942 = vpack.c.b16 %v2190, %v2174
        %v2943 = vpack.c.b16 %v2191, %v2175
        %v2944 = vpack.c.b16 %v2208, %v2192
        %v2945 = vpack.c.b16 %v2209, %v2193
        %v2946 = vpack.c.b16 %v2210, %v2194
        %v2947 = vpack.c.b16 %v2211, %v2195
        %v2948 = vpack.c.b16 %v2212, %v2196
        %v2949 = vpack.c.b16 %v2213, %v2197
        %v2950 = vpack.c.b16 %v2214, %v2198
        %v2951 = vpack.c.b16 %v2215, %v2199
        %v2952 = vpack.c.b16 %v2216, %v2200
        %v2953 = vpack.c.b16 %v2217, %v2201
        %v2954 = vpack.c.b16 %v2218, %v2202
        %v2955 = vpack.c.b16 %v2219, %v2203
        %v2956 = vpack.c.b16 %v2220, %v2204
        %v2957 = vpack.c.b16 %v2221, %v2205
        %v2958 = vpack.c.b16 %v2222, %v2206
        %v2959 = vpack.c.b16 %v2223, %v2207
        %v2960 = vpack.c.b16 %v2240, %v2224
        %v2961 = vpack.c.b16 %v2241, %v2225
        %v2962 = vpack.c.b16 %v2242, %v2226
        %v2963 = vpack.c.b16 %v2243, %v2227
        %v2964 = vpack.c.b16 %v2244, %v2228
        %v2965 = vpack.c.b16 %v2245, %v2229
        %v2966 = vpack.c.b16 %v2246, %v2230
        %v2967 = vpack.c.b16 %v2247, %v2231
        %v2968 = vpack.c.b16 %v2248, %v2232
        %v2969 = vpack.c.b16 %v2249, %v2233
        %v2970 = vpack.c.b16 %v2250, %v2234
        %v2971 = vpack.c.b16 %v2251, %v2235
        %v2972 = vpack.c.b16 %v2252, %v2236
        %v2973 = vpack.c.b16 %v2253, %v2237
        %v2974 = vpack.c.b16 %v2254, %v2238
        %v2975 = vpack.c.b16 %v2255, %v2239
        %v2976 = vpack.c.b16 %v2272, %v2256
        %v2977 = vpack.c.b16 %v2273, %v2257
        %v2978 = vpack.c.b16 %v2274, %v2258
        %v2979 = vpack.c.b16 %v2275, %v2259
        %v2980 = vpack.c.b16 %v2276, %v2260
        %v2981 = vpack.c.b16 %v2277, %v2261
        %v2982 = vpack.c.b16 %v2278, %v2262
        %v2983 = vpack.c.b16 %v2279, %v2263
        %v2984 = vpack.c.b16 %v2280, %v2264
        %v2985 = vpack.c.b16 %v2281, %v2265
        %v2986 = vpack.c.b16 %v2282, %v2266
        %v2987 = vpack.c.b16 %v2283, %v2267
        %v2988 = vpack.c.b16 %v2284, %v2268
        %v2989 = vpack.c.b16 %v2285, %v2269
        %v2990 = vpack.c.b16 %v2286, %v2270
        %v2991 = vpack.c.b16 %v2287, %v2271
        %v2992 = vpack.c.b16 %v2304, %v2288
        %v2993 = vpack.c.b16 %v2305, %v2289
        %v2994 = vpack.c.b16 %v2306, %v2290
        %v2995 = vpack.c.b16 %v2307, %v2291
        %v2996 = vpack.c.b16 %v2308, %v2292
        %v2997 = vpack.c.b16 %v2309, %v2293
        %v2998 = vpack.c.b16 %v2310, %v2294
        %v2999 = vpack.c.b16 %v2311, %v2295
        %v3000 = vpack.c.b16 %v2312, %v2296
        %v3001 = vpack.c.b16 %v2313, %v2297
        %v3002 = vpack.c.b16 %v2314, %v2298
        %v3003 = vpack.c.b16 %v2315, %v2299
        %v3004 = vpack.c.b16 %v2316, %v2300
        %v3005 = vpack.c.b16 %v2317, %v2301
        %v3006 = vpack.c.b16 %v2318, %v2302
        %v3007 = vpack.c.b16 %v2319, %v2303
        %v3008 = vpack.c.b16 %v2336, %v2320
        %v3009 = vpack.c.b16 %v2337, %v2321
        %v3010 = vpack.c.b16 %v2338, %v2322
        %v3011 = vpack.c.b16 %v2339, %v2323
        %v3012 = vpack.c.b16 %v2340, %v2324
        %v3013 = vpack.c.b16 %v2341, %v2325
        %v3014 = vpack.c.b16 %v2342, %v2326
        %v3015 = vpack.c.b16 %v2343, %v2327
        %v3016 = vpack.c.b16 %v2344, %v2328
        %v3017 = vpack.c.b16 %v2345, %v2329
        %v3018 = vpack.c.b16 %v2346, %v2330
        %v3019 = vpack.c.b16 %v2347, %v2331
        %v3020 = vpack.c.b16 %v2348, %v2332
        %v3021 = vpack.c.b16 %v2349, %v2333
        %v3022 = vpack.c.b16 %v2350, %v2334
        %v3023 = vpack.c.b16 %v2351, %v2335
        %v3024 = vpack.c.b16 %v2368, %v2352
        %v3025 = vpack.c.b16 %v2369, %v2353
        %v3026 = vpack.c.b16 %v2370, %v2354
        %v3027 = vpack.c.b16 %v2371, %v2355
        %v3028 = vpack.c.b16 %v2372, %v2356
        %v3029 = vpack.c.b16 %v2373, %v2357
        %v3030 = vpack.c.b16 %v2374, %v2358
        %v3031 = vpack.c.b16 %v2375, %v2359
        %v3032 = vpack.c.b16 %v2376, %v2360
        %v3033 = vpack.c.b16 %v2377, %v2361
        %v3034 = vpack.c.b16 %v2378, %v2362
        %v3035 = vpack.c.b16 %v2379, %v2363
        %v3036 = vpack.c.b16 %v2380, %v2364
        %v3037 = vpack.c.b16 %v2381, %v2365
        %v3038 = vpack.c.b16 %v2382, %v2366
        %v3039 = vpack.c.b16 %v2383, %v2367
        %v3040 = vpack.c.b16 %v2400, %v2384
        %v3041 = vpack.c.b16 %v2401, %v2385
        %v3042 = vpack.c.b16 %v2402, %v2386
        %v3043 = vpack.c.b16 %v2403, %v2387
        %v3044 = vpack.c.b16 %v2404, %v2388
        %v3045 = vpack.c.b16 %v2405, %v2389
        %v3046 = vpack.c.b16 %v2406, %v2390
        %v3047 = vpack.c.b16 %v2407, %v2391
        %v3048 = vpack.c.b16 %v2408, %v2392
        %v3049 = vpack.c.b16 %v2409, %v2393
        %v3050 = vpack.c.b16 %v2410, %v2394
        %v3051 = vpack.c.b16 %v2411, %v2395
        %v3052 = vpack.c.b16 %v2412, %v2396
        %v3053 = vpack.c.b16 %v2413, %v2397
        %v3054 = vpack.c.b16 %v2414, %v2398
        %v3055 = vpack.c.b16 %v2415, %v2399
        %v3056 = vpack.c.b16 %v2432, %v2416
        %v3057 = vpack.c.b16 %v2433, %v2417
        %v3058 = vpack.c.b16 %v2434, %v2418
        %v3059 = vpack.c.b16 %v2435, %v2419
        %v3060 = vpack.c.b16 %v2436, %v2420
        %v3061 = vpack.c.b16 %v2437, %v2421
        %v3062 = vpack.c.b16 %v2438, %v2422
        %v3063 = vpack.c.b16 %v2439, %v2423
        %v3064 = vpack.c.b16 %v2440, %v2424
        %v3065 = vpack.c.b16 %v2441, %v2425
        %v3066 = vpack.c.b16 %v2442, %v2426
        %v3067 = vpack.c.b16 %v2443, %v2427
        %v3068 = vpack.c.b16 %v2444, %v2428
        %v3069 = vpack.c.b16 %v2445, %v2429
        %v3070 = vpack.c.b16 %v2446, %v2430
        %v3071 = vpack.c.b16 %v2447, %v2431
        %v3072 = vpack.c.b16 %v2464, %v2448
        %v3073 = vpack.c.b16 %v2465, %v2449
        %v3074 = vpack.c.b16 %v2466, %v2450
        %v3075 = vpack.c.b16 %v2467, %v2451
        %v3076 = vpack.c.b16 %v2468, %v2452
        %v3077 = vpack.c.b16 %v2469, %v2453
        %v3078 = vpack.c.b16 %v2470, %v2454
        %v3079 = vpack.c.b16 %v2471, %v2455
        %v3080 = vpack.c.b16 %v2472, %v2456
        %v3081 = vpack.c.b16 %v2473, %v2457
        %v3082 = vpack.c.b16 %v2474, %v2458
        %v3083 = vpack.c.b16 %v2475, %v2459
        %v3084 = vpack.c.b16 %v2476, %v2460
        %v3085 = vpack.c.b16 %v2477, %v2461
        %v3086 = vpack.c.b16 %v2478, %v2462
        %v3087 = vpack.c.b16 %v2479, %v2463
        %v3088 = vpack.c.b16 %v2496, %v2480
        %v3089 = vpack.c.b16 %v2497, %v2481
        %v3090 = vpack.c.b16 %v2498, %v2482
        %v3091 = vpack.c.b16 %v2499, %v2483
        %v3092 = vpack.c.b16 %v2500, %v2484
        %v3093 = vpack.c.b16 %v2501, %v2485
        %v3094 = vpack.c.b16 %v2502, %v2486
        %v3095 = vpack.c.b16 %v2503, %v2487
        %v3096 = vpack.c.b16 %v2504, %v2488
        %v3097 = vpack.c.b16 %v2505, %v2489
        %v3098 = vpack.c.b16 %v2506, %v2490
        %v3099 = vpack.c.b16 %v2507, %v2491
        %v3100 = vpack.c.b16 %v2508, %v2492
        %v3101 = vpack.c.b16 %v2509, %v2493
        %v3102 = vpack.c.b16 %v2510, %v2494
        %v3103 = vpack.c.b16 %v2511, %v2495
        %v3104 = vpack.c.b16 %v2528, %v2512
        %v3105 = vpack.c.b16 %v2529, %v2513
        %v3106 = vpack.c.b16 %v2530, %v2514
        %v3107 = vpack.c.b16 %v2531, %v2515
        %v3108 = vpack.c.b16 %v2532, %v2516
        %v3109 = vpack.c.b16 %v2533, %v2517
        %v3110 = vpack.c.b16 %v2534, %v2518
        %v3111 = vpack.c.b16 %v2535, %v2519
        %v3112 = vpack.c.b16 %v2536, %v2520
        %v3113 = vpack.c.b16 %v2537, %v2521
        %v3114 = vpack.c.b16 %v2538, %v2522
        %v3115 = vpack.c.b16 %v2539, %v2523
        %v3116 = vpack.c.b16 %v2540, %v2524
        %v3117 = vpack.c.b16 %v2541, %v2525
        %v3118 = vpack.c.b16 %v2542, %v2526
        %v3119 = vpack.c.b16 %v2543, %v2527
        %v3120 = vpack.c.b16 %v2560, %v2544
        %v3121 = vpack.c.b16 %v2561, %v2545
        %v3122 = vpack.c.b16 %v2562, %v2546
        %v3123 = vpack.c.b16 %v2563, %v2547
        %v3124 = vpack.c.b16 %v2564, %v2548
        %v3125 = vpack.c.b16 %v2565, %v2549
        %v3126 = vpack.c.b16 %v2566, %v2550
        %v3127 = vpack.c.b16 %v2567, %v2551
        %v3128 = vpack.c.b16 %v2568, %v2552
        %v3129 = vpack.c.b16 %v2569, %v2553
        %v3130 = vpack.c.b16 %v2570, %v2554
        %v3131 = vpack.c.b16 %v2571, %v2555
        %v3132 = vpack.c.b16 %v2572, %v2556
        %v3133 = vpack.c.b16 %v2573, %v2557
        %v3134 = vpack.c.b16 %v2574, %v2558
        %v3135 = vpack.c.b16 %v2575, %v2559
        %v3136 = vpack.c.b16 %v2592, %v2576
        %v3137 = vpack.c.b16 %v2593, %v2577
        %v3138 = vpack.c.b16 %v2594, %v2578
        %v3139 = vpack.c.b16 %v2595, %v2579
        %v3140 = vpack.c.b16 %v2596, %v2580
        %v3141 = vpack.c.b16 %v2597, %v2581
        %v3142 = vpack.c.b16 %v2598, %v2582
        %v3143 = vpack.c.b16 %v2599, %v2583
        %v3144 = vpack.c.b16 %v2600, %v2584
        %v3145 = vpack.c.b16 %v2601, %v2585
        %v3146 = vpack.c.b16 %v2602, %v2586
        %v3147 = vpack.c.b16 %v2603, %v2587
        %v3148 = vpack.c.b16 %v2604, %v2588
        %v3149 = vpack.c.b16 %v2605, %v2589
        %v3150 = vpack.c.b16 %v2606, %v2590
        %v3151 = vpack.c.b16 %v2607, %v2591
        %v3152 = vpack.c.b16 %v2624, %v2608
        %v3153 = vpack.c.b16 %v2625, %v2609
        %v3154 = vpack.c.b16 %v2626, %v2610
        %v3155 = vpack.c.b16 %v2627, %v2611
        %v3156 = vpack.c.b16 %v2628, %v2612
        %v3157 = vpack.c.b16 %v2629, %v2613
        %v3158 = vpack.c.b16 %v2630, %v2614
        %v3159 = vpack.c.b16 %v2631, %v2615
        %v3160 = vpack.c.b16 %v2632, %v2616
        %v3161 = vpack.c.b16 %v2633, %v2617
        %v3162 = vpack.c.b16 %v2634, %v2618
        %v3163 = vpack.c.b16 %v2635, %v2619
        %v3164 = vpack.c.b16 %v2636, %v2620
        %v3165 = vpack.c.b16 %v2637, %v2621
        %v3166 = vpack.c.b16 %v2638, %v2622
        %v3167 = vpack.c.b16 %v2639, %v2623
        %v3168 = vpack.c.b16 %v2656, %v2640
        %v3169 = vpack.c.b16 %v2657, %v2641
        %v3170 = vpack.c.b16 %v2658, %v2642
        %v3171 = vpack.c.b16 %v2659, %v2643
        %v3172 = vpack.c.b16 %v2660, %v2644
        %v3173 = vpack.c.b16 %v2661, %v2645
        %v3174 = vpack.c.b16 %v2662, %v2646
        %v3175 = vpack.c.b16 %v2663, %v2647
        %v3176 = vpack.c.b16 %v2664, %v2648
        %v3177 = vpack.c.b16 %v2665, %v2649
        %v3178 = vpack.c.b16 %v2666, %v2650
        %v3179 = vpack.c.b16 %v2667, %v2651
        %v3180 = vpack.c.b16 %v2668, %v2652
        %v3181 = vpack.c.b16 %v2669, %v2653
        %v3182 = vpack.c.b16 %v2670, %v2654
        %v3183 = vpack.c.b16 %v2671, %v2655
        %3696 = vmatprep.subr.bf16.mxu0 %v2673
        %3697 = vmatpush1.bf16.msra.mxu0 %v2672
        %3698 = vmatprep.subr.bf16.mxu0 %v2689
        %3699 = vmatpush1.bf16.msra.mxu0 %v2688
        %3700 = vmatprep.subr.bf16.mxu0 %v2705
        %3701 = vmatpush1.bf16.msra.mxu0 %v2704
        %3702 = vmatprep.subr.bf16.mxu0 %v2721
        %3703 = vmatpush1.bf16.msra.mxu0 %v2720
        %3704 = vmatprep.subr.bf16.mxu0 %v2737
        %3705 = vmatpush1.bf16.msra.mxu0 %v2736
        %3706 = vmatprep.subr.bf16.mxu0 %v2753
        %3707 = vmatpush1.bf16.msra.mxu0 %v2752
        %3708 = vmatprep.subr.bf16.mxu0 %v2769
        %3709 = vmatpush1.bf16.msra.mxu0 %v2768
        %3710 = vmatprep.subr.bf16.mxu0 %v2785
        %3711 = vmatpush1.bf16.msra.mxu0 %v2784
        %3712 = vmatprep.subr.bf16.mxu0 %v2801
        %3713 = vmatpush1.bf16.msra.mxu0 %v2800
        %3714 = vmatprep.subr.bf16.mxu0 %v2817
        %3715 = vmatpush1.bf16.msra.mxu0 %v2816
        %3716 = vmatprep.subr.bf16.mxu0 %v2833
        %3717 = vmatpush1.bf16.msra.mxu0 %v2832
        %3718 = vmatprep.subr.bf16.mxu0 %v2849
        %3719 = vmatpush1.bf16.msra.mxu0 %v2848
        %3720 = vmatprep.subr.bf16.mxu0 %v2865
        %3721 = vmatpush1.bf16.msra.mxu0 %v2864
        %3722 = vmatprep.subr.bf16.mxu0 %v2881
        %3723 = vmatpush1.bf16.msra.mxu0 %v2880
        %3724 = vmatprep.subr.bf16.mxu0 %v2897
        %3725 = vmatpush1.bf16.msra.mxu0 %v2896
        %3726 = vmatprep.subr.bf16.mxu0 %v2913
        %3727 = vmatpush1.bf16.msra.mxu0 %v2912
        %3728 = vmatprep.mubr.bf16.mxu0 %v1073
        %3729 = vmatmul.mubr.bf16.gmra.mrb[0].mxu0 %v1072
        %v3730 = vpop.f32.mrb[0].mxu0
        %v3731 = vadd.f32 %v899, %v3730
        %v3732 = vpop.f32.mrb[0].mxu0
        %v3733 = vadd.f32 %v903, %v3732
        %v3734 = vpop.f32.mrb[0].mxu0
        %v3735 = vadd.f32 %v899, %v3734
        %v3736 = vpop.f32.mrb[0].mxu0
        %v3737 = vadd.f32 %v903, %v3736
        %3738 = vmatprep.mubr.bf16.mxu0 %v1077
        %3739 = vmatmul.mubr.bf16.gmra.mrb[0].mxu0 %v1076
        %v3740 = vpop.f32.mrb[0].mxu0
        %v3741 = vadd.f32 %v899, %v3740
        %v3742 = vpop.f32.mrb[0].mxu0
        %v3743 = vadd.f32 %v903, %v3742
        %v3744 = vpop.f32.mrb[0].mxu0
        %v3745 = vadd.f32 %v899, %v3744
        %v3746 = vpop.f32.mrb[0].mxu0
        %v3747 = vadd.f32 %v903, %v3746
        %3748 = vmatprep.mubr.bf16.mxu0 %v1081
        %3749 = vmatmul.mubr.bf16.gmra.mrb[0].mxu0 %v1080
        %v3750 = vpop.f32.mrb[0].mxu0
        %v3751 = vadd.f32 %v899, %v3750
        %v3752 = vpop.f32.mrb[0].mxu0
        %v3753 = vadd.f32 %v903, %v3752
        %v3754 = vpop.f32.mrb[0].mxu0
        %v3755 = vadd.f32 %v899, %v3754
        %v3756 = vpop.f32.mrb[0].mxu0
        %v3757 = vadd.f32 %v903, %v3756
        %3758 = vmatprep.mubr.bf16.mxu0 %v1085
        %3759 = vmatmul.mubr.bf16.gmra.mrb[0].mxu0 %v1084
        %v3760 = vpop.f32.mrb[0].mxu0
        %v3761 = vadd.f32 %v899, %v3760
        %v3762 = vpop.f32.mrb[0].mxu0
        %v3763 = vadd.f32 %v903, %v3762
        %v3764 = vpop.f32.mrb[0].mxu0
        %v3765 = vadd.f32 %v899, %v3764
        %v3766 = vpop.f32.mrb[0].mxu0
        %v3767 = vadd.f32 %v903, %v3766
        %3768 = vmatprep.mubr.bf16.mxu0 %v1089
        %3769 = vmatmul.mubr.bf16.gmra.mrb[0].mxu0 %v1088
        %v3770 = vpop.f32.mrb[0].mxu0
        %v3771 = vadd.f32 %v899, %v3770
        %v3772 = vpop.f32.mrb[0].mxu0
        %v3773 = vadd.f32 %v903, %v3772
        %v3774 = vpop.f32.mrb[0].mxu0
        %v3775 = vadd.f32 %v899, %v3774
        %v3776 = vpop.f32.mrb[0].mxu0
        %v3777 = vadd.f32 %v903, %v3776
        %3778 = vmatprep.mubr.bf16.mxu0 %v1093
        %3779 = vmatmul.mubr.bf16.gmra.mrb[0].mxu0 %v1092
        %v3780 = vpop.f32.mrb[0].mxu0
        %v3781 = vadd.f32 %v899, %v3780
        %v3782 = vpop.f32.mrb[0].mxu0
        %v3783 = vadd.f32 %v903, %v3782
        %v3784 = vpop.f32.mrb[0].mxu0
        %v3785 = vadd.f32 %v899, %v3784
        %v3786 = vpop.f32.mrb[0].mxu0
        %v3787 = vadd.f32 %v903, %v3786
        %3788 = vmatprep.mubr.bf16.mxu0 %v1097
        %3789 = vmatmul.mubr.bf16.gmra.mrb[0].mxu0 %v1096
        %v3790 = vpop.f32.mrb[0].mxu0
        %v3791 = vadd.f32 %v899, %v3790
        %v3792 = vpop.f32.mrb[0].mxu0
        %v3793 = vadd.f32 %v903, %v3792
        %v3794 = vpop.f32.mrb[0].mxu0
        %v3795 = vadd.f32 %v899, %v3794
        %v3796 = vpop.f32.mrb[0].mxu0
        %v3797 = vadd.f32 %v903, %v3796
        %3798 = vmatprep.mubr.bf16.mxu0 %v1101
        %3799 = vmatmul.mubr.bf16.gmra.mrb[0].mxu0 %v1100
        %v3800 = vpop.f32.mrb[0].mxu0
        %v3801 = vadd.f32 %v899, %v3800
        %v3802 = vpop.f32.mrb[0].mxu0
        %v3803 = vadd.f32 %v903, %v3802
        %v3804 = vpop.f32.mrb[0].mxu0
        %v3805 = vadd.f32 %v899, %v3804
        %v3806 = vpop.f32.mrb[0].mxu0
        %v3807 = vadd.f32 %v903, %v3806
        %3808 = vdwg.mxu0
        %3809 = vmatprep.subr.bf16.mxu0 %v2929
        %3810 = vmatpush1.bf16.msra.mxu0 %v2928
        %3811 = vmatprep.subr.bf16.mxu0 %v2945
        %3812 = vmatpush1.bf16.msra.mxu0 %v2944
        %3813 = vmatprep.subr.bf16.mxu0 %v2961
        %3814 = vmatpush1.bf16.msra.mxu0 %v2960
        %3815 = vmatprep.subr.bf16.mxu0 %v2977
        %3816 = vmatpush1.bf16.msra.mxu0 %v2976
        %3817 = vmatprep.subr.bf16.mxu0 %v2993
        %3818 = vmatpush1.bf16.msra.mxu0 %v2992
        %3819 = vmatprep.subr.bf16.mxu0 %v3009
        %3820 = vmatpush1.bf16.msra.mxu0 %v3008
        %3821 = vmatprep.subr.bf16.mxu0 %v3025
        %3822 = vmatpush1.bf16.msra.mxu0 %v3024
        %3823 = vmatprep.subr.bf16.mxu0 %v3041
        %3824 = vmatpush1.bf16.msra.mxu0 %v3040
        %3825 = vmatprep.subr.bf16.mxu0 %v3057
        %3826 = vmatpush1.bf16.msra.mxu0 %v3056
        %3827 = vmatprep.subr.bf16.mxu0 %v3073
        %3828 = vmatpush1.bf16.msra.mxu0 %v3072
        %3829 = vmatprep.subr.bf16.mxu0 %v3089
        %3830 = vmatpush1.bf16.msra.mxu0 %v3088
        %3831 = vmatprep.subr.bf16.mxu0 %v3105
        %3832 = vmatpush1.bf16.msra.mxu0 %v3104
        %3833 = vmatprep.subr.bf16.mxu0 %v3121
        %3834 = vmatpush1.bf16.msra.mxu0 %v3120
        %3835 = vmatprep.subr.bf16.mxu0 %v3137
        %3836 = vmatpush1.bf16.msra.mxu0 %v3136
        %3837 = vmatprep.subr.bf16.mxu0 %v3153
        %3838 = vmatpush1.bf16.msra.mxu0 %v3152
        %3839 = vmatprep.subr.bf16.mxu0 %v3169
        %3840 = vmatpush1.bf16.msra.mxu0 %v3168
        %3841 = vmatprep.mubr.bf16.mxu0 %v1075
        %3842 = vmatmul.mubr.bf16.gmra.mrb[0].mxu0 %v1074
        %v3843 = vpop.f32.mrb[0].mxu0
        %v3844 = vadd.f32 %v3731, %v3843
        %v3845 = vpop.f32.mrb[0].mxu0
        %v3846 = vadd.f32 %v3733, %v3845
        %v3847 = vpop.f32.mrb[0].mxu0
        %v3848 = vadd.f32 %v3735, %v3847
        %v3849 = vpop.f32.mrb[0].mxu0
        %v3850 = vadd.f32 %v3737, %v3849
        %3851 = vmatprep.mubr.bf16.mxu0 %v1079
        %3852 = vmatmul.mubr.bf16.gmra.mrb[0].mxu0 %v1078
        %v3853 = vpop.f32.mrb[0].mxu0
        %v3854 = vadd.f32 %v3741, %v3853
        %v3855 = vpop.f32.mrb[0].mxu0
        %v3856 = vadd.f32 %v3743, %v3855
        %v3857 = vpop.f32.mrb[0].mxu0
        %v3858 = vadd.f32 %v3745, %v3857
        %v3859 = vpop.f32.mrb[0].mxu0
        %v3860 = vadd.f32 %v3747, %v3859
        %3861 = vmatprep.mubr.bf16.mxu0 %v1083
        %3862 = vmatmul.mubr.bf16.gmra.mrb[0].mxu0 %v1082
        %v3863 = vpop.f32.mrb[0].mxu0
        %v3864 = vadd.f32 %v3751, %v3863
        %v3865 = vpop.f32.mrb[0].mxu0
        %v3866 = vadd.f32 %v3753, %v3865
        %v3867 = vpop.f32.mrb[0].mxu0
        %v3868 = vadd.f32 %v3755, %v3867
        %v3869 = vpop.f32.mrb[0].mxu0
        %v3870 = vadd.f32 %v3757, %v3869
        %3871 = vmatprep.mubr.bf16.mxu0 %v1087
        %3872 = vmatmul.mubr.bf16.gmra.mrb[0].mxu0 %v1086
        %v3873 = vpop.f32.mrb[0].mxu0
        %v3874 = vadd.f32 %v3761, %v3873
        %v3875 = vpop.f32.mrb[0].mxu0
        %v3876 = vadd.f32 %v3763, %v3875
        %v3877 = vpop.f32.mrb[0].mxu0
        %v3878 = vadd.f32 %v3765, %v3877
        %v3879 = vpop.f32.mrb[0].mxu0
        %v3880 = vadd.f32 %v3767, %v3879
        %3881 = vmatprep.mubr.bf16.mxu0 %v1091
        %3882 = vmatmul.mubr.bf16.gmra.mrb[0].mxu0 %v1090
        %v3883 = vpop.f32.mrb[0].mxu0
        %v3884 = vadd.f32 %v3771, %v3883
        %v3885 = vpop.f32.mrb[0].mxu0
        %v3886 = vadd.f32 %v3773, %v3885
        %v3887 = vpop.f32.mrb[0].mxu0
        %v3888 = vadd.f32 %v3775, %v3887
        %v3889 = vpop.f32.mrb[0].mxu0
        %v3890 = vadd.f32 %v3777, %v3889
        %3891 = vmatprep.mubr.bf16.mxu0 %v1095
        %3892 = vmatmul.mubr.bf16.gmra.mrb[0].mxu0 %v1094
        %v3893 = vpop.f32.mrb[0].mxu0
        %v3894 = vadd.f32 %v3781, %v3893
        %v3895 = vpop.f32.mrb[0].mxu0
        %v3896 = vadd.f32 %v3783, %v3895
        %v3897 = vpop.f32.mrb[0].mxu0
        %v3898 = vadd.f32 %v3785, %v3897
        %v3899 = vpop.f32.mrb[0].mxu0
        %v3900 = vadd.f32 %v3787, %v3899
        %3901 = vmatprep.mubr.bf16.mxu0 %v1099
        %3902 = vmatmul.mubr.bf16.gmra.mrb[0].mxu0 %v1098
        %v3903 = vpop.f32.mrb[0].mxu0
        %v3904 = vadd.f32 %v3791, %v3903
        %v3905 = vpop.f32.mrb[0].mxu0
        %v3906 = vadd.f32 %v3793, %v3905
        %v3907 = vpop.f32.mrb[0].mxu0
        %v3908 = vadd.f32 %v3795, %v3907
        %v3909 = vpop.f32.mrb[0].mxu0
        %v3910 = vadd.f32 %v3797, %v3909
        %3911 = vmatprep.mubr.bf16.mxu0 %v1103
        %3912 = vmatmul.mubr.bf16.gmra.mrb[0].mxu0 %v1102
        %v3913 = vpop.f32.mrb[0].mxu0
        %v3914 = vadd.f32 %v3801, %v3913
        %v3915 = vpop.f32.mrb[0].mxu0
        %v3916 = vadd.f32 %v3803, %v3915
        %v3917 = vpop.f32.mrb[0].mxu0
        %v3918 = vadd.f32 %v3805, %v3917
        %v3919 = vpop.f32.mrb[0].mxu0
        %v3920 = vadd.f32 %v3807, %v3919
        %3921 = vdwg.mxu0
        %3922 = vmatprep.subr.bf16.mxu0 %v2675
        %3923 = vmatpush1.bf16.msra.mxu0 %v2674
        %3924 = vmatprep.subr.bf16.mxu0 %v2691
        %3925 = vmatpush1.bf16.msra.mxu0 %v2690
        %3926 = vmatprep.subr.bf16.mxu0 %v2707
        %3927 = vmatpush1.bf16.msra.mxu0 %v2706
        %3928 = vmatprep.subr.bf16.mxu0 %v2723
        %3929 = vmatpush1.bf16.msra.mxu0 %v2722
        %3930 = vmatprep.subr.bf16.mxu0 %v2739
        %3931 = vmatpush1.bf16.msra.mxu0 %v2738
        %3932 = vmatprep.subr.bf16.mxu0 %v2755
        %3933 = vmatpush1.bf16.msra.mxu0 %v2754
        %3934 = vmatprep.subr.bf16.mxu0 %v2771
        %3935 = vmatpush1.bf16.msra.mxu0 %v2770
        %3936 = vmatprep.subr.bf16.mxu0 %v2787
        %3937 = vmatpush1.bf16.msra.mxu0 %v2786
        %3938 = vmatprep.subr.bf16.mxu0 %v2803
        %3939 = vmatpush1.bf16.msra.mxu0 %v2802
        %3940 = vmatprep.subr.bf16.mxu0 %v2819
        %3941 = vmatpush1.bf16.msra.mxu0 %v2818
        %3942 = vmatprep.subr.bf16.mxu0 %v2835
        %3943 = vmatpush1.bf16.msra.mxu0 %v2834
        %3944 = vmatprep.subr.bf16.mxu0 %v2851
        %3945 = vmatpush1.bf16.msra.mxu0 %v2850
        %3946 = vmatprep.subr.bf16.mxu0 %v2867
        %3947 = vmatpush1.bf16.msra.mxu0 %v2866
        %3948 = vmatprep.subr.bf16.mxu0 %v2883
        %3949 = vmatpush1.bf16.msra.mxu0 %v2882
        %3950 = vmatprep.subr.bf16.mxu0 %v2899
        %3951 = vmatpush1.bf16.msra.mxu0 %v2898
        %3952 = vmatprep.subr.bf16.mxu0 %v2915
        %3953 = vmatpush1.bf16.msra.mxu0 %v2914
        %3954 = vmatprep.mubr.bf16.mxu0 %v1073
        %3955 = vmatmul.mubr.bf16.gmra.mrb[0].mxu0 %v1072
        %v3956 = vpop.f32.mrb[0].mxu0
        %v3957 = vadd.f32 %v907, %v3956
        %v3958 = vpop.f32.mrb[0].mxu0
        %v3959 = vadd.f32 %v911, %v3958
        %v3960 = vpop.f32.mrb[0].mxu0
        %v3961 = vadd.f32 %v907, %v3960
        %v3962 = vpop.f32.mrb[0].mxu0
        %v3963 = vadd.f32 %v911, %v3962
        %3964 = vmatprep.mubr.bf16.mxu0 %v1077
        %3965 = vmatmul.mubr.bf16.gmra.mrb[0].mxu0 %v1076
        %v3966 = vpop.f32.mrb[0].mxu0
        %v3967 = vadd.f32 %v907, %v3966
        %v3968 = vpop.f32.mrb[0].mxu0
        %v3969 = vadd.f32 %v911, %v3968
        %v3970 = vpop.f32.mrb[0].mxu0
        %v3971 = vadd.f32 %v907, %v3970
        %v3972 = vpop.f32.mrb[0].mxu0
        %v3973 = vadd.f32 %v911, %v3972
        %3974 = vmatprep.mubr.bf16.mxu0 %v1081
        %3975 = vmatmul.mubr.bf16.gmra.mrb[0].mxu0 %v1080
        %v3976 = vpop.f32.mrb[0].mxu0
        %v3977 = vadd.f32 %v907, %v3976
        %v3978 = vpop.f32.mrb[0].mxu0
        %v3979 = vadd.f32 %v911, %v3978
        %v3980 = vpop.f32.mrb[0].mxu0
        %v3981 = vadd.f32 %v907, %v3980
        %v3982 = vpop.f32.mrb[0].mxu0
        %v3983 = vadd.f32 %v911, %v3982
        %3984 = vmatprep.mubr.bf16.mxu0 %v1085
        %3985 = vmatmul.mubr.bf16.gmra.mrb[0].mxu0 %v1084
        %v3986 = vpop.f32.mrb[0].mxu0
        %v3987 = vadd.f32 %v907, %v3986
        %v3988 = vpop.f32.mrb[0].mxu0
        %v3989 = vadd.f32 %v911, %v3988
        %v3990 = vpop.f32.mrb[0].mxu0
        %v3991 = vadd.f32 %v907, %v3990
        %v3992 = vpop.f32.mrb[0].mxu0
        %v3993 = vadd.f32 %v911, %v3992
        %3994 = vmatprep.mubr.bf16.mxu0 %v1089
        %3995 = vmatmul.mubr.bf16.gmra.mrb[0].mxu0 %v1088
        %v3996 = vpop.f32.mrb[0].mxu0
        %v3997 = vadd.f32 %v907, %v3996
        %v3998 = vpop.f32.mrb[0].mxu0
        %v3999 = vadd.f32 %v911, %v3998
        %v4000 = vpop.f32.mrb[0].mxu0
        %v4001 = vadd.f32 %v907, %v4000
        %v4002 = vpop.f32.mrb[0].mxu0
        %v4003 = vadd.f32 %v911, %v4002
        %4004 = vmatprep.mubr.bf16.mxu0 %v1093
        %4005 = vmatmul.mubr.bf16.gmra.mrb[0].mxu0 %v1092
        %v4006 = vpop.f32.mrb[0].mxu0
        %v4007 = vadd.f32 %v907, %v4006
        %v4008 = vpop.f32.mrb[0].mxu0
        %v4009 = vadd.f32 %v911, %v4008
        %v4010 = vpop.f32.mrb[0].mxu0
        %v4011 = vadd.f32 %v907, %v4010
        %v4012 = vpop.f32.mrb[0].mxu0
        %v4013 = vadd.f32 %v911, %v4012
        %4014 = vmatprep.mubr.bf16.mxu0 %v1097
        %4015 = vmatmul.mubr.bf16.gmra.mrb[0].mxu0 %v1096
        %v4016 = vpop.f32.mrb[0].mxu0
        %v4017 = vadd.f32 %v907, %v4016
        %v4018 = vpop.f32.mrb[0].mxu0
        %v4019 = vadd.f32 %v911, %v4018
        %v4020 = vpop.f32.mrb[0].mxu0
        %v4021 = vadd.f32 %v907, %v4020
        %v4022 = vpop.f32.mrb[0].mxu0
        %v4023 = vadd.f32 %v911, %v4022
        %4024 = vmatprep.mubr.bf16.mxu0 %v1101
        %4025 = vmatmul.mubr.bf16.gmra.mrb[0].mxu0 %v1100
        %v4026 = vpop.f32.mrb[0].mxu0
        %v4027 = vadd.f32 %v907, %v4026
        %v4028 = vpop.f32.mrb[0].mxu0
        %v4029 = vadd.f32 %v911, %v4028
        %v4030 = vpop.f32.mrb[0].mxu0
        %v4031 = vadd.f32 %v907, %v4030
        %v4032 = vpop.f32.mrb[0].mxu0
        %v4033 = vadd.f32 %v911, %v4032
        %4034 = vdwg.mxu0
        %4035 = vmatprep.subr.bf16.mxu0 %v2931
        %4036 = vmatpush1.bf16.msra.mxu0 %v2930
        %4037 = vmatprep.subr.bf16.mxu0 %v2947
        %4038 = vmatpush1.bf16.msra.mxu0 %v2946
        %4039 = vmatprep.subr.bf16.mxu0 %v2963
        %4040 = vmatpush1.bf16.msra.mxu0 %v2962
        %4041 = vmatprep.subr.bf16.mxu0 %v2979
        %4042 = vmatpush1.bf16.msra.mxu0 %v2978
        %4043 = vmatprep.subr.bf16.mxu0 %v2995
        %4044 = vmatpush1.bf16.msra.mxu0 %v2994
        %4045 = vmatprep.subr.bf16.mxu0 %v3011
        %4046 = vmatpush1.bf16.msra.mxu0 %v3010
        %4047 = vmatprep.subr.bf16.mxu0 %v3027
        %4048 = vmatpush1.bf16.msra.mxu0 %v3026
        %4049 = vmatprep.subr.bf16.mxu0 %v3043
        %4050 = vmatpush1.bf16.msra.mxu0 %v3042
        %4051 = vmatprep.subr.bf16.mxu0 %v3059
        %4052 = vmatpush1.bf16.msra.mxu0 %v3058
        %4053 = vmatprep.subr.bf16.mxu0 %v3075
        %4054 = vmatpush1.bf16.msra.mxu0 %v3074
        %4055 = vmatprep.subr.bf16.mxu0 %v3091
        %4056 = vmatpush1.bf16.msra.mxu0 %v3090
        %4057 = vmatprep.subr.bf16.mxu0 %v3107
        %4058 = vmatpush1.bf16.msra.mxu0 %v3106
        %4059 = vmatprep.subr.bf16.mxu0 %v3123
        %4060 = vmatpush1.bf16.msra.mxu0 %v3122
        %4061 = vmatprep.subr.bf16.mxu0 %v3139
        %4062 = vmatpush1.bf16.msra.mxu0 %v3138
        %4063 = vmatprep.subr.bf16.mxu0 %v3155
        %4064 = vmatpush1.bf16.msra.mxu0 %v3154
        %4065 = vmatprep.subr.bf16.mxu0 %v3171
        %4066 = vmatpush1.bf16.msra.mxu0 %v3170
        %4067 = vmatprep.mubr.bf16.mxu0 %v1075
        %4068 = vmatmul.mubr.bf16.gmra.mrb[0].mxu0 %v1074
        %v4069 = vpop.f32.mrb[0].mxu0
        %v4070 = vadd.f32 %v3957, %v4069
        %v4071 = vpop.f32.mrb[0].mxu0
        %v4072 = vadd.f32 %v3959, %v4071
        %v4073 = vpop.f32.mrb[0].mxu0
        %v4074 = vadd.f32 %v3961, %v4073
        %v4075 = vpop.f32.mrb[0].mxu0
        %v4076 = vadd.f32 %v3963, %v4075
        %4077 = vmatprep.mubr.bf16.mxu0 %v1079
        %4078 = vmatmul.mubr.bf16.gmra.mrb[0].mxu0 %v1078
        %v4079 = vpop.f32.mrb[0].mxu0
        %v4080 = vadd.f32 %v3967, %v4079
        %v4081 = vpop.f32.mrb[0].mxu0
        %v4082 = vadd.f32 %v3969, %v4081
        %v4083 = vpop.f32.mrb[0].mxu0
        %v4084 = vadd.f32 %v3971, %v4083
        %v4085 = vpop.f32.mrb[0].mxu0
        %v4086 = vadd.f32 %v3973, %v4085
        %4087 = vmatprep.mubr.bf16.mxu0 %v1083
        %4088 = vmatmul.mubr.bf16.gmra.mrb[0].mxu0 %v1082
        %v4089 = vpop.f32.mrb[0].mxu0
        %v4090 = vadd.f32 %v3977, %v4089
        %v4091 = vpop.f32.mrb[0].mxu0
        %v4092 = vadd.f32 %v3979, %v4091
        %v4093 = vpop.f32.mrb[0].mxu0
        %v4094 = vadd.f32 %v3981, %v4093
        %v4095 = vpop.f32.mrb[0].mxu0
        %v4096 = vadd.f32 %v3983, %v4095
        %4097 = vmatprep.mubr.bf16.mxu0 %v1087
        %4098 = vmatmul.mubr.bf16.gmra.mrb[0].mxu0 %v1086
        %v4099 = vpop.f32.mrb[0].mxu0
        %v4100 = vadd.f32 %v3987, %v4099
        %v4101 = vpop.f32.mrb[0].mxu0
        %v4102 = vadd.f32 %v3989, %v4101
        %v4103 = vpop.f32.mrb[0].mxu0
        %v4104 = vadd.f32 %v3991, %v4103
        %v4105 = vpop.f32.mrb[0].mxu0
        %v4106 = vadd.f32 %v3993, %v4105
        %4107 = vmatprep.mubr.bf16.mxu0 %v1091
        %4108 = vmatmul.mubr.bf16.gmra.mrb[0].mxu0 %v1090
        %v4109 = vpop.f32.mrb[0].mxu0
        %v4110 = vadd.f32 %v3997, %v4109
        %v4111 = vpop.f32.mrb[0].mxu0
        %v4112 = vadd.f32 %v3999, %v4111
        %v4113 = vpop.f32.mrb[0].mxu0
        %v4114 = vadd.f32 %v4001, %v4113
        %v4115 = vpop.f32.mrb[0].mxu0
        %v4116 = vadd.f32 %v4003, %v4115
        %4117 = vmatprep.mubr.bf16.mxu0 %v1095
        %4118 = vmatmul.mubr.bf16.gmra.mrb[0].mxu0 %v1094
        %v4119 = vpop.f32.mrb[0].mxu0
        %v4120 = vadd.f32 %v4007, %v4119
        %v4121 = vpop.f32.mrb[0].mxu0
        %v4122 = vadd.f32 %v4009, %v4121
        %v4123 = vpop.f32.mrb[0].mxu0
        %v4124 = vadd.f32 %v4011, %v4123
        %v4125 = vpop.f32.mrb[0].mxu0
        %v4126 = vadd.f32 %v4013, %v4125
        %4127 = vmatprep.mubr.bf16.mxu0 %v1099
        %4128 = vmatmul.mubr.bf16.gmra.mrb[0].mxu0 %v1098
        %v4129 = vpop.f32.mrb[0].mxu0
        %v4130 = vadd.f32 %v4017, %v4129
        %v4131 = vpop.f32.mrb[0].mxu0
        %v4132 = vadd.f32 %v4019, %v4131
        %v4133 = vpop.f32.mrb[0].mxu0
        %v4134 = vadd.f32 %v4021, %v4133
        %v4135 = vpop.f32.mrb[0].mxu0
        %v4136 = vadd.f32 %v4023, %v4135
        %4137 = vmatprep.mubr.bf16.mxu0 %v1103
        %4138 = vmatmul.mubr.bf16.gmra.mrb[0].mxu0 %v1102
        %v4139 = vpop.f32.mrb[0].mxu0
        %v4140 = vadd.f32 %v4027, %v4139
        %v4141 = vpop.f32.mrb[0].mxu0
        %v4142 = vadd.f32 %v4029, %v4141
        %v4143 = vpop.f32.mrb[0].mxu0
        %v4144 = vadd.f32 %v4031, %v4143
        %v4145 = vpop.f32.mrb[0].mxu0
        %v4146 = vadd.f32 %v4033, %v4145
        %4147 = vdwg.mxu0
        %4148 = vmatprep.subr.bf16.mxu0 %v2677
        %4149 = vmatpush1.bf16.msra.mxu0 %v2676
        %4150 = vmatprep.subr.bf16.mxu0 %v2693
        %4151 = vmatpush1.bf16.msra.mxu0 %v2692
        %4152 = vmatprep.subr.bf16.mxu0 %v2709
        %4153 = vmatpush1.bf16.msra.mxu0 %v2708
        %4154 = vmatprep.subr.bf16.mxu0 %v2725
        %4155 = vmatpush1.bf16.msra.mxu0 %v2724
        %4156 = vmatprep.subr.bf16.mxu0 %v2741
        %4157 = vmatpush1.bf16.msra.mxu0 %v2740
        %4158 = vmatprep.subr.bf16.mxu0 %v2757
        %4159 = vmatpush1.bf16.msra.mxu0 %v2756
        %4160 = vmatprep.subr.bf16.mxu0 %v2773
        %4161 = vmatpush1.bf16.msra.mxu0 %v2772
        %4162 = vmatprep.subr.bf16.mxu0 %v2789
        %4163 = vmatpush1.bf16.msra.mxu0 %v2788
        %4164 = vmatprep.subr.bf16.mxu0 %v2805
        %4165 = vmatpush1.bf16.msra.mxu0 %v2804
        %4166 = vmatprep.subr.bf16.mxu0 %v2821
        %4167 = vmatpush1.bf16.msra.mxu0 %v2820
        %4168 = vmatprep.subr.bf16.mxu0 %v2837
        %4169 = vmatpush1.bf16.msra.mxu0 %v2836
        %4170 = vmatprep.subr.bf16.mxu0 %v2853
        %4171 = vmatpush1.bf16.msra.mxu0 %v2852
        %4172 = vmatprep.subr.bf16.mxu0 %v2869
        %4173 = vmatpush1.bf16.msra.mxu0 %v2868
        %4174 = vmatprep.subr.bf16.mxu0 %v2885
        %4175 = vmatpush1.bf16.msra.mxu0 %v2884
        %4176 = vmatprep.subr.bf16.mxu0 %v2901
        %4177 = vmatpush1.bf16.msra.mxu0 %v2900
        %4178 = vmatprep.subr.bf16.mxu0 %v2917
        %4179 = vmatpush1.bf16.msra.mxu0 %v2916
        %4180 = vmatprep.mubr.bf16.mxu0 %v1073
        %4181 = vmatmul.mubr.bf16.gmra.mrb[0].mxu0 %v1072
        %v4182 = vpop.f32.mrb[0].mxu0
        %v4183 = vadd.f32 %v915, %v4182
        %v4184 = vpop.f32.mrb[0].mxu0
        %v4185 = vadd.f32 %v919, %v4184
        %v4186 = vpop.f32.mrb[0].mxu0
        %v4187 = vadd.f32 %v915, %v4186
        %v4188 = vpop.f32.mrb[0].mxu0
        %v4189 = vadd.f32 %v919, %v4188
        %4190 = vmatprep.mubr.bf16.mxu0 %v1077
        %4191 = vmatmul.mubr.bf16.gmra.mrb[0].mxu0 %v1076
        %v4192 = vpop.f32.mrb[0].mxu0
        %v4193 = vadd.f32 %v915, %v4192
        %v4194 = vpop.f32.mrb[0].mxu0
        %v4195 = vadd.f32 %v919, %v4194
        %v4196 = vpop.f32.mrb[0].mxu0
        %v4197 = vadd.f32 %v915, %v4196
        %v4198 = vpop.f32.mrb[0].mxu0
        %v4199 = vadd.f32 %v919, %v4198
        %4200 = vmatprep.mubr.bf16.mxu0 %v1081
        %4201 = vmatmul.mubr.bf16.gmra.mrb[0].mxu0 %v1080
        %v4202 = vpop.f32.mrb[0].mxu0
        %v4203 = vadd.f32 %v915, %v4202
        %v4204 = vpop.f32.mrb[0].mxu0
        %v4205 = vadd.f32 %v919, %v4204
        %v4206 = vpop.f32.mrb[0].mxu0
        %v4207 = vadd.f32 %v915, %v4206
        %v4208 = vpop.f32.mrb[0].mxu0
        %v4209 = vadd.f32 %v919, %v4208
        %4210 = vmatprep.mubr.bf16.mxu0 %v1085
        %4211 = vmatmul.mubr.bf16.gmra.mrb[0].mxu0 %v1084
        %v4212 = vpop.f32.mrb[0].mxu0
        %v4213 = vadd.f32 %v915, %v4212
        %v4214 = vpop.f32.mrb[0].mxu0
        %v4215 = vadd.f32 %v919, %v4214
        %v4216 = vpop.f32.mrb[0].mxu0
        %v4217 = vadd.f32 %v915, %v4216
        %v4218 = vpop.f32.mrb[0].mxu0
        %v4219 = vadd.f32 %v919, %v4218
        %4220 = vmatprep.mubr.bf16.mxu0 %v1089
        %4221 = vmatmul.mubr.bf16.gmra.mrb[0].mxu0 %v1088
        %v4222 = vpop.f32.mrb[0].mxu0
        %v4223 = vadd.f32 %v915, %v4222
        %v4224 = vpop.f32.mrb[0].mxu0
        %v4225 = vadd.f32 %v919, %v4224
        %v4226 = vpop.f32.mrb[0].mxu0
        %v4227 = vadd.f32 %v915, %v4226
        %v4228 = vpop.f32.mrb[0].mxu0
        %v4229 = vadd.f32 %v919, %v4228
        %4230 = vmatprep.mubr.bf16.mxu0 %v1093
        %4231 = vmatmul.mubr.bf16.gmra.mrb[0].mxu0 %v1092
        %v4232 = vpop.f32.mrb[0].mxu0
        %v4233 = vadd.f32 %v915, %v4232
        %v4234 = vpop.f32.mrb[0].mxu0
        %v4235 = vadd.f32 %v919, %v4234
        %v4236 = vpop.f32.mrb[0].mxu0
        %v4237 = vadd.f32 %v915, %v4236
        %v4238 = vpop.f32.mrb[0].mxu0
        %v4239 = vadd.f32 %v919, %v4238
        %4240 = vmatprep.mubr.bf16.mxu0 %v1097
        %4241 = vmatmul.mubr.bf16.gmra.mrb[0].mxu0 %v1096
        %v4242 = vpop.f32.mrb[0].mxu0
        %v4243 = vadd.f32 %v915, %v4242
        %v4244 = vpop.f32.mrb[0].mxu0
        %v4245 = vadd.f32 %v919, %v4244
        %v4246 = vpop.f32.mrb[0].mxu0
        %v4247 = vadd.f32 %v915, %v4246
        %v4248 = vpop.f32.mrb[0].mxu0
        %v4249 = vadd.f32 %v919, %v4248
        %4250 = vmatprep.mubr.bf16.mxu0 %v1101
        %4251 = vmatmul.mubr.bf16.gmra.mrb[0].mxu0 %v1100
        %v4252 = vpop.f32.mrb[0].mxu0
        %v4253 = vadd.f32 %v915, %v4252
        %v4254 = vpop.f32.mrb[0].mxu0
        %v4255 = vadd.f32 %v919, %v4254
        %v4256 = vpop.f32.mrb[0].mxu0
        %v4257 = vadd.f32 %v915, %v4256
        %v4258 = vpop.f32.mrb[0].mxu0
        %v4259 = vadd.f32 %v919, %v4258
        %4260 = vdwg.mxu0
        %4261 = vmatprep.subr.bf16.mxu0 %v2933
        %4262 = vmatpush1.bf16.msra.mxu0 %v2932
        %4263 = vmatprep.subr.bf16.mxu0 %v2949
        %4264 = vmatpush1.bf16.msra.mxu0 %v2948
        %4265 = vmatprep.subr.bf16.mxu0 %v2965
        %4266 = vmatpush1.bf16.msra.mxu0 %v2964
        %4267 = vmatprep.subr.bf16.mxu0 %v2981
        %4268 = vmatpush1.bf16.msra.mxu0 %v2980
        %4269 = vmatprep.subr.bf16.mxu0 %v2997
        %4270 = vmatpush1.bf16.msra.mxu0 %v2996
        %4271 = vmatprep.subr.bf16.mxu0 %v3013
        %4272 = vmatpush1.bf16.msra.mxu0 %v3012
        %4273 = vmatprep.subr.bf16.mxu0 %v3029
        %4274 = vmatpush1.bf16.msra.mxu0 %v3028
        %4275 = vmatprep.subr.bf16.mxu0 %v3045
        %4276 = vmatpush1.bf16.msra.mxu0 %v3044
        %4277 = vmatprep.subr.bf16.mxu0 %v3061
        %4278 = vmatpush1.bf16.msra.mxu0 %v3060
        %4279 = vmatprep.subr.bf16.mxu0 %v3077
        %4280 = vmatpush1.bf16.msra.mxu0 %v3076
        %4281 = vmatprep.subr.bf16.mxu0 %v3093
        %4282 = vmatpush1.bf16.msra.mxu0 %v3092
        %4283 = vmatprep.subr.bf16.mxu0 %v3109
        %4284 = vmatpush1.bf16.msra.mxu0 %v3108
        %4285 = vmatprep.subr.bf16.mxu0 %v3125
        %4286 = vmatpush1.bf16.msra.mxu0 %v3124
        %4287 = vmatprep.subr.bf16.mxu0 %v3141
        %4288 = vmatpush1.bf16.msra.mxu0 %v3140
        %4289 = vmatprep.subr.bf16.mxu0 %v3157
        %4290 = vmatpush1.bf16.msra.mxu0 %v3156
        %4291 = vmatprep.subr.bf16.mxu0 %v3173
        %4292 = vmatpush1.bf16.msra.mxu0 %v3172
        %4293 = vmatprep.mubr.bf16.mxu0 %v1075
        %4294 = vmatmul.mubr.bf16.gmra.mrb[0].mxu0 %v1074
        %v4295 = vpop.f32.mrb[0].mxu0
        %v4296 = vadd.f32 %v4183, %v4295
        %v4297 = vpop.f32.mrb[0].mxu0
        %v4298 = vadd.f32 %v4185, %v4297
        %v4299 = vpop.f32.mrb[0].mxu0
        %v4300 = vadd.f32 %v4187, %v4299
        %v4301 = vpop.f32.mrb[0].mxu0
        %v4302 = vadd.f32 %v4189, %v4301
        %4303 = vmatprep.mubr.bf16.mxu0 %v1079
        %4304 = vmatmul.mubr.bf16.gmra.mrb[0].mxu0 %v1078
        %v4305 = vpop.f32.mrb[0].mxu0
        %v4306 = vadd.f32 %v4193, %v4305
        %v4307 = vpop.f32.mrb[0].mxu0
        %v4308 = vadd.f32 %v4195, %v4307
        %v4309 = vpop.f32.mrb[0].mxu0
        %v4310 = vadd.f32 %v4197, %v4309
        %v4311 = vpop.f32.mrb[0].mxu0
        %v4312 = vadd.f32 %v4199, %v4311
        %4313 = vmatprep.mubr.bf16.mxu0 %v1083
        %4314 = vmatmul.mubr.bf16.gmra.mrb[0].mxu0 %v1082
        %v4315 = vpop.f32.mrb[0].mxu0
        %v4316 = vadd.f32 %v4203, %v4315
        %v4317 = vpop.f32.mrb[0].mxu0
        %v4318 = vadd.f32 %v4205, %v4317
        %v4319 = vpop.f32.mrb[0].mxu0
        %v4320 = vadd.f32 %v4207, %v4319
        %v4321 = vpop.f32.mrb[0].mxu0
        %v4322 = vadd.f32 %v4209, %v4321
        %4323 = vmatprep.mubr.bf16.mxu0 %v1087
        %4324 = vmatmul.mubr.bf16.gmra.mrb[0].mxu0 %v1086
        %v4325 = vpop.f32.mrb[0].mxu0
        %v4326 = vadd.f32 %v4213, %v4325
        %v4327 = vpop.f32.mrb[0].mxu0
        %v4328 = vadd.f32 %v4215, %v4327
        %v4329 = vpop.f32.mrb[0].mxu0
        %v4330 = vadd.f32 %v4217, %v4329
        %v4331 = vpop.f32.mrb[0].mxu0
        %v4332 = vadd.f32 %v4219, %v4331
        %4333 = vmatprep.mubr.bf16.mxu0 %v1091
        %4334 = vmatmul.mubr.bf16.gmra.mrb[0].mxu0 %v1090
        %v4335 = vpop.f32.mrb[0].mxu0
        %v4336 = vadd.f32 %v4223, %v4335
        %v4337 = vpop.f32.mrb[0].mxu0
        %v4338 = vadd.f32 %v4225, %v4337
        %v4339 = vpop.f32.mrb[0].mxu0
        %v4340 = vadd.f32 %v4227, %v4339
        %v4341 = vpop.f32.mrb[0].mxu0
        %v4342 = vadd.f32 %v4229, %v4341
        %4343 = vmatprep.mubr.bf16.mxu0 %v1095
        %4344 = vmatmul.mubr.bf16.gmra.mrb[0].mxu0 %v1094
        %v4345 = vpop.f32.mrb[0].mxu0
        %v4346 = vadd.f32 %v4233, %v4345
        %v4347 = vpop.f32.mrb[0].mxu0
        %v4348 = vadd.f32 %v4235, %v4347
        %v4349 = vpop.f32.mrb[0].mxu0
        %v4350 = vadd.f32 %v4237, %v4349
        %v4351 = vpop.f32.mrb[0].mxu0
        %v4352 = vadd.f32 %v4239, %v4351
        %4353 = vmatprep.mubr.bf16.mxu0 %v1099
        %4354 = vmatmul.mubr.bf16.gmra.mrb[0].mxu0 %v1098
        %v4355 = vpop.f32.mrb[0].mxu0
        %v4356 = vadd.f32 %v4243, %v4355
        %v4357 = vpop.f32.mrb[0].mxu0
        %v4358 = vadd.f32 %v4245, %v4357
        %v4359 = vpop.f32.mrb[0].mxu0
        %v4360 = vadd.f32 %v4247, %v4359
        %v4361 = vpop.f32.mrb[0].mxu0
        %v4362 = vadd.f32 %v4249, %v4361
        %4363 = vmatprep.mubr.bf16.mxu0 %v1103
        %4364 = vmatmul.mubr.bf16.gmra.mrb[0].mxu0 %v1102
        %v4365 = vpop.f32.mrb[0].mxu0
        %v4366 = vadd.f32 %v4253, %v4365
        %v4367 = vpop.f32.mrb[0].mxu0
        %v4368 = vadd.f32 %v4255, %v4367
        %v4369 = vpop.f32.mrb[0].mxu0
        %v4370 = vadd.f32 %v4257, %v4369
        %v4371 = vpop.f32.mrb[0].mxu0
        %v4372 = vadd.f32 %v4259, %v4371
        %4373 = vdwg.mxu0
        %4374 = vmatprep.subr.bf16.mxu0 %v2679
        %4375 = vmatpush1.bf16.msra.mxu0 %v2678
        %4376 = vmatprep.subr.bf16.mxu0 %v2695
        %4377 = vmatpush1.bf16.msra.mxu0 %v2694
        %4378 = vmatprep.subr.bf16.mxu0 %v2711
        %4379 = vmatpush1.bf16.msra.mxu0 %v2710
        %4380 = vmatprep.subr.bf16.mxu0 %v2727
        %4381 = vmatpush1.bf16.msra.mxu0 %v2726
        %4382 = vmatprep.subr.bf16.mxu0 %v2743
        %4383 = vmatpush1.bf16.msra.mxu0 %v2742
        %4384 = vmatprep.subr.bf16.mxu0 %v2759
        %4385 = vmatpush1.bf16.msra.mxu0 %v2758
        %4386 = vmatprep.subr.bf16.mxu0 %v2775
        %4387 = vmatpush1.bf16.msra.mxu0 %v2774
        %4388 = vmatprep.subr.bf16.mxu0 %v2791
        %4389 = vmatpush1.bf16.msra.mxu0 %v2790
        %4390 = vmatprep.subr.bf16.mxu0 %v2807
        %4391 = vmatpush1.bf16.msra.mxu0 %v2806
        %4392 = vmatprep.subr.bf16.mxu0 %v2823
        %4393 = vmatpush1.bf16.msra.mxu0 %v2822
        %4394 = vmatprep.subr.bf16.mxu0 %v2839
        %4395 = vmatpush1.bf16.msra.mxu0 %v2838
        %4396 = vmatprep.subr.bf16.mxu0 %v2855
        %4397 = vmatpush1.bf16.msra.mxu0 %v2854
        %4398 = vmatprep.subr.bf16.mxu0 %v2871
        %4399 = vmatpush1.bf16.msra.mxu0 %v2870
        %4400 = vmatprep.subr.bf16.mxu0 %v2887
        %4401 = vmatpush1.bf16.msra.mxu0 %v2886
        %4402 = vmatprep.subr.bf16.mxu0 %v2903
        %4403 = vmatpush1.bf16.msra.mxu0 %v2902
        %4404 = vmatprep.subr.bf16.mxu0 %v2919
        %4405 = vmatpush1.bf16.msra.mxu0 %v2918
        %4406 = vmatprep.mubr.bf16.mxu0 %v1073
        %4407 = vmatmul.mubr.bf16.gmra.mrb[0].mxu0 %v1072
        %v4408 = vpop.f32.mrb[0].mxu0
        %v4409 = vadd.f32 %v923, %v4408
        %v4410 = vpop.f32.mrb[0].mxu0
        %v4411 = vadd.f32 %v927, %v4410
        %v4412 = vpop.f32.mrb[0].mxu0
        %v4413 = vadd.f32 %v923, %v4412
        %v4414 = vpop.f32.mrb[0].mxu0
        %v4415 = vadd.f32 %v927, %v4414
        %4416 = vmatprep.mubr.bf16.mxu0 %v1077
        %4417 = vmatmul.mubr.bf16.gmra.mrb[0].mxu0 %v1076
        %v4418 = vpop.f32.mrb[0].mxu0
        %v4419 = vadd.f32 %v923, %v4418
        %v4420 = vpop.f32.mrb[0].mxu0
        %v4421 = vadd.f32 %v927, %v4420
        %v4422 = vpop.f32.mrb[0].mxu0
        %v4423 = vadd.f32 %v923, %v4422
        %v4424 = vpop.f32.mrb[0].mxu0
        %v4425 = vadd.f32 %v927, %v4424
        %4426 = vmatprep.mubr.bf16.mxu0 %v1081
        %4427 = vmatmul.mubr.bf16.gmra.mrb[0].mxu0 %v1080
        %v4428 = vpop.f32.mrb[0].mxu0
        %v4429 = vadd.f32 %v923, %v4428
        %v4430 = vpop.f32.mrb[0].mxu0
        %v4431 = vadd.f32 %v927, %v4430
        %v4432 = vpop.f32.mrb[0].mxu0
        %v4433 = vadd.f32 %v923, %v4432
        %v4434 = vpop.f32.mrb[0].mxu0
        %v4435 = vadd.f32 %v927, %v4434
        %4436 = vmatprep.mubr.bf16.mxu0 %v1085
        %4437 = vmatmul.mubr.bf16.gmra.mrb[0].mxu0 %v1084
        %v4438 = vpop.f32.mrb[0].mxu0
        %v4439 = vadd.f32 %v923, %v4438
        %v4440 = vpop.f32.mrb[0].mxu0
        %v4441 = vadd.f32 %v927, %v4440
        %v4442 = vpop.f32.mrb[0].mxu0
        %v4443 = vadd.f32 %v923, %v4442
        %v4444 = vpop.f32.mrb[0].mxu0
        %v4445 = vadd.f32 %v927, %v4444
        %4446 = vmatprep.mubr.bf16.mxu0 %v1089
        %4447 = vmatmul.mubr.bf16.gmra.mrb[0].mxu0 %v1088
        %v4448 = vpop.f32.mrb[0].mxu0
        %v4449 = vadd.f32 %v923, %v4448
        %v4450 = vpop.f32.mrb[0].mxu0
        %v4451 = vadd.f32 %v927, %v4450
        %v4452 = vpop.f32.mrb[0].mxu0
        %v4453 = vadd.f32 %v923, %v4452
        %v4454 = vpop.f32.mrb[0].mxu0
        %v4455 = vadd.f32 %v927, %v4454
        %4456 = vmatprep.mubr.bf16.mxu0 %v1093
        %4457 = vmatmul.mubr.bf16.gmra.mrb[0].mxu0 %v1092
        %v4458 = vpop.f32.mrb[0].mxu0
        %v4459 = vadd.f32 %v923, %v4458
        %v4460 = vpop.f32.mrb[0].mxu0
        %v4461 = vadd.f32 %v927, %v4460
        %v4462 = vpop.f32.mrb[0].mxu0
        %v4463 = vadd.f32 %v923, %v4462
        %v4464 = vpop.f32.mrb[0].mxu0
        %v4465 = vadd.f32 %v927, %v4464
        %4466 = vmatprep.mubr.bf16.mxu0 %v1097
        %4467 = vmatmul.mubr.bf16.gmra.mrb[0].mxu0 %v1096
        %v4468 = vpop.f32.mrb[0].mxu0
        %v4469 = vadd.f32 %v923, %v4468
        %v4470 = vpop.f32.mrb[0].mxu0
        %v4471 = vadd.f32 %v927, %v4470
        %v4472 = vpop.f32.mrb[0].mxu0
        %v4473 = vadd.f32 %v923, %v4472
        %v4474 = vpop.f32.mrb[0].mxu0
        %v4475 = vadd.f32 %v927, %v4474
        %4476 = vmatprep.mubr.bf16.mxu0 %v1101
        %4477 = vmatmul.mubr.bf16.gmra.mrb[0].mxu0 %v1100
        %v4478 = vpop.f32.mrb[0].mxu0
        %v4479 = vadd.f32 %v923, %v4478
        %v4480 = vpop.f32.mrb[0].mxu0
        %v4481 = vadd.f32 %v927, %v4480
        %v4482 = vpop.f32.mrb[0].mxu0
        %v4483 = vadd.f32 %v923, %v4482
        %v4484 = vpop.f32.mrb[0].mxu0
        %v4485 = vadd.f32 %v927, %v4484
        %4486 = vdwg.mxu0
        %4487 = vmatprep.subr.bf16.mxu0 %v2935
        %4488 = vmatpush1.bf16.msra.mxu0 %v2934
        %4489 = vmatprep.subr.bf16.mxu0 %v2951
        %4490 = vmatpush1.bf16.msra.mxu0 %v2950
        %4491 = vmatprep.subr.bf16.mxu0 %v2967
        %4492 = vmatpush1.bf16.msra.mxu0 %v2966
        %4493 = vmatprep.subr.bf16.mxu0 %v2983
        %4494 = vmatpush1.bf16.msra.mxu0 %v2982
        %4495 = vmatprep.subr.bf16.mxu0 %v2999
        %4496 = vmatpush1.bf16.msra.mxu0 %v2998
        %4497 = vmatprep.subr.bf16.mxu0 %v3015
        %4498 = vmatpush1.bf16.msra.mxu0 %v3014
        %4499 = vmatprep.subr.bf16.mxu0 %v3031
        %4500 = vmatpush1.bf16.msra.mxu0 %v3030
        %4501 = vmatprep.subr.bf16.mxu0 %v3047
        %4502 = vmatpush1.bf16.msra.mxu0 %v3046
        %4503 = vmatprep.subr.bf16.mxu0 %v3063
        %4504 = vmatpush1.bf16.msra.mxu0 %v3062
        %4505 = vmatprep.subr.bf16.mxu0 %v3079
        %4506 = vmatpush1.bf16.msra.mxu0 %v3078
        %4507 = vmatprep.subr.bf16.mxu0 %v3095
        %4508 = vmatpush1.bf16.msra.mxu0 %v3094
        %4509 = vmatprep.subr.bf16.mxu0 %v3111
        %4510 = vmatpush1.bf16.msra.mxu0 %v3110
        %4511 = vmatprep.subr.bf16.mxu0 %v3127
        %4512 = vmatpush1.bf16.msra.mxu0 %v3126
        %4513 = vmatprep.subr.bf16.mxu0 %v3143
        %4514 = vmatpush1.bf16.msra.mxu0 %v3142
        %4515 = vmatprep.subr.bf16.mxu0 %v3159
        %4516 = vmatpush1.bf16.msra.mxu0 %v3158
        %4517 = vmatprep.subr.bf16.mxu0 %v3175
        %4518 = vmatpush1.bf16.msra.mxu0 %v3174
        %4519 = vmatprep.mubr.bf16.mxu0 %v1075
        %4520 = vmatmul.mubr.bf16.gmra.mrb[0].mxu0 %v1074
        %v4521 = vpop.f32.mrb[0].mxu0
        %v4522 = vadd.f32 %v4409, %v4521
        %v4523 = vpop.f32.mrb[0].mxu0
        %v4524 = vadd.f32 %v4411, %v4523
        %v4525 = vpop.f32.mrb[0].mxu0
        %v4526 = vadd.f32 %v4413, %v4525
        %v4527 = vpop.f32.mrb[0].mxu0
        %v4528 = vadd.f32 %v4415, %v4527
        %4529 = vmatprep.mubr.bf16.mxu0 %v1079
        %4530 = vmatmul.mubr.bf16.gmra.mrb[0].mxu0 %v1078
        %v4531 = vpop.f32.mrb[0].mxu0
        %v4532 = vadd.f32 %v4419, %v4531
        %v4533 = vpop.f32.mrb[0].mxu0
        %v4534 = vadd.f32 %v4421, %v4533
        %v4535 = vpop.f32.mrb[0].mxu0
        %v4536 = vadd.f32 %v4423, %v4535
        %v4537 = vpop.f32.mrb[0].mxu0
        %v4538 = vadd.f32 %v4425, %v4537
        %4539 = vmatprep.mubr.bf16.mxu0 %v1083
        %4540 = vmatmul.mubr.bf16.gmra.mrb[0].mxu0 %v1082
        %v4541 = vpop.f32.mrb[0].mxu0
        %v4542 = vadd.f32 %v4429, %v4541
        %v4543 = vpop.f32.mrb[0].mxu0
        %v4544 = vadd.f32 %v4431, %v4543
        %v4545 = vpop.f32.mrb[0].mxu0
        %v4546 = vadd.f32 %v4433, %v4545
        %v4547 = vpop.f32.mrb[0].mxu0
        %v4548 = vadd.f32 %v4435, %v4547
        %4549 = vmatprep.mubr.bf16.mxu0 %v1087
        %4550 = vmatmul.mubr.bf16.gmra.mrb[0].mxu0 %v1086
        %v4551 = vpop.f32.mrb[0].mxu0
        %v4552 = vadd.f32 %v4439, %v4551
        %v4553 = vpop.f32.mrb[0].mxu0
        %v4554 = vadd.f32 %v4441, %v4553
        %v4555 = vpop.f32.mrb[0].mxu0
        %v4556 = vadd.f32 %v4443, %v4555
        %v4557 = vpop.f32.mrb[0].mxu0
        %v4558 = vadd.f32 %v4445, %v4557
        %4559 = vmatprep.mubr.bf16.mxu0 %v1091
        %4560 = vmatmul.mubr.bf16.gmra.mrb[0].mxu0 %v1090
        %v4561 = vpop.f32.mrb[0].mxu0
        %v4562 = vadd.f32 %v4449, %v4561
        %v4563 = vpop.f32.mrb[0].mxu0
        %v4564 = vadd.f32 %v4451, %v4563
        %v4565 = vpop.f32.mrb[0].mxu0
        %v4566 = vadd.f32 %v4453, %v4565
        %v4567 = vpop.f32.mrb[0].mxu0
        %v4568 = vadd.f32 %v4455, %v4567
        %4569 = vmatprep.mubr.bf16.mxu0 %v1095
        %4570 = vmatmul.mubr.bf16.gmra.mrb[0].mxu0 %v1094
        %v4571 = vpop.f32.mrb[0].mxu0
        %v4572 = vadd.f32 %v4459, %v4571
        %v4573 = vpop.f32.mrb[0].mxu0
        %v4574 = vadd.f32 %v4461, %v4573
        %v4575 = vpop.f32.mrb[0].mxu0
        %v4576 = vadd.f32 %v4463, %v4575
        %v4577 = vpop.f32.mrb[0].mxu0
        %v4578 = vadd.f32 %v4465, %v4577
        %4579 = vmatprep.mubr.bf16.mxu0 %v1099
        %4580 = vmatmul.mubr.bf16.gmra.mrb[0].mxu0 %v1098
        %v4581 = vpop.f32.mrb[0].mxu0
        %v4582 = vadd.f32 %v4469, %v4581
        %v4583 = vpop.f32.mrb[0].mxu0
        %v4584 = vadd.f32 %v4471, %v4583
        %v4585 = vpop.f32.mrb[0].mxu0
        %v4586 = vadd.f32 %v4473, %v4585
        %v4587 = vpop.f32.mrb[0].mxu0
        %v4588 = vadd.f32 %v4475, %v4587
        %4589 = vmatprep.mubr.bf16.mxu0 %v1103
        %4590 = vmatmul.mubr.bf16.gmra.mrb[0].mxu0 %v1102
        %v4591 = vpop.f32.mrb[0].mxu0
        %v4592 = vadd.f32 %v4479, %v4591
        %v4593 = vpop.f32.mrb[0].mxu0
        %v4594 = vadd.f32 %v4481, %v4593
        %v4595 = vpop.f32.mrb[0].mxu0
        %v4596 = vadd.f32 %v4483, %v4595
        %v4597 = vpop.f32.mrb[0].mxu0
        %v4598 = vadd.f32 %v4485, %v4597
        %4599 = vdwg.mxu0
        %4600 = vmatprep.subr.bf16.mxu0 %v2681
        %4601 = vmatpush1.bf16.msra.mxu0 %v2680
        %4602 = vmatprep.subr.bf16.mxu0 %v2697
        %4603 = vmatpush1.bf16.msra.mxu0 %v2696
        %4604 = vmatprep.subr.bf16.mxu0 %v2713
        %4605 = vmatpush1.bf16.msra.mxu0 %v2712
        %4606 = vmatprep.subr.bf16.mxu0 %v2729
        %4607 = vmatpush1.bf16.msra.mxu0 %v2728
        %4608 = vmatprep.subr.bf16.mxu0 %v2745
        %4609 = vmatpush1.bf16.msra.mxu0 %v2744
        %4610 = vmatprep.subr.bf16.mxu0 %v2761
        %4611 = vmatpush1.bf16.msra.mxu0 %v2760
        %4612 = vmatprep.subr.bf16.mxu0 %v2777
        %4613 = vmatpush1.bf16.msra.mxu0 %v2776
        %4614 = vmatprep.subr.bf16.mxu0 %v2793
        %4615 = vmatpush1.bf16.msra.mxu0 %v2792
        %4616 = vmatprep.subr.bf16.mxu0 %v2809
        %4617 = vmatpush1.bf16.msra.mxu0 %v2808
        %4618 = vmatprep.subr.bf16.mxu0 %v2825
        %4619 = vmatpush1.bf16.msra.mxu0 %v2824
        %4620 = vmatprep.subr.bf16.mxu0 %v2841
        %4621 = vmatpush1.bf16.msra.mxu0 %v2840
        %4622 = vmatprep.subr.bf16.mxu0 %v2857
        %4623 = vmatpush1.bf16.msra.mxu0 %v2856
        %4624 = vmatprep.subr.bf16.mxu0 %v2873
        %4625 = vmatpush1.bf16.msra.mxu0 %v2872
        %4626 = vmatprep.subr.bf16.mxu0 %v2889
        %4627 = vmatpush1.bf16.msra.mxu0 %v2888
        %4628 = vmatprep.subr.bf16.mxu0 %v2905
        %4629 = vmatpush1.bf16.msra.mxu0 %v2904
        %4630 = vmatprep.subr.bf16.mxu0 %v2921
        %4631 = vmatpush1.bf16.msra.mxu0 %v2920
        %4632 = vmatprep.mubr.bf16.mxu0 %v1073
        %4633 = vmatmul.mubr.bf16.gmra.mrb[0].mxu0 %v1072
        %v4634 = vpop.f32.mrb[0].mxu0
        %v4635 = vadd.f32 %v931, %v4634
        %v4636 = vpop.f32.mrb[0].mxu0
        %v4637 = vadd.f32 %v935, %v4636
        %v4638 = vpop.f32.mrb[0].mxu0
        %v4639 = vadd.f32 %v931, %v4638
        %v4640 = vpop.f32.mrb[0].mxu0
        %v4641 = vadd.f32 %v935, %v4640
        %4642 = vmatprep.mubr.bf16.mxu0 %v1077
        %4643 = vmatmul.mubr.bf16.gmra.mrb[0].mxu0 %v1076
        %v4644 = vpop.f32.mrb[0].mxu0
        %v4645 = vadd.f32 %v931, %v4644
        %v4646 = vpop.f32.mrb[0].mxu0
        %v4647 = vadd.f32 %v935, %v4646
        %v4648 = vpop.f32.mrb[0].mxu0
        %v4649 = vadd.f32 %v931, %v4648
        %v4650 = vpop.f32.mrb[0].mxu0
        %v4651 = vadd.f32 %v935, %v4650
        %4652 = vmatprep.mubr.bf16.mxu0 %v1081
        %4653 = vmatmul.mubr.bf16.gmra.mrb[0].mxu0 %v1080
        %v4654 = vpop.f32.mrb[0].mxu0
        %v4655 = vadd.f32 %v931, %v4654
        %v4656 = vpop.f32.mrb[0].mxu0
        %v4657 = vadd.f32 %v935, %v4656
        %v4658 = vpop.f32.mrb[0].mxu0
        %v4659 = vadd.f32 %v931, %v4658
        %v4660 = vpop.f32.mrb[0].mxu0
        %v4661 = vadd.f32 %v935, %v4660
        %4662 = vmatprep.mubr.bf16.mxu0 %v1085
        %4663 = vmatmul.mubr.bf16.gmra.mrb[0].mxu0 %v1084
        %v4664 = vpop.f32.mrb[0].mxu0
        %v4665 = vadd.f32 %v931, %v4664
        %v4666 = vpop.f32.mrb[0].mxu0
        %v4667 = vadd.f32 %v935, %v4666
        %v4668 = vpop.f32.mrb[0].mxu0
        %v4669 = vadd.f32 %v931, %v4668
        %v4670 = vpop.f32.mrb[0].mxu0
        %v4671 = vadd.f32 %v935, %v4670
        %4672 = vmatprep.mubr.bf16.mxu0 %v1089
        %4673 = vmatmul.mubr.bf16.gmra.mrb[0].mxu0 %v1088
        %v4674 = vpop.f32.mrb[0].mxu0
        %v4675 = vadd.f32 %v931, %v4674
        %v4676 = vpop.f32.mrb[0].mxu0
        %v4677 = vadd.f32 %v935, %v4676
        %v4678 = vpop.f32.mrb[0].mxu0
        %v4679 = vadd.f32 %v931, %v4678
        %v4680 = vpop.f32.mrb[0].mxu0
        %v4681 = vadd.f32 %v935, %v4680
        %4682 = vmatprep.mubr.bf16.mxu0 %v1093
        %4683 = vmatmul.mubr.bf16.gmra.mrb[0].mxu0 %v1092
        %v4684 = vpop.f32.mrb[0].mxu0
        %v4685 = vadd.f32 %v931, %v4684
        %v4686 = vpop.f32.mrb[0].mxu0
        %v4687 = vadd.f32 %v935, %v4686
        %v4688 = vpop.f32.mrb[0].mxu0
        %v4689 = vadd.f32 %v931, %v4688
        %v4690 = vpop.f32.mrb[0].mxu0
        %v4691 = vadd.f32 %v935, %v4690
        %4692 = vmatprep.mubr.bf16.mxu0 %v1097
        %4693 = vmatmul.mubr.bf16.gmra.mrb[0].mxu0 %v1096
        %v4694 = vpop.f32.mrb[0].mxu0
        %v4695 = vadd.f32 %v931, %v4694
        %v4696 = vpop.f32.mrb[0].mxu0
        %v4697 = vadd.f32 %v935, %v4696
        %v4698 = vpop.f32.mrb[0].mxu0
        %v4699 = vadd.f32 %v931, %v4698
        %v4700 = vpop.f32.mrb[0].mxu0
        %v4701 = vadd.f32 %v935, %v4700
        %4702 = vmatprep.mubr.bf16.mxu0 %v1101
        %4703 = vmatmul.mubr.bf16.gmra.mrb[0].mxu0 %v1100
        %v4704 = vpop.f32.mrb[0].mxu0
        %v4705 = vadd.f32 %v931, %v4704
        %v4706 = vpop.f32.mrb[0].mxu0
        %v4707 = vadd.f32 %v935, %v4706
        %v4708 = vpop.f32.mrb[0].mxu0
        %v4709 = vadd.f32 %v931, %v4708
        %v4710 = vpop.f32.mrb[0].mxu0
        %v4711 = vadd.f32 %v935, %v4710
        %4712 = vdwg.mxu0
        %4713 = vmatprep.subr.bf16.mxu0 %v2937
        %4714 = vmatpush1.bf16.msra.mxu0 %v2936
        %4715 = vmatprep.subr.bf16.mxu0 %v2953
        %4716 = vmatpush1.bf16.msra.mxu0 %v2952
        %4717 = vmatprep.subr.bf16.mxu0 %v2969
        %4718 = vmatpush1.bf16.msra.mxu0 %v2968
        %4719 = vmatprep.subr.bf16.mxu0 %v2985
        %4720 = vmatpush1.bf16.msra.mxu0 %v2984
        %4721 = vmatprep.subr.bf16.mxu0 %v3001
        %4722 = vmatpush1.bf16.msra.mxu0 %v3000
        %4723 = vmatprep.subr.bf16.mxu0 %v3017
        %4724 = vmatpush1.bf16.msra.mxu0 %v3016
        %4725 = vmatprep.subr.bf16.mxu0 %v3033
        %4726 = vmatpush1.bf16.msra.mxu0 %v3032
        %4727 = vmatprep.subr.bf16.mxu0 %v3049
        %4728 = vmatpush1.bf16.msra.mxu0 %v3048
        %4729 = vmatprep.subr.bf16.mxu0 %v3065
        %4730 = vmatpush1.bf16.msra.mxu0 %v3064
        %4731 = vmatprep.subr.bf16.mxu0 %v3081
        %4732 = vmatpush1.bf16.msra.mxu0 %v3080
        %4733 = vmatprep.subr.bf16.mxu0 %v3097
        %4734 = vmatpush1.bf16.msra.mxu0 %v3096
        %4735 = vmatprep.subr.bf16.mxu0 %v3113
        %4736 = vmatpush1.bf16.msra.mxu0 %v3112
        %4737 = vmatprep.subr.bf16.mxu0 %v3129
        %4738 = vmatpush1.bf16.msra.mxu0 %v3128
        %4739 = vmatprep.subr.bf16.mxu0 %v3145
        %4740 = vmatpush1.bf16.msra.mxu0 %v3144
        %4741 = vmatprep.subr.bf16.mxu0 %v3161
        %4742 = vmatpush1.bf16.msra.mxu0 %v3160
        %4743 = vmatprep.subr.bf16.mxu0 %v3177
        %4744 = vmatpush1.bf16.msra.mxu0 %v3176
        %4745 = vmatprep.mubr.bf16.mxu0 %v1075
        %4746 = vmatmul.mubr.bf16.gmra.mrb[0].mxu0 %v1074
        %v4747 = vpop.f32.mrb[0].mxu0
        %v4748 = vadd.f32 %v4635, %v4747
        %v4749 = vpop.f32.mrb[0].mxu0
        %v4750 = vadd.f32 %v4637, %v4749
        %v4751 = vpop.f32.mrb[0].mxu0
        %v4752 = vadd.f32 %v4639, %v4751
        %v4753 = vpop.f32.mrb[0].mxu0
        %v4754 = vadd.f32 %v4641, %v4753
        %4755 = vmatprep.mubr.bf16.mxu0 %v1079
        %4756 = vmatmul.mubr.bf16.gmra.mrb[0].mxu0 %v1078
        %v4757 = vpop.f32.mrb[0].mxu0
        %v4758 = vadd.f32 %v4645, %v4757
        %v4759 = vpop.f32.mrb[0].mxu0
        %v4760 = vadd.f32 %v4647, %v4759
        %v4761 = vpop.f32.mrb[0].mxu0
        %v4762 = vadd.f32 %v4649, %v4761
        %v4763 = vpop.f32.mrb[0].mxu0
        %v4764 = vadd.f32 %v4651, %v4763
        %4765 = vmatprep.mubr.bf16.mxu0 %v1083
        %4766 = vmatmul.mubr.bf16.gmra.mrb[0].mxu0 %v1082
        %v4767 = vpop.f32.mrb[0].mxu0
        %v4768 = vadd.f32 %v4655, %v4767
        %v4769 = vpop.f32.mrb[0].mxu0
        %v4770 = vadd.f32 %v4657, %v4769
        %v4771 = vpop.f32.mrb[0].mxu0
        %v4772 = vadd.f32 %v4659, %v4771
        %v4773 = vpop.f32.mrb[0].mxu0
        %v4774 = vadd.f32 %v4661, %v4773
        %4775 = vmatprep.mubr.bf16.mxu0 %v1087
        %4776 = vmatmul.mubr.bf16.gmra.mrb[0].mxu0 %v1086
        %v4777 = vpop.f32.mrb[0].mxu0
        %v4778 = vadd.f32 %v4665, %v4777
        %v4779 = vpop.f32.mrb[0].mxu0
        %v4780 = vadd.f32 %v4667, %v4779
        %v4781 = vpop.f32.mrb[0].mxu0
        %v4782 = vadd.f32 %v4669, %v4781
        %v4783 = vpop.f32.mrb[0].mxu0
        %v4784 = vadd.f32 %v4671, %v4783
        %4785 = vmatprep.mubr.bf16.mxu0 %v1091
        %4786 = vmatmul.mubr.bf16.gmra.mrb[0].mxu0 %v1090
        %v4787 = vpop.f32.mrb[0].mxu0
        %v4788 = vadd.f32 %v4675, %v4787
        %v4789 = vpop.f32.mrb[0].mxu0
        %v4790 = vadd.f32 %v4677, %v4789
        %v4791 = vpop.f32.mrb[0].mxu0
        %v4792 = vadd.f32 %v4679, %v4791
        %v4793 = vpop.f32.mrb[0].mxu0
        %v4794 = vadd.f32 %v4681, %v4793
        %4795 = vmatprep.mubr.bf16.mxu0 %v1095
        %4796 = vmatmul.mubr.bf16.gmra.mrb[0].mxu0 %v1094
        %v4797 = vpop.f32.mrb[0].mxu0
        %v4798 = vadd.f32 %v4685, %v4797
        %v4799 = vpop.f32.mrb[0].mxu0
        %v4800 = vadd.f32 %v4687, %v4799
        %v4801 = vpop.f32.mrb[0].mxu0
        %v4802 = vadd.f32 %v4689, %v4801
        %v4803 = vpop.f32.mrb[0].mxu0
        %v4804 = vadd.f32 %v4691, %v4803
        %4805 = vmatprep.mubr.bf16.mxu0 %v1099
        %4806 = vmatmul.mubr.bf16.gmra.mrb[0].mxu0 %v1098
        %v4807 = vpop.f32.mrb[0].mxu0
        %v4808 = vadd.f32 %v4695, %v4807
        %v4809 = vpop.f32.mrb[0].mxu0
        %v4810 = vadd.f32 %v4697, %v4809
        %v4811 = vpop.f32.mrb[0].mxu0
        %v4812 = vadd.f32 %v4699, %v4811
        %v4813 = vpop.f32.mrb[0].mxu0
        %v4814 = vadd.f32 %v4701, %v4813
        %4815 = vmatprep.mubr.bf16.mxu0 %v1103
        %4816 = vmatmul.mubr.bf16.gmra.mrb[0].mxu0 %v1102
        %v4817 = vpop.f32.mrb[0].mxu0
        %v4818 = vadd.f32 %v4705, %v4817
        %v4819 = vpop.f32.mrb[0].mxu0
        %v4820 = vadd.f32 %v4707, %v4819
        %v4821 = vpop.f32.mrb[0].mxu0
        %v4822 = vadd.f32 %v4709, %v4821
        %v4823 = vpop.f32.mrb[0].mxu0
        %v4824 = vadd.f32 %v4711, %v4823
        %4825 = vdwg.mxu0
        %4826 = vmatprep.subr.bf16.mxu0 %v2683
        %4827 = vmatpush1.bf16.msra.mxu0 %v2682
        %4828 = vmatprep.subr.bf16.mxu0 %v2699
        %4829 = vmatpush1.bf16.msra.mxu0 %v2698
        %4830 = vmatprep.subr.bf16.mxu0 %v2715
        %4831 = vmatpush1.bf16.msra.mxu0 %v2714
        %4832 = vmatprep.subr.bf16.mxu0 %v2731
        %4833 = vmatpush1.bf16.msra.mxu0 %v2730
        %4834 = vmatprep.subr.bf16.mxu0 %v2747
        %4835 = vmatpush1.bf16.msra.mxu0 %v2746
        %4836 = vmatprep.subr.bf16.mxu0 %v2763
        %4837 = vmatpush1.bf16.msra.mxu0 %v2762
        %4838 = vmatprep.subr.bf16.mxu0 %v2779
        %4839 = vmatpush1.bf16.msra.mxu0 %v2778
        %4840 = vmatprep.subr.bf16.mxu0 %v2795
        %4841 = vmatpush1.bf16.msra.mxu0 %v2794
        %4842 = vmatprep.subr.bf16.mxu0 %v2811
        %4843 = vmatpush1.bf16.msra.mxu0 %v2810
        %4844 = vmatprep.subr.bf16.mxu0 %v2827
        %4845 = vmatpush1.bf16.msra.mxu0 %v2826
        %4846 = vmatprep.subr.bf16.mxu0 %v2843
        %4847 = vmatpush1.bf16.msra.mxu0 %v2842
        %4848 = vmatprep.subr.bf16.mxu0 %v2859
        %4849 = vmatpush1.bf16.msra.mxu0 %v2858
        %4850 = vmatprep.subr.bf16.mxu0 %v2875
        %4851 = vmatpush1.bf16.msra.mxu0 %v2874
        %4852 = vmatprep.subr.bf16.mxu0 %v2891
        %4853 = vmatpush1.bf16.msra.mxu0 %v2890
        %4854 = vmatprep.subr.bf16.mxu0 %v2907
        %4855 = vmatpush1.bf16.msra.mxu0 %v2906
        %4856 = vmatprep.subr.bf16.mxu0 %v2923
        %4857 = vmatpush1.bf16.msra.mxu0 %v2922
        %4858 = vmatprep.mubr.bf16.mxu0 %v1073
        %4859 = vmatmul.mubr.bf16.gmra.mrb[0].mxu0 %v1072
        %v4860 = vpop.f32.mrb[0].mxu0
        %v4861 = vadd.f32 %v939, %v4860
        %v4862 = vpop.f32.mrb[0].mxu0
        %v4863 = vadd.f32 %v943, %v4862
        %v4864 = vpop.f32.mrb[0].mxu0
        %v4865 = vadd.f32 %v939, %v4864
        %v4866 = vpop.f32.mrb[0].mxu0
        %v4867 = vadd.f32 %v943, %v4866
        %4868 = vmatprep.mubr.bf16.mxu0 %v1077
        %4869 = vmatmul.mubr.bf16.gmra.mrb[0].mxu0 %v1076
        %v4870 = vpop.f32.mrb[0].mxu0
        %v4871 = vadd.f32 %v939, %v4870
        %v4872 = vpop.f32.mrb[0].mxu0
        %v4873 = vadd.f32 %v943, %v4872
        %v4874 = vpop.f32.mrb[0].mxu0
        %v4875 = vadd.f32 %v939, %v4874
        %v4876 = vpop.f32.mrb[0].mxu0
        %v4877 = vadd.f32 %v943, %v4876
        %4878 = vmatprep.mubr.bf16.mxu0 %v1081
        %4879 = vmatmul.mubr.bf16.gmra.mrb[0].mxu0 %v1080
        %v4880 = vpop.f32.mrb[0].mxu0
        %v4881 = vadd.f32 %v939, %v4880
        %v4882 = vpop.f32.mrb[0].mxu0
        %v4883 = vadd.f32 %v943, %v4882
        %v4884 = vpop.f32.mrb[0].mxu0
        %v4885 = vadd.f32 %v939, %v4884
        %v4886 = vpop.f32.mrb[0].mxu0
        %v4887 = vadd.f32 %v943, %v4886
        %4888 = vmatprep.mubr.bf16.mxu0 %v1085
        %4889 = vmatmul.mubr.bf16.gmra.mrb[0].mxu0 %v1084
        %v4890 = vpop.f32.mrb[0].mxu0
        %v4891 = vadd.f32 %v939, %v4890
        %v4892 = vpop.f32.mrb[0].mxu0
        %v4893 = vadd.f32 %v943, %v4892
        %v4894 = vpop.f32.mrb[0].mxu0
        %v4895 = vadd.f32 %v939, %v4894
        %v4896 = vpop.f32.mrb[0].mxu0
        %v4897 = vadd.f32 %v943, %v4896
        %4898 = vmatprep.mubr.bf16.mxu0 %v1089
        %4899 = vmatmul.mubr.bf16.gmra.mrb[0].mxu0 %v1088
        %v4900 = vpop.f32.mrb[0].mxu0
        %v4901 = vadd.f32 %v939, %v4900
        %v4902 = vpop.f32.mrb[0].mxu0
        %v4903 = vadd.f32 %v943, %v4902
        %v4904 = vpop.f32.mrb[0].mxu0
        %v4905 = vadd.f32 %v939, %v4904
        %v4906 = vpop.f32.mrb[0].mxu0
        %v4907 = vadd.f32 %v943, %v4906
        %4908 = vmatprep.mubr.bf16.mxu0 %v1093
        %4909 = vmatmul.mubr.bf16.gmra.mrb[0].mxu0 %v1092
        %v4910 = vpop.f32.mrb[0].mxu0
        %v4911 = vadd.f32 %v939, %v4910
        %v4912 = vpop.f32.mrb[0].mxu0
        %v4913 = vadd.f32 %v943, %v4912
        %v4914 = vpop.f32.mrb[0].mxu0
        %v4915 = vadd.f32 %v939, %v4914
        %v4916 = vpop.f32.mrb[0].mxu0
        %v4917 = vadd.f32 %v943, %v4916
        %4918 = vmatprep.mubr.bf16.mxu0 %v1097
        %4919 = vmatmul.mubr.bf16.gmra.mrb[0].mxu0 %v1096
        %v4920 = vpop.f32.mrb[0].mxu0
        %v4921 = vadd.f32 %v939, %v4920
        %v4922 = vpop.f32.mrb[0].mxu0
        %v4923 = vadd.f32 %v943, %v4922
        %v4924 = vpop.f32.mrb[0].mxu0
        %v4925 = vadd.f32 %v939, %v4924
        %v4926 = vpop.f32.mrb[0].mxu0
        %v4927 = vadd.f32 %v943, %v4926
        %4928 = vmatprep.mubr.bf16.mxu0 %v1101
        %4929 = vmatmul.mubr.bf16.gmra.mrb[0].mxu0 %v1100
        %v4930 = vpop.f32.mrb[0].mxu0
        %v4931 = vadd.f32 %v939, %v4930
        %v4932 = vpop.f32.mrb[0].mxu0
        %v4933 = vadd.f32 %v943, %v4932
        %v4934 = vpop.f32.mrb[0].mxu0
        %v4935 = vadd.f32 %v939, %v4934
        %v4936 = vpop.f32.mrb[0].mxu0
        %v4937 = vadd.f32 %v943, %v4936
        %4938 = vdwg.mxu0
        %4939 = vmatprep.subr.bf16.mxu0 %v2939
        %4940 = vmatpush1.bf16.msra.mxu0 %v2938
        %4941 = vmatprep.subr.bf16.mxu0 %v2955
        %4942 = vmatpush1.bf16.msra.mxu0 %v2954
        %4943 = vmatprep.subr.bf16.mxu0 %v2971
        %4944 = vmatpush1.bf16.msra.mxu0 %v2970
        %4945 = vmatprep.subr.bf16.mxu0 %v2987
        %4946 = vmatpush1.bf16.msra.mxu0 %v2986
        %4947 = vmatprep.subr.bf16.mxu0 %v3003
        %4948 = vmatpush1.bf16.msra.mxu0 %v3002
        %4949 = vmatprep.subr.bf16.mxu0 %v3019
        %4950 = vmatpush1.bf16.msra.mxu0 %v3018
        %4951 = vmatprep.subr.bf16.mxu0 %v3035
        %4952 = vmatpush1.bf16.msra.mxu0 %v3034
        %4953 = vmatprep.subr.bf16.mxu0 %v3051
        %4954 = vmatpush1.bf16.msra.mxu0 %v3050
        %4955 = vmatprep.subr.bf16.mxu0 %v3067
        %4956 = vmatpush1.bf16.msra.mxu0 %v3066
        %4957 = vmatprep.subr.bf16.mxu0 %v3083
        %4958 = vmatpush1.bf16.msra.mxu0 %v3082
        %4959 = vmatprep.subr.bf16.mxu0 %v3099
        %4960 = vmatpush1.bf16.msra.mxu0 %v3098
        %4961 = vmatprep.subr.bf16.mxu0 %v3115
        %4962 = vmatpush1.bf16.msra.mxu0 %v3114
        %4963 = vmatprep.subr.bf16.mxu0 %v3131
        %4964 = vmatpush1.bf16.msra.mxu0 %v3130
        %4965 = vmatprep.subr.bf16.mxu0 %v3147
        %4966 = vmatpush1.bf16.msra.mxu0 %v3146
        %4967 = vmatprep.subr.bf16.mxu0 %v3163
        %4968 = vmatpush1.bf16.msra.mxu0 %v3162
        %4969 = vmatprep.subr.bf16.mxu0 %v3179
        %4970 = vmatpush1.bf16.msra.mxu0 %v3178
        %4971 = vmatprep.mubr.bf16.mxu0 %v1075
        %4972 = vmatmul.mubr.bf16.gmra.mrb[0].mxu0 %v1074
        %v4973 = vpop.f32.mrb[0].mxu0
        %v4974 = vadd.f32 %v4861, %v4973
        %v4975 = vpop.f32.mrb[0].mxu0
        %v4976 = vadd.f32 %v4863, %v4975
        %v4977 = vpop.f32.mrb[0].mxu0
        %v4978 = vadd.f32 %v4865, %v4977
        %v4979 = vpop.f32.mrb[0].mxu0
        %v4980 = vadd.f32 %v4867, %v4979
        %4981 = vmatprep.mubr.bf16.mxu0 %v1079
        %4982 = vmatmul.mubr.bf16.gmra.mrb[0].mxu0 %v1078
        %v4983 = vpop.f32.mrb[0].mxu0
        %v4984 = vadd.f32 %v4871, %v4983
        %v4985 = vpop.f32.mrb[0].mxu0
        %v4986 = vadd.f32 %v4873, %v4985
        %v4987 = vpop.f32.mrb[0].mxu0
        %v4988 = vadd.f32 %v4875, %v4987
        %v4989 = vpop.f32.mrb[0].mxu0
        %v4990 = vadd.f32 %v4877, %v4989
        %4991 = vmatprep.mubr.bf16.mxu0 %v1083
        %4992 = vmatmul.mubr.bf16.gmra.mrb[0].mxu0 %v1082
        %v4993 = vpop.f32.mrb[0].mxu0
        %v4994 = vadd.f32 %v4881, %v4993
        %v4995 = vpop.f32.mrb[0].mxu0
        %v4996 = vadd.f32 %v4883, %v4995
        %v4997 = vpop.f32.mrb[0].mxu0
        %v4998 = vadd.f32 %v4885, %v4997
        %v4999 = vpop.f32.mrb[0].mxu0
        %v5000 = vadd.f32 %v4887, %v4999
        %5001 = vmatprep.mubr.bf16.mxu0 %v1087
        %5002 = vmatmul.mubr.bf16.gmra.mrb[0].mxu0 %v1086
        %v5003 = vpop.f32.mrb[0].mxu0
        %v5004 = vadd.f32 %v4891, %v5003
        %v5005 = vpop.f32.mrb[0].mxu0
        %v5006 = vadd.f32 %v4893, %v5005
        %v5007 = vpop.f32.mrb[0].mxu0
        %v5008 = vadd.f32 %v4895, %v5007
        %v5009 = vpop.f32.mrb[0].mxu0
        %v5010 = vadd.f32 %v4897, %v5009
        %5011 = vmatprep.mubr.bf16.mxu0 %v1091
        %5012 = vmatmul.mubr.bf16.gmra.mrb[0].mxu0 %v1090
        %v5013 = vpop.f32.mrb[0].mxu0
        %v5014 = vadd.f32 %v4901, %v5013
        %v5015 = vpop.f32.mrb[0].mxu0
        %v5016 = vadd.f32 %v4903, %v5015
        %v5017 = vpop.f32.mrb[0].mxu0
        %v5018 = vadd.f32 %v4905, %v5017
        %v5019 = vpop.f32.mrb[0].mxu0
        %v5020 = vadd.f32 %v4907, %v5019
        %5021 = vmatprep.mubr.bf16.mxu0 %v1095
        %5022 = vmatmul.mubr.bf16.gmra.mrb[0].mxu0 %v1094
        %v5023 = vpop.f32.mrb[0].mxu0
        %v5024 = vadd.f32 %v4911, %v5023
        %v5025 = vpop.f32.mrb[0].mxu0
        %v5026 = vadd.f32 %v4913, %v5025
        %v5027 = vpop.f32.mrb[0].mxu0
        %v5028 = vadd.f32 %v4915, %v5027
        %v5029 = vpop.f32.mrb[0].mxu0
        %v5030 = vadd.f32 %v4917, %v5029
        %5031 = vmatprep.mubr.bf16.mxu0 %v1099
        %5032 = vmatmul.mubr.bf16.gmra.mrb[0].mxu0 %v1098
        %v5033 = vpop.f32.mrb[0].mxu0
        %v5034 = vadd.f32 %v4921, %v5033
        %v5035 = vpop.f32.mrb[0].mxu0
        %v5036 = vadd.f32 %v4923, %v5035
        %v5037 = vpop.f32.mrb[0].mxu0
        %v5038 = vadd.f32 %v4925, %v5037
        %v5039 = vpop.f32.mrb[0].mxu0
        %v5040 = vadd.f32 %v4927, %v5039
        %5041 = vmatprep.mubr.bf16.mxu0 %v1103
        %5042 = vmatmul.mubr.bf16.gmra.mrb[0].mxu0 %v1102
        %v5043 = vpop.f32.mrb[0].mxu0
        %v5044 = vadd.f32 %v4931, %v5043
        %v5045 = vpop.f32.mrb[0].mxu0
        %v5046 = vadd.f32 %v4933, %v5045
        %v5047 = vpop.f32.mrb[0].mxu0
        %v5048 = vadd.f32 %v4935, %v5047
        %v5049 = vpop.f32.mrb[0].mxu0
        %v5050 = vadd.f32 %v4937, %v5049
        %5051 = vdwg.mxu0
        %5052 = vmatprep.subr.bf16.mxu0 %v2685
        %5053 = vmatpush1.bf16.msra.mxu0 %v2684
        %5054 = vmatprep.subr.bf16.mxu0 %v2701
        %5055 = vmatpush1.bf16.msra.mxu0 %v2700
        %5056 = vmatprep.subr.bf16.mxu0 %v2717
        %5057 = vmatpush1.bf16.msra.mxu0 %v2716
        %5058 = vmatprep.subr.bf16.mxu0 %v2733
        %5059 = vmatpush1.bf16.msra.mxu0 %v2732
        %5060 = vmatprep.subr.bf16.mxu0 %v2749
        %5061 = vmatpush1.bf16.msra.mxu0 %v2748
        %5062 = vmatprep.subr.bf16.mxu0 %v2765
        %5063 = vmatpush1.bf16.msra.mxu0 %v2764
        %5064 = vmatprep.subr.bf16.mxu0 %v2781
        %5065 = vmatpush1.bf16.msra.mxu0 %v2780
        %5066 = vmatprep.subr.bf16.mxu0 %v2797
        %5067 = vmatpush1.bf16.msra.mxu0 %v2796
        %5068 = vmatprep.subr.bf16.mxu0 %v2813
        %5069 = vmatpush1.bf16.msra.mxu0 %v2812
        %5070 = vmatprep.subr.bf16.mxu0 %v2829
        %5071 = vmatpush1.bf16.msra.mxu0 %v2828
        %5072 = vmatprep.subr.bf16.mxu0 %v2845
        %5073 = vmatpush1.bf16.msra.mxu0 %v2844
        %5074 = vmatprep.subr.bf16.mxu0 %v2861
        %5075 = vmatpush1.bf16.msra.mxu0 %v2860
        %5076 = vmatprep.subr.bf16.mxu0 %v2877
        %5077 = vmatpush1.bf16.msra.mxu0 %v2876
        %5078 = vmatprep.subr.bf16.mxu0 %v2893
        %5079 = vmatpush1.bf16.msra.mxu0 %v2892
        %5080 = vmatprep.subr.bf16.mxu0 %v2909
        %5081 = vmatpush1.bf16.msra.mxu0 %v2908
        %5082 = vmatprep.subr.bf16.mxu0 %v2925
        %5083 = vmatpush1.bf16.msra.mxu0 %v2924
        %5084 = vmatprep.mubr.bf16.mxu0 %v1073
        %5085 = vmatmul.mubr.bf16.gmra.mrb[0].mxu0 %v1072
        %v5086 = vpop.f32.mrb[0].mxu0
        %v5087 = vadd.f32 %v947, %v5086
        %v5088 = vpop.f32.mrb[0].mxu0
        %v5089 = vadd.f32 %v951, %v5088
        %v5090 = vpop.f32.mrb[0].mxu0
        %v5091 = vadd.f32 %v947, %v5090
        %v5092 = vpop.f32.mrb[0].mxu0
        %v5093 = vadd.f32 %v951, %v5092
        %5094 = vmatprep.mubr.bf16.mxu0 %v1077
        %5095 = vmatmul.mubr.bf16.gmra.mrb[0].mxu0 %v1076
        %v5096 = vpop.f32.mrb[0].mxu0
        %v5097 = vadd.f32 %v947, %v5096
        %v5098 = vpop.f32.mrb[0].mxu0
        %v5099 = vadd.f32 %v951, %v5098
        %v5100 = vpop.f32.mrb[0].mxu0
        %v5101 = vadd.f32 %v947, %v5100
        %v5102 = vpop.f32.mrb[0].mxu0
        %v5103 = vadd.f32 %v951, %v5102
        %5104 = vmatprep.mubr.bf16.mxu0 %v1081
        %5105 = vmatmul.mubr.bf16.gmra.mrb[0].mxu0 %v1080
        %v5106 = vpop.f32.mrb[0].mxu0
        %v5107 = vadd.f32 %v947, %v5106
        %v5108 = vpop.f32.mrb[0].mxu0
        %v5109 = vadd.f32 %v951, %v5108
        %v5110 = vpop.f32.mrb[0].mxu0
        %v5111 = vadd.f32 %v947, %v5110
        %v5112 = vpop.f32.mrb[0].mxu0
        %v5113 = vadd.f32 %v951, %v5112
        %5114 = vmatprep.mubr.bf16.mxu0 %v1085
        %5115 = vmatmul.mubr.bf16.gmra.mrb[0].mxu0 %v1084
        %v5116 = vpop.f32.mrb[0].mxu0
        %v5117 = vadd.f32 %v947, %v5116
        %v5118 = vpop.f32.mrb[0].mxu0
        %v5119 = vadd.f32 %v951, %v5118
        %v5120 = vpop.f32.mrb[0].mxu0
        %v5121 = vadd.f32 %v947, %v5120
        %v5122 = vpop.f32.mrb[0].mxu0
        %v5123 = vadd.f32 %v951, %v5122
        %5124 = vmatprep.mubr.bf16.mxu0 %v1089
        %5125 = vmatmul.mubr.bf16.gmra.mrb[0].mxu0 %v1088
        %v5126 = vpop.f32.mrb[0].mxu0
        %v5127 = vadd.f32 %v947, %v5126
        %v5128 = vpop.f32.mrb[0].mxu0
        %v5129 = vadd.f32 %v951, %v5128
        %v5130 = vpop.f32.mrb[0].mxu0
        %v5131 = vadd.f32 %v947, %v5130
        %v5132 = vpop.f32.mrb[0].mxu0
        %v5133 = vadd.f32 %v951, %v5132
        %5134 = vmatprep.mubr.bf16.mxu0 %v1093
        %5135 = vmatmul.mubr.bf16.gmra.mrb[0].mxu0 %v1092
        %v5136 = vpop.f32.mrb[0].mxu0
        %v5137 = vadd.f32 %v947, %v5136
        %v5138 = vpop.f32.mrb[0].mxu0
        %v5139 = vadd.f32 %v951, %v5138
        %v5140 = vpop.f32.mrb[0].mxu0
        %v5141 = vadd.f32 %v947, %v5140
        %v5142 = vpop.f32.mrb[0].mxu0
        %v5143 = vadd.f32 %v951, %v5142
        %5144 = vmatprep.mubr.bf16.mxu0 %v1097
        %5145 = vmatmul.mubr.bf16.gmra.mrb[0].mxu0 %v1096
        %v5146 = vpop.f32.mrb[0].mxu0
        %v5147 = vadd.f32 %v947, %v5146
        %v5148 = vpop.f32.mrb[0].mxu0
        %v5149 = vadd.f32 %v951, %v5148
        %v5150 = vpop.f32.mrb[0].mxu0
        %v5151 = vadd.f32 %v947, %v5150
        %v5152 = vpop.f32.mrb[0].mxu0
        %v5153 = vadd.f32 %v951, %v5152
        %5154 = vmatprep.mubr.bf16.mxu0 %v1101
        %5155 = vmatmul.mubr.bf16.gmra.mrb[0].mxu0 %v1100
        %v5156 = vpop.f32.mrb[0].mxu0
        %v5157 = vadd.f32 %v947, %v5156
        %v5158 = vpop.f32.mrb[0].mxu0
        %v5159 = vadd.f32 %v951, %v5158
        %v5160 = vpop.f32.mrb[0].mxu0
        %v5161 = vadd.f32 %v947, %v5160
        %v5162 = vpop.f32.mrb[0].mxu0
        %v5163 = vadd.f32 %v951, %v5162
        %5164 = vdwg.mxu0
        %5165 = vmatprep.subr.bf16.mxu0 %v2941
        %5166 = vmatpush1.bf16.msra.mxu0 %v2940
        %5167 = vmatprep.subr.bf16.mxu0 %v2957
        %5168 = vmatpush1.bf16.msra.mxu0 %v2956
        %5169 = vmatprep.subr.bf16.mxu0 %v2973
        %5170 = vmatpush1.bf16.msra.mxu0 %v2972
        %5171 = vmatprep.subr.bf16.mxu0 %v2989
        %5172 = vmatpush1.bf16.msra.mxu0 %v2988
        %5173 = vmatprep.subr.bf16.mxu0 %v3005
        %5174 = vmatpush1.bf16.msra.mxu0 %v3004
        %5175 = vmatprep.subr.bf16.mxu0 %v3021
        %5176 = vmatpush1.bf16.msra.mxu0 %v3020
        %5177 = vmatprep.subr.bf16.mxu0 %v3037
        %5178 = vmatpush1.bf16.msra.mxu0 %v3036
        %5179 = vmatprep.subr.bf16.mxu0 %v3053
        %5180 = vmatpush1.bf16.msra.mxu0 %v3052
        %5181 = vmatprep.subr.bf16.mxu0 %v3069
        %5182 = vmatpush1.bf16.msra.mxu0 %v3068
        %5183 = vmatprep.subr.bf16.mxu0 %v3085
        %5184 = vmatpush1.bf16.msra.mxu0 %v3084
        %5185 = vmatprep.subr.bf16.mxu0 %v3101
        %5186 = vmatpush1.bf16.msra.mxu0 %v3100
        %5187 = vmatprep.subr.bf16.mxu0 %v3117
        %5188 = vmatpush1.bf16.msra.mxu0 %v3116
        %5189 = vmatprep.subr.bf16.mxu0 %v3133
        %5190 = vmatpush1.bf16.msra.mxu0 %v3132
        %5191 = vmatprep.subr.bf16.mxu0 %v3149
        %5192 = vmatpush1.bf16.msra.mxu0 %v3148
        %5193 = vmatprep.subr.bf16.mxu0 %v3165
        %5194 = vmatpush1.bf16.msra.mxu0 %v3164
        %5195 = vmatprep.subr.bf16.mxu0 %v3181
        %5196 = vmatpush1.bf16.msra.mxu0 %v3180
        %5197 = vmatprep.mubr.bf16.mxu0 %v1075
        %5198 = vmatmul.mubr.bf16.gmra.mrb[0].mxu0 %v1074
        %v5199 = vpop.f32.mrb[0].mxu0
        %v5200 = vadd.f32 %v5087, %v5199
        %v5201 = vpop.f32.mrb[0].mxu0
        %v5202 = vadd.f32 %v5089, %v5201
        %v5203 = vpop.f32.mrb[0].mxu0
        %v5204 = vadd.f32 %v5091, %v5203
        %v5205 = vpop.f32.mrb[0].mxu0
        %v5206 = vadd.f32 %v5093, %v5205
        %5207 = vmatprep.mubr.bf16.mxu0 %v1079
        %5208 = vmatmul.mubr.bf16.gmra.mrb[0].mxu0 %v1078
        %v5209 = vpop.f32.mrb[0].mxu0
        %v5210 = vadd.f32 %v5097, %v5209
        %v5211 = vpop.f32.mrb[0].mxu0
        %v5212 = vadd.f32 %v5099, %v5211
        %v5213 = vpop.f32.mrb[0].mxu0
        %v5214 = vadd.f32 %v5101, %v5213
        %v5215 = vpop.f32.mrb[0].mxu0
        %v5216 = vadd.f32 %v5103, %v5215
        %5217 = vmatprep.mubr.bf16.mxu0 %v1083
        %5218 = vmatmul.mubr.bf16.gmra.mrb[0].mxu0 %v1082
        %v5219 = vpop.f32.mrb[0].mxu0
        %v5220 = vadd.f32 %v5107, %v5219
        %v5221 = vpop.f32.mrb[0].mxu0
        %v5222 = vadd.f32 %v5109, %v5221
        %v5223 = vpop.f32.mrb[0].mxu0
        %v5224 = vadd.f32 %v5111, %v5223
        %v5225 = vpop.f32.mrb[0].mxu0
        %v5226 = vadd.f32 %v5113, %v5225
        %5227 = vmatprep.mubr.bf16.mxu0 %v1087
        %5228 = vmatmul.mubr.bf16.gmra.mrb[0].mxu0 %v1086
        %v5229 = vpop.f32.mrb[0].mxu0
        %v5230 = vadd.f32 %v5117, %v5229
        %v5231 = vpop.f32.mrb[0].mxu0
        %v5232 = vadd.f32 %v5119, %v5231
        %v5233 = vpop.f32.mrb[0].mxu0
        %v5234 = vadd.f32 %v5121, %v5233
        %v5235 = vpop.f32.mrb[0].mxu0
        %v5236 = vadd.f32 %v5123, %v5235
        %5237 = vmatprep.mubr.bf16.mxu0 %v1091
        %5238 = vmatmul.mubr.bf16.gmra.mrb[0].mxu0 %v1090
        %v5239 = vpop.f32.mrb[0].mxu0
        %v5240 = vadd.f32 %v5127, %v5239
        %v5241 = vpop.f32.mrb[0].mxu0
        %v5242 = vadd.f32 %v5129, %v5241
        %v5243 = vpop.f32.mrb[0].mxu0
        %v5244 = vadd.f32 %v5131, %v5243
        %v5245 = vpop.f32.mrb[0].mxu0
        %v5246 = vadd.f32 %v5133, %v5245
        %5247 = vmatprep.mubr.bf16.mxu0 %v1095
        %5248 = vmatmul.mubr.bf16.gmra.mrb[0].mxu0 %v1094
        %v5249 = vpop.f32.mrb[0].mxu0
        %v5250 = vadd.f32 %v5137, %v5249
        %v5251 = vpop.f32.mrb[0].mxu0
        %v5252 = vadd.f32 %v5139, %v5251
        %v5253 = vpop.f32.mrb[0].mxu0
        %v5254 = vadd.f32 %v5141, %v5253
        %v5255 = vpop.f32.mrb[0].mxu0
        %v5256 = vadd.f32 %v5143, %v5255
        %5257 = vmatprep.mubr.bf16.mxu0 %v1099
        %5258 = vmatmul.mubr.bf16.gmra.mrb[0].mxu0 %v1098
        %v5259 = vpop.f32.mrb[0].mxu0
        %v5260 = vadd.f32 %v5147, %v5259
        %v5261 = vpop.f32.mrb[0].mxu0
        %v5262 = vadd.f32 %v5149, %v5261
        %v5263 = vpop.f32.mrb[0].mxu0
        %v5264 = vadd.f32 %v5151, %v5263
        %v5265 = vpop.f32.mrb[0].mxu0
        %v5266 = vadd.f32 %v5153, %v5265
        %5267 = vmatprep.mubr.bf16.mxu0 %v1103
        %5268 = vmatmul.mubr.bf16.gmra.mrb[0].mxu0 %v1102
        %v5269 = vpop.f32.mrb[0].mxu0
        %v5270 = vadd.f32 %v5157, %v5269
        %v5271 = vpop.f32.mrb[0].mxu0
        %v5272 = vadd.f32 %v5159, %v5271
        %v5273 = vpop.f32.mrb[0].mxu0
        %v5274 = vadd.f32 %v5161, %v5273
        %v5275 = vpop.f32.mrb[0].mxu0
        %v5276 = vadd.f32 %v5163, %v5275
        %5277 = vdwg.mxu0
        %5278 = vmatprep.subr.bf16.mxu0 %v2687
        %5279 = vmatpush1.bf16.msra.mxu0 %v2686
        %5280 = vmatprep.subr.bf16.mxu0 %v2703
        %5281 = vmatpush1.bf16.msra.mxu0 %v2702
        %5282 = vmatprep.subr.bf16.mxu0 %v2719
        %5283 = vmatpush1.bf16.msra.mxu0 %v2718
        %5284 = vmatprep.subr.bf16.mxu0 %v2735
        %5285 = vmatpush1.bf16.msra.mxu0 %v2734
        %5286 = vmatprep.subr.bf16.mxu0 %v2751
        %5287 = vmatpush1.bf16.msra.mxu0 %v2750
        %5288 = vmatprep.subr.bf16.mxu0 %v2767
        %5289 = vmatpush1.bf16.msra.mxu0 %v2766
        %5290 = vmatprep.subr.bf16.mxu0 %v2783
        %5291 = vmatpush1.bf16.msra.mxu0 %v2782
        %5292 = vmatprep.subr.bf16.mxu0 %v2799
        %5293 = vmatpush1.bf16.msra.mxu0 %v2798
        %5294 = vmatprep.subr.bf16.mxu0 %v2815
        %5295 = vmatpush1.bf16.msra.mxu0 %v2814
        %5296 = vmatprep.subr.bf16.mxu0 %v2831
        %5297 = vmatpush1.bf16.msra.mxu0 %v2830
        %5298 = vmatprep.subr.bf16.mxu0 %v2847
        %5299 = vmatpush1.bf16.msra.mxu0 %v2846
        %5300 = vmatprep.subr.bf16.mxu0 %v2863
        %5301 = vmatpush1.bf16.msra.mxu0 %v2862
        %5302 = vmatprep.subr.bf16.mxu0 %v2879
        %5303 = vmatpush1.bf16.msra.mxu0 %v2878
        %5304 = vmatprep.subr.bf16.mxu0 %v2895
        %5305 = vmatpush1.bf16.msra.mxu0 %v2894
        %5306 = vmatprep.subr.bf16.mxu0 %v2911
        %5307 = vmatpush1.bf16.msra.mxu0 %v2910
        %5308 = vmatprep.subr.bf16.mxu0 %v2927
        %5309 = vmatpush1.bf16.msra.mxu0 %v2926
        %5310 = vmatprep.mubr.bf16.mxu0 %v1073
        %5311 = vmatmul.mubr.bf16.gmra.mrb[0].mxu0 %v1072
        %v5312 = vpop.f32.mrb[0].mxu0
        %v5313 = vadd.f32 %v955, %v5312
        %v5314 = vpop.f32.mrb[0].mxu0
        %v5315 = vadd.f32 %v959, %v5314
        %v5316 = vpop.f32.mrb[0].mxu0
        %v5317 = vadd.f32 %v955, %v5316
        %v5318 = vpop.f32.mrb[0].mxu0
        %v5319 = vadd.f32 %v959, %v5318
        %5320 = vmatprep.mubr.bf16.mxu0 %v1077
        %5321 = vmatmul.mubr.bf16.gmra.mrb[0].mxu0 %v1076
        %v5322 = vpop.f32.mrb[0].mxu0
        %v5323 = vadd.f32 %v955, %v5322
        %v5324 = vpop.f32.mrb[0].mxu0
        %v5325 = vadd.f32 %v959, %v5324
        %v5326 = vpop.f32.mrb[0].mxu0
        %v5327 = vadd.f32 %v955, %v5326
        %v5328 = vpop.f32.mrb[0].mxu0
        %v5329 = vadd.f32 %v959, %v5328
        %5330 = vmatprep.mubr.bf16.mxu0 %v1081
        %5331 = vmatmul.mubr.bf16.gmra.mrb[0].mxu0 %v1080
        %v5332 = vpop.f32.mrb[0].mxu0
        %v5333 = vadd.f32 %v955, %v5332
        %v5334 = vpop.f32.mrb[0].mxu0
        %v5335 = vadd.f32 %v959, %v5334
        %v5336 = vpop.f32.mrb[0].mxu0
        %v5337 = vadd.f32 %v955, %v5336
        %v5338 = vpop.f32.mrb[0].mxu0
        %v5339 = vadd.f32 %v959, %v5338
        %5340 = vmatprep.mubr.bf16.mxu0 %v1085
        %5341 = vmatmul.mubr.bf16.gmra.mrb[0].mxu0 %v1084
        %v5342 = vpop.f32.mrb[0].mxu0
        %v5343 = vadd.f32 %v955, %v5342
        %v5344 = vpop.f32.mrb[0].mxu0
        %v5345 = vadd.f32 %v959, %v5344
        %v5346 = vpop.f32.mrb[0].mxu0
        %v5347 = vadd.f32 %v955, %v5346
        %v5348 = vpop.f32.mrb[0].mxu0
        %v5349 = vadd.f32 %v959, %v5348
        %5350 = vmatprep.mubr.bf16.mxu0 %v1089
        %5351 = vmatmul.mubr.bf16.gmra.mrb[0].mxu0 %v1088
        %v5352 = vpop.f32.mrb[0].mxu0
        %v5353 = vadd.f32 %v955, %v5352
        %v5354 = vpop.f32.mrb[0].mxu0
        %v5355 = vadd.f32 %v959, %v5354
        %v5356 = vpop.f32.mrb[0].mxu0
        %v5357 = vadd.f32 %v955, %v5356
        %v5358 = vpop.f32.mrb[0].mxu0
        %v5359 = vadd.f32 %v959, %v5358
        %5360 = vmatprep.mubr.bf16.mxu0 %v1093
        %5361 = vmatmul.mubr.bf16.gmra.mrb[0].mxu0 %v1092
        %v5362 = vpop.f32.mrb[0].mxu0
        %v5363 = vadd.f32 %v955, %v5362
        %v5364 = vpop.f32.mrb[0].mxu0
        %v5365 = vadd.f32 %v959, %v5364
        %v5366 = vpop.f32.mrb[0].mxu0
        %v5367 = vadd.f32 %v955, %v5366
        %v5368 = vpop.f32.mrb[0].mxu0
        %v5369 = vadd.f32 %v959, %v5368
        %5370 = vmatprep.mubr.bf16.mxu0 %v1097
        %5371 = vmatmul.mubr.bf16.gmra.mrb[0].mxu0 %v1096
        %v5372 = vpop.f32.mrb[0].mxu0
        %v5373 = vadd.f32 %v955, %v5372
        %v5374 = vpop.f32.mrb[0].mxu0
        %v5375 = vadd.f32 %v959, %v5374
        %v5376 = vpop.f32.mrb[0].mxu0
        %v5377 = vadd.f32 %v955, %v5376
        %v5378 = vpop.f32.mrb[0].mxu0
        %v5379 = vadd.f32 %v959, %v5378
        %5380 = vmatprep.mubr.bf16.mxu0 %v1101
        %5381 = vmatmul.mubr.bf16.gmra.mrb[0].mxu0 %v1100
        %v5382 = vpop.f32.mrb[0].mxu0
        %v5383 = vadd.f32 %v955, %v5382
        %v5384 = vpop.f32.mrb[0].mxu0
        %v5385 = vadd.f32 %v959, %v5384
        %v5386 = vpop.f32.mrb[0].mxu0
        %v5387 = vadd.f32 %v955, %v5386
        %v5388 = vpop.f32.mrb[0].mxu0
        %v5389 = vadd.f32 %v959, %v5388
        %5390 = vdwg.mxu0
        %5391 = vmatprep.subr.bf16.mxu0 %v2943
        %5392 = vmatpush1.bf16.msra.mxu0 %v2942
        %5393 = vmatprep.subr.bf16.mxu0 %v2959
        %5394 = vmatpush1.bf16.msra.mxu0 %v2958
        %5395 = vmatprep.subr.bf16.mxu0 %v2975
        %5396 = vmatpush1.bf16.msra.mxu0 %v2974
        %5397 = vmatprep.subr.bf16.mxu0 %v2991
        %5398 = vmatpush1.bf16.msra.mxu0 %v2990
        %5399 = vmatprep.subr.bf16.mxu0 %v3007
        %5400 = vmatpush1.bf16.msra.mxu0 %v3006
        %5401 = vmatprep.subr.bf16.mxu0 %v3023
        %5402 = vmatpush1.bf16.msra.mxu0 %v3022
        %5403 = vmatprep.subr.bf16.mxu0 %v3039
        %5404 = vmatpush1.bf16.msra.mxu0 %v3038
        %5405 = vmatprep.subr.bf16.mxu0 %v3055
        %5406 = vmatpush1.bf16.msra.mxu0 %v3054
        %5407 = vmatprep.subr.bf16.mxu0 %v3071
        %5408 = vmatpush1.bf16.msra.mxu0 %v3070
        %5409 = vmatprep.subr.bf16.mxu0 %v3087
        %5410 = vmatpush1.bf16.msra.mxu0 %v3086
        %5411 = vmatprep.subr.bf16.mxu0 %v3103
        %5412 = vmatpush1.bf16.msra.mxu0 %v3102
        %5413 = vmatprep.subr.bf16.mxu0 %v3119
        %5414 = vmatpush1.bf16.msra.mxu0 %v3118
        %5415 = vmatprep.subr.bf16.mxu0 %v3135
        %5416 = vmatpush1.bf16.msra.mxu0 %v3134
        %5417 = vmatprep.subr.bf16.mxu0 %v3151
        %5418 = vmatpush1.bf16.msra.mxu0 %v3150
        %5419 = vmatprep.subr.bf16.mxu0 %v3167
        %5420 = vmatpush1.bf16.msra.mxu0 %v3166
        %5421 = vmatprep.subr.bf16.mxu0 %v3183
        %5422 = vmatpush1.bf16.msra.mxu0 %v3182
        %5423 = vmatprep.mubr.bf16.mxu0 %v1075
        %5424 = vmatmul.mubr.bf16.gmra.mrb[0].mxu0 %v1074
        %v5425 = vpop.f32.mrb[0].mxu0
        %v5426 = vadd.f32 %v5313, %v5425
        %v5427 = vpop.f32.mrb[0].mxu0
        %v5428 = vadd.f32 %v5315, %v5427
        %v5429 = vpop.f32.mrb[0].mxu0
        %v5430 = vadd.f32 %v5317, %v5429
        %v5431 = vpop.f32.mrb[0].mxu0
        %v5432 = vadd.f32 %v5319, %v5431
        %5433 = vmatprep.mubr.bf16.mxu0 %v1079
        %5434 = vmatmul.mubr.bf16.gmra.mrb[0].mxu0 %v1078
        %v5435 = vpop.f32.mrb[0].mxu0
        %v5436 = vadd.f32 %v5323, %v5435
        %v5437 = vpop.f32.mrb[0].mxu0
        %v5438 = vadd.f32 %v5325, %v5437
        %v5439 = vpop.f32.mrb[0].mxu0
        %v5440 = vadd.f32 %v5327, %v5439
        %v5441 = vpop.f32.mrb[0].mxu0
        %v5442 = vadd.f32 %v5329, %v5441
        %5443 = vmatprep.mubr.bf16.mxu0 %v1083
        %5444 = vmatmul.mubr.bf16.gmra.mrb[0].mxu0 %v1082
        %v5445 = vpop.f32.mrb[0].mxu0
        %v5446 = vadd.f32 %v5333, %v5445
        %v5447 = vpop.f32.mrb[0].mxu0
        %v5448 = vadd.f32 %v5335, %v5447
        %v5449 = vpop.f32.mrb[0].mxu0
        %v5450 = vadd.f32 %v5337, %v5449
        %v5451 = vpop.f32.mrb[0].mxu0
        %v5452 = vadd.f32 %v5339, %v5451
        %5453 = vmatprep.mubr.bf16.mxu0 %v1087
        %5454 = vmatmul.mubr.bf16.gmra.mrb[0].mxu0 %v1086
        %v5455 = vpop.f32.mrb[0].mxu0
        %v5456 = vadd.f32 %v5343, %v5455
        %v5457 = vpop.f32.mrb[0].mxu0
        %v5458 = vadd.f32 %v5345, %v5457
        %v5459 = vpop.f32.mrb[0].mxu0
        %v5460 = vadd.f32 %v5347, %v5459
        %v5461 = vpop.f32.mrb[0].mxu0
        %v5462 = vadd.f32 %v5349, %v5461
        %5463 = vmatprep.mubr.bf16.mxu0 %v1091
        %5464 = vmatmul.mubr.bf16.gmra.mrb[0].mxu0 %v1090
        %v5465 = vpop.f32.mrb[0].mxu0
        %v5466 = vadd.f32 %v5353, %v5465
        %v5467 = vpop.f32.mrb[0].mxu0
        %v5468 = vadd.f32 %v5355, %v5467
        %v5469 = vpop.f32.mrb[0].mxu0
        %v5470 = vadd.f32 %v5357, %v5469
        %v5471 = vpop.f32.mrb[0].mxu0
        %v5472 = vadd.f32 %v5359, %v5471
        %5473 = vmatprep.mubr.bf16.mxu0 %v1095
        %5474 = vmatmul.mubr.bf16.gmra.mrb[0].mxu0 %v1094
        %v5475 = vpop.f32.mrb[0].mxu0
        %v5476 = vadd.f32 %v5363, %v5475
        %v5477 = vpop.f32.mrb[0].mxu0
        %v5478 = vadd.f32 %v5365, %v5477
        %v5479 = vpop.f32.mrb[0].mxu0
        %v5480 = vadd.f32 %v5367, %v5479
        %v5481 = vpop.f32.mrb[0].mxu0
        %v5482 = vadd.f32 %v5369, %v5481
        %5483 = vmatprep.mubr.bf16.mxu0 %v1099
        %5484 = vmatmul.mubr.bf16.gmra.mrb[0].mxu0 %v1098
        %v5485 = vpop.f32.mrb[0].mxu0
        %v5486 = vadd.f32 %v5373, %v5485
        %v5487 = vpop.f32.mrb[0].mxu0
        %v5488 = vadd.f32 %v5375, %v5487
        %v5489 = vpop.f32.mrb[0].mxu0
        %v5490 = vadd.f32 %v5377, %v5489
        %v5491 = vpop.f32.mrb[0].mxu0
        %v5492 = vadd.f32 %v5379, %v5491
        %5493 = vmatprep.mubr.bf16.mxu0 %v1103
        %5494 = vmatmul.mubr.bf16.gmra.mrb[0].mxu0 %v1102
        %v5495 = vpop.f32.mrb[0].mxu0
        %v5496 = vadd.f32 %v5383, %v5495
        %v5497 = vpop.f32.mrb[0].mxu0
        %v5498 = vadd.f32 %v5385, %v5497
        %v5499 = vpop.f32.mrb[0].mxu0
        %v5500 = vadd.f32 %v5387, %v5499
        %v5501 = vpop.f32.mrb[0].mxu0
        %v5502 = vadd.f32 %v5389, %v5501
        %5503 = vdwg.mxu0
        %v5504 = vmax.f32 %v3844, 0.0
        %v5505 = vmax.f32 %v3846, 0.0
        %v5506 = vmax.f32 %v4070, 0.0
        %v5507 = vmax.f32 %v4072, 0.0
        %v5508 = vmax.f32 %v4296, 0.0
        %v5509 = vmax.f32 %v4298, 0.0
        %v5510 = vmax.f32 %v4522, 0.0
        %v5511 = vmax.f32 %v4524, 0.0
        %v5512 = vmax.f32 %v4748, 0.0
        %v5513 = vmax.f32 %v4750, 0.0
        %v5514 = vmax.f32 %v4974, 0.0
        %v5515 = vmax.f32 %v4976, 0.0
        %v5516 = vmax.f32 %v5200, 0.0
        %v5517 = vmax.f32 %v5202, 0.0
        %v5518 = vmax.f32 %v5426, 0.0
        %v5519 = vmax.f32 %v5428, 0.0
        %v5520 = vmax.f32 %v3848, 0.0
        %v5521 = vmax.f32 %v3850, 0.0
        %v5522 = vmax.f32 %v4074, 0.0
        %v5523 = vmax.f32 %v4076, 0.0
        %v5524 = vmax.f32 %v4300, 0.0
        %v5525 = vmax.f32 %v4302, 0.0
        %v5526 = vmax.f32 %v4526, 0.0
        %v5527 = vmax.f32 %v4528, 0.0
        %v5528 = vmax.f32 %v4752, 0.0
        %v5529 = vmax.f32 %v4754, 0.0
        %v5530 = vmax.f32 %v4978, 0.0
        %v5531 = vmax.f32 %v4980, 0.0
        %v5532 = vmax.f32 %v5204, 0.0
        %v5533 = vmax.f32 %v5206, 0.0
        %v5534 = vmax.f32 %v5430, 0.0
        %v5535 = vmax.f32 %v5432, 0.0
        %v5536 = vmax.f32 %v3854, 0.0
        %v5537 = vmax.f32 %v3856, 0.0
        %v5538 = vmax.f32 %v4080, 0.0
        %v5539 = vmax.f32 %v4082, 0.0
        %v5540 = vmax.f32 %v4306, 0.0
        %v5541 = vmax.f32 %v4308, 0.0
        %v5542 = vmax.f32 %v4532, 0.0
        %v5543 = vmax.f32 %v4534, 0.0
        %v5544 = vmax.f32 %v4758, 0.0
        %v5545 = vmax.f32 %v4760, 0.0
        %v5546 = vmax.f32 %v4984, 0.0
        %v5547 = vmax.f32 %v4986, 0.0
        %v5548 = vmax.f32 %v5210, 0.0
        %v5549 = vmax.f32 %v5212, 0.0
        %v5550 = vmax.f32 %v5436, 0.0
        %v5551 = vmax.f32 %v5438, 0.0
        %v5552 = vmax.f32 %v3858, 0.0
        %v5553 = vmax.f32 %v3860, 0.0
        %v5554 = vmax.f32 %v4084, 0.0
        %v5555 = vmax.f32 %v4086, 0.0
        %v5556 = vmax.f32 %v4310, 0.0
        %v5557 = vmax.f32 %v4312, 0.0
        %v5558 = vmax.f32 %v4536, 0.0
        %v5559 = vmax.f32 %v4538, 0.0
        %v5560 = vmax.f32 %v4762, 0.0
        %v5561 = vmax.f32 %v4764, 0.0
        %v5562 = vmax.f32 %v4988, 0.0
        %v5563 = vmax.f32 %v4990, 0.0
        %v5564 = vmax.f32 %v5214, 0.0
        %v5565 = vmax.f32 %v5216, 0.0
        %v5566 = vmax.f32 %v5440, 0.0
        %v5567 = vmax.f32 %v5442, 0.0
        %v5568 = vmax.f32 %v3864, 0.0
        %v5569 = vmax.f32 %v3866, 0.0
        %v5570 = vmax.f32 %v4090, 0.0
        %v5571 = vmax.f32 %v4092, 0.0
        %v5572 = vmax.f32 %v4316, 0.0
        %v5573 = vmax.f32 %v4318, 0.0
        %v5574 = vmax.f32 %v4542, 0.0
        %v5575 = vmax.f32 %v4544, 0.0
        %v5576 = vmax.f32 %v4768, 0.0
        %v5577 = vmax.f32 %v4770, 0.0
        %v5578 = vmax.f32 %v4994, 0.0
        %v5579 = vmax.f32 %v4996, 0.0
        %v5580 = vmax.f32 %v5220, 0.0
        %v5581 = vmax.f32 %v5222, 0.0
        %v5582 = vmax.f32 %v5446, 0.0
        %v5583 = vmax.f32 %v5448, 0.0
        %v5584 = vmax.f32 %v3868, 0.0
        %v5585 = vmax.f32 %v3870, 0.0
        %v5586 = vmax.f32 %v4094, 0.0
        %v5587 = vmax.f32 %v4096, 0.0
        %v5588 = vmax.f32 %v4320, 0.0
        %v5589 = vmax.f32 %v4322, 0.0
        %v5590 = vmax.f32 %v4546, 0.0
        %v5591 = vmax.f32 %v4548, 0.0
        %v5592 = vmax.f32 %v4772, 0.0
        %v5593 = vmax.f32 %v4774, 0.0
        %v5594 = vmax.f32 %v4998, 0.0
        %v5595 = vmax.f32 %v5000, 0.0
        %v5596 = vmax.f32 %v5224, 0.0
        %v5597 = vmax.f32 %v5226, 0.0
        %v5598 = vmax.f32 %v5450, 0.0
        %v5599 = vmax.f32 %v5452, 0.0
        %v5600 = vmax.f32 %v3874, 0.0
        %v5601 = vmax.f32 %v3876, 0.0
        %v5602 = vmax.f32 %v4100, 0.0
        %v5603 = vmax.f32 %v4102, 0.0
        %v5604 = vmax.f32 %v4326, 0.0
        %v5605 = vmax.f32 %v4328, 0.0
        %v5606 = vmax.f32 %v4552, 0.0
        %v5607 = vmax.f32 %v4554, 0.0
        %v5608 = vmax.f32 %v4778, 0.0
        %v5609 = vmax.f32 %v4780, 0.0
        %v5610 = vmax.f32 %v5004, 0.0
        %v5611 = vmax.f32 %v5006, 0.0
        %v5612 = vmax.f32 %v5230, 0.0
        %v5613 = vmax.f32 %v5232, 0.0
        %v5614 = vmax.f32 %v5456, 0.0
        %v5615 = vmax.f32 %v5458, 0.0
        %v5616 = vmax.f32 %v3878, 0.0
        %v5617 = vmax.f32 %v3880, 0.0
        %v5618 = vmax.f32 %v4104, 0.0
        %v5619 = vmax.f32 %v4106, 0.0
        %v5620 = vmax.f32 %v4330, 0.0
        %v5621 = vmax.f32 %v4332, 0.0
        %v5622 = vmax.f32 %v4556, 0.0
        %v5623 = vmax.f32 %v4558, 0.0
        %v5624 = vmax.f32 %v4782, 0.0
        %v5625 = vmax.f32 %v4784, 0.0
        %v5626 = vmax.f32 %v5008, 0.0
        %v5627 = vmax.f32 %v5010, 0.0
        %v5628 = vmax.f32 %v5234, 0.0
        %v5629 = vmax.f32 %v5236, 0.0
        %v5630 = vmax.f32 %v5460, 0.0
        %v5631 = vmax.f32 %v5462, 0.0
        %v5632 = vmax.f32 %v3884, 0.0
        %v5633 = vmax.f32 %v3886, 0.0
        %v5634 = vmax.f32 %v4110, 0.0
        %v5635 = vmax.f32 %v4112, 0.0
        %v5636 = vmax.f32 %v4336, 0.0
        %v5637 = vmax.f32 %v4338, 0.0
        %v5638 = vmax.f32 %v4562, 0.0
        %v5639 = vmax.f32 %v4564, 0.0
        %v5640 = vmax.f32 %v4788, 0.0
        %v5641 = vmax.f32 %v4790, 0.0
        %v5642 = vmax.f32 %v5014, 0.0
        %v5643 = vmax.f32 %v5016, 0.0
        %v5644 = vmax.f32 %v5240, 0.0
        %v5645 = vmax.f32 %v5242, 0.0
        %v5646 = vmax.f32 %v5466, 0.0
        %v5647 = vmax.f32 %v5468, 0.0
        %v5648 = vmax.f32 %v3888, 0.0
        %v5649 = vmax.f32 %v3890, 0.0
        %v5650 = vmax.f32 %v4114, 0.0
        %v5651 = vmax.f32 %v4116, 0.0
        %v5652 = vmax.f32 %v4340, 0.0
        %v5653 = vmax.f32 %v4342, 0.0
        %v5654 = vmax.f32 %v4566, 0.0
        %v5655 = vmax.f32 %v4568, 0.0
        %v5656 = vmax.f32 %v4792, 0.0
        %v5657 = vmax.f32 %v4794, 0.0
        %v5658 = vmax.f32 %v5018, 0.0
        %v5659 = vmax.f32 %v5020, 0.0
        %v5660 = vmax.f32 %v5244, 0.0
        %v5661 = vmax.f32 %v5246, 0.0
        %v5662 = vmax.f32 %v5470, 0.0
        %v5663 = vmax.f32 %v5472, 0.0
        %v5664 = vmax.f32 %v3894, 0.0
        %v5665 = vmax.f32 %v3896, 0.0
        %v5666 = vmax.f32 %v4120, 0.0
        %v5667 = vmax.f32 %v4122, 0.0
        %v5668 = vmax.f32 %v4346, 0.0
        %v5669 = vmax.f32 %v4348, 0.0
        %v5670 = vmax.f32 %v4572, 0.0
        %v5671 = vmax.f32 %v4574, 0.0
        %v5672 = vmax.f32 %v4798, 0.0
        %v5673 = vmax.f32 %v4800, 0.0
        %v5674 = vmax.f32 %v5024, 0.0
        %v5675 = vmax.f32 %v5026, 0.0
        %v5676 = vmax.f32 %v5250, 0.0
        %v5677 = vmax.f32 %v5252, 0.0
        %v5678 = vmax.f32 %v5476, 0.0
        %v5679 = vmax.f32 %v5478, 0.0
        %v5680 = vmax.f32 %v3898, 0.0
        %v5681 = vmax.f32 %v3900, 0.0
        %v5682 = vmax.f32 %v4124, 0.0
        %v5683 = vmax.f32 %v4126, 0.0
        %v5684 = vmax.f32 %v4350, 0.0
        %v5685 = vmax.f32 %v4352, 0.0
        %v5686 = vmax.f32 %v4576, 0.0
        %v5687 = vmax.f32 %v4578, 0.0
        %v5688 = vmax.f32 %v4802, 0.0
        %v5689 = vmax.f32 %v4804, 0.0
        %v5690 = vmax.f32 %v5028, 0.0
        %v5691 = vmax.f32 %v5030, 0.0
        %v5692 = vmax.f32 %v5254, 0.0
        %v5693 = vmax.f32 %v5256, 0.0
        %v5694 = vmax.f32 %v5480, 0.0
        %v5695 = vmax.f32 %v5482, 0.0
        %v5696 = vmax.f32 %v3904, 0.0
        %v5697 = vmax.f32 %v3906, 0.0
        %v5698 = vmax.f32 %v4130, 0.0
        %v5699 = vmax.f32 %v4132, 0.0
        %v5700 = vmax.f32 %v4356, 0.0
        %v5701 = vmax.f32 %v4358, 0.0
        %v5702 = vmax.f32 %v4582, 0.0
        %v5703 = vmax.f32 %v4584, 0.0
        %v5704 = vmax.f32 %v4808, 0.0
        %v5705 = vmax.f32 %v4810, 0.0
        %v5706 = vmax.f32 %v5034, 0.0
        %v5707 = vmax.f32 %v5036, 0.0
        %v5708 = vmax.f32 %v5260, 0.0
        %v5709 = vmax.f32 %v5262, 0.0
        %v5710 = vmax.f32 %v5486, 0.0
        %v5711 = vmax.f32 %v5488, 0.0
        %v5712 = vmax.f32 %v3908, 0.0
        %v5713 = vmax.f32 %v3910, 0.0
        %v5714 = vmax.f32 %v4134, 0.0
        %v5715 = vmax.f32 %v4136, 0.0
        %v5716 = vmax.f32 %v4360, 0.0
        %v5717 = vmax.f32 %v4362, 0.0
        %v5718 = vmax.f32 %v4586, 0.0
        %v5719 = vmax.f32 %v4588, 0.0
        %v5720 = vmax.f32 %v4812, 0.0
        %v5721 = vmax.f32 %v4814, 0.0
        %v5722 = vmax.f32 %v5038, 0.0
        %v5723 = vmax.f32 %v5040, 0.0
        %v5724 = vmax.f32 %v5264, 0.0
        %v5725 = vmax.f32 %v5266, 0.0
        %v5726 = vmax.f32 %v5490, 0.0
        %v5727 = vmax.f32 %v5492, 0.0
        %v5728 = vmax.f32 %v3914, 0.0
        %v5729 = vmax.f32 %v3916, 0.0
        %v5730 = vmax.f32 %v4140, 0.0
        %v5731 = vmax.f32 %v4142, 0.0
        %v5732 = vmax.f32 %v4366, 0.0
        %v5733 = vmax.f32 %v4368, 0.0
        %v5734 = vmax.f32 %v4592, 0.0
        %v5735 = vmax.f32 %v4594, 0.0
        %v5736 = vmax.f32 %v4818, 0.0
        %v5737 = vmax.f32 %v4820, 0.0
        %v5738 = vmax.f32 %v5044, 0.0
        %v5739 = vmax.f32 %v5046, 0.0
        %v5740 = vmax.f32 %v5270, 0.0
        %v5741 = vmax.f32 %v5272, 0.0
        %v5742 = vmax.f32 %v5496, 0.0
        %v5743 = vmax.f32 %v5498, 0.0
        %v5744 = vmax.f32 %v3918, 0.0
        %v5745 = vmax.f32 %v3920, 0.0
        %v5746 = vmax.f32 %v4144, 0.0
        %v5747 = vmax.f32 %v4146, 0.0
        %v5748 = vmax.f32 %v4370, 0.0
        %v5749 = vmax.f32 %v4372, 0.0
        %v5750 = vmax.f32 %v4596, 0.0
        %v5751 = vmax.f32 %v4598, 0.0
        %v5752 = vmax.f32 %v4822, 0.0
        %v5753 = vmax.f32 %v4824, 0.0
        %v5754 = vmax.f32 %v5048, 0.0
        %v5755 = vmax.f32 %v5050, 0.0
        %v5756 = vmax.f32 %v5274, 0.0
        %v5757 = vmax.f32 %v5276, 0.0
        %v5758 = vmax.f32 %v5500, 0.0
        %v5759 = vmax.f32 %v5502, 0.0
        %v5760 = vpack.c.bf16 %v5520, %v5504
        %v5761 = vpack.c.bf16 %v5521, %v5505
        %v5762 = vpack.c.bf16 %v5522, %v5506
        %v5763 = vpack.c.bf16 %v5523, %v5507
        %v5764 = vpack.c.bf16 %v5524, %v5508
        %v5765 = vpack.c.bf16 %v5525, %v5509
        %v5766 = vpack.c.bf16 %v5526, %v5510
        %v5767 = vpack.c.bf16 %v5527, %v5511
        %v5768 = vpack.c.bf16 %v5528, %v5512
        %v5769 = vpack.c.bf16 %v5529, %v5513
        %v5770 = vpack.c.bf16 %v5530, %v5514
        %v5771 = vpack.c.bf16 %v5531, %v5515
        %v5772 = vpack.c.bf16 %v5532, %v5516
        %v5773 = vpack.c.bf16 %v5533, %v5517
        %v5774 = vpack.c.bf16 %v5534, %v5518
        %v5775 = vpack.c.bf16 %v5535, %v5519
        %v5776 = vpack.c.bf16 %v5552, %v5536
        %v5777 = vpack.c.bf16 %v5553, %v5537
        %v5778 = vpack.c.bf16 %v5554, %v5538
        %v5779 = vpack.c.bf16 %v5555, %v5539
        %v5780 = vpack.c.bf16 %v5556, %v5540
        %v5781 = vpack.c.bf16 %v5557, %v5541
        %v5782 = vpack.c.bf16 %v5558, %v5542
        %v5783 = vpack.c.bf16 %v5559, %v5543
        %v5784 = vpack.c.bf16 %v5560, %v5544
        %v5785 = vpack.c.bf16 %v5561, %v5545
        %v5786 = vpack.c.bf16 %v5562, %v5546
        %v5787 = vpack.c.bf16 %v5563, %v5547
        %v5788 = vpack.c.bf16 %v5564, %v5548
        %v5789 = vpack.c.bf16 %v5565, %v5549
        %v5790 = vpack.c.bf16 %v5566, %v5550
        %v5791 = vpack.c.bf16 %v5567, %v5551
        %v5792 = vpack.c.bf16 %v5584, %v5568
        %v5793 = vpack.c.bf16 %v5585, %v5569
        %v5794 = vpack.c.bf16 %v5586, %v5570
        %v5795 = vpack.c.bf16 %v5587, %v5571
        %v5796 = vpack.c.bf16 %v5588, %v5572
        %v5797 = vpack.c.bf16 %v5589, %v5573
        %v5798 = vpack.c.bf16 %v5590, %v5574
        %v5799 = vpack.c.bf16 %v5591, %v5575
        %v5800 = vpack.c.bf16 %v5592, %v5576
        %v5801 = vpack.c.bf16 %v5593, %v5577
        %v5802 = vpack.c.bf16 %v5594, %v5578
        %v5803 = vpack.c.bf16 %v5595, %v5579
        %v5804 = vpack.c.bf16 %v5596, %v5580
        %v5805 = vpack.c.bf16 %v5597, %v5581
        %v5806 = vpack.c.bf16 %v5598, %v5582
        %v5807 = vpack.c.bf16 %v5599, %v5583
        %v5808 = vpack.c.bf16 %v5616, %v5600
        %v5809 = vpack.c.bf16 %v5617, %v5601
        %v5810 = vpack.c.bf16 %v5618, %v5602
        %v5811 = vpack.c.bf16 %v5619, %v5603
        %v5812 = vpack.c.bf16 %v5620, %v5604
        %v5813 = vpack.c.bf16 %v5621, %v5605
        %v5814 = vpack.c.bf16 %v5622, %v5606
        %v5815 = vpack.c.bf16 %v5623, %v5607
        %v5816 = vpack.c.bf16 %v5624, %v5608
        %v5817 = vpack.c.bf16 %v5625, %v5609
        %v5818 = vpack.c.bf16 %v5626, %v5610
        %v5819 = vpack.c.bf16 %v5627, %v5611
        %v5820 = vpack.c.bf16 %v5628, %v5612
        %v5821 = vpack.c.bf16 %v5629, %v5613
        %v5822 = vpack.c.bf16 %v5630, %v5614
        %v5823 = vpack.c.bf16 %v5631, %v5615
        %v5824 = vpack.c.bf16 %v5648, %v5632
        %v5825 = vpack.c.bf16 %v5649, %v5633
        %v5826 = vpack.c.bf16 %v5650, %v5634
        %v5827 = vpack.c.bf16 %v5651, %v5635
        %v5828 = vpack.c.bf16 %v5652, %v5636
        %v5829 = vpack.c.bf16 %v5653, %v5637
        %v5830 = vpack.c.bf16 %v5654, %v5638
        %v5831 = vpack.c.bf16 %v5655, %v5639
        %v5832 = vpack.c.bf16 %v5656, %v5640
        %v5833 = vpack.c.bf16 %v5657, %v5641
        %v5834 = vpack.c.bf16 %v5658, %v5642
        %v5835 = vpack.c.bf16 %v5659, %v5643
        %v5836 = vpack.c.bf16 %v5660, %v5644
        %v5837 = vpack.c.bf16 %v5661, %v5645
        %v5838 = vpack.c.bf16 %v5662, %v5646
        %v5839 = vpack.c.bf16 %v5663, %v5647
        %v5840 = vpack.c.bf16 %v5680, %v5664
        %v5841 = vpack.c.bf16 %v5681, %v5665
        %v5842 = vpack.c.bf16 %v5682, %v5666
        %v5843 = vpack.c.bf16 %v5683, %v5667
        %v5844 = vpack.c.bf16 %v5684, %v5668
        %v5845 = vpack.c.bf16 %v5685, %v5669
        %v5846 = vpack.c.bf16 %v5686, %v5670
        %v5847 = vpack.c.bf16 %v5687, %v5671
        %v5848 = vpack.c.bf16 %v5688, %v5672
        %v5849 = vpack.c.bf16 %v5689, %v5673
        %v5850 = vpack.c.bf16 %v5690, %v5674
        %v5851 = vpack.c.bf16 %v5691, %v5675
        %v5852 = vpack.c.bf16 %v5692, %v5676
        %v5853 = vpack.c.bf16 %v5693, %v5677
        %v5854 = vpack.c.bf16 %v5694, %v5678
        %v5855 = vpack.c.bf16 %v5695, %v5679
        %v5856 = vpack.c.bf16 %v5712, %v5696
        %v5857 = vpack.c.bf16 %v5713, %v5697
        %v5858 = vpack.c.bf16 %v5714, %v5698
        %v5859 = vpack.c.bf16 %v5715, %v5699
        %v5860 = vpack.c.bf16 %v5716, %v5700
        %v5861 = vpack.c.bf16 %v5717, %v5701
        %v5862 = vpack.c.bf16 %v5718, %v5702
        %v5863 = vpack.c.bf16 %v5719, %v5703
        %v5864 = vpack.c.bf16 %v5720, %v5704
        %v5865 = vpack.c.bf16 %v5721, %v5705
        %v5866 = vpack.c.bf16 %v5722, %v5706
        %v5867 = vpack.c.bf16 %v5723, %v5707
        %v5868 = vpack.c.bf16 %v5724, %v5708
        %v5869 = vpack.c.bf16 %v5725, %v5709
        %v5870 = vpack.c.bf16 %v5726, %v5710
        %v5871 = vpack.c.bf16 %v5727, %v5711
        %v5872 = vpack.c.bf16 %v5744, %v5728
        %v5873 = vpack.c.bf16 %v5745, %v5729
        %v5874 = vpack.c.bf16 %v5746, %v5730
        %v5875 = vpack.c.bf16 %v5747, %v5731
        %v5876 = vpack.c.bf16 %v5748, %v5732
        %v5877 = vpack.c.bf16 %v5749, %v5733
        %v5878 = vpack.c.bf16 %v5750, %v5734
        %v5879 = vpack.c.bf16 %v5751, %v5735
        %v5880 = vpack.c.bf16 %v5752, %v5736
        %v5881 = vpack.c.bf16 %v5753, %v5737
        %v5882 = vpack.c.bf16 %v5754, %v5738
        %v5883 = vpack.c.bf16 %v5755, %v5739
        %v5884 = vpack.c.bf16 %v5756, %v5740
        %v5885 = vpack.c.bf16 %v5757, %v5741
        %v5886 = vpack.c.bf16 %v5758, %v5742
        %v5887 = vpack.c.bf16 %v5759, %v5743
        %v5888 = vld [vmem:[%s302] sm:$0xff]
        %v5889 = vld [vmem:[%s302 + $0x8] sm:$0xff]
        %v5890 = vld [vmem:[%s302 + $0x10] sm:$0xff]
        %v5891 = vld [vmem:[%s302 + $0x18] sm:$0xff]
        %v5892 = vld [vmem:[%s302 + $0x20] sm:$0xff]
        %v5893 = vld [vmem:[%s302 + $0x28] sm:$0xff]
        %v5894 = vld [vmem:[%s302 + $0x30] sm:$0xff]
        %v5895 = vld [vmem:[%s302 + $0x38] sm:$0xff]
        %v5896 = vld [vmem:[%s302 + $0x40] sm:$0xff]
        %v5897 = vld [vmem:[%s302 + $0x48] sm:$0xff]
        %v5898 = vld [vmem:[%s302 + $0x50] sm:$0xff]
        %v5899 = vld [vmem:[%s302 + $0x58] sm:$0xff]
        %v5900 = vld [vmem:[%s302 + $0x60] sm:$0xff]
        %v5901 = vld [vmem:[%s302 + $0x68] sm:$0xff]
        %v5902 = vld [vmem:[%s302 + $0x70] sm:$0xff]
        %v5903 = vld [vmem:[%s302 + $0x78] sm:$0xff]
        %v5904 = vld [vmem:[%s302 + $0x80] sm:$0xff]
        %v5905 = vld [vmem:[%s302 + $0x88] sm:$0xff]
        %v5906 = vld [vmem:[%s302 + $0x90] sm:$0xff]
        %v5907 = vld [vmem:[%s302 + $0x98] sm:$0xff]
        %v5908 = vld [vmem:[%s302 + $0xa0] sm:$0xff]
        %v5909 = vld [vmem:[%s302 + $0xa8] sm:$0xff]
        %v5910 = vld [vmem:[%s302 + $0xb0] sm:$0xff]
        %v5911 = vld [vmem:[%s302 + $0xb8] sm:$0xff]
        %v5912 = vld [vmem:[%s302 + $0xc0] sm:$0xff]
        %v5913 = vld [vmem:[%s302 + $0xc8] sm:$0xff]
        %v5914 = vld [vmem:[%s302 + $0xd0] sm:$0xff]
        %v5915 = vld [vmem:[%s302 + $0xd8] sm:$0xff]
        %v5916 = vld [vmem:[%s302 + $0xe0] sm:$0xff]
        %v5917 = vld [vmem:[%s302 + $0xe8] sm:$0xff]
        %v5918 = vld [vmem:[%s302 + $0xf0] sm:$0xff]
        %v5919 = vld [vmem:[%s302 + $0xf8] sm:$0xff]
        %v5920 = vld [vmem:[%s302 + $0x100] sm:$0xff]
        %v5921 = vld [vmem:[%s302 + $0x108] sm:$0xff]
        %v5922 = vld [vmem:[%s302 + $0x110] sm:$0xff]
        %v5923 = vld [vmem:[%s302 + $0x118] sm:$0xff]
        %v5924 = vld [vmem:[%s302 + $0x120] sm:$0xff]
        %v5925 = vld [vmem:[%s302 + $0x128] sm:$0xff]
        %v5926 = vld [vmem:[%s302 + $0x130] sm:$0xff]
        %v5927 = vld [vmem:[%s302 + $0x138] sm:$0xff]
        %v5928 = vld [vmem:[%s302 + $0x140] sm:$0xff]
        %v5929 = vld [vmem:[%s302 + $0x148] sm:$0xff]
        %v5930 = vld [vmem:[%s302 + $0x150] sm:$0xff]
        %v5931 = vld [vmem:[%s302 + $0x158] sm:$0xff]
        %v5932 = vld [vmem:[%s302 + $0x160] sm:$0xff]
        %v5933 = vld [vmem:[%s302 + $0x168] sm:$0xff]
        %v5934 = vld [vmem:[%s302 + $0x170] sm:$0xff]
        %v5935 = vld [vmem:[%s302 + $0x178] sm:$0xff]
        %v5936 = vld [vmem:[%s302 + $0x180] sm:$0xff]
        %v5937 = vld [vmem:[%s302 + $0x188] sm:$0xff]
        %v5938 = vld [vmem:[%s302 + $0x190] sm:$0xff]
        %v5939 = vld [vmem:[%s302 + $0x198] sm:$0xff]
        %v5940 = vld [vmem:[%s302 + $0x1a0] sm:$0xff]
        %v5941 = vld [vmem:[%s302 + $0x1a8] sm:$0xff]
        %v5942 = vld [vmem:[%s302 + $0x1b0] sm:$0xff]
        %v5943 = vld [vmem:[%s302 + $0x1b8] sm:$0xff]
        %v5944 = vld [vmem:[%s302 + $0x1c0] sm:$0xff]
        %v5945 = vld [vmem:[%s302 + $0x1c8] sm:$0xff]
        %v5946 = vld [vmem:[%s302 + $0x1d0] sm:$0xff]
        %v5947 = vld [vmem:[%s302 + $0x1d8] sm:$0xff]
        %v5948 = vld [vmem:[%s302 + $0x1e0] sm:$0xff]
        %v5949 = vld [vmem:[%s302 + $0x1e8] sm:$0xff]
        %v5950 = vld [vmem:[%s302 + $0x1f0] sm:$0xff]
        %v5951 = vld [vmem:[%s302 + $0x1f8] sm:$0xff]
        %v5952 = vld [vmem:[%s302 + $0x200] sm:$0xff]
        %v5953 = vld [vmem:[%s302 + $0x208] sm:$0xff]
        %v5954 = vld [vmem:[%s302 + $0x210] sm:$0xff]
        %v5955 = vld [vmem:[%s302 + $0x218] sm:$0xff]
        %v5956 = vld [vmem:[%s302 + $0x220] sm:$0xff]
        %v5957 = vld [vmem:[%s302 + $0x228] sm:$0xff]
        %v5958 = vld [vmem:[%s302 + $0x230] sm:$0xff]
        %v5959 = vld [vmem:[%s302 + $0x238] sm:$0xff]
        %v5960 = vld [vmem:[%s302 + $0x240] sm:$0xff]
        %v5961 = vld [vmem:[%s302 + $0x248] sm:$0xff]
        %v5962 = vld [vmem:[%s302 + $0x250] sm:$0xff]
        %v5963 = vld [vmem:[%s302 + $0x258] sm:$0xff]
        %v5964 = vld [vmem:[%s302 + $0x260] sm:$0xff]
        %v5965 = vld [vmem:[%s302 + $0x268] sm:$0xff]
        %v5966 = vld [vmem:[%s302 + $0x270] sm:$0xff]
        %v5967 = vld [vmem:[%s302 + $0x278] sm:$0xff]
        %v5968 = vld [vmem:[%s302 + $0x280] sm:$0xff]
        %v5969 = vld [vmem:[%s302 + $0x288] sm:$0xff]
        %v5970 = vld [vmem:[%s302 + $0x290] sm:$0xff]
        %v5971 = vld [vmem:[%s302 + $0x298] sm:$0xff]
        %v5972 = vld [vmem:[%s302 + $0x2a0] sm:$0xff]
        %v5973 = vld [vmem:[%s302 + $0x2a8] sm:$0xff]
        %v5974 = vld [vmem:[%s302 + $0x2b0] sm:$0xff]
        %v5975 = vld [vmem:[%s302 + $0x2b8] sm:$0xff]
        %v5976 = vld [vmem:[%s302 + $0x2c0] sm:$0xff]
        %v5977 = vld [vmem:[%s302 + $0x2c8] sm:$0xff]
        %v5978 = vld [vmem:[%s302 + $0x2d0] sm:$0xff]
        %v5979 = vld [vmem:[%s302 + $0x2d8] sm:$0xff]
        %v5980 = vld [vmem:[%s302 + $0x2e0] sm:$0xff]
        %v5981 = vld [vmem:[%s302 + $0x2e8] sm:$0xff]
        %v5982 = vld [vmem:[%s302 + $0x2f0] sm:$0xff]
        %v5983 = vld [vmem:[%s302 + $0x2f8] sm:$0xff]
        %v5984 = vld [vmem:[%s302 + $0x300] sm:$0xff]
        %v5985 = vld [vmem:[%s302 + $0x308] sm:$0xff]
        %v5986 = vld [vmem:[%s302 + $0x310] sm:$0xff]
        %v5987 = vld [vmem:[%s302 + $0x318] sm:$0xff]
        %v5988 = vld [vmem:[%s302 + $0x320] sm:$0xff]
        %v5989 = vld [vmem:[%s302 + $0x328] sm:$0xff]
        %v5990 = vld [vmem:[%s302 + $0x330] sm:$0xff]
        %v5991 = vld [vmem:[%s302 + $0x338] sm:$0xff]
        %v5992 = vld [vmem:[%s302 + $0x340] sm:$0xff]
        %v5993 = vld [vmem:[%s302 + $0x348] sm:$0xff]
        %v5994 = vld [vmem:[%s302 + $0x350] sm:$0xff]
        %v5995 = vld [vmem:[%s302 + $0x358] sm:$0xff]
        %v5996 = vld [vmem:[%s302 + $0x360] sm:$0xff]
        %v5997 = vld [vmem:[%s302 + $0x368] sm:$0xff]
        %v5998 = vld [vmem:[%s302 + $0x370] sm:$0xff]
        %v5999 = vld [vmem:[%s302 + $0x378] sm:$0xff]
        %v6000 = vld [vmem:[%s302 + $0x380] sm:$0xff]
        %v6001 = vld [vmem:[%s302 + $0x388] sm:$0xff]
        %v6002 = vld [vmem:[%s302 + $0x390] sm:$0xff]
        %v6003 = vld [vmem:[%s302 + $0x398] sm:$0xff]
        %v6004 = vld [vmem:[%s302 + $0x3a0] sm:$0xff]
        %v6005 = vld [vmem:[%s302 + $0x3a8] sm:$0xff]
        %v6006 = vld [vmem:[%s302 + $0x3b0] sm:$0xff]
        %v6007 = vld [vmem:[%s302 + $0x3b8] sm:$0xff]
        %v6008 = vld [vmem:[%s302 + $0x3c0] sm:$0xff]
        %v6009 = vld [vmem:[%s302 + $0x3c8] sm:$0xff]
        %v6010 = vld [vmem:[%s302 + $0x3d0] sm:$0xff]
        %v6011 = vld [vmem:[%s302 + $0x3d8] sm:$0xff]
        %v6012 = vld [vmem:[%s302 + $0x3e0] sm:$0xff]
        %v6013 = vld [vmem:[%s302 + $0x3e8] sm:$0xff]
        %v6014 = vld [vmem:[%s302 + $0x3f0] sm:$0xff]
        %v6015 = vld [vmem:[%s302 + $0x3f8] sm:$0xff]
        %v6016 = vld [vmem:[%s302 + $0x400] sm:$0xff]
        %v6017 = vld [vmem:[%s302 + $0x408] sm:$0xff]
        %v6018 = vld [vmem:[%s302 + $0x410] sm:$0xff]
        %v6019 = vld [vmem:[%s302 + $0x418] sm:$0xff]
        %v6020 = vld [vmem:[%s302 + $0x420] sm:$0xff]
        %v6021 = vld [vmem:[%s302 + $0x428] sm:$0xff]
        %v6022 = vld [vmem:[%s302 + $0x430] sm:$0xff]
        %v6023 = vld [vmem:[%s302 + $0x438] sm:$0xff]
        %v6024 = vld [vmem:[%s302 + $0x440] sm:$0xff]
        %v6025 = vld [vmem:[%s302 + $0x448] sm:$0xff]
        %v6026 = vld [vmem:[%s302 + $0x450] sm:$0xff]
        %v6027 = vld [vmem:[%s302 + $0x458] sm:$0xff]
        %v6028 = vld [vmem:[%s302 + $0x460] sm:$0xff]
        %v6029 = vld [vmem:[%s302 + $0x468] sm:$0xff]
        %v6030 = vld [vmem:[%s302 + $0x470] sm:$0xff]
        %v6031 = vld [vmem:[%s302 + $0x478] sm:$0xff]
        %v6032 = vld [vmem:[%s302 + $0x480] sm:$0xff]
        %v6033 = vld [vmem:[%s302 + $0x488] sm:$0xff]
        %v6034 = vld [vmem:[%s302 + $0x490] sm:$0xff]
        %v6035 = vld [vmem:[%s302 + $0x498] sm:$0xff]
        %v6036 = vld [vmem:[%s302 + $0x4a0] sm:$0xff]
        %v6037 = vld [vmem:[%s302 + $0x4a8] sm:$0xff]
        %v6038 = vld [vmem:[%s302 + $0x4b0] sm:$0xff]
        %v6039 = vld [vmem:[%s302 + $0x4b8] sm:$0xff]
        %v6040 = vld [vmem:[%s302 + $0x4c0] sm:$0xff]
        %v6041 = vld [vmem:[%s302 + $0x4c8] sm:$0xff]
        %v6042 = vld [vmem:[%s302 + $0x4d0] sm:$0xff]
        %v6043 = vld [vmem:[%s302 + $0x4d8] sm:$0xff]
        %v6044 = vld [vmem:[%s302 + $0x4e0] sm:$0xff]
        %v6045 = vld [vmem:[%s302 + $0x4e8] sm:$0xff]
        %v6046 = vld [vmem:[%s302 + $0x4f0] sm:$0xff]
        %v6047 = vld [vmem:[%s302 + $0x4f8] sm:$0xff]
        %v6048 = vld [vmem:[%s302 + $0x500] sm:$0xff]
        %v6049 = vld [vmem:[%s302 + $0x508] sm:$0xff]
        %v6050 = vld [vmem:[%s302 + $0x510] sm:$0xff]
        %v6051 = vld [vmem:[%s302 + $0x518] sm:$0xff]
        %v6052 = vld [vmem:[%s302 + $0x520] sm:$0xff]
        %v6053 = vld [vmem:[%s302 + $0x528] sm:$0xff]
        %v6054 = vld [vmem:[%s302 + $0x530] sm:$0xff]
        %v6055 = vld [vmem:[%s302 + $0x538] sm:$0xff]
        %v6056 = vld [vmem:[%s302 + $0x540] sm:$0xff]
        %v6057 = vld [vmem:[%s302 + $0x548] sm:$0xff]
        %v6058 = vld [vmem:[%s302 + $0x550] sm:$0xff]
        %v6059 = vld [vmem:[%s302 + $0x558] sm:$0xff]
        %v6060 = vld [vmem:[%s302 + $0x560] sm:$0xff]
        %v6061 = vld [vmem:[%s302 + $0x568] sm:$0xff]
        %v6062 = vld [vmem:[%s302 + $0x570] sm:$0xff]
        %v6063 = vld [vmem:[%s302 + $0x578] sm:$0xff]
        %v6064 = vld [vmem:[%s302 + $0x580] sm:$0xff]
        %v6065 = vld [vmem:[%s302 + $0x588] sm:$0xff]
        %v6066 = vld [vmem:[%s302 + $0x590] sm:$0xff]
        %v6067 = vld [vmem:[%s302 + $0x598] sm:$0xff]
        %v6068 = vld [vmem:[%s302 + $0x5a0] sm:$0xff]
        %v6069 = vld [vmem:[%s302 + $0x5a8] sm:$0xff]
        %v6070 = vld [vmem:[%s302 + $0x5b0] sm:$0xff]
        %v6071 = vld [vmem:[%s302 + $0x5b8] sm:$0xff]
        %v6072 = vld [vmem:[%s302 + $0x5c0] sm:$0xff]
        %v6073 = vld [vmem:[%s302 + $0x5c8] sm:$0xff]
        %v6074 = vld [vmem:[%s302 + $0x5d0] sm:$0xff]
        %v6075 = vld [vmem:[%s302 + $0x5d8] sm:$0xff]
        %v6076 = vld [vmem:[%s302 + $0x5e0] sm:$0xff]
        %v6077 = vld [vmem:[%s302 + $0x5e8] sm:$0xff]
        %v6078 = vld [vmem:[%s302 + $0x5f0] sm:$0xff]
        %v6079 = vld [vmem:[%s302 + $0x5f8] sm:$0xff]
        %v6080 = vld [vmem:[%s302 + $0x600] sm:$0xff]
        %v6081 = vld [vmem:[%s302 + $0x608] sm:$0xff]
        %v6082 = vld [vmem:[%s302 + $0x610] sm:$0xff]
        %v6083 = vld [vmem:[%s302 + $0x618] sm:$0xff]
        %v6084 = vld [vmem:[%s302 + $0x620] sm:$0xff]
        %v6085 = vld [vmem:[%s302 + $0x628] sm:$0xff]
        %v6086 = vld [vmem:[%s302 + $0x630] sm:$0xff]
        %v6087 = vld [vmem:[%s302 + $0x638] sm:$0xff]
        %v6088 = vld [vmem:[%s302 + $0x640] sm:$0xff]
        %v6089 = vld [vmem:[%s302 + $0x648] sm:$0xff]
        %v6090 = vld [vmem:[%s302 + $0x650] sm:$0xff]
        %v6091 = vld [vmem:[%s302 + $0x658] sm:$0xff]
        %v6092 = vld [vmem:[%s302 + $0x660] sm:$0xff]
        %v6093 = vld [vmem:[%s302 + $0x668] sm:$0xff]
        %v6094 = vld [vmem:[%s302 + $0x670] sm:$0xff]
        %v6095 = vld [vmem:[%s302 + $0x678] sm:$0xff]
        %v6096 = vld [vmem:[%s302 + $0x680] sm:$0xff]
        %v6097 = vld [vmem:[%s302 + $0x688] sm:$0xff]
        %v6098 = vld [vmem:[%s302 + $0x690] sm:$0xff]
        %v6099 = vld [vmem:[%s302 + $0x698] sm:$0xff]
        %v6100 = vld [vmem:[%s302 + $0x6a0] sm:$0xff]
        %v6101 = vld [vmem:[%s302 + $0x6a8] sm:$0xff]
        %v6102 = vld [vmem:[%s302 + $0x6b0] sm:$0xff]
        %v6103 = vld [vmem:[%s302 + $0x6b8] sm:$0xff]
        %v6104 = vld [vmem:[%s302 + $0x6c0] sm:$0xff]
        %v6105 = vld [vmem:[%s302 + $0x6c8] sm:$0xff]
        %v6106 = vld [vmem:[%s302 + $0x6d0] sm:$0xff]
        %v6107 = vld [vmem:[%s302 + $0x6d8] sm:$0xff]
        %v6108 = vld [vmem:[%s302 + $0x6e0] sm:$0xff]
        %v6109 = vld [vmem:[%s302 + $0x6e8] sm:$0xff]
        %v6110 = vld [vmem:[%s302 + $0x6f0] sm:$0xff]
        %v6111 = vld [vmem:[%s302 + $0x6f8] sm:$0xff]
        %v6112 = vld [vmem:[%s302 + $0x700] sm:$0xff]
        %v6113 = vld [vmem:[%s302 + $0x708] sm:$0xff]
        %v6114 = vld [vmem:[%s302 + $0x710] sm:$0xff]
        %v6115 = vld [vmem:[%s302 + $0x718] sm:$0xff]
        %v6116 = vld [vmem:[%s302 + $0x720] sm:$0xff]
        %v6117 = vld [vmem:[%s302 + $0x728] sm:$0xff]
        %v6118 = vld [vmem:[%s302 + $0x730] sm:$0xff]
        %v6119 = vld [vmem:[%s302 + $0x738] sm:$0xff]
        %v6120 = vld [vmem:[%s302 + $0x740] sm:$0xff]
        %v6121 = vld [vmem:[%s302 + $0x748] sm:$0xff]
        %v6122 = vld [vmem:[%s302 + $0x750] sm:$0xff]
        %v6123 = vld [vmem:[%s302 + $0x758] sm:$0xff]
        %v6124 = vld [vmem:[%s302 + $0x760] sm:$0xff]
        %v6125 = vld [vmem:[%s302 + $0x768] sm:$0xff]
        %v6126 = vld [vmem:[%s302 + $0x770] sm:$0xff]
        %v6127 = vld [vmem:[%s302 + $0x778] sm:$0xff]
        %v6128 = vld [vmem:[%s302 + $0x780] sm:$0xff]
        %v6129 = vld [vmem:[%s302 + $0x788] sm:$0xff]
        %v6130 = vld [vmem:[%s302 + $0x790] sm:$0xff]
        %v6131 = vld [vmem:[%s302 + $0x798] sm:$0xff]
        %v6132 = vld [vmem:[%s302 + $0x7a0] sm:$0xff]
        %v6133 = vld [vmem:[%s302 + $0x7a8] sm:$0xff]
        %v6134 = vld [vmem:[%s302 + $0x7b0] sm:$0xff]
        %v6135 = vld [vmem:[%s302 + $0x7b8] sm:$0xff]
        %v6136 = vld [vmem:[%s302 + $0x7c0] sm:$0xff]
        %v6137 = vld [vmem:[%s302 + $0x7c8] sm:$0xff]
        %v6138 = vld [vmem:[%s302 + $0x7d0] sm:$0xff]
        %v6139 = vld [vmem:[%s302 + $0x7d8] sm:$0xff]
        %v6140 = vld [vmem:[%s302 + $0x7e0] sm:$0xff]
        %v6141 = vld [vmem:[%s302 + $0x7e8] sm:$0xff]
        %v6142 = vld [vmem:[%s302 + $0x7f0] sm:$0xff]
        %v6143 = vld [vmem:[%s302 + $0x7f8] sm:$0xff]
        %v6144 = vld [vmem:[%s311] sm:$0x3]
        %v6146 = vlaneseq
        %v6147 = vshrl.u32 %v6146, 7
        %v6148 = vsub.s32 0, %v6147
        %v6149 = vrot.slane %v6144, %v6148
        %v6150 = vlaneseq
        %v6151 = vshrl.u32 %v6150, 7
        %v6152 = vsub.s32 1, %v6151
        %v6153 = vrot.slane %v6144, %v6152
        %v6412 = vunpack.c.l.b16 %v5888
        %v6413 = vunpack.c.h.b16 %v5888
        %v6414 = vunpack.c.l.b16 %v5889
        %v6415 = vunpack.c.h.b16 %v5889
        %v6416 = vunpack.c.l.b16 %v5890
        %v6417 = vunpack.c.h.b16 %v5890
        %v6418 = vunpack.c.l.b16 %v5891
        %v6419 = vunpack.c.h.b16 %v5891
        %v6420 = vunpack.c.l.b16 %v5892
        %v6421 = vunpack.c.h.b16 %v5892
        %v6422 = vunpack.c.l.b16 %v5893
        %v6423 = vunpack.c.h.b16 %v5893
        %v6424 = vunpack.c.l.b16 %v5894
        %v6425 = vunpack.c.h.b16 %v5894
        %v6426 = vunpack.c.l.b16 %v5895
        %v6427 = vunpack.c.h.b16 %v5895
        %v6428 = vunpack.c.l.b16 %v5896
        %v6429 = vunpack.c.h.b16 %v5896
        %v6430 = vunpack.c.l.b16 %v5897
        %v6431 = vunpack.c.h.b16 %v5897
        %v6432 = vunpack.c.l.b16 %v5898
        %v6433 = vunpack.c.h.b16 %v5898
        %v6434 = vunpack.c.l.b16 %v5899
        %v6435 = vunpack.c.h.b16 %v5899
        %v6436 = vunpack.c.l.b16 %v5900
        %v6437 = vunpack.c.h.b16 %v5900
        %v6438 = vunpack.c.l.b16 %v5901
        %v6439 = vunpack.c.h.b16 %v5901
        %v6440 = vunpack.c.l.b16 %v5902
        %v6441 = vunpack.c.h.b16 %v5902
        %v6442 = vunpack.c.l.b16 %v5903
        %v6443 = vunpack.c.h.b16 %v5903
        %v6444 = vunpack.c.l.b16 %v5904
        %v6445 = vunpack.c.h.b16 %v5904
        %v6446 = vunpack.c.l.b16 %v5905
        %v6447 = vunpack.c.h.b16 %v5905
        %v6448 = vunpack.c.l.b16 %v5906
        %v6449 = vunpack.c.h.b16 %v5906
        %v6450 = vunpack.c.l.b16 %v5907
        %v6451 = vunpack.c.h.b16 %v5907
        %v6452 = vunpack.c.l.b16 %v5908
        %v6453 = vunpack.c.h.b16 %v5908
        %v6454 = vunpack.c.l.b16 %v5909
        %v6455 = vunpack.c.h.b16 %v5909
        %v6456 = vunpack.c.l.b16 %v5910
        %v6457 = vunpack.c.h.b16 %v5910
        %v6458 = vunpack.c.l.b16 %v5911
        %v6459 = vunpack.c.h.b16 %v5911
        %v6460 = vunpack.c.l.b16 %v5912
        %v6461 = vunpack.c.h.b16 %v5912
        %v6462 = vunpack.c.l.b16 %v5913
        %v6463 = vunpack.c.h.b16 %v5913
        %v6464 = vunpack.c.l.b16 %v5914
        %v6465 = vunpack.c.h.b16 %v5914
        %v6466 = vunpack.c.l.b16 %v5915
        %v6467 = vunpack.c.h.b16 %v5915
        %v6468 = vunpack.c.l.b16 %v5916
        %v6469 = vunpack.c.h.b16 %v5916
        %v6470 = vunpack.c.l.b16 %v5917
        %v6471 = vunpack.c.h.b16 %v5917
        %v6472 = vunpack.c.l.b16 %v5918
        %v6473 = vunpack.c.h.b16 %v5918
        %v6474 = vunpack.c.l.b16 %v5919
        %v6475 = vunpack.c.h.b16 %v5919
        %v6476 = vunpack.c.l.b16 %v5920
        %v6477 = vunpack.c.h.b16 %v5920
        %v6478 = vunpack.c.l.b16 %v5921
        %v6479 = vunpack.c.h.b16 %v5921
        %v6480 = vunpack.c.l.b16 %v5922
        %v6481 = vunpack.c.h.b16 %v5922
        %v6482 = vunpack.c.l.b16 %v5923
        %v6483 = vunpack.c.h.b16 %v5923
        %v6484 = vunpack.c.l.b16 %v5924
        %v6485 = vunpack.c.h.b16 %v5924
        %v6486 = vunpack.c.l.b16 %v5925
        %v6487 = vunpack.c.h.b16 %v5925
        %v6488 = vunpack.c.l.b16 %v5926
        %v6489 = vunpack.c.h.b16 %v5926
        %v6490 = vunpack.c.l.b16 %v5927
        %v6491 = vunpack.c.h.b16 %v5927
        %v6492 = vunpack.c.l.b16 %v5928
        %v6493 = vunpack.c.h.b16 %v5928
        %v6494 = vunpack.c.l.b16 %v5929
        %v6495 = vunpack.c.h.b16 %v5929
        %v6496 = vunpack.c.l.b16 %v5930
        %v6497 = vunpack.c.h.b16 %v5930
        %v6498 = vunpack.c.l.b16 %v5931
        %v6499 = vunpack.c.h.b16 %v5931
        %v6500 = vunpack.c.l.b16 %v5932
        %v6501 = vunpack.c.h.b16 %v5932
        %v6502 = vunpack.c.l.b16 %v5933
        %v6503 = vunpack.c.h.b16 %v5933
        %v6504 = vunpack.c.l.b16 %v5934
        %v6505 = vunpack.c.h.b16 %v5934
        %v6506 = vunpack.c.l.b16 %v5935
        %v6507 = vunpack.c.h.b16 %v5935
        %v6508 = vunpack.c.l.b16 %v5936
        %v6509 = vunpack.c.h.b16 %v5936
        %v6510 = vunpack.c.l.b16 %v5937
        %v6511 = vunpack.c.h.b16 %v5937
        %v6512 = vunpack.c.l.b16 %v5938
        %v6513 = vunpack.c.h.b16 %v5938
        %v6514 = vunpack.c.l.b16 %v5939
        %v6515 = vunpack.c.h.b16 %v5939
        %v6516 = vunpack.c.l.b16 %v5940
        %v6517 = vunpack.c.h.b16 %v5940
        %v6518 = vunpack.c.l.b16 %v5941
        %v6519 = vunpack.c.h.b16 %v5941
        %v6520 = vunpack.c.l.b16 %v5942
        %v6521 = vunpack.c.h.b16 %v5942
        %v6522 = vunpack.c.l.b16 %v5943
        %v6523 = vunpack.c.h.b16 %v5943
        %v6524 = vunpack.c.l.b16 %v5944
        %v6525 = vunpack.c.h.b16 %v5944
        %v6526 = vunpack.c.l.b16 %v5945
        %v6527 = vunpack.c.h.b16 %v5945
        %v6528 = vunpack.c.l.b16 %v5946
        %v6529 = vunpack.c.h.b16 %v5946
        %v6530 = vunpack.c.l.b16 %v5947
        %v6531 = vunpack.c.h.b16 %v5947
        %v6532 = vunpack.c.l.b16 %v5948
        %v6533 = vunpack.c.h.b16 %v5948
        %v6534 = vunpack.c.l.b16 %v5949
        %v6535 = vunpack.c.h.b16 %v5949
        %v6536 = vunpack.c.l.b16 %v5950
        %v6537 = vunpack.c.h.b16 %v5950
        %v6538 = vunpack.c.l.b16 %v5951
        %v6539 = vunpack.c.h.b16 %v5951
        %v6540 = vunpack.c.l.b16 %v5952
        %v6541 = vunpack.c.h.b16 %v5952
        %v6542 = vunpack.c.l.b16 %v5953
        %v6543 = vunpack.c.h.b16 %v5953
        %v6544 = vunpack.c.l.b16 %v5954
        %v6545 = vunpack.c.h.b16 %v5954
        %v6546 = vunpack.c.l.b16 %v5955
        %v6547 = vunpack.c.h.b16 %v5955
        %v6548 = vunpack.c.l.b16 %v5956
        %v6549 = vunpack.c.h.b16 %v5956
        %v6550 = vunpack.c.l.b16 %v5957
        %v6551 = vunpack.c.h.b16 %v5957
        %v6552 = vunpack.c.l.b16 %v5958
        %v6553 = vunpack.c.h.b16 %v5958
        %v6554 = vunpack.c.l.b16 %v5959
        %v6555 = vunpack.c.h.b16 %v5959
        %v6556 = vunpack.c.l.b16 %v5960
        %v6557 = vunpack.c.h.b16 %v5960
        %v6558 = vunpack.c.l.b16 %v5961
        %v6559 = vunpack.c.h.b16 %v5961
        %v6560 = vunpack.c.l.b16 %v5962
        %v6561 = vunpack.c.h.b16 %v5962
        %v6562 = vunpack.c.l.b16 %v5963
        %v6563 = vunpack.c.h.b16 %v5963
        %v6564 = vunpack.c.l.b16 %v5964
        %v6565 = vunpack.c.h.b16 %v5964
        %v6566 = vunpack.c.l.b16 %v5965
        %v6567 = vunpack.c.h.b16 %v5965
        %v6568 = vunpack.c.l.b16 %v5966
        %v6569 = vunpack.c.h.b16 %v5966
        %v6570 = vunpack.c.l.b16 %v5967
        %v6571 = vunpack.c.h.b16 %v5967
        %v6572 = vunpack.c.l.b16 %v5968
        %v6573 = vunpack.c.h.b16 %v5968
        %v6574 = vunpack.c.l.b16 %v5969
        %v6575 = vunpack.c.h.b16 %v5969
        %v6576 = vunpack.c.l.b16 %v5970
        %v6577 = vunpack.c.h.b16 %v5970
        %v6578 = vunpack.c.l.b16 %v5971
        %v6579 = vunpack.c.h.b16 %v5971
        %v6580 = vunpack.c.l.b16 %v5972
        %v6581 = vunpack.c.h.b16 %v5972
        %v6582 = vunpack.c.l.b16 %v5973
        %v6583 = vunpack.c.h.b16 %v5973
        %v6584 = vunpack.c.l.b16 %v5974
        %v6585 = vunpack.c.h.b16 %v5974
        %v6586 = vunpack.c.l.b16 %v5975
        %v6587 = vunpack.c.h.b16 %v5975
        %v6588 = vunpack.c.l.b16 %v5976
        %v6589 = vunpack.c.h.b16 %v5976
        %v6590 = vunpack.c.l.b16 %v5977
        %v6591 = vunpack.c.h.b16 %v5977
        %v6592 = vunpack.c.l.b16 %v5978
        %v6593 = vunpack.c.h.b16 %v5978
        %v6594 = vunpack.c.l.b16 %v5979
        %v6595 = vunpack.c.h.b16 %v5979
        %v6596 = vunpack.c.l.b16 %v5980
        %v6597 = vunpack.c.h.b16 %v5980
        %v6598 = vunpack.c.l.b16 %v5981
        %v6599 = vunpack.c.h.b16 %v5981
        %v6600 = vunpack.c.l.b16 %v5982
        %v6601 = vunpack.c.h.b16 %v5982
        %v6602 = vunpack.c.l.b16 %v5983
        %v6603 = vunpack.c.h.b16 %v5983
        %v6604 = vunpack.c.l.b16 %v5984
        %v6605 = vunpack.c.h.b16 %v5984
        %v6606 = vunpack.c.l.b16 %v5985
        %v6607 = vunpack.c.h.b16 %v5985
        %v6608 = vunpack.c.l.b16 %v5986
        %v6609 = vunpack.c.h.b16 %v5986
        %v6610 = vunpack.c.l.b16 %v5987
        %v6611 = vunpack.c.h.b16 %v5987
        %v6612 = vunpack.c.l.b16 %v5988
        %v6613 = vunpack.c.h.b16 %v5988
        %v6614 = vunpack.c.l.b16 %v5989
        %v6615 = vunpack.c.h.b16 %v5989
        %v6616 = vunpack.c.l.b16 %v5990
        %v6617 = vunpack.c.h.b16 %v5990
        %v6618 = vunpack.c.l.b16 %v5991
        %v6619 = vunpack.c.h.b16 %v5991
        %v6620 = vunpack.c.l.b16 %v5992
        %v6621 = vunpack.c.h.b16 %v5992
        %v6622 = vunpack.c.l.b16 %v5993
        %v6623 = vunpack.c.h.b16 %v5993
        %v6624 = vunpack.c.l.b16 %v5994
        %v6625 = vunpack.c.h.b16 %v5994
        %v6626 = vunpack.c.l.b16 %v5995
        %v6627 = vunpack.c.h.b16 %v5995
        %v6628 = vunpack.c.l.b16 %v5996
        %v6629 = vunpack.c.h.b16 %v5996
        %v6630 = vunpack.c.l.b16 %v5997
        %v6631 = vunpack.c.h.b16 %v5997
        %v6632 = vunpack.c.l.b16 %v5998
        %v6633 = vunpack.c.h.b16 %v5998
        %v6634 = vunpack.c.l.b16 %v5999
        %v6635 = vunpack.c.h.b16 %v5999
        %v6636 = vunpack.c.l.b16 %v6000
        %v6637 = vunpack.c.h.b16 %v6000
        %v6638 = vunpack.c.l.b16 %v6001
        %v6639 = vunpack.c.h.b16 %v6001
        %v6640 = vunpack.c.l.b16 %v6002
        %v6641 = vunpack.c.h.b16 %v6002
        %v6642 = vunpack.c.l.b16 %v6003
        %v6643 = vunpack.c.h.b16 %v6003
        %v6644 = vunpack.c.l.b16 %v6004
        %v6645 = vunpack.c.h.b16 %v6004
        %v6646 = vunpack.c.l.b16 %v6005
        %v6647 = vunpack.c.h.b16 %v6005
        %v6648 = vunpack.c.l.b16 %v6006
        %v6649 = vunpack.c.h.b16 %v6006
        %v6650 = vunpack.c.l.b16 %v6007
        %v6651 = vunpack.c.h.b16 %v6007
        %v6652 = vunpack.c.l.b16 %v6008
        %v6653 = vunpack.c.h.b16 %v6008
        %v6654 = vunpack.c.l.b16 %v6009
        %v6655 = vunpack.c.h.b16 %v6009
        %v6656 = vunpack.c.l.b16 %v6010
        %v6657 = vunpack.c.h.b16 %v6010
        %v6658 = vunpack.c.l.b16 %v6011
        %v6659 = vunpack.c.h.b16 %v6011
        %v6660 = vunpack.c.l.b16 %v6012
        %v6661 = vunpack.c.h.b16 %v6012
        %v6662 = vunpack.c.l.b16 %v6013
        %v6663 = vunpack.c.h.b16 %v6013
        %v6664 = vunpack.c.l.b16 %v6014
        %v6665 = vunpack.c.h.b16 %v6014
        %v6666 = vunpack.c.l.b16 %v6015
        %v6667 = vunpack.c.h.b16 %v6015
        %v6668 = vunpack.c.l.b16 %v6016
        %v6669 = vunpack.c.h.b16 %v6016
        %v6670 = vunpack.c.l.b16 %v6017
        %v6671 = vunpack.c.h.b16 %v6017
        %v6672 = vunpack.c.l.b16 %v6018
        %v6673 = vunpack.c.h.b16 %v6018
        %v6674 = vunpack.c.l.b16 %v6019
        %v6675 = vunpack.c.h.b16 %v6019
        %v6676 = vunpack.c.l.b16 %v6020
        %v6677 = vunpack.c.h.b16 %v6020
        %v6678 = vunpack.c.l.b16 %v6021
        %v6679 = vunpack.c.h.b16 %v6021
        %v6680 = vunpack.c.l.b16 %v6022
        %v6681 = vunpack.c.h.b16 %v6022
        %v6682 = vunpack.c.l.b16 %v6023
        %v6683 = vunpack.c.h.b16 %v6023
        %v6684 = vunpack.c.l.b16 %v6024
        %v6685 = vunpack.c.h.b16 %v6024
        %v6686 = vunpack.c.l.b16 %v6025
        %v6687 = vunpack.c.h.b16 %v6025
        %v6688 = vunpack.c.l.b16 %v6026
        %v6689 = vunpack.c.h.b16 %v6026
        %v6690 = vunpack.c.l.b16 %v6027
        %v6691 = vunpack.c.h.b16 %v6027
        %v6692 = vunpack.c.l.b16 %v6028
        %v6693 = vunpack.c.h.b16 %v6028
        %v6694 = vunpack.c.l.b16 %v6029
        %v6695 = vunpack.c.h.b16 %v6029
        %v6696 = vunpack.c.l.b16 %v6030
        %v6697 = vunpack.c.h.b16 %v6030
        %v6698 = vunpack.c.l.b16 %v6031
        %v6699 = vunpack.c.h.b16 %v6031
        %v6700 = vunpack.c.l.b16 %v6032
        %v6701 = vunpack.c.h.b16 %v6032
        %v6702 = vunpack.c.l.b16 %v6033
        %v6703 = vunpack.c.h.b16 %v6033
        %v6704 = vunpack.c.l.b16 %v6034
        %v6705 = vunpack.c.h.b16 %v6034
        %v6706 = vunpack.c.l.b16 %v6035
        %v6707 = vunpack.c.h.b16 %v6035
        %v6708 = vunpack.c.l.b16 %v6036
        %v6709 = vunpack.c.h.b16 %v6036
        %v6710 = vunpack.c.l.b16 %v6037
        %v6711 = vunpack.c.h.b16 %v6037
        %v6712 = vunpack.c.l.b16 %v6038
        %v6713 = vunpack.c.h.b16 %v6038
        %v6714 = vunpack.c.l.b16 %v6039
        %v6715 = vunpack.c.h.b16 %v6039
        %v6716 = vunpack.c.l.b16 %v6040
        %v6717 = vunpack.c.h.b16 %v6040
        %v6718 = vunpack.c.l.b16 %v6041
        %v6719 = vunpack.c.h.b16 %v6041
        %v6720 = vunpack.c.l.b16 %v6042
        %v6721 = vunpack.c.h.b16 %v6042
        %v6722 = vunpack.c.l.b16 %v6043
        %v6723 = vunpack.c.h.b16 %v6043
        %v6724 = vunpack.c.l.b16 %v6044
        %v6725 = vunpack.c.h.b16 %v6044
        %v6726 = vunpack.c.l.b16 %v6045
        %v6727 = vunpack.c.h.b16 %v6045
        %v6728 = vunpack.c.l.b16 %v6046
        %v6729 = vunpack.c.h.b16 %v6046
        %v6730 = vunpack.c.l.b16 %v6047
        %v6731 = vunpack.c.h.b16 %v6047
        %v6732 = vunpack.c.l.b16 %v6048
        %v6733 = vunpack.c.h.b16 %v6048
        %v6734 = vunpack.c.l.b16 %v6049
        %v6735 = vunpack.c.h.b16 %v6049
        %v6736 = vunpack.c.l.b16 %v6050
        %v6737 = vunpack.c.h.b16 %v6050
        %v6738 = vunpack.c.l.b16 %v6051
        %v6739 = vunpack.c.h.b16 %v6051
        %v6740 = vunpack.c.l.b16 %v6052
        %v6741 = vunpack.c.h.b16 %v6052
        %v6742 = vunpack.c.l.b16 %v6053
        %v6743 = vunpack.c.h.b16 %v6053
        %v6744 = vunpack.c.l.b16 %v6054
        %v6745 = vunpack.c.h.b16 %v6054
        %v6746 = vunpack.c.l.b16 %v6055
        %v6747 = vunpack.c.h.b16 %v6055
        %v6748 = vunpack.c.l.b16 %v6056
        %v6749 = vunpack.c.h.b16 %v6056
        %v6750 = vunpack.c.l.b16 %v6057
        %v6751 = vunpack.c.h.b16 %v6057
        %v6752 = vunpack.c.l.b16 %v6058
        %v6753 = vunpack.c.h.b16 %v6058
        %v6754 = vunpack.c.l.b16 %v6059
        %v6755 = vunpack.c.h.b16 %v6059
        %v6756 = vunpack.c.l.b16 %v6060
        %v6757 = vunpack.c.h.b16 %v6060
        %v6758 = vunpack.c.l.b16 %v6061
        %v6759 = vunpack.c.h.b16 %v6061
        %v6760 = vunpack.c.l.b16 %v6062
        %v6761 = vunpack.c.h.b16 %v6062
        %v6762 = vunpack.c.l.b16 %v6063
        %v6763 = vunpack.c.h.b16 %v6063
        %v6764 = vunpack.c.l.b16 %v6064
        %v6765 = vunpack.c.h.b16 %v6064
        %v6766 = vunpack.c.l.b16 %v6065
        %v6767 = vunpack.c.h.b16 %v6065
        %v6768 = vunpack.c.l.b16 %v6066
        %v6769 = vunpack.c.h.b16 %v6066
        %v6770 = vunpack.c.l.b16 %v6067
        %v6771 = vunpack.c.h.b16 %v6067
        %v6772 = vunpack.c.l.b16 %v6068
        %v6773 = vunpack.c.h.b16 %v6068
        %v6774 = vunpack.c.l.b16 %v6069
        %v6775 = vunpack.c.h.b16 %v6069
        %v6776 = vunpack.c.l.b16 %v6070
        %v6777 = vunpack.c.h.b16 %v6070
        %v6778 = vunpack.c.l.b16 %v6071
        %v6779 = vunpack.c.h.b16 %v6071
        %v6780 = vunpack.c.l.b16 %v6072
        %v6781 = vunpack.c.h.b16 %v6072
        %v6782 = vunpack.c.l.b16 %v6073
        %v6783 = vunpack.c.h.b16 %v6073
        %v6784 = vunpack.c.l.b16 %v6074
        %v6785 = vunpack.c.h.b16 %v6074
        %v6786 = vunpack.c.l.b16 %v6075
        %v6787 = vunpack.c.h.b16 %v6075
        %v6788 = vunpack.c.l.b16 %v6076
        %v6789 = vunpack.c.h.b16 %v6076
        %v6790 = vunpack.c.l.b16 %v6077
        %v6791 = vunpack.c.h.b16 %v6077
        %v6792 = vunpack.c.l.b16 %v6078
        %v6793 = vunpack.c.h.b16 %v6078
        %v6794 = vunpack.c.l.b16 %v6079
        %v6795 = vunpack.c.h.b16 %v6079
        %v6796 = vunpack.c.l.b16 %v6080
        %v6797 = vunpack.c.h.b16 %v6080
        %v6798 = vunpack.c.l.b16 %v6081
        %v6799 = vunpack.c.h.b16 %v6081
        %v6800 = vunpack.c.l.b16 %v6082
        %v6801 = vunpack.c.h.b16 %v6082
        %v6802 = vunpack.c.l.b16 %v6083
        %v6803 = vunpack.c.h.b16 %v6083
        %v6804 = vunpack.c.l.b16 %v6084
        %v6805 = vunpack.c.h.b16 %v6084
        %v6806 = vunpack.c.l.b16 %v6085
        %v6807 = vunpack.c.h.b16 %v6085
        %v6808 = vunpack.c.l.b16 %v6086
        %v6809 = vunpack.c.h.b16 %v6086
        %v6810 = vunpack.c.l.b16 %v6087
        %v6811 = vunpack.c.h.b16 %v6087
        %v6812 = vunpack.c.l.b16 %v6088
        %v6813 = vunpack.c.h.b16 %v6088
        %v6814 = vunpack.c.l.b16 %v6089
        %v6815 = vunpack.c.h.b16 %v6089
        %v6816 = vunpack.c.l.b16 %v6090
        %v6817 = vunpack.c.h.b16 %v6090
        %v6818 = vunpack.c.l.b16 %v6091
        %v6819 = vunpack.c.h.b16 %v6091
        %v6820 = vunpack.c.l.b16 %v6092
        %v6821 = vunpack.c.h.b16 %v6092
        %v6822 = vunpack.c.l.b16 %v6093
        %v6823 = vunpack.c.h.b16 %v6093
        %v6824 = vunpack.c.l.b16 %v6094
        %v6825 = vunpack.c.h.b16 %v6094
        %v6826 = vunpack.c.l.b16 %v6095
        %v6827 = vunpack.c.h.b16 %v6095
        %v6828 = vunpack.c.l.b16 %v6096
        %v6829 = vunpack.c.h.b16 %v6096
        %v6830 = vunpack.c.l.b16 %v6097
        %v6831 = vunpack.c.h.b16 %v6097
        %v6832 = vunpack.c.l.b16 %v6098
        %v6833 = vunpack.c.h.b16 %v6098
        %v6834 = vunpack.c.l.b16 %v6099
        %v6835 = vunpack.c.h.b16 %v6099
        %v6836 = vunpack.c.l.b16 %v6100
        %v6837 = vunpack.c.h.b16 %v6100
        %v6838 = vunpack.c.l.b16 %v6101
        %v6839 = vunpack.c.h.b16 %v6101
        %v6840 = vunpack.c.l.b16 %v6102
        %v6841 = vunpack.c.h.b16 %v6102
        %v6842 = vunpack.c.l.b16 %v6103
        %v6843 = vunpack.c.h.b16 %v6103
        %v6844 = vunpack.c.l.b16 %v6104
        %v6845 = vunpack.c.h.b16 %v6104
        %v6846 = vunpack.c.l.b16 %v6105
        %v6847 = vunpack.c.h.b16 %v6105
        %v6848 = vunpack.c.l.b16 %v6106
        %v6849 = vunpack.c.h.b16 %v6106
        %v6850 = vunpack.c.l.b16 %v6107
        %v6851 = vunpack.c.h.b16 %v6107
        %v6852 = vunpack.c.l.b16 %v6108
        %v6853 = vunpack.c.h.b16 %v6108
        %v6854 = vunpack.c.l.b16 %v6109
        %v6855 = vunpack.c.h.b16 %v6109
        %v6856 = vunpack.c.l.b16 %v6110
        %v6857 = vunpack.c.h.b16 %v6110
        %v6858 = vunpack.c.l.b16 %v6111
        %v6859 = vunpack.c.h.b16 %v6111
        %v6860 = vunpack.c.l.b16 %v6112
        %v6861 = vunpack.c.h.b16 %v6112
        %v6862 = vunpack.c.l.b16 %v6113
        %v6863 = vunpack.c.h.b16 %v6113
        %v6864 = vunpack.c.l.b16 %v6114
        %v6865 = vunpack.c.h.b16 %v6114
        %v6866 = vunpack.c.l.b16 %v6115
        %v6867 = vunpack.c.h.b16 %v6115
        %v6868 = vunpack.c.l.b16 %v6116
        %v6869 = vunpack.c.h.b16 %v6116
        %v6870 = vunpack.c.l.b16 %v6117
        %v6871 = vunpack.c.h.b16 %v6117
        %v6872 = vunpack.c.l.b16 %v6118
        %v6873 = vunpack.c.h.b16 %v6118
        %v6874 = vunpack.c.l.b16 %v6119
        %v6875 = vunpack.c.h.b16 %v6119
        %v6876 = vunpack.c.l.b16 %v6120
        %v6877 = vunpack.c.h.b16 %v6120
        %v6878 = vunpack.c.l.b16 %v6121
        %v6879 = vunpack.c.h.b16 %v6121
        %v6880 = vunpack.c.l.b16 %v6122
        %v6881 = vunpack.c.h.b16 %v6122
        %v6882 = vunpack.c.l.b16 %v6123
        %v6883 = vunpack.c.h.b16 %v6123
        %v6884 = vunpack.c.l.b16 %v6124
        %v6885 = vunpack.c.h.b16 %v6124
        %v6886 = vunpack.c.l.b16 %v6125
        %v6887 = vunpack.c.h.b16 %v6125
        %v6888 = vunpack.c.l.b16 %v6126
        %v6889 = vunpack.c.h.b16 %v6126
        %v6890 = vunpack.c.l.b16 %v6127
        %v6891 = vunpack.c.h.b16 %v6127
        %v6892 = vunpack.c.l.b16 %v6128
        %v6893 = vunpack.c.h.b16 %v6128
        %v6894 = vunpack.c.l.b16 %v6129
        %v6895 = vunpack.c.h.b16 %v6129
        %v6896 = vunpack.c.l.b16 %v6130
        %v6897 = vunpack.c.h.b16 %v6130
        %v6898 = vunpack.c.l.b16 %v6131
        %v6899 = vunpack.c.h.b16 %v6131
        %v6900 = vunpack.c.l.b16 %v6132
        %v6901 = vunpack.c.h.b16 %v6132
        %v6902 = vunpack.c.l.b16 %v6133
        %v6903 = vunpack.c.h.b16 %v6133
        %v6904 = vunpack.c.l.b16 %v6134
        %v6905 = vunpack.c.h.b16 %v6134
        %v6906 = vunpack.c.l.b16 %v6135
        %v6907 = vunpack.c.h.b16 %v6135
        %v6908 = vunpack.c.l.b16 %v6136
        %v6909 = vunpack.c.h.b16 %v6136
        %v6910 = vunpack.c.l.b16 %v6137
        %v6911 = vunpack.c.h.b16 %v6137
        %v6912 = vunpack.c.l.b16 %v6138
        %v6913 = vunpack.c.h.b16 %v6138
        %v6914 = vunpack.c.l.b16 %v6139
        %v6915 = vunpack.c.h.b16 %v6139
        %v6916 = vunpack.c.l.b16 %v6140
        %v6917 = vunpack.c.h.b16 %v6140
        %v6918 = vunpack.c.l.b16 %v6141
        %v6919 = vunpack.c.h.b16 %v6141
        %v6920 = vunpack.c.l.b16 %v6142
        %v6921 = vunpack.c.h.b16 %v6142
        %v6922 = vunpack.c.l.b16 %v6143
        %v6923 = vunpack.c.h.b16 %v6143
        %v6924 = vpack.c.b16 %v6414, %v6412
        %v6925 = vpack.c.b16 %v6415, %v6413
        %v6926 = vpack.c.b16 %v6418, %v6416
        %v6927 = vpack.c.b16 %v6419, %v6417
        %v6928 = vpack.c.b16 %v6422, %v6420
        %v6929 = vpack.c.b16 %v6423, %v6421
        %v6930 = vpack.c.b16 %v6426, %v6424
        %v6931 = vpack.c.b16 %v6427, %v6425
        %v6932 = vpack.c.b16 %v6430, %v6428
        %v6933 = vpack.c.b16 %v6431, %v6429
        %v6934 = vpack.c.b16 %v6434, %v6432
        %v6935 = vpack.c.b16 %v6435, %v6433
        %v6936 = vpack.c.b16 %v6438, %v6436
        %v6937 = vpack.c.b16 %v6439, %v6437
        %v6938 = vpack.c.b16 %v6442, %v6440
        %v6939 = vpack.c.b16 %v6443, %v6441
        %v6940 = vpack.c.b16 %v6446, %v6444
        %v6941 = vpack.c.b16 %v6447, %v6445
        %v6942 = vpack.c.b16 %v6450, %v6448
        %v6943 = vpack.c.b16 %v6451, %v6449
        %v6944 = vpack.c.b16 %v6454, %v6452
        %v6945 = vpack.c.b16 %v6455, %v6453
        %v6946 = vpack.c.b16 %v6458, %v6456
        %v6947 = vpack.c.b16 %v6459, %v6457
        %v6948 = vpack.c.b16 %v6462, %v6460
        %v6949 = vpack.c.b16 %v6463, %v6461
        %v6950 = vpack.c.b16 %v6466, %v6464
        %v6951 = vpack.c.b16 %v6467, %v6465
        %v6952 = vpack.c.b16 %v6470, %v6468
        %v6953 = vpack.c.b16 %v6471, %v6469
        %v6954 = vpack.c.b16 %v6474, %v6472
        %v6955 = vpack.c.b16 %v6475, %v6473
        %v6956 = vpack.c.b16 %v6478, %v6476
        %v6957 = vpack.c.b16 %v6479, %v6477
        %v6958 = vpack.c.b16 %v6482, %v6480
        %v6959 = vpack.c.b16 %v6483, %v6481
        %v6960 = vpack.c.b16 %v6486, %v6484
        %v6961 = vpack.c.b16 %v6487, %v6485
        %v6962 = vpack.c.b16 %v6490, %v6488
        %v6963 = vpack.c.b16 %v6491, %v6489
        %v6964 = vpack.c.b16 %v6494, %v6492
        %v6965 = vpack.c.b16 %v6495, %v6493
        %v6966 = vpack.c.b16 %v6498, %v6496
        %v6967 = vpack.c.b16 %v6499, %v6497
        %v6968 = vpack.c.b16 %v6502, %v6500
        %v6969 = vpack.c.b16 %v6503, %v6501
        %v6970 = vpack.c.b16 %v6506, %v6504
        %v6971 = vpack.c.b16 %v6507, %v6505
        %v6972 = vpack.c.b16 %v6510, %v6508
        %v6973 = vpack.c.b16 %v6511, %v6509
        %v6974 = vpack.c.b16 %v6514, %v6512
        %v6975 = vpack.c.b16 %v6515, %v6513
        %v6976 = vpack.c.b16 %v6518, %v6516
        %v6977 = vpack.c.b16 %v6519, %v6517
        %v6978 = vpack.c.b16 %v6522, %v6520
        %v6979 = vpack.c.b16 %v6523, %v6521
        %v6980 = vpack.c.b16 %v6526, %v6524
        %v6981 = vpack.c.b16 %v6527, %v6525
        %v6982 = vpack.c.b16 %v6530, %v6528
        %v6983 = vpack.c.b16 %v6531, %v6529
        %v6984 = vpack.c.b16 %v6534, %v6532
        %v6985 = vpack.c.b16 %v6535, %v6533
        %v6986 = vpack.c.b16 %v6538, %v6536
        %v6987 = vpack.c.b16 %v6539, %v6537
        %v6988 = vpack.c.b16 %v6542, %v6540
        %v6989 = vpack.c.b16 %v6543, %v6541
        %v6990 = vpack.c.b16 %v6546, %v6544
        %v6991 = vpack.c.b16 %v6547, %v6545
        %v6992 = vpack.c.b16 %v6550, %v6548
        %v6993 = vpack.c.b16 %v6551, %v6549
        %v6994 = vpack.c.b16 %v6554, %v6552
        %v6995 = vpack.c.b16 %v6555, %v6553
        %v6996 = vpack.c.b16 %v6558, %v6556
        %v6997 = vpack.c.b16 %v6559, %v6557
        %v6998 = vpack.c.b16 %v6562, %v6560
        %v6999 = vpack.c.b16 %v6563, %v6561
        %v7000 = vpack.c.b16 %v6566, %v6564
        %v7001 = vpack.c.b16 %v6567, %v6565
        %v7002 = vpack.c.b16 %v6570, %v6568
        %v7003 = vpack.c.b16 %v6571, %v6569
        %v7004 = vpack.c.b16 %v6574, %v6572
        %v7005 = vpack.c.b16 %v6575, %v6573
        %v7006 = vpack.c.b16 %v6578, %v6576
        %v7007 = vpack.c.b16 %v6579, %v6577
        %v7008 = vpack.c.b16 %v6582, %v6580
        %v7009 = vpack.c.b16 %v6583, %v6581
        %v7010 = vpack.c.b16 %v6586, %v6584
        %v7011 = vpack.c.b16 %v6587, %v6585
        %v7012 = vpack.c.b16 %v6590, %v6588
        %v7013 = vpack.c.b16 %v6591, %v6589
        %v7014 = vpack.c.b16 %v6594, %v6592
        %v7015 = vpack.c.b16 %v6595, %v6593
        %v7016 = vpack.c.b16 %v6598, %v6596
        %v7017 = vpack.c.b16 %v6599, %v6597
        %v7018 = vpack.c.b16 %v6602, %v6600
        %v7019 = vpack.c.b16 %v6603, %v6601
        %v7020 = vpack.c.b16 %v6606, %v6604
        %v7021 = vpack.c.b16 %v6607, %v6605
        %v7022 = vpack.c.b16 %v6610, %v6608
        %v7023 = vpack.c.b16 %v6611, %v6609
        %v7024 = vpack.c.b16 %v6614, %v6612
        %v7025 = vpack.c.b16 %v6615, %v6613
        %v7026 = vpack.c.b16 %v6618, %v6616
        %v7027 = vpack.c.b16 %v6619, %v6617
        %v7028 = vpack.c.b16 %v6622, %v6620
        %v7029 = vpack.c.b16 %v6623, %v6621
        %v7030 = vpack.c.b16 %v6626, %v6624
        %v7031 = vpack.c.b16 %v6627, %v6625
        %v7032 = vpack.c.b16 %v6630, %v6628
        %v7033 = vpack.c.b16 %v6631, %v6629
        %v7034 = vpack.c.b16 %v6634, %v6632
        %v7035 = vpack.c.b16 %v6635, %v6633
        %v7036 = vpack.c.b16 %v6638, %v6636
        %v7037 = vpack.c.b16 %v6639, %v6637
        %v7038 = vpack.c.b16 %v6642, %v6640
        %v7039 = vpack.c.b16 %v6643, %v6641
        %v7040 = vpack.c.b16 %v6646, %v6644
        %v7041 = vpack.c.b16 %v6647, %v6645
        %v7042 = vpack.c.b16 %v6650, %v6648
        %v7043 = vpack.c.b16 %v6651, %v6649
        %v7044 = vpack.c.b16 %v6654, %v6652
        %v7045 = vpack.c.b16 %v6655, %v6653
        %v7046 = vpack.c.b16 %v6658, %v6656
        %v7047 = vpack.c.b16 %v6659, %v6657
        %v7048 = vpack.c.b16 %v6662, %v6660
        %v7049 = vpack.c.b16 %v6663, %v6661
        %v7050 = vpack.c.b16 %v6666, %v6664
        %v7051 = vpack.c.b16 %v6667, %v6665
        %v7052 = vpack.c.b16 %v6670, %v6668
        %v7053 = vpack.c.b16 %v6671, %v6669
        %v7054 = vpack.c.b16 %v6674, %v6672
        %v7055 = vpack.c.b16 %v6675, %v6673
        %v7056 = vpack.c.b16 %v6678, %v6676
        %v7057 = vpack.c.b16 %v6679, %v6677
        %v7058 = vpack.c.b16 %v6682, %v6680
        %v7059 = vpack.c.b16 %v6683, %v6681
        %v7060 = vpack.c.b16 %v6686, %v6684
        %v7061 = vpack.c.b16 %v6687, %v6685
        %v7062 = vpack.c.b16 %v6690, %v6688
        %v7063 = vpack.c.b16 %v6691, %v6689
        %v7064 = vpack.c.b16 %v6694, %v6692
        %v7065 = vpack.c.b16 %v6695, %v6693
        %v7066 = vpack.c.b16 %v6698, %v6696
        %v7067 = vpack.c.b16 %v6699, %v6697
        %v7068 = vpack.c.b16 %v6702, %v6700
        %v7069 = vpack.c.b16 %v6703, %v6701
        %v7070 = vpack.c.b16 %v6706, %v6704
        %v7071 = vpack.c.b16 %v6707, %v6705
        %v7072 = vpack.c.b16 %v6710, %v6708
        %v7073 = vpack.c.b16 %v6711, %v6709
        %v7074 = vpack.c.b16 %v6714, %v6712
        %v7075 = vpack.c.b16 %v6715, %v6713
        %v7076 = vpack.c.b16 %v6718, %v6716
        %v7077 = vpack.c.b16 %v6719, %v6717
        %v7078 = vpack.c.b16 %v6722, %v6720
        %v7079 = vpack.c.b16 %v6723, %v6721
        %v7080 = vpack.c.b16 %v6726, %v6724
        %v7081 = vpack.c.b16 %v6727, %v6725
        %v7082 = vpack.c.b16 %v6730, %v6728
        %v7083 = vpack.c.b16 %v6731, %v6729
        %v7084 = vpack.c.b16 %v6734, %v6732
        %v7085 = vpack.c.b16 %v6735, %v6733
        %v7086 = vpack.c.b16 %v6738, %v6736
        %v7087 = vpack.c.b16 %v6739, %v6737
        %v7088 = vpack.c.b16 %v6742, %v6740
        %v7089 = vpack.c.b16 %v6743, %v6741
        %v7090 = vpack.c.b16 %v6746, %v6744
        %v7091 = vpack.c.b16 %v6747, %v6745
        %v7092 = vpack.c.b16 %v6750, %v6748
        %v7093 = vpack.c.b16 %v6751, %v6749
        %v7094 = vpack.c.b16 %v6754, %v6752
        %v7095 = vpack.c.b16 %v6755, %v6753
        %v7096 = vpack.c.b16 %v6758, %v6756
        %v7097 = vpack.c.b16 %v6759, %v6757
        %v7098 = vpack.c.b16 %v6762, %v6760
        %v7099 = vpack.c.b16 %v6763, %v6761
        %v7100 = vpack.c.b16 %v6766, %v6764
        %v7101 = vpack.c.b16 %v6767, %v6765
        %v7102 = vpack.c.b16 %v6770, %v6768
        %v7103 = vpack.c.b16 %v6771, %v6769
        %v7104 = vpack.c.b16 %v6774, %v6772
        %v7105 = vpack.c.b16 %v6775, %v6773
        %v7106 = vpack.c.b16 %v6778, %v6776
        %v7107 = vpack.c.b16 %v6779, %v6777
        %v7108 = vpack.c.b16 %v6782, %v6780
        %v7109 = vpack.c.b16 %v6783, %v6781
        %v7110 = vpack.c.b16 %v6786, %v6784
        %v7111 = vpack.c.b16 %v6787, %v6785
        %v7112 = vpack.c.b16 %v6790, %v6788
        %v7113 = vpack.c.b16 %v6791, %v6789
        %v7114 = vpack.c.b16 %v6794, %v6792
        %v7115 = vpack.c.b16 %v6795, %v6793
        %v7116 = vpack.c.b16 %v6798, %v6796
        %v7117 = vpack.c.b16 %v6799, %v6797
        %v7118 = vpack.c.b16 %v6802, %v6800
        %v7119 = vpack.c.b16 %v6803, %v6801
        %v7120 = vpack.c.b16 %v6806, %v6804
        %v7121 = vpack.c.b16 %v6807, %v6805
        %v7122 = vpack.c.b16 %v6810, %v6808
        %v7123 = vpack.c.b16 %v6811, %v6809
        %v7124 = vpack.c.b16 %v6814, %v6812
        %v7125 = vpack.c.b16 %v6815, %v6813
        %v7126 = vpack.c.b16 %v6818, %v6816
        %v7127 = vpack.c.b16 %v6819, %v6817
        %v7128 = vpack.c.b16 %v6822, %v6820
        %v7129 = vpack.c.b16 %v6823, %v6821
        %v7130 = vpack.c.b16 %v6826, %v6824
        %v7131 = vpack.c.b16 %v6827, %v6825
        %v7132 = vpack.c.b16 %v6830, %v6828
        %v7133 = vpack.c.b16 %v6831, %v6829
        %v7134 = vpack.c.b16 %v6834, %v6832
        %v7135 = vpack.c.b16 %v6835, %v6833
        %v7136 = vpack.c.b16 %v6838, %v6836
        %v7137 = vpack.c.b16 %v6839, %v6837
        %v7138 = vpack.c.b16 %v6842, %v6840
        %v7139 = vpack.c.b16 %v6843, %v6841
        %v7140 = vpack.c.b16 %v6846, %v6844
        %v7141 = vpack.c.b16 %v6847, %v6845
        %v7142 = vpack.c.b16 %v6850, %v6848
        %v7143 = vpack.c.b16 %v6851, %v6849
        %v7144 = vpack.c.b16 %v6854, %v6852
        %v7145 = vpack.c.b16 %v6855, %v6853
        %v7146 = vpack.c.b16 %v6858, %v6856
        %v7147 = vpack.c.b16 %v6859, %v6857
        %v7148 = vpack.c.b16 %v6862, %v6860
        %v7149 = vpack.c.b16 %v6863, %v6861
        %v7150 = vpack.c.b16 %v6866, %v6864
        %v7151 = vpack.c.b16 %v6867, %v6865
        %v7152 = vpack.c.b16 %v6870, %v6868
        %v7153 = vpack.c.b16 %v6871, %v6869
        %v7154 = vpack.c.b16 %v6874, %v6872
        %v7155 = vpack.c.b16 %v6875, %v6873
        %v7156 = vpack.c.b16 %v6878, %v6876
        %v7157 = vpack.c.b16 %v6879, %v6877
        %v7158 = vpack.c.b16 %v6882, %v6880
        %v7159 = vpack.c.b16 %v6883, %v6881
        %v7160 = vpack.c.b16 %v6886, %v6884
        %v7161 = vpack.c.b16 %v6887, %v6885
        %v7162 = vpack.c.b16 %v6890, %v6888
        %v7163 = vpack.c.b16 %v6891, %v6889
        %v7164 = vpack.c.b16 %v6894, %v6892
        %v7165 = vpack.c.b16 %v6895, %v6893
        %v7166 = vpack.c.b16 %v6898, %v6896
        %v7167 = vpack.c.b16 %v6899, %v6897
        %v7168 = vpack.c.b16 %v6902, %v6900
        %v7169 = vpack.c.b16 %v6903, %v6901
        %v7170 = vpack.c.b16 %v6906, %v6904
        %v7171 = vpack.c.b16 %v6907, %v6905
        %v7172 = vpack.c.b16 %v6910, %v6908
        %v7173 = vpack.c.b16 %v6911, %v6909
        %v7174 = vpack.c.b16 %v6914, %v6912
        %v7175 = vpack.c.b16 %v6915, %v6913
        %v7176 = vpack.c.b16 %v6918, %v6916
        %v7177 = vpack.c.b16 %v6919, %v6917
        %v7178 = vpack.c.b16 %v6922, %v6920
        %v7179 = vpack.c.b16 %v6923, %v6921
        %7436 = vmatprep.subr.bf16.mxu0 %v6925
        %7437 = vmatpush1.bf16.msra.mxu0 %v6924
        %7438 = vmatprep.subr.bf16.mxu0 %v6927
        %7439 = vmatpush1.bf16.msra.mxu0 %v6926
        %7440 = vmatprep.subr.bf16.mxu0 %v6929
        %7441 = vmatpush1.bf16.msra.mxu0 %v6928
        %7442 = vmatprep.subr.bf16.mxu0 %v6931
        %7443 = vmatpush1.bf16.msra.mxu0 %v6930
        %7444 = vmatprep.subr.bf16.mxu0 %v6933
        %7445 = vmatpush1.bf16.msra.mxu0 %v6932
        %7446 = vmatprep.subr.bf16.mxu0 %v6935
        %7447 = vmatpush1.bf16.msra.mxu0 %v6934
        %7448 = vmatprep.subr.bf16.mxu0 %v6937
        %7449 = vmatpush1.bf16.msra.mxu0 %v6936
        %7450 = vmatprep.subr.bf16.mxu0 %v6939
        %7451 = vmatpush1.bf16.msra.mxu0 %v6938
        %7452 = vmatprep.subr.bf16.mxu0 %v6941
        %7453 = vmatpush1.bf16.msra.mxu0 %v6940
        %7454 = vmatprep.subr.bf16.mxu0 %v6943
        %7455 = vmatpush1.bf16.msra.mxu0 %v6942
        %7456 = vmatprep.subr.bf16.mxu0 %v6945
        %7457 = vmatpush1.bf16.msra.mxu0 %v6944
        %7458 = vmatprep.subr.bf16.mxu0 %v6947
        %7459 = vmatpush1.bf16.msra.mxu0 %v6946
        %7460 = vmatprep.subr.bf16.mxu0 %v6949
        %7461 = vmatpush1.bf16.msra.mxu0 %v6948
        %7462 = vmatprep.subr.bf16.mxu0 %v6951
        %7463 = vmatpush1.bf16.msra.mxu0 %v6950
        %7464 = vmatprep.subr.bf16.mxu0 %v6953
        %7465 = vmatpush1.bf16.msra.mxu0 %v6952
        %7466 = vmatprep.subr.bf16.mxu0 %v6955
        %7467 = vmatpush1.bf16.msra.mxu0 %v6954
        %7468 = vmatprep.mubr.bf16.mxu0 %v5761
        %7469 = vmatmul.mubr.bf16.gmra.mrb[0].mxu0 %v5760
        %v7470 = vpop.f32.mrb[0].mxu0
        %v7471 = vadd.f32 %v6149, %v7470
        %v7472 = vpop.f32.mrb[0].mxu0
        %v7473 = vadd.f32 %v6153, %v7472
        %v7474 = vpop.f32.mrb[0].mxu0
        %v7475 = vadd.f32 %v6149, %v7474
        %v7476 = vpop.f32.mrb[0].mxu0
        %v7477 = vadd.f32 %v6153, %v7476
        %7478 = vmatprep.mubr.bf16.mxu0 %v5777
        %7479 = vmatmul.mubr.bf16.gmra.mrb[0].mxu0 %v5776
        %v7480 = vpop.f32.mrb[0].mxu0
        %v7481 = vadd.f32 %v6149, %v7480
        %v7482 = vpop.f32.mrb[0].mxu0
        %v7483 = vadd.f32 %v6153, %v7482
        %v7484 = vpop.f32.mrb[0].mxu0
        %v7485 = vadd.f32 %v6149, %v7484
        %v7486 = vpop.f32.mrb[0].mxu0
        %v7487 = vadd.f32 %v6153, %v7486
        %7488 = vmatprep.mubr.bf16.mxu0 %v5793
        %7489 = vmatmul.mubr.bf16.gmra.mrb[0].mxu0 %v5792
        %v7490 = vpop.f32.mrb[0].mxu0
        %v7491 = vadd.f32 %v6149, %v7490
        %v7492 = vpop.f32.mrb[0].mxu0
        %v7493 = vadd.f32 %v6153, %v7492
        %v7494 = vpop.f32.mrb[0].mxu0
        %v7495 = vadd.f32 %v6149, %v7494
        %v7496 = vpop.f32.mrb[0].mxu0
        %v7497 = vadd.f32 %v6153, %v7496
        %7498 = vmatprep.mubr.bf16.mxu0 %v5809
        %7499 = vmatmul.mubr.bf16.gmra.mrb[0].mxu0 %v5808
        %v7500 = vpop.f32.mrb[0].mxu0
        %v7501 = vadd.f32 %v6149, %v7500
        %v7502 = vpop.f32.mrb[0].mxu0
        %v7503 = vadd.f32 %v6153, %v7502
        %v7504 = vpop.f32.mrb[0].mxu0
        %v7505 = vadd.f32 %v6149, %v7504
        %v7506 = vpop.f32.mrb[0].mxu0
        %v7507 = vadd.f32 %v6153, %v7506
        %7508 = vmatprep.mubr.bf16.mxu0 %v5825
        %7509 = vmatmul.mubr.bf16.gmra.mrb[0].mxu0 %v5824
        %v7510 = vpop.f32.mrb[0].mxu0
        %v7511 = vadd.f32 %v6149, %v7510
        %v7512 = vpop.f32.mrb[0].mxu0
        %v7513 = vadd.f32 %v6153, %v7512
        %v7514 = vpop.f32.mrb[0].mxu0
        %v7515 = vadd.f32 %v6149, %v7514
        %v7516 = vpop.f32.mrb[0].mxu0
        %v7517 = vadd.f32 %v6153, %v7516
        %7518 = vmatprep.mubr.bf16.mxu0 %v5841
        %7519 = vmatmul.mubr.bf16.gmra.mrb[0].mxu0 %v5840
        %v7520 = vpop.f32.mrb[0].mxu0
        %v7521 = vadd.f32 %v6149, %v7520
        %v7522 = vpop.f32.mrb[0].mxu0
        %v7523 = vadd.f32 %v6153, %v7522
        %v7524 = vpop.f32.mrb[0].mxu0
        %v7525 = vadd.f32 %v6149, %v7524
        %v7526 = vpop.f32.mrb[0].mxu0
        %v7527 = vadd.f32 %v6153, %v7526
        %7528 = vmatprep.mubr.bf16.mxu0 %v5857
        %7529 = vmatmul.mubr.bf16.gmra.mrb[0].mxu0 %v5856
        %v7530 = vpop.f32.mrb[0].mxu0
        %v7531 = vadd.f32 %v6149, %v7530
        %v7532 = vpop.f32.mrb[0].mxu0
        %v7533 = vadd.f32 %v6153, %v7532
        %v7534 = vpop.f32.mrb[0].mxu0
        %v7535 = vadd.f32 %v6149, %v7534
        %v7536 = vpop.f32.mrb[0].mxu0
        %v7537 = vadd.f32 %v6153, %v7536
        %7538 = vmatprep.mubr.bf16.mxu0 %v5873
        %7539 = vmatmul.mubr.bf16.gmra.mrb[0].mxu0 %v5872
        %v7540 = vpop.f32.mrb[0].mxu0
        %v7541 = vadd.f32 %v6149, %v7540
        %v7542 = vpop.f32.mrb[0].mxu0
        %v7543 = vadd.f32 %v6153, %v7542
        %v7544 = vpop.f32.mrb[0].mxu0
        %v7545 = vadd.f32 %v6149, %v7544
        %v7546 = vpop.f32.mrb[0].mxu0
        %v7547 = vadd.f32 %v6153, %v7546
        %7548 = vdwg.mxu0
        %7549 = vmatprep.subr.bf16.mxu0 %v6957
        %7550 = vmatpush1.bf16.msra.mxu0 %v6956
        %7551 = vmatprep.subr.bf16.mxu0 %v6959
        %7552 = vmatpush1.bf16.msra.mxu0 %v6958
        %7553 = vmatprep.subr.bf16.mxu0 %v6961
        %7554 = vmatpush1.bf16.msra.mxu0 %v6960
        %7555 = vmatprep.subr.bf16.mxu0 %v6963
        %7556 = vmatpush1.bf16.msra.mxu0 %v6962
        %7557 = vmatprep.subr.bf16.mxu0 %v6965
        %7558 = vmatpush1.bf16.msra.mxu0 %v6964
        %7559 = vmatprep.subr.bf16.mxu0 %v6967
        %7560 = vmatpush1.bf16.msra.mxu0 %v6966
        %7561 = vmatprep.subr.bf16.mxu0 %v6969
        %7562 = vmatpush1.bf16.msra.mxu0 %v6968
        %7563 = vmatprep.subr.bf16.mxu0 %v6971
        %7564 = vmatpush1.bf16.msra.mxu0 %v6970
        %7565 = vmatprep.subr.bf16.mxu0 %v6973
        %7566 = vmatpush1.bf16.msra.mxu0 %v6972
        %7567 = vmatprep.subr.bf16.mxu0 %v6975
        %7568 = vmatpush1.bf16.msra.mxu0 %v6974
        %7569 = vmatprep.subr.bf16.mxu0 %v6977
        %7570 = vmatpush1.bf16.msra.mxu0 %v6976
        %7571 = vmatprep.subr.bf16.mxu0 %v6979
        %7572 = vmatpush1.bf16.msra.mxu0 %v6978
        %7573 = vmatprep.subr.bf16.mxu0 %v6981
        %7574 = vmatpush1.bf16.msra.mxu0 %v6980
        %7575 = vmatprep.subr.bf16.mxu0 %v6983
        %7576 = vmatpush1.bf16.msra.mxu0 %v6982
        %7577 = vmatprep.subr.bf16.mxu0 %v6985
        %7578 = vmatpush1.bf16.msra.mxu0 %v6984
        %7579 = vmatprep.subr.bf16.mxu0 %v6987
        %7580 = vmatpush1.bf16.msra.mxu0 %v6986
        %7581 = vmatprep.mubr.bf16.mxu0 %v5763
        %7582 = vmatmul.mubr.bf16.gmra.mrb[0].mxu0 %v5762
        %v7583 = vpop.f32.mrb[0].mxu0
        %v7584 = vadd.f32 %v7471, %v7583
        %v7585 = vpop.f32.mrb[0].mxu0
        %v7586 = vadd.f32 %v7473, %v7585
        %v7587 = vpop.f32.mrb[0].mxu0
        %v7588 = vadd.f32 %v7475, %v7587
        %v7589 = vpop.f32.mrb[0].mxu0
        %v7590 = vadd.f32 %v7477, %v7589
        %7591 = vmatprep.mubr.bf16.mxu0 %v5779
        %7592 = vmatmul.mubr.bf16.gmra.mrb[0].mxu0 %v5778
        %v7593 = vpop.f32.mrb[0].mxu0
        %v7594 = vadd.f32 %v7481, %v7593
        %v7595 = vpop.f32.mrb[0].mxu0
        %v7596 = vadd.f32 %v7483, %v7595
        %v7597 = vpop.f32.mrb[0].mxu0
        %v7598 = vadd.f32 %v7485, %v7597
        %v7599 = vpop.f32.mrb[0].mxu0
        %v7600 = vadd.f32 %v7487, %v7599
        %7601 = vmatprep.mubr.bf16.mxu0 %v5795
        %7602 = vmatmul.mubr.bf16.gmra.mrb[0].mxu0 %v5794
        %v7603 = vpop.f32.mrb[0].mxu0
        %v7604 = vadd.f32 %v7491, %v7603
        %v7605 = vpop.f32.mrb[0].mxu0
        %v7606 = vadd.f32 %v7493, %v7605
        %v7607 = vpop.f32.mrb[0].mxu0
        %v7608 = vadd.f32 %v7495, %v7607
        %v7609 = vpop.f32.mrb[0].mxu0
        %v7610 = vadd.f32 %v7497, %v7609
        %7611 = vmatprep.mubr.bf16.mxu0 %v5811
        %7612 = vmatmul.mubr.bf16.gmra.mrb[0].mxu0 %v5810
        %v7613 = vpop.f32.mrb[0].mxu0
        %v7614 = vadd.f32 %v7501, %v7613
        %v7615 = vpop.f32.mrb[0].mxu0
        %v7616 = vadd.f32 %v7503, %v7615
        %v7617 = vpop.f32.mrb[0].mxu0
        %v7618 = vadd.f32 %v7505, %v7617
        %v7619 = vpop.f32.mrb[0].mxu0
        %v7620 = vadd.f32 %v7507, %v7619
        %7621 = vmatprep.mubr.bf16.mxu0 %v5827
        %7622 = vmatmul.mubr.bf16.gmra.mrb[0].mxu0 %v5826
        %v7623 = vpop.f32.mrb[0].mxu0
        %v7624 = vadd.f32 %v7511, %v7623
        %v7625 = vpop.f32.mrb[0].mxu0
        %v7626 = vadd.f32 %v7513, %v7625
        %v7627 = vpop.f32.mrb[0].mxu0
        %v7628 = vadd.f32 %v7515, %v7627
        %v7629 = vpop.f32.mrb[0].mxu0
        %v7630 = vadd.f32 %v7517, %v7629
        %7631 = vmatprep.mubr.bf16.mxu0 %v5843
        %7632 = vmatmul.mubr.bf16.gmra.mrb[0].mxu0 %v5842
        %v7633 = vpop.f32.mrb[0].mxu0
        %v7634 = vadd.f32 %v7521, %v7633
        %v7635 = vpop.f32.mrb[0].mxu0
        %v7636 = vadd.f32 %v7523, %v7635
        %v7637 = vpop.f32.mrb[0].mxu0
        %v7638 = vadd.f32 %v7525, %v7637
        %v7639 = vpop.f32.mrb[0].mxu0
        %v7640 = vadd.f32 %v7527, %v7639
        %7641 = vmatprep.mubr.bf16.mxu0 %v5859
        %7642 = vmatmul.mubr.bf16.gmra.mrb[0].mxu0 %v5858
        %v7643 = vpop.f32.mrb[0].mxu0
        %v7644 = vadd.f32 %v7531, %v7643
        %v7645 = vpop.f32.mrb[0].mxu0
        %v7646 = vadd.f32 %v7533, %v7645
        %v7647 = vpop.f32.mrb[0].mxu0
        %v7648 = vadd.f32 %v7535, %v7647
        %v7649 = vpop.f32.mrb[0].mxu0
        %v7650 = vadd.f32 %v7537, %v7649
        %7651 = vmatprep.mubr.bf16.mxu0 %v5875
        %7652 = vmatmul.mubr.bf16.gmra.mrb[0].mxu0 %v5874
        %v7653 = vpop.f32.mrb[0].mxu0
        %v7654 = vadd.f32 %v7541, %v7653
        %v7655 = vpop.f32.mrb[0].mxu0
        %v7656 = vadd.f32 %v7543, %v7655
        %v7657 = vpop.f32.mrb[0].mxu0
        %v7658 = vadd.f32 %v7545, %v7657
        %v7659 = vpop.f32.mrb[0].mxu0
        %v7660 = vadd.f32 %v7547, %v7659
        %7661 = vdwg.mxu0
        %7662 = vmatprep.subr.bf16.mxu0 %v6989
        %7663 = vmatpush1.bf16.msra.mxu0 %v6988
        %7664 = vmatprep.subr.bf16.mxu0 %v6991
        %7665 = vmatpush1.bf16.msra.mxu0 %v6990
        %7666 = vmatprep.subr.bf16.mxu0 %v6993
        %7667 = vmatpush1.bf16.msra.mxu0 %v6992
        %7668 = vmatprep.subr.bf16.mxu0 %v6995
        %7669 = vmatpush1.bf16.msra.mxu0 %v6994
        %7670 = vmatprep.subr.bf16.mxu0 %v6997
        %7671 = vmatpush1.bf16.msra.mxu0 %v6996
        %7672 = vmatprep.subr.bf16.mxu0 %v6999
        %7673 = vmatpush1.bf16.msra.mxu0 %v6998
        %7674 = vmatprep.subr.bf16.mxu0 %v7001
        %7675 = vmatpush1.bf16.msra.mxu0 %v7000
        %7676 = vmatprep.subr.bf16.mxu0 %v7003
        %7677 = vmatpush1.bf16.msra.mxu0 %v7002
        %7678 = vmatprep.subr.bf16.mxu0 %v7005
        %7679 = vmatpush1.bf16.msra.mxu0 %v7004
        %7680 = vmatprep.subr.bf16.mxu0 %v7007
        %7681 = vmatpush1.bf16.msra.mxu0 %v7006
        %7682 = vmatprep.subr.bf16.mxu0 %v7009
        %7683 = vmatpush1.bf16.msra.mxu0 %v7008
        %7684 = vmatprep.subr.bf16.mxu0 %v7011
        %7685 = vmatpush1.bf16.msra.mxu0 %v7010
        %7686 = vmatprep.subr.bf16.mxu0 %v7013
        %7687 = vmatpush1.bf16.msra.mxu0 %v7012
        %7688 = vmatprep.subr.bf16.mxu0 %v7015
        %7689 = vmatpush1.bf16.msra.mxu0 %v7014
        %7690 = vmatprep.subr.bf16.mxu0 %v7017
        %7691 = vmatpush1.bf16.msra.mxu0 %v7016
        %7692 = vmatprep.subr.bf16.mxu0 %v7019
        %7693 = vmatpush1.bf16.msra.mxu0 %v7018
        %7694 = vmatprep.mubr.bf16.mxu0 %v5765
        %7695 = vmatmul.mubr.bf16.gmra.mrb[0].mxu0 %v5764
        %v7696 = vpop.f32.mrb[0].mxu0
        %v7697 = vadd.f32 %v7584, %v7696
        %v7698 = vpop.f32.mrb[0].mxu0
        %v7699 = vadd.f32 %v7586, %v7698
        %v7700 = vpop.f32.mrb[0].mxu0
        %v7701 = vadd.f32 %v7588, %v7700
        %v7702 = vpop.f32.mrb[0].mxu0
        %v7703 = vadd.f32 %v7590, %v7702
        %7704 = vmatprep.mubr.bf16.mxu0 %v5781
        %7705 = vmatmul.mubr.bf16.gmra.mrb[0].mxu0 %v5780
        %v7706 = vpop.f32.mrb[0].mxu0
        %v7707 = vadd.f32 %v7594, %v7706
        %v7708 = vpop.f32.mrb[0].mxu0
        %v7709 = vadd.f32 %v7596, %v7708
        %v7710 = vpop.f32.mrb[0].mxu0
        %v7711 = vadd.f32 %v7598, %v7710
        %v7712 = vpop.f32.mrb[0].mxu0
        %v7713 = vadd.f32 %v7600, %v7712
        %7714 = vmatprep.mubr.bf16.mxu0 %v5797
        %7715 = vmatmul.mubr.bf16.gmra.mrb[0].mxu0 %v5796
        %v7716 = vpop.f32.mrb[0].mxu0
        %v7717 = vadd.f32 %v7604, %v7716
        %v7718 = vpop.f32.mrb[0].mxu0
        %v7719 = vadd.f32 %v7606, %v7718
        %v7720 = vpop.f32.mrb[0].mxu0
        %v7721 = vadd.f32 %v7608, %v7720
        %v7722 = vpop.f32.mrb[0].mxu0
        %v7723 = vadd.f32 %v7610, %v7722
        %7724 = vmatprep.mubr.bf16.mxu0 %v5813
        %7725 = vmatmul.mubr.bf16.gmra.mrb[0].mxu0 %v5812
        %v7726 = vpop.f32.mrb[0].mxu0
        %v7727 = vadd.f32 %v7614, %v7726
        %v7728 = vpop.f32.mrb[0].mxu0
        %v7729 = vadd.f32 %v7616, %v7728
        %v7730 = vpop.f32.mrb[0].mxu0
        %v7731 = vadd.f32 %v7618, %v7730
        %v7732 = vpop.f32.mrb[0].mxu0
        %v7733 = vadd.f32 %v7620, %v7732
        %7734 = vmatprep.mubr.bf16.mxu0 %v5829
        %7735 = vmatmul.mubr.bf16.gmra.mrb[0].mxu0 %v5828
        %v7736 = vpop.f32.mrb[0].mxu0
        %v7737 = vadd.f32 %v7624, %v7736
        %v7738 = vpop.f32.mrb[0].mxu0
        %v7739 = vadd.f32 %v7626, %v7738
        %v7740 = vpop.f32.mrb[0].mxu0
        %v7741 = vadd.f32 %v7628, %v7740
        %v7742 = vpop.f32.mrb[0].mxu0
        %v7743 = vadd.f32 %v7630, %v7742
        %7744 = vmatprep.mubr.bf16.mxu0 %v5845
        %7745 = vmatmul.mubr.bf16.gmra.mrb[0].mxu0 %v5844
        %v7746 = vpop.f32.mrb[0].mxu0
        %v7747 = vadd.f32 %v7634, %v7746
        %v7748 = vpop.f32.mrb[0].mxu0
        %v7749 = vadd.f32 %v7636, %v7748
        %v7750 = vpop.f32.mrb[0].mxu0
        %v7751 = vadd.f32 %v7638, %v7750
        %v7752 = vpop.f32.mrb[0].mxu0
        %v7753 = vadd.f32 %v7640, %v7752
        %7754 = vmatprep.mubr.bf16.mxu0 %v5861
        %7755 = vmatmul.mubr.bf16.gmra.mrb[0].mxu0 %v5860
        %v7756 = vpop.f32.mrb[0].mxu0
        %v7757 = vadd.f32 %v7644, %v7756
        %v7758 = vpop.f32.mrb[0].mxu0
        %v7759 = vadd.f32 %v7646, %v7758
        %v7760 = vpop.f32.mrb[0].mxu0
        %v7761 = vadd.f32 %v7648, %v7760
        %v7762 = vpop.f32.mrb[0].mxu0
        %v7763 = vadd.f32 %v7650, %v7762
        %7764 = vmatprep.mubr.bf16.mxu0 %v5877
        %7765 = vmatmul.mubr.bf16.gmra.mrb[0].mxu0 %v5876
        %v7766 = vpop.f32.mrb[0].mxu0
        %v7767 = vadd.f32 %v7654, %v7766
        %v7768 = vpop.f32.mrb[0].mxu0
        %v7769 = vadd.f32 %v7656, %v7768
        %v7770 = vpop.f32.mrb[0].mxu0
        %v7771 = vadd.f32 %v7658, %v7770
        %v7772 = vpop.f32.mrb[0].mxu0
        %v7773 = vadd.f32 %v7660, %v7772
        %7774 = vdwg.mxu0
        %7775 = vmatprep.subr.bf16.mxu0 %v7021
        %7776 = vmatpush1.bf16.msra.mxu0 %v7020
        %7777 = vmatprep.subr.bf16.mxu0 %v7023
        %7778 = vmatpush1.bf16.msra.mxu0 %v7022
        %7779 = vmatprep.subr.bf16.mxu0 %v7025
        %7780 = vmatpush1.bf16.msra.mxu0 %v7024
        %7781 = vmatprep.subr.bf16.mxu0 %v7027
        %7782 = vmatpush1.bf16.msra.mxu0 %v7026
        %7783 = vmatprep.subr.bf16.mxu0 %v7029
        %7784 = vmatpush1.bf16.msra.mxu0 %v7028
        %7785 = vmatprep.subr.bf16.mxu0 %v7031
        %7786 = vmatpush1.bf16.msra.mxu0 %v7030
        %7787 = vmatprep.subr.bf16.mxu0 %v7033
        %7788 = vmatpush1.bf16.msra.mxu0 %v7032
        %7789 = vmatprep.subr.bf16.mxu0 %v7035
        %7790 = vmatpush1.bf16.msra.mxu0 %v7034
        %7791 = vmatprep.subr.bf16.mxu0 %v7037
        %7792 = vmatpush1.bf16.msra.mxu0 %v7036
        %7793 = vmatprep.subr.bf16.mxu0 %v7039
        %7794 = vmatpush1.bf16.msra.mxu0 %v7038
        %7795 = vmatprep.subr.bf16.mxu0 %v7041
        %7796 = vmatpush1.bf16.msra.mxu0 %v7040
        %7797 = vmatprep.subr.bf16.mxu0 %v7043
        %7798 = vmatpush1.bf16.msra.mxu0 %v7042
        %7799 = vmatprep.subr.bf16.mxu0 %v7045
        %7800 = vmatpush1.bf16.msra.mxu0 %v7044
        %7801 = vmatprep.subr.bf16.mxu0 %v7047
        %7802 = vmatpush1.bf16.msra.mxu0 %v7046
        %7803 = vmatprep.subr.bf16.mxu0 %v7049
        %7804 = vmatpush1.bf16.msra.mxu0 %v7048
        %7805 = vmatprep.subr.bf16.mxu0 %v7051
        %7806 = vmatpush1.bf16.msra.mxu0 %v7050
        %7807 = vmatprep.mubr.bf16.mxu0 %v5767
        %7808 = vmatmul.mubr.bf16.gmra.mrb[0].mxu0 %v5766
        %v7809 = vpop.f32.mrb[0].mxu0
        %v7810 = vadd.f32 %v7697, %v7809
        %v7811 = vpop.f32.mrb[0].mxu0
        %v7812 = vadd.f32 %v7699, %v7811
        %v7813 = vpop.f32.mrb[0].mxu0
        %v7814 = vadd.f32 %v7701, %v7813
        %v7815 = vpop.f32.mrb[0].mxu0
        %v7816 = vadd.f32 %v7703, %v7815
        %7817 = vmatprep.mubr.bf16.mxu0 %v5783
        %7818 = vmatmul.mubr.bf16.gmra.mrb[0].mxu0 %v5782
        %v7819 = vpop.f32.mrb[0].mxu0
        %v7820 = vadd.f32 %v7707, %v7819
        %v7821 = vpop.f32.mrb[0].mxu0
        %v7822 = vadd.f32 %v7709, %v7821
        %v7823 = vpop.f32.mrb[0].mxu0
        %v7824 = vadd.f32 %v7711, %v7823
        %v7825 = vpop.f32.mrb[0].mxu0
        %v7826 = vadd.f32 %v7713, %v7825
        %7827 = vmatprep.mubr.bf16.mxu0 %v5799
        %7828 = vmatmul.mubr.bf16.gmra.mrb[0].mxu0 %v5798
        %v7829 = vpop.f32.mrb[0].mxu0
        %v7830 = vadd.f32 %v7717, %v7829
        %v7831 = vpop.f32.mrb[0].mxu0
        %v7832 = vadd.f32 %v7719, %v7831
        %v7833 = vpop.f32.mrb[0].mxu0
        %v7834 = vadd.f32 %v7721, %v7833
        %v7835 = vpop.f32.mrb[0].mxu0
        %v7836 = vadd.f32 %v7723, %v7835
        %7837 = vmatprep.mubr.bf16.mxu0 %v5815
        %7838 = vmatmul.mubr.bf16.gmra.mrb[0].mxu0 %v5814
        %v7839 = vpop.f32.mrb[0].mxu0
        %v7840 = vadd.f32 %v7727, %v7839
        %v7841 = vpop.f32.mrb[0].mxu0
        %v7842 = vadd.f32 %v7729, %v7841
        %v7843 = vpop.f32.mrb[0].mxu0
        %v7844 = vadd.f32 %v7731, %v7843
        %v7845 = vpop.f32.mrb[0].mxu0
        %v7846 = vadd.f32 %v7733, %v7845
        %7847 = vmatprep.mubr.bf16.mxu0 %v5831
        %7848 = vmatmul.mubr.bf16.gmra.mrb[0].mxu0 %v5830
        %v7849 = vpop.f32.mrb[0].mxu0
        %v7850 = vadd.f32 %v7737, %v7849
        %v7851 = vpop.f32.mrb[0].mxu0
        %v7852 = vadd.f32 %v7739, %v7851
        %v7853 = vpop.f32.mrb[0].mxu0
        %v7854 = vadd.f32 %v7741, %v7853
        %v7855 = vpop.f32.mrb[0].mxu0
        %v7856 = vadd.f32 %v7743, %v7855
        %7857 = vmatprep.mubr.bf16.mxu0 %v5847
        %7858 = vmatmul.mubr.bf16.gmra.mrb[0].mxu0 %v5846
        %v7859 = vpop.f32.mrb[0].mxu0
        %v7860 = vadd.f32 %v7747, %v7859
        %v7861 = vpop.f32.mrb[0].mxu0
        %v7862 = vadd.f32 %v7749, %v7861
        %v7863 = vpop.f32.mrb[0].mxu0
        %v7864 = vadd.f32 %v7751, %v7863
        %v7865 = vpop.f32.mrb[0].mxu0
        %v7866 = vadd.f32 %v7753, %v7865
        %7867 = vmatprep.mubr.bf16.mxu0 %v5863
        %7868 = vmatmul.mubr.bf16.gmra.mrb[0].mxu0 %v5862
        %v7869 = vpop.f32.mrb[0].mxu0
        %v7870 = vadd.f32 %v7757, %v7869
        %v7871 = vpop.f32.mrb[0].mxu0
        %v7872 = vadd.f32 %v7759, %v7871
        %v7873 = vpop.f32.mrb[0].mxu0
        %v7874 = vadd.f32 %v7761, %v7873
        %v7875 = vpop.f32.mrb[0].mxu0
        %v7876 = vadd.f32 %v7763, %v7875
        %7877 = vmatprep.mubr.bf16.mxu0 %v5879
        %7878 = vmatmul.mubr.bf16.gmra.mrb[0].mxu0 %v5878
        %v7879 = vpop.f32.mrb[0].mxu0
        %v7880 = vadd.f32 %v7767, %v7879
        %v7881 = vpop.f32.mrb[0].mxu0
        %v7882 = vadd.f32 %v7769, %v7881
        %v7883 = vpop.f32.mrb[0].mxu0
        %v7884 = vadd.f32 %v7771, %v7883
        %v7885 = vpop.f32.mrb[0].mxu0
        %v7886 = vadd.f32 %v7773, %v7885
        %7887 = vdwg.mxu0
        %7888 = vmatprep.subr.bf16.mxu0 %v7053
        %7889 = vmatpush1.bf16.msra.mxu0 %v7052
        %7890 = vmatprep.subr.bf16.mxu0 %v7055
        %7891 = vmatpush1.bf16.msra.mxu0 %v7054
        %7892 = vmatprep.subr.bf16.mxu0 %v7057
        %7893 = vmatpush1.bf16.msra.mxu0 %v7056
        %7894 = vmatprep.subr.bf16.mxu0 %v7059
        %7895 = vmatpush1.bf16.msra.mxu0 %v7058
        %7896 = vmatprep.subr.bf16.mxu0 %v7061
        %7897 = vmatpush1.bf16.msra.mxu0 %v7060
        %7898 = vmatprep.subr.bf16.mxu0 %v7063
        %7899 = vmatpush1.bf16.msra.mxu0 %v7062
        %7900 = vmatprep.subr.bf16.mxu0 %v7065
        %7901 = vmatpush1.bf16.msra.mxu0 %v7064
        %7902 = vmatprep.subr.bf16.mxu0 %v7067
        %7903 = vmatpush1.bf16.msra.mxu0 %v7066
        %7904 = vmatprep.subr.bf16.mxu0 %v7069
        %7905 = vmatpush1.bf16.msra.mxu0 %v7068
        %7906 = vmatprep.subr.bf16.mxu0 %v7071
        %7907 = vmatpush1.bf16.msra.mxu0 %v7070
        %7908 = vmatprep.subr.bf16.mxu0 %v7073
        %7909 = vmatpush1.bf16.msra.mxu0 %v7072
        %7910 = vmatprep.subr.bf16.mxu0 %v7075
        %7911 = vmatpush1.bf16.msra.mxu0 %v7074
        %7912 = vmatprep.subr.bf16.mxu0 %v7077
        %7913 = vmatpush1.bf16.msra.mxu0 %v7076
        %7914 = vmatprep.subr.bf16.mxu0 %v7079
        %7915 = vmatpush1.bf16.msra.mxu0 %v7078
        %7916 = vmatprep.subr.bf16.mxu0 %v7081
        %7917 = vmatpush1.bf16.msra.mxu0 %v7080
        %7918 = vmatprep.subr.bf16.mxu0 %v7083
        %7919 = vmatpush1.bf16.msra.mxu0 %v7082
        %7920 = vmatprep.mubr.bf16.mxu0 %v5769
        %7921 = vmatmul.mubr.bf16.gmra.mrb[0].mxu0 %v5768
        %v7922 = vpop.f32.mrb[0].mxu0
        %v7923 = vadd.f32 %v7810, %v7922
        %v7924 = vpop.f32.mrb[0].mxu0
        %v7925 = vadd.f32 %v7812, %v7924
        %v7926 = vpop.f32.mrb[0].mxu0
        %v7927 = vadd.f32 %v7814, %v7926
        %v7928 = vpop.f32.mrb[0].mxu0
        %v7929 = vadd.f32 %v7816, %v7928
        %7930 = vmatprep.mubr.bf16.mxu0 %v5785
        %7931 = vmatmul.mubr.bf16.gmra.mrb[0].mxu0 %v5784
        %v7932 = vpop.f32.mrb[0].mxu0
        %v7933 = vadd.f32 %v7820, %v7932
        %v7934 = vpop.f32.mrb[0].mxu0
        %v7935 = vadd.f32 %v7822, %v7934
        %v7936 = vpop.f32.mrb[0].mxu0
        %v7937 = vadd.f32 %v7824, %v7936
        %v7938 = vpop.f32.mrb[0].mxu0
        %v7939 = vadd.f32 %v7826, %v7938
        %7940 = vmatprep.mubr.bf16.mxu0 %v5801
        %7941 = vmatmul.mubr.bf16.gmra.mrb[0].mxu0 %v5800
        %v7942 = vpop.f32.mrb[0].mxu0
        %v7943 = vadd.f32 %v7830, %v7942
        %v7944 = vpop.f32.mrb[0].mxu0
        %v7945 = vadd.f32 %v7832, %v7944
        %v7946 = vpop.f32.mrb[0].mxu0
        %v7947 = vadd.f32 %v7834, %v7946
        %v7948 = vpop.f32.mrb[0].mxu0
        %v7949 = vadd.f32 %v7836, %v7948
        %7950 = vmatprep.mubr.bf16.mxu0 %v5817
        %7951 = vmatmul.mubr.bf16.gmra.mrb[0].mxu0 %v5816
        %v7952 = vpop.f32.mrb[0].mxu0
        %v7953 = vadd.f32 %v7840, %v7952
        %v7954 = vpop.f32.mrb[0].mxu0
        %v7955 = vadd.f32 %v7842, %v7954
        %v7956 = vpop.f32.mrb[0].mxu0
        %v7957 = vadd.f32 %v7844, %v7956
        %v7958 = vpop.f32.mrb[0].mxu0
        %v7959 = vadd.f32 %v7846, %v7958
        %7960 = vmatprep.mubr.bf16.mxu0 %v5833
        %7961 = vmatmul.mubr.bf16.gmra.mrb[0].mxu0 %v5832
        %v7962 = vpop.f32.mrb[0].mxu0
        %v7963 = vadd.f32 %v7850, %v7962
        %v7964 = vpop.f32.mrb[0].mxu0
        %v7965 = vadd.f32 %v7852, %v7964
        %v7966 = vpop.f32.mrb[0].mxu0
        %v7967 = vadd.f32 %v7854, %v7966
        %v7968 = vpop.f32.mrb[0].mxu0
        %v7969 = vadd.f32 %v7856, %v7968
        %7970 = vmatprep.mubr.bf16.mxu0 %v5849
        %7971 = vmatmul.mubr.bf16.gmra.mrb[0].mxu0 %v5848
        %v7972 = vpop.f32.mrb[0].mxu0
        %v7973 = vadd.f32 %v7860, %v7972
        %v7974 = vpop.f32.mrb[0].mxu0
        %v7975 = vadd.f32 %v7862, %v7974
        %v7976 = vpop.f32.mrb[0].mxu0
        %v7977 = vadd.f32 %v7864, %v7976
        %v7978 = vpop.f32.mrb[0].mxu0
        %v7979 = vadd.f32 %v7866, %v7978
        %7980 = vmatprep.mubr.bf16.mxu0 %v5865
        %7981 = vmatmul.mubr.bf16.gmra.mrb[0].mxu0 %v5864
        %v7982 = vpop.f32.mrb[0].mxu0
        %v7983 = vadd.f32 %v7870, %v7982
        %v7984 = vpop.f32.mrb[0].mxu0
        %v7985 = vadd.f32 %v7872, %v7984
        %v7986 = vpop.f32.mrb[0].mxu0
        %v7987 = vadd.f32 %v7874, %v7986
        %v7988 = vpop.f32.mrb[0].mxu0
        %v7989 = vadd.f32 %v7876, %v7988
        %7990 = vmatprep.mubr.bf16.mxu0 %v5881
        %7991 = vmatmul.mubr.bf16.gmra.mrb[0].mxu0 %v5880
        %v7992 = vpop.f32.mrb[0].mxu0
        %v7993 = vadd.f32 %v7880, %v7992
        %v7994 = vpop.f32.mrb[0].mxu0
        %v7995 = vadd.f32 %v7882, %v7994
        %v7996 = vpop.f32.mrb[0].mxu0
        %v7997 = vadd.f32 %v7884, %v7996
        %v7998 = vpop.f32.mrb[0].mxu0
        %v7999 = vadd.f32 %v7886, %v7998
        %8000 = vdwg.mxu0
        %8001 = vmatprep.subr.bf16.mxu0 %v7085
        %8002 = vmatpush1.bf16.msra.mxu0 %v7084
        %8003 = vmatprep.subr.bf16.mxu0 %v7087
        %8004 = vmatpush1.bf16.msra.mxu0 %v7086
        %8005 = vmatprep.subr.bf16.mxu0 %v7089
        %8006 = vmatpush1.bf16.msra.mxu0 %v7088
        %8007 = vmatprep.subr.bf16.mxu0 %v7091
        %8008 = vmatpush1.bf16.msra.mxu0 %v7090
        %8009 = vmatprep.subr.bf16.mxu0 %v7093
        %8010 = vmatpush1.bf16.msra.mxu0 %v7092
        %8011 = vmatprep.subr.bf16.mxu0 %v7095
        %8012 = vmatpush1.bf16.msra.mxu0 %v7094
        %8013 = vmatprep.subr.bf16.mxu0 %v7097
        %8014 = vmatpush1.bf16.msra.mxu0 %v7096
        %8015 = vmatprep.subr.bf16.mxu0 %v7099
        %8016 = vmatpush1.bf16.msra.mxu0 %v7098
        %8017 = vmatprep.subr.bf16.mxu0 %v7101
        %8018 = vmatpush1.bf16.msra.mxu0 %v7100
        %8019 = vmatprep.subr.bf16.mxu0 %v7103
        %8020 = vmatpush1.bf16.msra.mxu0 %v7102
        %8021 = vmatprep.subr.bf16.mxu0 %v7105
        %8022 = vmatpush1.bf16.msra.mxu0 %v7104
        %8023 = vmatprep.subr.bf16.mxu0 %v7107
        %8024 = vmatpush1.bf16.msra.mxu0 %v7106
        %8025 = vmatprep.subr.bf16.mxu0 %v7109
        %8026 = vmatpush1.bf16.msra.mxu0 %v7108
        %8027 = vmatprep.subr.bf16.mxu0 %v7111
        %8028 = vmatpush1.bf16.msra.mxu0 %v7110
        %8029 = vmatprep.subr.bf16.mxu0 %v7113
        %8030 = vmatpush1.bf16.msra.mxu0 %v7112
        %8031 = vmatprep.subr.bf16.mxu0 %v7115
        %8032 = vmatpush1.bf16.msra.mxu0 %v7114
        %8033 = vmatprep.mubr.bf16.mxu0 %v5771
        %8034 = vmatmul.mubr.bf16.gmra.mrb[0].mxu0 %v5770
        %v8035 = vpop.f32.mrb[0].mxu0
        %v8036 = vadd.f32 %v7923, %v8035
        %v8037 = vpop.f32.mrb[0].mxu0
        %v8038 = vadd.f32 %v7925, %v8037
        %v8039 = vpop.f32.mrb[0].mxu0
        %v8040 = vadd.f32 %v7927, %v8039
        %v8041 = vpop.f32.mrb[0].mxu0
        %v8042 = vadd.f32 %v7929, %v8041
        %8043 = vmatprep.mubr.bf16.mxu0 %v5787
        %8044 = vmatmul.mubr.bf16.gmra.mrb[0].mxu0 %v5786
        %v8045 = vpop.f32.mrb[0].mxu0
        %v8046 = vadd.f32 %v7933, %v8045
        %v8047 = vpop.f32.mrb[0].mxu0
        %v8048 = vadd.f32 %v7935, %v8047
        %v8049 = vpop.f32.mrb[0].mxu0
        %v8050 = vadd.f32 %v7937, %v8049
        %v8051 = vpop.f32.mrb[0].mxu0
        %v8052 = vadd.f32 %v7939, %v8051
        %8053 = vmatprep.mubr.bf16.mxu0 %v5803
        %8054 = vmatmul.mubr.bf16.gmra.mrb[0].mxu0 %v5802
        %v8055 = vpop.f32.mrb[0].mxu0
        %v8056 = vadd.f32 %v7943, %v8055
        %v8057 = vpop.f32.mrb[0].mxu0
        %v8058 = vadd.f32 %v7945, %v8057
        %v8059 = vpop.f32.mrb[0].mxu0
        %v8060 = vadd.f32 %v7947, %v8059
        %v8061 = vpop.f32.mrb[0].mxu0
        %v8062 = vadd.f32 %v7949, %v8061
        %8063 = vmatprep.mubr.bf16.mxu0 %v5819
        %8064 = vmatmul.mubr.bf16.gmra.mrb[0].mxu0 %v5818
        %v8065 = vpop.f32.mrb[0].mxu0
        %v8066 = vadd.f32 %v7953, %v8065
        %v8067 = vpop.f32.mrb[0].mxu0
        %v8068 = vadd.f32 %v7955, %v8067
        %v8069 = vpop.f32.mrb[0].mxu0
        %v8070 = vadd.f32 %v7957, %v8069
        %v8071 = vpop.f32.mrb[0].mxu0
        %v8072 = vadd.f32 %v7959, %v8071
        %8073 = vmatprep.mubr.bf16.mxu0 %v5835
        %8074 = vmatmul.mubr.bf16.gmra.mrb[0].mxu0 %v5834
        %v8075 = vpop.f32.mrb[0].mxu0
        %v8076 = vadd.f32 %v7963, %v8075
        %v8077 = vpop.f32.mrb[0].mxu0
        %v8078 = vadd.f32 %v7965, %v8077
        %v8079 = vpop.f32.mrb[0].mxu0
        %v8080 = vadd.f32 %v7967, %v8079
        %v8081 = vpop.f32.mrb[0].mxu0
        %v8082 = vadd.f32 %v7969, %v8081
        %8083 = vmatprep.mubr.bf16.mxu0 %v5851
        %8084 = vmatmul.mubr.bf16.gmra.mrb[0].mxu0 %v5850
        %v8085 = vpop.f32.mrb[0].mxu0
        %v8086 = vadd.f32 %v7973, %v8085
        %v8087 = vpop.f32.mrb[0].mxu0
        %v8088 = vadd.f32 %v7975, %v8087
        %v8089 = vpop.f32.mrb[0].mxu0
        %v8090 = vadd.f32 %v7977, %v8089
        %v8091 = vpop.f32.mrb[0].mxu0
        %v8092 = vadd.f32 %v7979, %v8091
        %8093 = vmatprep.mubr.bf16.mxu0 %v5867
        %8094 = vmatmul.mubr.bf16.gmra.mrb[0].mxu0 %v5866
        %v8095 = vpop.f32.mrb[0].mxu0
        %v8096 = vadd.f32 %v7983, %v8095
        %v8097 = vpop.f32.mrb[0].mxu0
        %v8098 = vadd.f32 %v7985, %v8097
        %v8099 = vpop.f32.mrb[0].mxu0
        %v8100 = vadd.f32 %v7987, %v8099
        %v8101 = vpop.f32.mrb[0].mxu0
        %v8102 = vadd.f32 %v7989, %v8101
        %8103 = vmatprep.mubr.bf16.mxu0 %v5883
        %8104 = vmatmul.mubr.bf16.gmra.mrb[0].mxu0 %v5882
        %v8105 = vpop.f32.mrb[0].mxu0
        %v8106 = vadd.f32 %v7993, %v8105
        %v8107 = vpop.f32.mrb[0].mxu0
        %v8108 = vadd.f32 %v7995, %v8107
        %v8109 = vpop.f32.mrb[0].mxu0
        %v8110 = vadd.f32 %v7997, %v8109
        %v8111 = vpop.f32.mrb[0].mxu0
        %v8112 = vadd.f32 %v7999, %v8111
        %8113 = vdwg.mxu0
        %8114 = vmatprep.subr.bf16.mxu0 %v7117
        %8115 = vmatpush1.bf16.msra.mxu0 %v7116
        %8116 = vmatprep.subr.bf16.mxu0 %v7119
        %8117 = vmatpush1.bf16.msra.mxu0 %v7118
        %8118 = vmatprep.subr.bf16.mxu0 %v7121
        %8119 = vmatpush1.bf16.msra.mxu0 %v7120
        %8120 = vmatprep.subr.bf16.mxu0 %v7123
        %8121 = vmatpush1.bf16.msra.mxu0 %v7122
        %8122 = vmatprep.subr.bf16.mxu0 %v7125
        %8123 = vmatpush1.bf16.msra.mxu0 %v7124
        %8124 = vmatprep.subr.bf16.mxu0 %v7127
        %8125 = vmatpush1.bf16.msra.mxu0 %v7126
        %8126 = vmatprep.subr.bf16.mxu0 %v7129
        %8127 = vmatpush1.bf16.msra.mxu0 %v7128
        %8128 = vmatprep.subr.bf16.mxu0 %v7131
        %8129 = vmatpush1.bf16.msra.mxu0 %v7130
        %8130 = vmatprep.subr.bf16.mxu0 %v7133
        %8131 = vmatpush1.bf16.msra.mxu0 %v7132
        %8132 = vmatprep.subr.bf16.mxu0 %v7135
        %8133 = vmatpush1.bf16.msra.mxu0 %v7134
        %8134 = vmatprep.subr.bf16.mxu0 %v7137
        %8135 = vmatpush1.bf16.msra.mxu0 %v7136
        %8136 = vmatprep.subr.bf16.mxu0 %v7139
        %8137 = vmatpush1.bf16.msra.mxu0 %v7138
        %8138 = vmatprep.subr.bf16.mxu0 %v7141
        %8139 = vmatpush1.bf16.msra.mxu0 %v7140
        %8140 = vmatprep.subr.bf16.mxu0 %v7143
        %8141 = vmatpush1.bf16.msra.mxu0 %v7142
        %8142 = vmatprep.subr.bf16.mxu0 %v7145
        %8143 = vmatpush1.bf16.msra.mxu0 %v7144
        %8144 = vmatprep.subr.bf16.mxu0 %v7147
        %8145 = vmatpush1.bf16.msra.mxu0 %v7146
        %8146 = vmatprep.mubr.bf16.mxu0 %v5773
        %8147 = vmatmul.mubr.bf16.gmra.mrb[0].mxu0 %v5772
        %v8148 = vpop.f32.mrb[0].mxu0
        %v8149 = vadd.f32 %v8036, %v8148
        %v8150 = vpop.f32.mrb[0].mxu0
        %v8151 = vadd.f32 %v8038, %v8150
        %v8152 = vpop.f32.mrb[0].mxu0
        %v8153 = vadd.f32 %v8040, %v8152
        %v8154 = vpop.f32.mrb[0].mxu0
        %v8155 = vadd.f32 %v8042, %v8154
        %8156 = vmatprep.mubr.bf16.mxu0 %v5789
        %8157 = vmatmul.mubr.bf16.gmra.mrb[0].mxu0 %v5788
        %v8158 = vpop.f32.mrb[0].mxu0
        %v8159 = vadd.f32 %v8046, %v8158
        %v8160 = vpop.f32.mrb[0].mxu0
        %v8161 = vadd.f32 %v8048, %v8160
        %v8162 = vpop.f32.mrb[0].mxu0
        %v8163 = vadd.f32 %v8050, %v8162
        %v8164 = vpop.f32.mrb[0].mxu0
        %v8165 = vadd.f32 %v8052, %v8164
        %8166 = vmatprep.mubr.bf16.mxu0 %v5805
        %8167 = vmatmul.mubr.bf16.gmra.mrb[0].mxu0 %v5804
        %v8168 = vpop.f32.mrb[0].mxu0
        %v8169 = vadd.f32 %v8056, %v8168
        %v8170 = vpop.f32.mrb[0].mxu0
        %v8171 = vadd.f32 %v8058, %v8170
        %v8172 = vpop.f32.mrb[0].mxu0
        %v8173 = vadd.f32 %v8060, %v8172
        %v8174 = vpop.f32.mrb[0].mxu0
        %v8175 = vadd.f32 %v8062, %v8174
        %8176 = vmatprep.mubr.bf16.mxu0 %v5821
        %8177 = vmatmul.mubr.bf16.gmra.mrb[0].mxu0 %v5820
        %v8178 = vpop.f32.mrb[0].mxu0
        %v8179 = vadd.f32 %v8066, %v8178
        %v8180 = vpop.f32.mrb[0].mxu0
        %v8181 = vadd.f32 %v8068, %v8180
        %v8182 = vpop.f32.mrb[0].mxu0
        %v8183 = vadd.f32 %v8070, %v8182
        %v8184 = vpop.f32.mrb[0].mxu0
        %v8185 = vadd.f32 %v8072, %v8184
        %8186 = vmatprep.mubr.bf16.mxu0 %v5837
        %8187 = vmatmul.mubr.bf16.gmra.mrb[0].mxu0 %v5836
        %v8188 = vpop.f32.mrb[0].mxu0
        %v8189 = vadd.f32 %v8076, %v8188
        %v8190 = vpop.f32.mrb[0].mxu0
        %v8191 = vadd.f32 %v8078, %v8190
        %v8192 = vpop.f32.mrb[0].mxu0
        %v8193 = vadd.f32 %v8080, %v8192
        %v8194 = vpop.f32.mrb[0].mxu0
        %v8195 = vadd.f32 %v8082, %v8194
        %8196 = vmatprep.mubr.bf16.mxu0 %v5853
        %8197 = vmatmul.mubr.bf16.gmra.mrb[0].mxu0 %v5852
        %v8198 = vpop.f32.mrb[0].mxu0
        %v8199 = vadd.f32 %v8086, %v8198
        %v8200 = vpop.f32.mrb[0].mxu0
        %v8201 = vadd.f32 %v8088, %v8200
        %v8202 = vpop.f32.mrb[0].mxu0
        %v8203 = vadd.f32 %v8090, %v8202
        %v8204 = vpop.f32.mrb[0].mxu0
        %v8205 = vadd.f32 %v8092, %v8204
        %8206 = vmatprep.mubr.bf16.mxu0 %v5869
        %8207 = vmatmul.mubr.bf16.gmra.mrb[0].mxu0 %v5868
        %v8208 = vpop.f32.mrb[0].mxu0
        %v8209 = vadd.f32 %v8096, %v8208
        %v8210 = vpop.f32.mrb[0].mxu0
        %v8211 = vadd.f32 %v8098, %v8210
        %v8212 = vpop.f32.mrb[0].mxu0
        %v8213 = vadd.f32 %v8100, %v8212
        %v8214 = vpop.f32.mrb[0].mxu0
        %v8215 = vadd.f32 %v8102, %v8214
        %8216 = vmatprep.mubr.bf16.mxu0 %v5885
        %8217 = vmatmul.mubr.bf16.gmra.mrb[0].mxu0 %v5884
        %v8218 = vpop.f32.mrb[0].mxu0
        %v8219 = vadd.f32 %v8106, %v8218
        %v8220 = vpop.f32.mrb[0].mxu0
        %v8221 = vadd.f32 %v8108, %v8220
        %v8222 = vpop.f32.mrb[0].mxu0
        %v8223 = vadd.f32 %v8110, %v8222
        %v8224 = vpop.f32.mrb[0].mxu0
        %v8225 = vadd.f32 %v8112, %v8224
        %8226 = vdwg.mxu0
        %8227 = vmatprep.subr.bf16.mxu0 %v7149
        %8228 = vmatpush1.bf16.msra.mxu0 %v7148
        %8229 = vmatprep.subr.bf16.mxu0 %v7151
        %8230 = vmatpush1.bf16.msra.mxu0 %v7150
        %8231 = vmatprep.subr.bf16.mxu0 %v7153
        %8232 = vmatpush1.bf16.msra.mxu0 %v7152
        %8233 = vmatprep.subr.bf16.mxu0 %v7155
        %8234 = vmatpush1.bf16.msra.mxu0 %v7154
        %8235 = vmatprep.subr.bf16.mxu0 %v7157
        %8236 = vmatpush1.bf16.msra.mxu0 %v7156
        %8237 = vmatprep.subr.bf16.mxu0 %v7159
        %8238 = vmatpush1.bf16.msra.mxu0 %v7158
        %8239 = vmatprep.subr.bf16.mxu0 %v7161
        %8240 = vmatpush1.bf16.msra.mxu0 %v7160
        %8241 = vmatprep.subr.bf16.mxu0 %v7163
        %8242 = vmatpush1.bf16.msra.mxu0 %v7162
        %8243 = vmatprep.subr.bf16.mxu0 %v7165
        %8244 = vmatpush1.bf16.msra.mxu0 %v7164
        %8245 = vmatprep.subr.bf16.mxu0 %v7167
        %8246 = vmatpush1.bf16.msra.mxu0 %v7166
        %8247 = vmatprep.subr.bf16.mxu0 %v7169
        %8248 = vmatpush1.bf16.msra.mxu0 %v7168
        %8249 = vmatprep.subr.bf16.mxu0 %v7171
        %8250 = vmatpush1.bf16.msra.mxu0 %v7170
        %8251 = vmatprep.subr.bf16.mxu0 %v7173
        %8252 = vmatpush1.bf16.msra.mxu0 %v7172
        %8253 = vmatprep.subr.bf16.mxu0 %v7175
        %8254 = vmatpush1.bf16.msra.mxu0 %v7174
        %8255 = vmatprep.subr.bf16.mxu0 %v7177
        %8256 = vmatpush1.bf16.msra.mxu0 %v7176
        %8257 = vmatprep.subr.bf16.mxu0 %v7179
        %8258 = vmatpush1.bf16.msra.mxu0 %v7178
        %8259 = vmatprep.mubr.bf16.mxu0 %v5775
        %8260 = vmatmul.mubr.bf16.gmra.mrb[0].mxu0 %v5774
        %v8261 = vpop.f32.mrb[0].mxu0
        %v8262 = vadd.f32 %v8149, %v8261
        %v8263 = vpop.f32.mrb[0].mxu0
        %v8264 = vadd.f32 %v8151, %v8263
        %v8265 = vpop.f32.mrb[0].mxu0
        %v8266 = vadd.f32 %v8153, %v8265
        %v8267 = vpop.f32.mrb[0].mxu0
        %v8268 = vadd.f32 %v8155, %v8267
        %8269 = vmatprep.mubr.bf16.mxu0 %v5791
        %8270 = vmatmul.mubr.bf16.gmra.mrb[0].mxu0 %v5790
        %v8271 = vpop.f32.mrb[0].mxu0
        %v8272 = vadd.f32 %v8159, %v8271
        %v8273 = vpop.f32.mrb[0].mxu0
        %v8274 = vadd.f32 %v8161, %v8273
        %v8275 = vpop.f32.mrb[0].mxu0
        %v8276 = vadd.f32 %v8163, %v8275
        %v8277 = vpop.f32.mrb[0].mxu0
        %v8278 = vadd.f32 %v8165, %v8277
        %8279 = vmatprep.mubr.bf16.mxu0 %v5807
        %8280 = vmatmul.mubr.bf16.gmra.mrb[0].mxu0 %v5806
        %v8281 = vpop.f32.mrb[0].mxu0
        %v8282 = vadd.f32 %v8169, %v8281
        %v8283 = vpop.f32.mrb[0].mxu0
        %v8284 = vadd.f32 %v8171, %v8283
        %v8285 = vpop.f32.mrb[0].mxu0
        %v8286 = vadd.f32 %v8173, %v8285
        %v8287 = vpop.f32.mrb[0].mxu0
        %v8288 = vadd.f32 %v8175, %v8287
        %8289 = vmatprep.mubr.bf16.mxu0 %v5823
        %8290 = vmatmul.mubr.bf16.gmra.mrb[0].mxu0 %v5822
        %v8291 = vpop.f32.mrb[0].mxu0
        %v8292 = vadd.f32 %v8179, %v8291
        %v8293 = vpop.f32.mrb[0].mxu0
        %v8294 = vadd.f32 %v8181, %v8293
        %v8295 = vpop.f32.mrb[0].mxu0
        %v8296 = vadd.f32 %v8183, %v8295
        %v8297 = vpop.f32.mrb[0].mxu0
        %v8298 = vadd.f32 %v8185, %v8297
        %8299 = vmatprep.mubr.bf16.mxu0 %v5839
        %8300 = vmatmul.mubr.bf16.gmra.mrb[0].mxu0 %v5838
        %v8301 = vpop.f32.mrb[0].mxu0
        %v8302 = vadd.f32 %v8189, %v8301
        %v8303 = vpop.f32.mrb[0].mxu0
        %v8304 = vadd.f32 %v8191, %v8303
        %v8305 = vpop.f32.mrb[0].mxu0
        %v8306 = vadd.f32 %v8193, %v8305
        %v8307 = vpop.f32.mrb[0].mxu0
        %v8308 = vadd.f32 %v8195, %v8307
        %8309 = vmatprep.mubr.bf16.mxu0 %v5855
        %8310 = vmatmul.mubr.bf16.gmra.mrb[0].mxu0 %v5854
        %v8311 = vpop.f32.mrb[0].mxu0
        %v8312 = vadd.f32 %v8199, %v8311
        %v8313 = vpop.f32.mrb[0].mxu0
        %v8314 = vadd.f32 %v8201, %v8313
        %v8315 = vpop.f32.mrb[0].mxu0
        %v8316 = vadd.f32 %v8203, %v8315
        %v8317 = vpop.f32.mrb[0].mxu0
        %v8318 = vadd.f32 %v8205, %v8317
        %8319 = vmatprep.mubr.bf16.mxu0 %v5871
        %8320 = vmatmul.mubr.bf16.gmra.mrb[0].mxu0 %v5870
        %v8321 = vpop.f32.mrb[0].mxu0
        %v8322 = vadd.f32 %v8209, %v8321
        %v8323 = vpop.f32.mrb[0].mxu0
        %v8324 = vadd.f32 %v8211, %v8323
        %v8325 = vpop.f32.mrb[0].mxu0
        %v8326 = vadd.f32 %v8213, %v8325
        %v8327 = vpop.f32.mrb[0].mxu0
        %v8328 = vadd.f32 %v8215, %v8327
        %8329 = vmatprep.mubr.bf16.mxu0 %v5887
        %8330 = vmatmul.mubr.bf16.gmra.mrb[0].mxu0 %v5886
        %v8331 = vpop.f32.mrb[0].mxu0
        %v8332 = vadd.f32 %v8219, %v8331
        %v8333 = vpop.f32.mrb[0].mxu0
        %v8334 = vadd.f32 %v8221, %v8333
        %v8335 = vpop.f32.mrb[0].mxu0
        %v8336 = vadd.f32 %v8223, %v8335
        %v8337 = vpop.f32.mrb[0].mxu0
        %v8338 = vadd.f32 %v8225, %v8337
        %8339 = vdwg.mxu0
        %8340 = vst [vmem:[%s342] sm:$0xff] %v8262
        %8341 = vst [vmem:[%s342 + $0x8] sm:$0xff] %v8264
        %8342 = vst [vmem:[%s342 + $0x10] sm:$0xff] %v8266
        %8343 = vst [vmem:[%s342 + $0x18] sm:$0xff] %v8268
        %8344 = vst [vmem:[%s342 + $0x20] sm:$0xff] %v8272
        %8345 = vst [vmem:[%s342 + $0x28] sm:$0xff] %v8274
        %8346 = vst [vmem:[%s342 + $0x30] sm:$0xff] %v8276
        %8347 = vst [vmem:[%s342 + $0x38] sm:$0xff] %v8278
        %8348 = vst [vmem:[%s342 + $0x40] sm:$0xff] %v8282
        %8349 = vst [vmem:[%s342 + $0x48] sm:$0xff] %v8284
        %8350 = vst [vmem:[%s342 + $0x50] sm:$0xff] %v8286
        %8351 = vst [vmem:[%s342 + $0x58] sm:$0xff] %v8288
        %8352 = vst [vmem:[%s342 + $0x60] sm:$0xff] %v8292
        %8353 = vst [vmem:[%s342 + $0x68] sm:$0xff] %v8294
        %8354 = vst [vmem:[%s342 + $0x70] sm:$0xff] %v8296
        %8355 = vst [vmem:[%s342 + $0x78] sm:$0xff] %v8298
        %8356 = vst [vmem:[%s342 + $0x80] sm:$0xff] %v8302
        %8357 = vst [vmem:[%s342 + $0x88] sm:$0xff] %v8304
        %8358 = vst [vmem:[%s342 + $0x90] sm:$0xff] %v8306
        %8359 = vst [vmem:[%s342 + $0x98] sm:$0xff] %v8308
        %8360 = vst [vmem:[%s342 + $0xa0] sm:$0xff] %v8312
        %8361 = vst [vmem:[%s342 + $0xa8] sm:$0xff] %v8314
        %8362 = vst [vmem:[%s342 + $0xb0] sm:$0xff] %v8316
        %8363 = vst [vmem:[%s342 + $0xb8] sm:$0xff] %v8318
        %8364 = vst [vmem:[%s342 + $0xc0] sm:$0xff] %v8322
        %8365 = vst [vmem:[%s342 + $0xc8] sm:$0xff] %v8324
        %8366 = vst [vmem:[%s342 + $0xd0] sm:$0xff] %v8326
        %8367 = vst [vmem:[%s342 + $0xd8] sm:$0xff] %v8328
        %8368 = vst [vmem:[%s342 + $0xe0] sm:$0xff] %v8332
        %8369 = vst [vmem:[%s342 + $0xe8] sm:$0xff] %v8334
        %8370 = vst [vmem:[%s342 + $0xf0] sm:$0xff] %v8336
        %8371 = vst [vmem:[%s342 + $0xf8] sm:$0xff] %v8338
        %s8372 = sand.u32 %s166, 1
        %s8373 = scalar_lea.sflag [#allocation4], %s8372
        %s8374 = sand.u32 %s166, 1
        %s8375 = smul.addr %s8374, 256
        %s8376 = scalar_lea.vmem [#allocation11], %s8375
        // Predicated region
        $region61: #{tpu_custom_call.1} parent=39 // pred_check
          %p8377 = pneg %p176
        $region62: #{tpu_custom_call.1} parent=39 // pred_check_branch
          %8379 = sbr.rel (%p8377) target = $region64
        $region63: #{tpu_custom_call.1} parent=39 // pred_region
          %s8380 = smul.u32 16, %s28
          %s8381 = smul.u32 2, %s29
          %s8383 = ssub.s32 4096, 4096
          %8384 = vsyncadd %s8373, %s8383
          %s8385 = smul.addr %s8380, 4
          %s8386 = sadd.s32 %s8381, %s8385
          %s8387 = smul.addr %s8386, 128
          %s8388 = scalar_lea.hbm %s5, %s8387
          %s8389 = sshll.u32 %s8376, 4
          %s8390 = int_to_ptr.vmem [resolvable:$true] %s8389
          %8395 = dma.vmem_to_hbm [thread:$0]  %s8390, 4096, %s8388, %s8373, 256, 512, 16
        $region64: #{tpu_custom_call.1} parent=39 // pred_fallthru
          _
      $region40: #{tpu_custom_call.1} parent=5 // pred_fallthru
        _
      %p8396 = scmp.le.s32.totalorder 2, %s19
      // Predicated region
      $region65: #{tpu_custom_call.1} parent=5 // pred_check
        %p8397 = pneg %p8396
      $region66: #{tpu_custom_call.1} parent=5 // pred_check_branch
        %8399 = sbr.rel (%p8397) target = $region68
      $region67: #{tpu_custom_call.1} parent=5 // pred_region
        %s8400 = ssub.s32 %s19, 2
        // Predicated region
        $region69: #{tpu_custom_call.1} parent=67 // pred_check
          %p8401 = pneg %p182
        $region70: #{tpu_custom_call.1} parent=67 // pred_check_branch
          %8403 = sbr.rel (%p8401) target = $region72
        $region71: #{tpu_custom_call.1} parent=67 // pred_region
          %s8404 = sand.u32 %s167, 1
          %s8405 = scalar_lea.sflag [#allocation4], %s8404
          %s8406 = sand.u32 %s167, 1
          %s8407 = smul.addr %s8406, 256
          %s8408 = scalar_lea.vmem [#allocation11], %s8407
          %8409 = dma.done %s8405, 4096
        $region72: #{tpu_custom_call.1} parent=67 // pred_fallthru
          _
      $region68: #{tpu_custom_call.1} parent=5 // pred_fallthru
        _
    $region6: #{tpu_custom_call.1} parent=1 // loop_footer
      %s23 = sadd.s32 1, %s19
    $region7: #{tpu_custom_call.1} parent=1 // loop_footer_branch
      %18 = sbr.rel target = $region3
    $region8: #{tpu_custom_call.1} parent=1 // loop_exit
      _
    %8410 = vsyncpa [#allocation3], 1
    %s8411 = scalar_lea.sflag [#allocation3], 1
    %8412 = vsyncpa %s8411, 1
    %8413 = vsyncpa [#allocation6], 1
    %8414 = vsyncpa [#allocation9], 1
    %s8415 = scalar_lea.sflag [#allocation9], 1
    %8416 = vsyncpa %s8415, 1
    %8417 = vsyncpa [#allocation4], 1
    %s8418 = scalar_lea.sflag [#allocation4], 1
    %8419 = vsyncpa %s8418, 1

</llo_original>
